<compile_context>
chip_gen: v7x
topology: tpu7x:2x2x1
jax: 0.10.0
libtpu: 0.0.40
codegen_flags: <defaults>
</compile_context>

<pallas_src>
import numpy as np
import jax
import jax.numpy as jnp
from jax.experimental import pallas as pl
from jax.experimental.pallas import tpu as pltpu

# ----------------------------- config (Encoder_SEQ) --------------------------
VOCAB_SIZE = 50
D_EMBEDDING = 32          # d_embedding
D_HIDDEN = 32             # d_hidden
N_LAYERS = 2              # n_layers
N_DIRECTIONS = 1          # bidirec = False
I_PADDING = 0             # i_padding
EOS_ID = 1                # tokenizer.eos_id
N_ENC_SEQ_CLASS = 8       # n_enc_seq_class (== input seq length here)
# p_dropout is irrelevant at inference (identity).

BATCH = 2
SEQ = 8


# ------------------------------ Pallas kernel --------------------------------
def gru_encoder_kernel(gi0_ref, mask_ref, whh0_ref, bhn0_ref,
                       wcat_ref, ba_ref, bhn_ref, out_ref, hid_ref):
    """Fused multi-layer GRU recurrence over the whole (time-major) batch.

    gi0_ref : (T, B, 3H) precomputed layer-0 input projection; r/z columns
              already include b_ih0_rz + b_hh0_rz, n column includes b_ih0_n.
    mask_ref: (T, B, 1)  1.0 while t < packed length of the row, else 0.0
    whh0_ref: (H, 3H)    layer-0 hidden->gates weights (gate order r, z, n)
    bhn0_ref: (1, H)     layer-0 b_hh_n
    wcat_ref: (L-1, 2H, 4H) fused [x|h]->[r|z|n_in|n_h] weights, layers 1..L-1
    ba_ref  : (L-1, 1, 3H)  merged bias  [b_ih_r+b_hh_r | b_ih_z+b_hh_z | b_ih_n]
    bhn_ref : (L-1, 1, H)   b_hh_n for layers 1..L-1
    out_ref : (T, B, H)  top-layer hidden per step (zero past the length)
    hid_ref : (L, B, H)  final hidden of every layer (at each row's last step)
    """
    T = gi0_ref.shape[0]
    B = gi0_ref.shape[1]
    H = D_HIDDEN
    L = N_LAYERS
    HI = jax.lax.Precision.HIGHEST

    # Parameter loads + bias broadcasts hoisted out of the unrolled T*L body.
    whh0 = whh0_ref[...]                                             # (H, 3H)
    bhn0 = jnp.broadcast_to(bhn0_ref[...], (B, H))
    wcat = [wcat_ref[l] for l in range(L - 1)]                       # (2H, 4H)
    ba = [jnp.broadcast_to(ba_ref[l], (B, 3 * H)) for l in range(L - 1)]
    bhn = [jnp.broadcast_to(bhn_ref[l], (B, H)) for l in range(L - 1)]

    # Initial hidden state is zeros (initHidden in the reference).
    h = [jnp.zeros((B, H), jnp.float32) for _ in range(L)]
    outs = []

    for t in range(T):                       # static unroll over timesteps
        m = mask_ref[t]                      # (B, 1)
        keep = 1.0 - m

        # ---- layer 0: input projection precomputed; only h @ Whh on the chain
        gi = gi0_ref[t]                                              # (B, 3H)
        gh = jnp.dot(h[0], whh0, preferred_element_type=jnp.float32,
                     precision=HI)                                   # (B, 3H)
        rz = jax.nn.sigmoid(gi[:, :2 * H] + gh[:, :2 * H])           # one EUP pass
        r, z = rz[:, :H], rz[:, H:]
        n = jnp.tanh(gi[:, 2 * H:] + r * (gh[:, 2 * H:] + bhn0))
        h_new = (1.0 - z) * n + z * h[0]
        h[0] = m * h_new + keep * h[0]       # freeze past packed length
        x = h[0]

        # ---- layers 1..L-1: ONE fused (B,2H) @ (2H,4H) matmul per layer-step
        for l in range(1, L):
            g = jnp.dot(jnp.concatenate([x, h[l]], axis=1), wcat[l - 1],
                        preferred_element_type=jnp.float32,
                        precision=HI)                                # (B, 4H)
            a = g[:, :3 * H] + ba[l - 1]
            rz = jax.nn.sigmoid(a[:, :2 * H])
            r, z = rz[:, :H], rz[:, H:]
            n = jnp.tanh(a[:, 2 * H:] + r * (g[:, 3 * H:] + bhn[l - 1]))
            h_new = (1.0 - z) * n + z * h[l]
            h[l] = m * h_new + keep * h[l]
            x = h[l]

        # pad_packed_sequence zero-pads output beyond the length.
        outs.append(m * h[L - 1])

    # Single bulk stores instead of T masked (B, H) partial stores.
    out_ref[...] = jnp.stack(outs, axis=0)
    hid_ref[...] = jnp.stack(h, axis=0)


def run_gru_encoder(gi0_t, mask_t, whh0, bhn0, wcat, ba, bhn):
    """gi0_t: (T,B,3H) f32, mask_t: (T,B,1) f32. Returns (out_t (T,B,H), hid (L,B,H))."""
    T, B, _ = gi0_t.shape
    H, L = D_HIDDEN, N_LAYERS

    def _full_spec(shape):
        nd = len(shape)
        return pl.BlockSpec(shape, lambda i, nd=nd: (0,) * nd)

    args = (gi0_t, mask_t, whh0, bhn0, wcat, ba, bhn)
    in_specs = [_full_spec(a.shape) for a in args]
    out_specs = [_full_spec((T, B, H)), _full_spec((L, B, H))]
    out_shapes = (jax.ShapeDtypeStruct((T, B, H), jnp.float32),
                  jax.ShapeDtypeStruct((L, B, H), jnp.float32))

    return pl.pallas_call(
        gru_encoder_kernel,
        out_shape=out_shapes,
        grid=(1,),                           # single fused step: everything in VMEM
        in_specs=in_specs,
        out_specs=out_specs,
        compiler_params=pltpu.CompilerParams(
            dimension_semantics=("arbitrary",)),
    )(*args)


# ------------------------------- full forward --------------------------------
@jax.jit
def encoder_seq_forward(input_ids, embedding, w_ih, w_hh, b_ih, b_hh):
    """Mirrors Encoder_SEQ.forward (eval mode). Returns (output, hidden)."""
    B, T = input_ids.shape
    H, L = D_HIDDEN, N_LAYERS
    HI = jax.lax.Precision.HIGHEST

    # embedding + dropout (identity at eval)
    embedded = jnp.take(embedding, input_ids, axis=0).astype(jnp.float32)   # (B,T,E)

    # batch_lengths = EOS position per row; sort descending (torch.sort(descending=True)).
    # NOTE: a row with no EOS yields length 0 (row fully masked); PyTorch would raise.
    lengths = jnp.argmax(input_ids == EOS_ID, axis=1).astype(jnp.int32)     # (B,)
    sorted_idxs = jnp.argsort(-lengths)
    sorted_lengths = jnp.take(lengths, sorted_idxs)

    # pack_padded_sequence(embedded, sorted_lengths): row b is processed for
    # sorted_lengths[b] steps (the reference packs the *unsorted* embeddings).
    step_mask = (jnp.arange(T, dtype=jnp.int32)[None, :]
                 < sorted_lengths[:, None]).astype(jnp.float32)             # (B,T)

    # time-major layouts so the kernel only needs leading-axis ref indexing
    emb_t = jnp.transpose(embedded, (1, 0, 2))                              # (T,B,E)
    mask_t = jnp.transpose(step_mask, (1, 0))[:, :, None]                   # (T,B,1)

    # ---- layer-0 input projection hoisted off the recurrent critical path ----
    # rz columns carry b_ih0_rz + b_hh0_rz, n column carries b_ih0_n only.
    b0 = jnp.concatenate([b_ih[0, :, :2 * H] + b_hh[0, :, :2 * H],
                          b_ih[0, :, 2 * H:]], axis=1)                      # (1, 3H)
    gi0_t = jnp.einsum('tbe,eg->tbg', emb_t, w_ih[0],
                       precision=HI) + b0[None]                             # (T,B,3H)
    whh0 = w_hh[0]                                                          # (H, 3H)
    bhn0 = b_hh[0, :, 2 * H:]                                               # (1, H)

    # ---- fused [x|h] weights for layers 1..L-1: columns [r | z | n_in | n_h] ----
    zer = jnp.zeros((L - 1, H, H), jnp.float32)
    wcat = jnp.concatenate([
        jnp.concatenate([w_ih[1:, :, :2 * H], w_hh[1:, :, :2 * H]], axis=1),  # rz
        jnp.concatenate([w_ih[1:, :, 2 * H:], zer], axis=1),                  # n_in
        jnp.concatenate([zer, w_hh[1:, :, 2 * H:]], axis=1),                  # n_h
    ], axis=2)                                                              # (L-1,2H,4H)
    ba = jnp.concatenate([b_ih[1:, :, :2 * H] + b_hh[1:, :, :2 * H],
                          b_ih[1:, :, 2 * H:]], axis=2)                     # (L-1,1,3H)
    bhn = b_hh[1:, :, 2 * H:]                                               # (L-1,1,H)

    out_t, hidden = run_gru_encoder(gi0_t, mask_t, whh0, bhn0, wcat, ba, bhn)

    # pad_packed_sequence(total_length=n_enc_seq_class) + restore original order
    padded_output = jnp.transpose(out_t, (1, 0, 2))                         # (B,T,H)
    reversed_idxs = jnp.argsort(sorted_idxs)
    output = jnp.take(padded_output, reversed_idxs, axis=0)
    # NOTE: the reference returns `hidden` without unsorting; we match that.
    return output, hidden


# --------------------------- parameter initialization ------------------------
def init_params(key):
    # The stacked (L, E, 3H) input-weight layout requires E == H for layers >= 1
    # (matches nn.GRU, whose upper layers take H-sized inputs).
    assert D_EMBEDDING == D_HIDDEN, "stacked w_ih packing assumes d_embedding == d_hidden"
    k_emb, k_wih, k_whh, k_bih, k_bhh = jax.random.split(key, 5)
    scale = 1.0 / np.sqrt(D_HIDDEN)
    embedding = jax.random.normal(k_emb, (VOCAB_SIZE, D_EMBEDDING), jnp.float32)
    embedding = embedding.at[I_PADDING].set(0.0)     # padding_idx row
    # gate order [r, z, n]; stored transposed ((in, 3H)) so x @ W works directly.
    w_ih = jax.random.uniform(k_wih, (N_LAYERS, D_EMBEDDING, 3 * D_HIDDEN),
                              jnp.float32, -scale, scale)
    w_hh = jax.random.uniform(k_whh, (N_LAYERS, D_HIDDEN, 3 * D_HIDDEN),
                              jnp.float32, -scale, scale)
    b_ih = jax.random.uniform(k_bih, (N_LAYERS, 1, 3 * D_HIDDEN),
                              jnp.float32, -scale, scale)
    b_hh = jax.random.uniform(k_bhh, (N_LAYERS, 1, 3 * D_HIDDEN),
                              jnp.float32, -scale, scale)
    return embedding, w_ih, w_hh, b_ih, b_hh


# ------------------------------------ main ------------------------------------
if __name__ == "__main__":
    key = jax.random.PRNGKey(0)
    k_tok, k_params = jax.random.split(key, 2)

    # token ids in [2, VOCAB) so pad(0)/eos(1) only appear where we place them;
    # exactly one EOS per row, padding after it (lengths 7 and 5, descending).
    input_ids = jax.random.randint(k_tok, (BATCH, SEQ), 2, VOCAB_SIZE, dtype=jnp.int32)
    input_ids = input_ids.at[0, 7].set(EOS_ID)
    input_ids = input_ids.at[1, 5].set(EOS_ID)
    input_ids = input_ids.at[1, 6:].set(I_PADDING)

    embedding, w_ih, w_hh, b_ih, b_hh = init_params(k_params)

    output, hidden = encoder_seq_forward(input_ids, embedding, w_ih, w_hh, b_ih, b_hh)
    output = jax.block_until_ready(output)
    hidden = jax.block_until_ready(hidden)

    assert output.shape == (BATCH, N_ENC_SEQ_CLASS, D_HIDDEN * N_DIRECTIONS)
    assert hidden.shape == (N_LAYERS * N_DIRECTIONS, BATCH, D_HIDDEN)
    assert bool(jnp.all(jnp.isfinite(output)))
    assert bool(jnp.all(jnp.isfinite(hidden)))
    # pad_packed_sequence zero-pads past each row's packed length
    assert bool(jnp.all(output[0, 7:] == 0.0))
    assert bool(jnp.all(output[1, 5:] == 0.0))
    print("KERNEL_OK")
</pallas_src>

<mosaic_0001>
module attributes {stable_mosaic.version = 11 : i64} {
  func.func @gru_encoder_kernel(%arg0: i32, %arg1: memref<8x2x96xf32, #tpu.memory_space<vmem>>, %arg2: memref<8x2x1xf32, #tpu.memory_space<vmem>>, %arg3: memref<32x96xf32, #tpu.memory_space<vmem>>, %arg4: memref<1x32xf32, #tpu.memory_space<vmem>>, %arg5: memref<1x64x128xf32, #tpu.memory_space<vmem>>, %arg6: memref<1x1x96xf32, #tpu.memory_space<vmem>>, %arg7: memref<1x1x32xf32, #tpu.memory_space<vmem>>, %arg8: memref<8x2x32xf32, #tpu.memory_space<vmem>>, %arg9: memref<2x2x32xf32, #tpu.memory_space<vmem>>) attributes {dimension_semantics = [#tpu.dimension_semantics<arbitrary>], iteration_bounds = array<i64: 1>, scalar_prefetch = 0 : i64, scratch_operands = 0 : i64, tpu.core_type = #tpu.core_type<tc>, window_params = [{pipeline_mode = #tpu.pipeline_mode<synchronous>, transform_indices = @transform_0, window_bounds = array<i64: 8, 2, 96>}, {pipeline_mode = #tpu.pipeline_mode<synchronous>, transform_indices = @transform_1, window_bounds = array<i64: 8, 2, 1>}, {pipeline_mode = #tpu.pipeline_mode<synchronous>, transform_indices = @transform_2, window_bounds = array<i64: 32, 96>}, {pipeline_mode = #tpu.pipeline_mode<synchronous>, transform_indices = @transform_3, window_bounds = array<i64: 1, 32>}, {pipeline_mode = #tpu.pipeline_mode<synchronous>, transform_indices = @transform_4, window_bounds = array<i64: 1, 64, 128>}, {pipeline_mode = #tpu.pipeline_mode<synchronous>, transform_indices = @transform_5, window_bounds = array<i64: 1, 1, 96>}, {pipeline_mode = #tpu.pipeline_mode<synchronous>, transform_indices = @transform_6, window_bounds = array<i64: 1, 1, 32>}, {pipeline_mode = #tpu.pipeline_mode<synchronous>, transform_indices = @transform_7, window_bounds = array<i64: 8, 2, 32>}, {pipeline_mode = #tpu.pipeline_mode<synchronous>, transform_indices = @transform_8, window_bounds = array<i64: 2, 2, 32>}]} {
    %c0 = arith.constant 0 : index
    %c0_0 = arith.constant 0 : index
    %0 = vector.load %arg3[%c0, %c0_0] : memref<32x96xf32, #tpu.memory_space<vmem>>, vector<32x96xf32>
    %c0_1 = arith.constant 0 : index
    %c0_2 = arith.constant 0 : index
    %1 = vector.load %arg4[%c0_1, %c0_2] : memref<1x32xf32, #tpu.memory_space<vmem>>, vector<1x32xf32>
    %2 = vector.shape_cast %1 : vector<1x32xf32> to vector<1x32xf32>
    %3 = vector.broadcast %2 : vector<1x32xf32> to vector<2x32xf32>
    %c0_3 = arith.constant 0 : index
    %c0_4 = arith.constant 0 : index
    %c0_5 = arith.constant 0 : index
    %4 = vector.load %arg5[%c0_3, %c0_4, %c0_5] : memref<1x64x128xf32, #tpu.memory_space<vmem>>, vector<1x64x128xf32>
    %5 = vector.shape_cast %4 : vector<1x64x128xf32> to vector<64x128xf32>
    %c0_6 = arith.constant 0 : index
    %c0_7 = arith.constant 0 : index
    %c0_8 = arith.constant 0 : index
    %6 = vector.load %arg6[%c0_6, %c0_7, %c0_8] : memref<1x1x96xf32, #tpu.memory_space<vmem>>, vector<1x1x96xf32>
    %7 = vector.shape_cast %6 : vector<1x1x96xf32> to vector<1x96xf32>
    %8 = vector.shape_cast %7 : vector<1x96xf32> to vector<1x96xf32>
    %9 = vector.broadcast %8 : vector<1x96xf32> to vector<2x96xf32>
    %c0_9 = arith.constant 0 : index
    %c0_10 = arith.constant 0 : index
    %c0_11 = arith.constant 0 : index
    %10 = vector.load %arg7[%c0_9, %c0_10, %c0_11] : memref<1x1x32xf32, #tpu.memory_space<vmem>>, vector<1x1x32xf32>
    %11 = vector.shape_cast %10 : vector<1x1x32xf32> to vector<1x32xf32>
    %12 = vector.shape_cast %11 : vector<1x32xf32> to vector<1x32xf32>
    %13 = vector.broadcast %12 : vector<1x32xf32> to vector<2x32xf32>
    %cst = arith.constant 0.000000e+00 : f32
    %14 = vector.broadcast %cst : f32 to vector<2x32xf32>
    %cst_12 = arith.constant 0.000000e+00 : f32
    %15 = vector.broadcast %cst_12 : f32 to vector<2x32xf32>
    %c0_13 = arith.constant 0 : index
    %c0_14 = arith.constant 0 : index
    %c0_15 = arith.constant 0 : index
    %16 = vector.load %arg2[%c0_13, %c0_14, %c0_15] : memref<8x2x1xf32, #tpu.memory_space<vmem>>, vector<1x2x1xf32>
    %17 = vector.shape_cast %16 : vector<1x2x1xf32> to vector<2x1xf32>
    %cst_16 = arith.constant 1.000000e+00 : f32
    %18 = vector.broadcast %cst_16 : f32 to vector<2x1xf32>
    %19 = arith.subf %18, %17 : vector<2x1xf32>
    %c0_17 = arith.constant 0 : index
    %c0_18 = arith.constant 0 : index
    %c0_19 = arith.constant 0 : index
    %20 = vector.load %arg1[%c0_17, %c0_18, %c0_19] : memref<8x2x96xf32, #tpu.memory_space<vmem>>, vector<1x2x96xf32>
    %21 = vector.shape_cast %20 : vector<1x2x96xf32> to vector<2x96xf32>
    %cst_20 = arith.constant dense<0.000000e+00> : vector<2x96xf32>
    %22 = tpu.matmul %14, %0, %cst_20 {dimension_numbers = #tpu.dot_dimension_numbers<[1], [0], [0], [1], [0, 0, 1, 1], [], []>, precision = #tpu.contract_precision<fp32>} : vector<2x32xf32>, vector<32x96xf32>, vector<2x96xf32> -> vector<2x96xf32>
    %23 = vector.extract_strided_slice %21 {offsets = [0, 0], sizes = [2, 64], strides = [1, 1]} : vector<2x96xf32> to vector<2x64xf32>
    %24 = vector.extract_strided_slice %22 {offsets = [0, 0], sizes = [2, 64], strides = [1, 1]} : vector<2x96xf32> to vector<2x64xf32>
    %25 = arith.addf %23, %24 : vector<2x64xf32>
    %26 = arith.negf %25 : vector<2x64xf32>
    %27 = math.exp %26 : vector<2x64xf32>
    %cst_21 = arith.constant 1.000000e+00 : f32
    %28 = vector.broadcast %cst_21 : f32 to vector<2x64xf32>
    %29 = arith.addf %28, %27 : vector<2x64xf32>
    %30 = arith.divf %28, %29 : vector<2x64xf32>
    %31 = vector.extract_strided_slice %30 {offsets = [0, 0], sizes = [2, 32], strides = [1, 1]} : vector<2x64xf32> to vector<2x32xf32>
    %32 = vector.extract_strided_slice %30 {offsets = [0, 32], sizes = [2, 32], strides = [1, 1]} : vector<2x64xf32> to vector<2x32xf32>
    %33 = vector.extract_strided_slice %21 {offsets = [0, 64], sizes = [2, 32], strides = [1, 1]} : vector<2x96xf32> to vector<2x32xf32>
    %34 = vector.extract_strided_slice %22 {offsets = [0, 64], sizes = [2, 32], strides = [1, 1]} : vector<2x96xf32> to vector<2x32xf32>
    %35 = arith.addf %34, %3 : vector<2x32xf32>
    %36 = arith.mulf %31, %35 : vector<2x32xf32>
    %37 = arith.addf %33, %36 : vector<2x32xf32>
    %38 = math.tanh %37 : vector<2x32xf32>
    %cst_22 = arith.constant 1.000000e+00 : f32
    %39 = vector.broadcast %cst_22 : f32 to vector<2x32xf32>
    %40 = arith.subf %39, %32 : vector<2x32xf32>
    %41 = arith.mulf %40, %38 : vector<2x32xf32>
    %42 = arith.mulf %32, %14 : vector<2x32xf32>
    %43 = arith.addf %41, %42 : vector<2x32xf32>
    %44 = vector.broadcast %17 : vector<2x1xf32> to vector<2x32xf32>
    %45 = arith.mulf %44, %43 : vector<2x32xf32>
    %46 = vector.broadcast %19 : vector<2x1xf32> to vector<2x32xf32>
    %47 = arith.mulf %46, %14 : vector<2x32xf32>
    %48 = arith.addf %45, %47 : vector<2x32xf32>
    %49 = tpu.concatenate %48, %15 in 1 : vector<2x32xf32>, vector<2x32xf32> -> vector<2x64xf32>
    %cst_23 = arith.constant dense<0.000000e+00> : vector<2x128xf32>
    %50 = tpu.matmul %49, %5, %cst_23 {dimension_numbers = #tpu.dot_dimension_numbers<[1], [0], [0], [1], [0, 0, 1, 1], [], []>, precision = #tpu.contract_precision<fp32>} : vector<2x64xf32>, vector<64x128xf32>, vector<2x128xf32> -> vector<2x128xf32>
    %51 = vector.extract_strided_slice %50 {offsets = [0, 0], sizes = [2, 96], strides = [1, 1]} : vector<2x128xf32> to vector<2x96xf32>
    %52 = arith.addf %51, %9 : vector<2x96xf32>
    %53 = vector.extract_strided_slice %52 {offsets = [0, 0], sizes = [2, 64], strides = [1, 1]} : vector<2x96xf32> to vector<2x64xf32>
    %54 = arith.negf %53 : vector<2x64xf32>
    %55 = math.exp %54 : vector<2x64xf32>
    %cst_24 = arith.constant 1.000000e+00 : f32
    %56 = vector.broadcast %cst_24 : f32 to vector<2x64xf32>
    %57 = arith.addf %56, %55 : vector<2x64xf32>
    %58 = arith.divf %56, %57 : vector<2x64xf32>
    %59 = vector.extract_strided_slice %58 {offsets = [0, 0], sizes = [2, 32], strides = [1, 1]} : vector<2x64xf32> to vector<2x32xf32>
    %60 = vector.extract_strided_slice %58 {offsets = [0, 32], sizes = [2, 32], strides = [1, 1]} : vector<2x64xf32> to vector<2x32xf32>
    %61 = vector.extract_strided_slice %52 {offsets = [0, 64], sizes = [2, 32], strides = [1, 1]} : vector<2x96xf32> to vector<2x32xf32>
    %62 = vector.extract_strided_slice %50 {offsets = [0, 96], sizes = [2, 32], strides = [1, 1]} : vector<2x128xf32> to vector<2x32xf32>
    %63 = arith.addf %62, %13 : vector<2x32xf32>
    %64 = arith.mulf %59, %63 : vector<2x32xf32>
    %65 = arith.addf %61, %64 : vector<2x32xf32>
    %66 = math.tanh %65 : vector<2x32xf32>
    %cst_25 = arith.constant 1.000000e+00 : f32
    %67 = vector.broadcast %cst_25 : f32 to vector<2x32xf32>
    %68 = arith.subf %67, %60 : vector<2x32xf32>
    %69 = arith.mulf %68, %66 : vector<2x32xf32>
    %70 = arith.mulf %60, %15 : vector<2x32xf32>
    %71 = arith.addf %69, %70 : vector<2x32xf32>
    %72 = vector.broadcast %17 : vector<2x1xf32> to vector<2x32xf32>
    %73 = arith.mulf %72, %71 : vector<2x32xf32>
    %74 = vector.broadcast %19 : vector<2x1xf32> to vector<2x32xf32>
    %75 = arith.mulf %74, %15 : vector<2x32xf32>
    %76 = arith.addf %73, %75 : vector<2x32xf32>
    %77 = vector.broadcast %17 : vector<2x1xf32> to vector<2x32xf32>
    %78 = arith.mulf %77, %76 : vector<2x32xf32>
    %c1 = arith.constant 1 : index
    %c0_26 = arith.constant 0 : index
    %c0_27 = arith.constant 0 : index
    %79 = vector.load %arg2[%c1, %c0_26, %c0_27] : memref<8x2x1xf32, #tpu.memory_space<vmem>>, vector<1x2x1xf32>
    %80 = vector.shape_cast %79 : vector<1x2x1xf32> to vector<2x1xf32>
    %cst_28 = arith.constant 1.000000e+00 : f32
    %81 = vector.broadcast %cst_28 : f32 to vector<2x1xf32>
    %82 = arith.subf %81, %80 : vector<2x1xf32>
    %c1_29 = arith.constant 1 : index
    %c0_30 = arith.constant 0 : index
    %c0_31 = arith.constant 0 : index
    %83 = vector.load %arg1[%c1_29, %c0_30, %c0_31] : memref<8x2x96xf32, #tpu.memory_space<vmem>>, vector<1x2x96xf32>
    %84 = vector.shape_cast %83 : vector<1x2x96xf32> to vector<2x96xf32>
    %cst_32 = arith.constant dense<0.000000e+00> : vector<2x96xf32>
    %85 = tpu.matmul %48, %0, %cst_32 {dimension_numbers = #tpu.dot_dimension_numbers<[1], [0], [0], [1], [0, 0, 1, 1], [], []>, precision = #tpu.contract_precision<fp32>} : vector<2x32xf32>, vector<32x96xf32>, vector<2x96xf32> -> vector<2x96xf32>
    %86 = vector.extract_strided_slice %84 {offsets = [0, 0], sizes = [2, 64], strides = [1, 1]} : vector<2x96xf32> to vector<2x64xf32>
    %87 = vector.extract_strided_slice %85 {offsets = [0, 0], sizes = [2, 64], strides = [1, 1]} : vector<2x96xf32> to vector<2x64xf32>
    %88 = arith.addf %86, %87 : vector<2x64xf32>
    %89 = arith.negf %88 : vector<2x64xf32>
    %90 = math.exp %89 : vector<2x64xf32>
    %cst_33 = arith.constant 1.000000e+00 : f32
    %91 = vector.broadcast %cst_33 : f32 to vector<2x64xf32>
    %92 = arith.addf %91, %90 : vector<2x64xf32>
    %93 = arith.divf %91, %92 : vector<2x64xf32>
    %94 = vector.extract_strided_slice %93 {offsets = [0, 0], sizes = [2, 32], strides = [1, 1]} : vector<2x64xf32> to vector<2x32xf32>
    %95 = vector.extract_strided_slice %93 {offsets = [0, 32], sizes = [2, 32], strides = [1, 1]} : vector<2x64xf32> to vector<2x32xf32>
    %96 = vector.extract_strided_slice %84 {offsets = [0, 64], sizes = [2, 32], strides = [1, 1]} : vector<2x96xf32> to vector<2x32xf32>
    %97 = vector.extract_strided_slice %85 {offsets = [0, 64], sizes = [2, 32], strides = [1, 1]} : vector<2x96xf32> to vector<2x32xf32>
    %98 = arith.addf %97, %3 : vector<2x32xf32>
    %99 = arith.mulf %94, %98 : vector<2x32xf32>
    %100 = arith.addf %96, %99 : vector<2x32xf32>
    %101 = math.tanh %100 : vector<2x32xf32>
    %cst_34 = arith.constant 1.000000e+00 : f32
    %102 = vector.broadcast %cst_34 : f32 to vector<2x32xf32>
    %103 = arith.subf %102, %95 : vector<2x32xf32>
    %104 = arith.mulf %103, %101 : vector<2x32xf32>
    %105 = arith.mulf %95, %48 : vector<2x32xf32>
    %106 = arith.addf %104, %105 : vector<2x32xf32>
    %107 = vector.broadcast %80 : vector<2x1xf32> to vector<2x32xf32>
    %108 = arith.mulf %107, %106 : vector<2x32xf32>
    %109 = vector.broadcast %82 : vector<2x1xf32> to vector<2x32xf32>
    %110 = arith.mulf %109, %48 : vector<2x32xf32>
    %111 = arith.addf %108, %110 : vector<2x32xf32>
    %112 = tpu.concatenate %111, %76 in 1 : vector<2x32xf32>, vector<2x32xf32> -> vector<2x64xf32>
    %cst_35 = arith.constant dense<0.000000e+00> : vector<2x128xf32>
    %113 = tpu.matmul %112, %5, %cst_35 {dimension_numbers = #tpu.dot_dimension_numbers<[1], [0], [0], [1], [0, 0, 1, 1], [], []>, precision = #tpu.contract_precision<fp32>} : vector<2x64xf32>, vector<64x128xf32>, vector<2x128xf32> -> vector<2x128xf32>
    %114 = vector.extract_strided_slice %113 {offsets = [0, 0], sizes = [2, 96], strides = [1, 1]} : vector<2x128xf32> to vector<2x96xf32>
    %115 = arith.addf %114, %9 : vector<2x96xf32>
    %116 = vector.extract_strided_slice %115 {offsets = [0, 0], sizes = [2, 64], strides = [1, 1]} : vector<2x96xf32> to vector<2x64xf32>
    %117 = arith.negf %116 : vector<2x64xf32>
    %118 = math.exp %117 : vector<2x64xf32>
    %cst_36 = arith.constant 1.000000e+00 : f32
    %119 = vector.broadcast %cst_36 : f32 to vector<2x64xf32>
    %120 = arith.addf %119, %118 : vector<2x64xf32>
    %121 = arith.divf %119, %120 : vector<2x64xf32>
    %122 = vector.extract_strided_slice %121 {offsets = [0, 0], sizes = [2, 32], strides = [1, 1]} : vector<2x64xf32> to vector<2x32xf32>
    %123 = vector.extract_strided_slice %121 {offsets = [0, 32], sizes = [2, 32], strides = [1, 1]} : vector<2x64xf32> to vector<2x32xf32>
    %124 = vector.extract_strided_slice %115 {offsets = [0, 64], sizes = [2, 32], strides = [1, 1]} : vector<2x96xf32> to vector<2x32xf32>
    %125 = vector.extract_strided_slice %113 {offsets = [0, 96], sizes = [2, 32], strides = [1, 1]} : vector<2x128xf32> to vector<2x32xf32>
    %126 = arith.addf %125, %13 : vector<2x32xf32>
    %127 = arith.mulf %122, %126 : vector<2x32xf32>
    %128 = arith.addf %124, %127 : vector<2x32xf32>
    %129 = math.tanh %128 : vector<2x32xf32>
    %cst_37 = arith.constant 1.000000e+00 : f32
    %130 = vector.broadcast %cst_37 : f32 to vector<2x32xf32>
    %131 = arith.subf %130, %123 : vector<2x32xf32>
    %132 = arith.mulf %131, %129 : vector<2x32xf32>
    %133 = arith.mulf %123, %76 : vector<2x32xf32>
    %134 = arith.addf %132, %133 : vector<2x32xf32>
    %135 = vector.broadcast %80 : vector<2x1xf32> to vector<2x32xf32>
    %136 = arith.mulf %135, %134 : vector<2x32xf32>
    %137 = vector.broadcast %82 : vector<2x1xf32> to vector<2x32xf32>
    %138 = arith.mulf %137, %76 : vector<2x32xf32>
    %139 = arith.addf %136, %138 : vector<2x32xf32>
    %140 = vector.broadcast %80 : vector<2x1xf32> to vector<2x32xf32>
    %141 = arith.mulf %140, %139 : vector<2x32xf32>
    %c2 = arith.constant 2 : index
    %c0_38 = arith.constant 0 : index
    %c0_39 = arith.constant 0 : index
    %142 = vector.load %arg2[%c2, %c0_38, %c0_39] : memref<8x2x1xf32, #tpu.memory_space<vmem>>, vector<1x2x1xf32>
    %143 = vector.shape_cast %142 : vector<1x2x1xf32> to vector<2x1xf32>
    %cst_40 = arith.constant 1.000000e+00 : f32
    %144 = vector.broadcast %cst_40 : f32 to vector<2x1xf32>
    %145 = arith.subf %144, %143 : vector<2x1xf32>
    %c2_41 = arith.constant 2 : index
    %c0_42 = arith.constant 0 : index
    %c0_43 = arith.constant 0 : index
    %146 = vector.load %arg1[%c2_41, %c0_42, %c0_43] : memref<8x2x96xf32, #tpu.memory_space<vmem>>, vector<1x2x96xf32>
    %147 = vector.shape_cast %146 : vector<1x2x96xf32> to vector<2x96xf32>
    %cst_44 = arith.constant dense<0.000000e+00> : vector<2x96xf32>
    %148 = tpu.matmul %111, %0, %cst_44 {dimension_numbers = #tpu.dot_dimension_numbers<[1], [0], [0], [1], [0, 0, 1, 1], [], []>, precision = #tpu.contract_precision<fp32>} : vector<2x32xf32>, vector<32x96xf32>, vector<2x96xf32> -> vector<2x96xf32>
    %149 = vector.extract_strided_slice %147 {offsets = [0, 0], sizes = [2, 64], strides = [1, 1]} : vector<2x96xf32> to vector<2x64xf32>
    %150 = vector.extract_strided_slice %148 {offsets = [0, 0], sizes = [2, 64], strides = [1, 1]} : vector<2x96xf32> to vector<2x64xf32>
    %151 = arith.addf %149, %150 : vector<2x64xf32>
    %152 = arith.negf %151 : vector<2x64xf32>
    %153 = math.exp %152 : vector<2x64xf32>
    %cst_45 = arith.constant 1.000000e+00 : f32
    %154 = vector.broadcast %cst_45 : f32 to vector<2x64xf32>
    %155 = arith.addf %154, %153 : vector<2x64xf32>
    %156 = arith.divf %154, %155 : vector<2x64xf32>
    %157 = vector.extract_strided_slice %156 {offsets = [0, 0], sizes = [2, 32], strides = [1, 1]} : vector<2x64xf32> to vector<2x32xf32>
    %158 = vector.extract_strided_slice %156 {offsets = [0, 32], sizes = [2, 32], strides = [1, 1]} : vector<2x64xf32> to vector<2x32xf32>
    %159 = vector.extract_strided_slice %147 {offsets = [0, 64], sizes = [2, 32], strides = [1, 1]} : vector<2x96xf32> to vector<2x32xf32>
    %160 = vector.extract_strided_slice %148 {offsets = [0, 64], sizes = [2, 32], strides = [1, 1]} : vector<2x96xf32> to vector<2x32xf32>
    %161 = arith.addf %160, %3 : vector<2x32xf32>
    %162 = arith.mulf %157, %161 : vector<2x32xf32>
    %163 = arith.addf %159, %162 : vector<2x32xf32>
    %164 = math.tanh %163 : vector<2x32xf32>
    %cst_46 = arith.constant 1.000000e+00 : f32
    %165 = vector.broadcast %cst_46 : f32 to vector<2x32xf32>
    %166 = arith.subf %165, %158 : vector<2x32xf32>
    %167 = arith.mulf %166, %164 : vector<2x32xf32>
    %168 = arith.mulf %158, %111 : vector<2x32xf32>
    %169 = arith.addf %167, %168 : vector<2x32xf32>
    %170 = vector.broadcast %143 : vector<2x1xf32> to vector<2x32xf32>
    %171 = arith.mulf %170, %169 : vector<2x32xf32>
    %172 = vector.broadcast %145 : vector<2x1xf32> to vector<2x32xf32>
    %173 = arith.mulf %172, %111 : vector<2x32xf32>
    %174 = arith.addf %171, %173 : vector<2x32xf32>
    %175 = tpu.concatenate %174, %139 in 1 : vector<2x32xf32>, vector<2x32xf32> -> vector<2x64xf32>
    %cst_47 = arith.constant dense<0.000000e+00> : vector<2x128xf32>
    %176 = tpu.matmul %175, %5, %cst_47 {dimension_numbers = #tpu.dot_dimension_numbers<[1], [0], [0], [1], [0, 0, 1, 1], [], []>, precision = #tpu.contract_precision<fp32>} : vector<2x64xf32>, vector<64x128xf32>, vector<2x128xf32> -> vector<2x128xf32>
    %177 = vector.extract_strided_slice %176 {offsets = [0, 0], sizes = [2, 96], strides = [1, 1]} : vector<2x128xf32> to vector<2x96xf32>
    %178 = arith.addf %177, %9 : vector<2x96xf32>
    %179 = vector.extract_strided_slice %178 {offsets = [0, 0], sizes = [2, 64], strides = [1, 1]} : vector<2x96xf32> to vector<2x64xf32>
    %180 = arith.negf %179 : vector<2x64xf32>
    %181 = math.exp %180 : vector<2x64xf32>
    %cst_48 = arith.constant 1.000000e+00 : f32
    %182 = vector.broadcast %cst_48 : f32 to vector<2x64xf32>
    %183 = arith.addf %182, %181 : vector<2x64xf32>
    %184 = arith.divf %182, %183 : vector<2x64xf32>
    %185 = vector.extract_strided_slice %184 {offsets = [0, 0], sizes = [2, 32], strides = [1, 1]} : vector<2x64xf32> to vector<2x32xf32>
    %186 = vector.extract_strided_slice %184 {offsets = [0, 32], sizes = [2, 32], strides = [1, 1]} : vector<2x64xf32> to vector<2x32xf32>
    %187 = vector.extract_strided_slice %178 {offsets = [0, 64], sizes = [2, 32], strides = [1, 1]} : vector<2x96xf32> to vector<2x32xf32>
    %188 = vector.extract_strided_slice %176 {offsets = [0, 96], sizes = [2, 32], strides = [1, 1]} : vector<2x128xf32> to vector<2x32xf32>
    %189 = arith.addf %188, %13 : vector<2x32xf32>
    %190 = arith.mulf %185, %189 : vector<2x32xf32>
    %191 = arith.addf %187, %190 : vector<2x32xf32>
    %192 = math.tanh %191 : vector<2x32xf32>
    %cst_49 = arith.constant 1.000000e+00 : f32
    %193 = vector.broadcast %cst_49 : f32 to vector<2x32xf32>
    %194 = arith.subf %193, %186 : vector<2x32xf32>
    %195 = arith.mulf %194, %192 : vector<2x32xf32>
    %196 = arith.mulf %186, %139 : vector<2x32xf32>
    %197 = arith.addf %195, %196 : vector<2x32xf32>
    %198 = vector.broadcast %143 : vector<2x1xf32> to vector<2x32xf32>
    %199 = arith.mulf %198, %197 : vector<2x32xf32>
    %200 = vector.broadcast %145 : vector<2x1xf32> to vector<2x32xf32>
    %201 = arith.mulf %200, %139 : vector<2x32xf32>
    %202 = arith.addf %199, %201 : vector<2x32xf32>
    %203 = vector.broadcast %143 : vector<2x1xf32> to vector<2x32xf32>
    %204 = arith.mulf %203, %202 : vector<2x32xf32>
    %c3 = arith.constant 3 : index
    %c0_50 = arith.constant 0 : index
    %c0_51 = arith.constant 0 : index
    %205 = vector.load %arg2[%c3, %c0_50, %c0_51] : memref<8x2x1xf32, #tpu.memory_space<vmem>>, vector<1x2x1xf32>
    %206 = vector.shape_cast %205 : vector<1x2x1xf32> to vector<2x1xf32>
    %cst_52 = arith.constant 1.000000e+00 : f32
    %207 = vector.broadcast %cst_52 : f32 to vector<2x1xf32>
    %208 = arith.subf %207, %206 : vector<2x1xf32>
    %c3_53 = arith.constant 3 : index
    %c0_54 = arith.constant 0 : index
    %c0_55 = arith.constant 0 : index
    %209 = vector.load %arg1[%c3_53, %c0_54, %c0_55] : memref<8x2x96xf32, #tpu.memory_space<vmem>>, vector<1x2x96xf32>
    %210 = vector.shape_cast %209 : vector<1x2x96xf32> to vector<2x96xf32>
    %cst_56 = arith.constant dense<0.000000e+00> : vector<2x96xf32>
    %211 = tpu.matmul %174, %0, %cst_56 {dimension_numbers = #tpu.dot_dimension_numbers<[1], [0], [0], [1], [0, 0, 1, 1], [], []>, precision = #tpu.contract_precision<fp32>} : vector<2x32xf32>, vector<32x96xf32>, vector<2x96xf32> -> vector<2x96xf32>
    %212 = vector.extract_strided_slice %210 {offsets = [0, 0], sizes = [2, 64], strides = [1, 1]} : vector<2x96xf32> to vector<2x64xf32>
    %213 = vector.extract_strided_slice %211 {offsets = [0, 0], sizes = [2, 64], strides = [1, 1]} : vector<2x96xf32> to vector<2x64xf32>
    %214 = arith.addf %212, %213 : vector<2x64xf32>
    %215 = arith.negf %214 : vector<2x64xf32>
    %216 = math.exp %215 : vector<2x64xf32>
    %cst_57 = arith.constant 1.000000e+00 : f32
    %217 = vector.broadcast %cst_57 : f32 to vector<2x64xf32>
    %218 = arith.addf %217, %216 : vector<2x64xf32>
    %219 = arith.divf %217, %218 : vector<2x64xf32>
    %220 = vector.extract_strided_slice %219 {offsets = [0, 0], sizes = [2, 32], strides = [1, 1]} : vector<2x64xf32> to vector<2x32xf32>
    %221 = vector.extract_strided_slice %219 {offsets = [0, 32], sizes = [2, 32], strides = [1, 1]} : vector<2x64xf32> to vector<2x32xf32>
    %222 = vector.extract_strided_slice %210 {offsets = [0, 64], sizes = [2, 32], strides = [1, 1]} : vector<2x96xf32> to vector<2x32xf32>
    %223 = vector.extract_strided_slice %211 {offsets = [0, 64], sizes = [2, 32], strides = [1, 1]} : vector<2x96xf32> to vector<2x32xf32>
    %224 = arith.addf %223, %3 : vector<2x32xf32>
    %225 = arith.mulf %220, %224 : vector<2x32xf32>
    %226 = arith.addf %222, %225 : vector<2x32xf32>
    %227 = math.tanh %226 : vector<2x32xf32>
    %cst_58 = arith.constant 1.000000e+00 : f32
    %228 = vector.broadcast %cst_58 : f32 to vector<2x32xf32>
    %229 = arith.subf %228, %221 : vector<2x32xf32>
    %230 = arith.mulf %229, %227 : vector<2x32xf32>
    %231 = arith.mulf %221, %174 : vector<2x32xf32>
    %232 = arith.addf %230, %231 : vector<2x32xf32>
    %233 = vector.broadcast %206 : vector<2x1xf32> to vector<2x32xf32>
    %234 = arith.mulf %233, %232 : vector<2x32xf32>
    %235 = vector.broadcast %208 : vector<2x1xf32> to vector<2x32xf32>
    %236 = arith.mulf %235, %174 : vector<2x32xf32>
    %237 = arith.addf %234, %236 : vector<2x32xf32>
    %238 = tpu.concatenate %237, %202 in 1 : vector<2x32xf32>, vector<2x32xf32> -> vector<2x64xf32>
    %cst_59 = arith.constant dense<0.000000e+00> : vector<2x128xf32>
    %239 = tpu.matmul %238, %5, %cst_59 {dimension_numbers = #tpu.dot_dimension_numbers<[1], [0], [0], [1], [0, 0, 1, 1], [], []>, precision = #tpu.contract_precision<fp32>} : vector<2x64xf32>, vector<64x128xf32>, vector<2x128xf32> -> vector<2x128xf32>
    %240 = vector.extract_strided_slice %239 {offsets = [0, 0], sizes = [2, 96], strides = [1, 1]} : vector<2x128xf32> to vector<2x96xf32>
    %241 = arith.addf %240, %9 : vector<2x96xf32>
    %242 = vector.extract_strided_slice %241 {offsets = [0, 0], sizes = [2, 64], strides = [1, 1]} : vector<2x96xf32> to vector<2x64xf32>
    %243 = arith.negf %242 : vector<2x64xf32>
    %244 = math.exp %243 : vector<2x64xf32>
    %cst_60 = arith.constant 1.000000e+00 : f32
    %245 = vector.broadcast %cst_60 : f32 to vector<2x64xf32>
    %246 = arith.addf %245, %244 : vector<2x64xf32>
    %247 = arith.divf %245, %246 : vector<2x64xf32>
    %248 = vector.extract_strided_slice %247 {offsets = [0, 0], sizes = [2, 32], strides = [1, 1]} : vector<2x64xf32> to vector<2x32xf32>
    %249 = vector.extract_strided_slice %247 {offsets = [0, 32], sizes = [2, 32], strides = [1, 1]} : vector<2x64xf32> to vector<2x32xf32>
    %250 = vector.extract_strided_slice %241 {offsets = [0, 64], sizes = [2, 32], strides = [1, 1]} : vector<2x96xf32> to vector<2x32xf32>
    %251 = vector.extract_strided_slice %239 {offsets = [0, 96], sizes = [2, 32], strides = [1, 1]} : vector<2x128xf32> to vector<2x32xf32>
    %252 = arith.addf %251, %13 : vector<2x32xf32>
    %253 = arith.mulf %248, %252 : vector<2x32xf32>
    %254 = arith.addf %250, %253 : vector<2x32xf32>
    %255 = math.tanh %254 : vector<2x32xf32>
    %cst_61 = arith.constant 1.000000e+00 : f32
    %256 = vector.broadcast %cst_61 : f32 to vector<2x32xf32>
    %257 = arith.subf %256, %249 : vector<2x32xf32>
    %258 = arith.mulf %257, %255 : vector<2x32xf32>
    %259 = arith.mulf %249, %202 : vector<2x32xf32>
    %260 = arith.addf %258, %259 : vector<2x32xf32>
    %261 = vector.broadcast %206 : vector<2x1xf32> to vector<2x32xf32>
    %262 = arith.mulf %261, %260 : vector<2x32xf32>
    %263 = vector.broadcast %208 : vector<2x1xf32> to vector<2x32xf32>
    %264 = arith.mulf %263, %202 : vector<2x32xf32>
    %265 = arith.addf %262, %264 : vector<2x32xf32>
    %266 = vector.broadcast %206 : vector<2x1xf32> to vector<2x32xf32>
    %267 = arith.mulf %266, %265 : vector<2x32xf32>
    %c4 = arith.constant 4 : index
    %c0_62 = arith.constant 0 : index
    %c0_63 = arith.constant 0 : index
    %268 = vector.load %arg2[%c4, %c0_62, %c0_63] : memref<8x2x1xf32, #tpu.memory_space<vmem>>, vector<1x2x1xf32>
    %269 = vector.shape_cast %268 : vector<1x2x1xf32> to vector<2x1xf32>
    %cst_64 = arith.constant 1.000000e+00 : f32
    %270 = vector.broadcast %cst_64 : f32 to vector<2x1xf32>
    %271 = arith.subf %270, %269 : vector<2x1xf32>
    %c4_65 = arith.constant 4 : index
    %c0_66 = arith.constant 0 : index
    %c0_67 = arith.constant 0 : index
    %272 = vector.load %arg1[%c4_65, %c0_66, %c0_67] : memref<8x2x96xf32, #tpu.memory_space<vmem>>, vector<1x2x96xf32>
    %273 = vector.shape_cast %272 : vector<1x2x96xf32> to vector<2x96xf32>
    %cst_68 = arith.constant dense<0.000000e+00> : vector<2x96xf32>
    %274 = tpu.matmul %237, %0, %cst_68 {dimension_numbers = #tpu.dot_dimension_numbers<[1], [0], [0], [1], [0, 0, 1, 1], [], []>, precision = #tpu.contract_precision<fp32>} : vector<2x32xf32>, vector<32x96xf32>, vector<2x96xf32> -> vector<2x96xf32>
    %275 = vector.extract_strided_slice %273 {offsets = [0, 0], sizes = [2, 64], strides = [1, 1]} : vector<2x96xf32> to vector<2x64xf32>
    %276 = vector.extract_strided_slice %274 {offsets = [0, 0], sizes = [2, 64], strides = [1, 1]} : vector<2x96xf32> to vector<2x64xf32>
    %277 = arith.addf %275, %276 : vector<2x64xf32>
    %278 = arith.negf %277 : vector<2x64xf32>
    %279 = math.exp %278 : vector<2x64xf32>
    %cst_69 = arith.constant 1.000000e+00 : f32
    %280 = vector.broadcast %cst_69 : f32 to vector<2x64xf32>
    %281 = arith.addf %280, %279 : vector<2x64xf32>
    %282 = arith.divf %280, %281 : vector<2x64xf32>
    %283 = vector.extract_strided_slice %282 {offsets = [0, 0], sizes = [2, 32], strides = [1, 1]} : vector<2x64xf32> to vector<2x32xf32>
    %284 = vector.extract_strided_slice %282 {offsets = [0, 32], sizes = [2, 32], strides = [1, 1]} : vector<2x64xf32> to vector<2x32xf32>
    %285 = vector.extract_strided_slice %273 {offsets = [0, 64], sizes = [2, 32], strides = [1, 1]} : vector<2x96xf32> to vector<2x32xf32>
    %286 = vector.extract_strided_slice %274 {offsets = [0, 64], sizes = [2, 32], strides = [1, 1]} : vector<2x96xf32> to vector<2x32xf32>
    %287 = arith.addf %286, %3 : vector<2x32xf32>
    %288 = arith.mulf %283, %287 : vector<2x32xf32>
    %289 = arith.addf %285, %288 : vector<2x32xf32>
    %290 = math.tanh %289 : vector<2x32xf32>
    %cst_70 = arith.constant 1.000000e+00 : f32
    %291 = vector.broadcast %cst_70 : f32 to vector<2x32xf32>
    %292 = arith.subf %291, %284 : vector<2x32xf32>
    %293 = arith.mulf %292, %290 : vector<2x32xf32>
    %294 = arith.mulf %284, %237 : vector<2x32xf32>
    %295 = arith.addf %293, %294 : vector<2x32xf32>
    %296 = vector.broadcast %269 : vector<2x1xf32> to vector<2x32xf32>
    %297 = arith.mulf %296, %295 : vector<2x32xf32>
    %298 = vector.broadcast %271 : vector<2x1xf32> to vector<2x32xf32>
    %299 = arith.mulf %298, %237 : vector<2x32xf32>
    %300 = arith.addf %297, %299 : vector<2x32xf32>
    %301 = tpu.concatenate %300, %265 in 1 : vector<2x32xf32>, vector<2x32xf32> -> vector<2x64xf32>
    %cst_71 = arith.constant dense<0.000000e+00> : vector<2x128xf32>
    %302 = tpu.matmul %301, %5, %cst_71 {dimension_numbers = #tpu.dot_dimension_numbers<[1], [0], [0], [1], [0, 0, 1, 1], [], []>, precision = #tpu.contract_precision<fp32>} : vector<2x64xf32>, vector<64x128xf32>, vector<2x128xf32> -> vector<2x128xf32>
    %303 = vector.extract_strided_slice %302 {offsets = [0, 0], sizes = [2, 96], strides = [1, 1]} : vector<2x128xf32> to vector<2x96xf32>
    %304 = arith.addf %303, %9 : vector<2x96xf32>
    %305 = vector.extract_strided_slice %304 {offsets = [0, 0], sizes = [2, 64], strides = [1, 1]} : vector<2x96xf32> to vector<2x64xf32>
    %306 = arith.negf %305 : vector<2x64xf32>
    %307 = math.exp %306 : vector<2x64xf32>
    %cst_72 = arith.constant 1.000000e+00 : f32
    %308 = vector.broadcast %cst_72 : f32 to vector<2x64xf32>
    %309 = arith.addf %308, %307 : vector<2x64xf32>
    %310 = arith.divf %308, %309 : vector<2x64xf32>
    %311 = vector.extract_strided_slice %310 {offsets = [0, 0], sizes = [2, 32], strides = [1, 1]} : vector<2x64xf32> to vector<2x32xf32>
    %312 = vector.extract_strided_slice %310 {offsets = [0, 32], sizes = [2, 32], strides = [1, 1]} : vector<2x64xf32> to vector<2x32xf32>
    %313 = vector.extract_strided_slice %304 {offsets = [0, 64], sizes = [2, 32], strides = [1, 1]} : vector<2x96xf32> to vector<2x32xf32>
    %314 = vector.extract_strided_slice %302 {offsets = [0, 96], sizes = [2, 32], strides = [1, 1]} : vector<2x128xf32> to vector<2x32xf32>
    %315 = arith.addf %314, %13 : vector<2x32xf32>
    %316 = arith.mulf %311, %315 : vector<2x32xf32>
    %317 = arith.addf %313, %316 : vector<2x32xf32>
    %318 = math.tanh %317 : vector<2x32xf32>
    %cst_73 = arith.constant 1.000000e+00 : f32
    %319 = vector.broadcast %cst_73 : f32 to vector<2x32xf32>
    %320 = arith.subf %319, %312 : vector<2x32xf32>
    %321 = arith.mulf %320, %318 : vector<2x32xf32>
    %322 = arith.mulf %312, %265 : vector<2x32xf32>
    %323 = arith.addf %321, %322 : vector<2x32xf32>
    %324 = vector.broadcast %269 : vector<2x1xf32> to vector<2x32xf32>
    %325 = arith.mulf %324, %323 : vector<2x32xf32>
    %326 = vector.broadcast %271 : vector<2x1xf32> to vector<2x32xf32>
    %327 = arith.mulf %326, %265 : vector<2x32xf32>
    %328 = arith.addf %325, %327 : vector<2x32xf32>
    %329 = vector.broadcast %269 : vector<2x1xf32> to vector<2x32xf32>
    %330 = arith.mulf %329, %328 : vector<2x32xf32>
    %c5 = arith.constant 5 : index
    %c0_74 = arith.constant 0 : index
    %c0_75 = arith.constant 0 : index
    %331 = vector.load %arg2[%c5, %c0_74, %c0_75] : memref<8x2x1xf32, #tpu.memory_space<vmem>>, vector<1x2x1xf32>
    %332 = vector.shape_cast %331 : vector<1x2x1xf32> to vector<2x1xf32>
    %cst_76 = arith.constant 1.000000e+00 : f32
    %333 = vector.broadcast %cst_76 : f32 to vector<2x1xf32>
    %334 = arith.subf %333, %332 : vector<2x1xf32>
    %c5_77 = arith.constant 5 : index
    %c0_78 = arith.constant 0 : index
    %c0_79 = arith.constant 0 : index
    %335 = vector.load %arg1[%c5_77, %c0_78, %c0_79] : memref<8x2x96xf32, #tpu.memory_space<vmem>>, vector<1x2x96xf32>
    %336 = vector.shape_cast %335 : vector<1x2x96xf32> to vector<2x96xf32>
    %cst_80 = arith.constant dense<0.000000e+00> : vector<2x96xf32>
    %337 = tpu.matmul %300, %0, %cst_80 {dimension_numbers = #tpu.dot_dimension_numbers<[1], [0], [0], [1], [0, 0, 1, 1], [], []>, precision = #tpu.contract_precision<fp32>} : vector<2x32xf32>, vector<32x96xf32>, vector<2x96xf32> -> vector<2x96xf32>
    %338 = vector.extract_strided_slice %336 {offsets = [0, 0], sizes = [2, 64], strides = [1, 1]} : vector<2x96xf32> to vector<2x64xf32>
    %339 = vector.extract_strided_slice %337 {offsets = [0, 0], sizes = [2, 64], strides = [1, 1]} : vector<2x96xf32> to vector<2x64xf32>
    %340 = arith.addf %338, %339 : vector<2x64xf32>
    %341 = arith.negf %340 : vector<2x64xf32>
    %342 = math.exp %341 : vector<2x64xf32>
    %cst_81 = arith.constant 1.000000e+00 : f32
    %343 = vector.broadcast %cst_81 : f32 to vector<2x64xf32>
    %344 = arith.addf %343, %342 : vector<2x64xf32>
    %345 = arith.divf %343, %344 : vector<2x64xf32>
    %346 = vector.extract_strided_slice %345 {offsets = [0, 0], sizes = [2, 32], strides = [1, 1]} : vector<2x64xf32> to vector<2x32xf32>
    %347 = vector.extract_strided_slice %345 {offsets = [0, 32], sizes = [2, 32], strides = [1, 1]} : vector<2x64xf32> to vector<2x32xf32>
    %348 = vector.extract_strided_slice %336 {offsets = [0, 64], sizes = [2, 32], strides = [1, 1]} : vector<2x96xf32> to vector<2x32xf32>
    %349 = vector.extract_strided_slice %337 {offsets = [0, 64], sizes = [2, 32], strides = [1, 1]} : vector<2x96xf32> to vector<2x32xf32>
    %350 = arith.addf %349, %3 : vector<2x32xf32>
    %351 = arith.mulf %346, %350 : vector<2x32xf32>
    %352 = arith.addf %348, %351 : vector<2x32xf32>
    %353 = math.tanh %352 : vector<2x32xf32>
    %cst_82 = arith.constant 1.000000e+00 : f32
    %354 = vector.broadcast %cst_82 : f32 to vector<2x32xf32>
    %355 = arith.subf %354, %347 : vector<2x32xf32>
    %356 = arith.mulf %355, %353 : vector<2x32xf32>
    %357 = arith.mulf %347, %300 : vector<2x32xf32>
    %358 = arith.addf %356, %357 : vector<2x32xf32>
    %359 = vector.broadcast %332 : vector<2x1xf32> to vector<2x32xf32>
    %360 = arith.mulf %359, %358 : vector<2x32xf32>
    %361 = vector.broadcast %334 : vector<2x1xf32> to vector<2x32xf32>
    %362 = arith.mulf %361, %300 : vector<2x32xf32>
    %363 = arith.addf %360, %362 : vector<2x32xf32>
    %364 = tpu.concatenate %363, %328 in 1 : vector<2x32xf32>, vector<2x32xf32> -> vector<2x64xf32>
    %cst_83 = arith.constant dense<0.000000e+00> : vector<2x128xf32>
    %365 = tpu.matmul %364, %5, %cst_83 {dimension_numbers = #tpu.dot_dimension_numbers<[1], [0], [0], [1], [0, 0, 1, 1], [], []>, precision = #tpu.contract_precision<fp32>} : vector<2x64xf32>, vector<64x128xf32>, vector<2x128xf32> -> vector<2x128xf32>
    %366 = vector.extract_strided_slice %365 {offsets = [0, 0], sizes = [2, 96], strides = [1, 1]} : vector<2x128xf32> to vector<2x96xf32>
    %367 = arith.addf %366, %9 : vector<2x96xf32>
    %368 = vector.extract_strided_slice %367 {offsets = [0, 0], sizes = [2, 64], strides = [1, 1]} : vector<2x96xf32> to vector<2x64xf32>
    %369 = arith.negf %368 : vector<2x64xf32>
    %370 = math.exp %369 : vector<2x64xf32>
    %cst_84 = arith.constant 1.000000e+00 : f32
    %371 = vector.broadcast %cst_84 : f32 to vector<2x64xf32>
    %372 = arith.addf %371, %370 : vector<2x64xf32>
    %373 = arith.divf %371, %372 : vector<2x64xf32>
    %374 = vector.extract_strided_slice %373 {offsets = [0, 0], sizes = [2, 32], strides = [1, 1]} : vector<2x64xf32> to vector<2x32xf32>
    %375 = vector.extract_strided_slice %373 {offsets = [0, 32], sizes = [2, 32], strides = [1, 1]} : vector<2x64xf32> to vector<2x32xf32>
    %376 = vector.extract_strided_slice %367 {offsets = [0, 64], sizes = [2, 32], strides = [1, 1]} : vector<2x96xf32> to vector<2x32xf32>
    %377 = vector.extract_strided_slice %365 {offsets = [0, 96], sizes = [2, 32], strides = [1, 1]} : vector<2x128xf32> to vector<2x32xf32>
    %378 = arith.addf %377, %13 : vector<2x32xf32>
    %379 = arith.mulf %374, %378 : vector<2x32xf32>
    %380 = arith.addf %376, %379 : vector<2x32xf32>
    %381 = math.tanh %380 : vector<2x32xf32>
    %cst_85 = arith.constant 1.000000e+00 : f32
    %382 = vector.broadcast %cst_85 : f32 to vector<2x32xf32>
    %383 = arith.subf %382, %375 : vector<2x32xf32>
    %384 = arith.mulf %383, %381 : vector<2x32xf32>
    %385 = arith.mulf %375, %328 : vector<2x32xf32>
    %386 = arith.addf %384, %385 : vector<2x32xf32>
    %387 = vector.broadcast %332 : vector<2x1xf32> to vector<2x32xf32>
    %388 = arith.mulf %387, %386 : vector<2x32xf32>
    %389 = vector.broadcast %334 : vector<2x1xf32> to vector<2x32xf32>
    %390 = arith.mulf %389, %328 : vector<2x32xf32>
    %391 = arith.addf %388, %390 : vector<2x32xf32>
    %392 = vector.broadcast %332 : vector<2x1xf32> to vector<2x32xf32>
    %393 = arith.mulf %392, %391 : vector<2x32xf32>
    %c6 = arith.constant 6 : index
    %c0_86 = arith.constant 0 : index
    %c0_87 = arith.constant 0 : index
    %394 = vector.load %arg2[%c6, %c0_86, %c0_87] : memref<8x2x1xf32, #tpu.memory_space<vmem>>, vector<1x2x1xf32>
    %395 = vector.shape_cast %394 : vector<1x2x1xf32> to vector<2x1xf32>
    %cst_88 = arith.constant 1.000000e+00 : f32
    %396 = vector.broadcast %cst_88 : f32 to vector<2x1xf32>
    %397 = arith.subf %396, %395 : vector<2x1xf32>
    %c6_89 = arith.constant 6 : index
    %c0_90 = arith.constant 0 : index
    %c0_91 = arith.constant 0 : index
    %398 = vector.load %arg1[%c6_89, %c0_90, %c0_91] : memref<8x2x96xf32, #tpu.memory_space<vmem>>, vector<1x2x96xf32>
    %399 = vector.shape_cast %398 : vector<1x2x96xf32> to vector<2x96xf32>
    %cst_92 = arith.constant dense<0.000000e+00> : vector<2x96xf32>
    %400 = tpu.matmul %363, %0, %cst_92 {dimension_numbers = #tpu.dot_dimension_numbers<[1], [0], [0], [1], [0, 0, 1, 1], [], []>, precision = #tpu.contract_precision<fp32>} : vector<2x32xf32>, vector<32x96xf32>, vector<2x96xf32> -> vector<2x96xf32>
    %401 = vector.extract_strided_slice %399 {offsets = [0, 0], sizes = [2, 64], strides = [1, 1]} : vector<2x96xf32> to vector<2x64xf32>
    %402 = vector.extract_strided_slice %400 {offsets = [0, 0], sizes = [2, 64], strides = [1, 1]} : vector<2x96xf32> to vector<2x64xf32>
    %403 = arith.addf %401, %402 : vector<2x64xf32>
    %404 = arith.negf %403 : vector<2x64xf32>
    %405 = math.exp %404 : vector<2x64xf32>
    %cst_93 = arith.constant 1.000000e+00 : f32
    %406 = vector.broadcast %cst_93 : f32 to vector<2x64xf32>
    %407 = arith.addf %406, %405 : vector<2x64xf32>
    %408 = arith.divf %406, %407 : vector<2x64xf32>
    %409 = vector.extract_strided_slice %408 {offsets = [0, 0], sizes = [2, 32], strides = [1, 1]} : vector<2x64xf32> to vector<2x32xf32>
    %410 = vector.extract_strided_slice %408 {offsets = [0, 32], sizes = [2, 32], strides = [1, 1]} : vector<2x64xf32> to vector<2x32xf32>
    %411 = vector.extract_strided_slice %399 {offsets = [0, 64], sizes = [2, 32], strides = [1, 1]} : vector<2x96xf32> to vector<2x32xf32>
    %412 = vector.extract_strided_slice %400 {offsets = [0, 64], sizes = [2, 32], strides = [1, 1]} : vector<2x96xf32> to vector<2x32xf32>
    %413 = arith.addf %412, %3 : vector<2x32xf32>
    %414 = arith.mulf %409, %413 : vector<2x32xf32>
    %415 = arith.addf %411, %414 : vector<2x32xf32>
    %416 = math.tanh %415 : vector<2x32xf32>
    %cst_94 = arith.constant 1.000000e+00 : f32
    %417 = vector.broadcast %cst_94 : f32 to vector<2x32xf32>
    %418 = arith.subf %417, %410 : vector<2x32xf32>
    %419 = arith.mulf %418, %416 : vector<2x32xf32>
    %420 = arith.mulf %410, %363 : vector<2x32xf32>
    %421 = arith.addf %419, %420 : vector<2x32xf32>
    %422 = vector.broadcast %395 : vector<2x1xf32> to vector<2x32xf32>
    %423 = arith.mulf %422, %421 : vector<2x32xf32>
    %424 = vector.broadcast %397 : vector<2x1xf32> to vector<2x32xf32>
    %425 = arith.mulf %424, %363 : vector<2x32xf32>
    %426 = arith.addf %423, %425 : vector<2x32xf32>
    %427 = tpu.concatenate %426, %391 in 1 : vector<2x32xf32>, vector<2x32xf32> -> vector<2x64xf32>
    %cst_95 = arith.constant dense<0.000000e+00> : vector<2x128xf32>
    %428 = tpu.matmul %427, %5, %cst_95 {dimension_numbers = #tpu.dot_dimension_numbers<[1], [0], [0], [1], [0, 0, 1, 1], [], []>, precision = #tpu.contract_precision<fp32>} : vector<2x64xf32>, vector<64x128xf32>, vector<2x128xf32> -> vector<2x128xf32>
    %429 = vector.extract_strided_slice %428 {offsets = [0, 0], sizes = [2, 96], strides = [1, 1]} : vector<2x128xf32> to vector<2x96xf32>
    %430 = arith.addf %429, %9 : vector<2x96xf32>
    %431 = vector.extract_strided_slice %430 {offsets = [0, 0], sizes = [2, 64], strides = [1, 1]} : vector<2x96xf32> to vector<2x64xf32>
    %432 = arith.negf %431 : vector<2x64xf32>
    %433 = math.exp %432 : vector<2x64xf32>
    %cst_96 = arith.constant 1.000000e+00 : f32
    %434 = vector.broadcast %cst_96 : f32 to vector<2x64xf32>
    %435 = arith.addf %434, %433 : vector<2x64xf32>
    %436 = arith.divf %434, %435 : vector<2x64xf32>
    %437 = vector.extract_strided_slice %436 {offsets = [0, 0], sizes = [2, 32], strides = [1, 1]} : vector<2x64xf32> to vector<2x32xf32>
    %438 = vector.extract_strided_slice %436 {offsets = [0, 32], sizes = [2, 32], strides = [1, 1]} : vector<2x64xf32> to vector<2x32xf32>
    %439 = vector.extract_strided_slice %430 {offsets = [0, 64], sizes = [2, 32], strides = [1, 1]} : vector<2x96xf32> to vector<2x32xf32>
    %440 = vector.extract_strided_slice %428 {offsets = [0, 96], sizes = [2, 32], strides = [1, 1]} : vector<2x128xf32> to vector<2x32xf32>
    %441 = arith.addf %440, %13 : vector<2x32xf32>
    %442 = arith.mulf %437, %441 : vector<2x32xf32>
    %443 = arith.addf %439, %442 : vector<2x32xf32>
    %444 = math.tanh %443 : vector<2x32xf32>
    %cst_97 = arith.constant 1.000000e+00 : f32
    %445 = vector.broadcast %cst_97 : f32 to vector<2x32xf32>
    %446 = arith.subf %445, %438 : vector<2x32xf32>
    %447 = arith.mulf %446, %444 : vector<2x32xf32>
    %448 = arith.mulf %438, %391 : vector<2x32xf32>
    %449 = arith.addf %447, %448 : vector<2x32xf32>
    %450 = vector.broadcast %395 : vector<2x1xf32> to vector<2x32xf32>
    %451 = arith.mulf %450, %449 : vector<2x32xf32>
    %452 = vector.broadcast %397 : vector<2x1xf32> to vector<2x32xf32>
    %453 = arith.mulf %452, %391 : vector<2x32xf32>
    %454 = arith.addf %451, %453 : vector<2x32xf32>
    %455 = vector.broadcast %395 : vector<2x1xf32> to vector<2x32xf32>
    %456 = arith.mulf %455, %454 : vector<2x32xf32>
    %c7 = arith.constant 7 : index
    %c0_98 = arith.constant 0 : index
    %c0_99 = arith.constant 0 : index
    %457 = vector.load %arg2[%c7, %c0_98, %c0_99] : memref<8x2x1xf32, #tpu.memory_space<vmem>>, vector<1x2x1xf32>
    %458 = vector.shape_cast %457 : vector<1x2x1xf32> to vector<2x1xf32>
    %cst_100 = arith.constant 1.000000e+00 : f32
    %459 = vector.broadcast %cst_100 : f32 to vector<2x1xf32>
    %460 = arith.subf %459, %458 : vector<2x1xf32>
    %c7_101 = arith.constant 7 : index
    %c0_102 = arith.constant 0 : index
    %c0_103 = arith.constant 0 : index
    %461 = vector.load %arg1[%c7_101, %c0_102, %c0_103] : memref<8x2x96xf32, #tpu.memory_space<vmem>>, vector<1x2x96xf32>
    %462 = vector.shape_cast %461 : vector<1x2x96xf32> to vector<2x96xf32>
    %cst_104 = arith.constant dense<0.000000e+00> : vector<2x96xf32>
    %463 = tpu.matmul %426, %0, %cst_104 {dimension_numbers = #tpu.dot_dimension_numbers<[1], [0], [0], [1], [0, 0, 1, 1], [], []>, precision = #tpu.contract_precision<fp32>} : vector<2x32xf32>, vector<32x96xf32>, vector<2x96xf32> -> vector<2x96xf32>
    %464 = vector.extract_strided_slice %462 {offsets = [0, 0], sizes = [2, 64], strides = [1, 1]} : vector<2x96xf32> to vector<2x64xf32>
    %465 = vector.extract_strided_slice %463 {offsets = [0, 0], sizes = [2, 64], strides = [1, 1]} : vector<2x96xf32> to vector<2x64xf32>
    %466 = arith.addf %464, %465 : vector<2x64xf32>
    %467 = arith.negf %466 : vector<2x64xf32>
    %468 = math.exp %467 : vector<2x64xf32>
    %cst_105 = arith.constant 1.000000e+00 : f32
    %469 = vector.broadcast %cst_105 : f32 to vector<2x64xf32>
    %470 = arith.addf %469, %468 : vector<2x64xf32>
    %471 = arith.divf %469, %470 : vector<2x64xf32>
    %472 = vector.extract_strided_slice %471 {offsets = [0, 0], sizes = [2, 32], strides = [1, 1]} : vector<2x64xf32> to vector<2x32xf32>
    %473 = vector.extract_strided_slice %471 {offsets = [0, 32], sizes = [2, 32], strides = [1, 1]} : vector<2x64xf32> to vector<2x32xf32>
    %474 = vector.extract_strided_slice %462 {offsets = [0, 64], sizes = [2, 32], strides = [1, 1]} : vector<2x96xf32> to vector<2x32xf32>
    %475 = vector.extract_strided_slice %463 {offsets = [0, 64], sizes = [2, 32], strides = [1, 1]} : vector<2x96xf32> to vector<2x32xf32>
    %476 = arith.addf %475, %3 : vector<2x32xf32>
    %477 = arith.mulf %472, %476 : vector<2x32xf32>
    %478 = arith.addf %474, %477 : vector<2x32xf32>
    %479 = math.tanh %478 : vector<2x32xf32>
    %cst_106 = arith.constant 1.000000e+00 : f32
    %480 = vector.broadcast %cst_106 : f32 to vector<2x32xf32>
    %481 = arith.subf %480, %473 : vector<2x32xf32>
    %482 = arith.mulf %481, %479 : vector<2x32xf32>
    %483 = arith.mulf %473, %426 : vector<2x32xf32>
    %484 = arith.addf %482, %483 : vector<2x32xf32>
    %485 = vector.broadcast %458 : vector<2x1xf32> to vector<2x32xf32>
    %486 = arith.mulf %485, %484 : vector<2x32xf32>
    %487 = vector.broadcast %460 : vector<2x1xf32> to vector<2x32xf32>
    %488 = arith.mulf %487, %426 : vector<2x32xf32>
    %489 = arith.addf %486, %488 : vector<2x32xf32>
    %490 = tpu.concatenate %489, %454 in 1 : vector<2x32xf32>, vector<2x32xf32> -> vector<2x64xf32>
    %cst_107 = arith.constant dense<0.000000e+00> : vector<2x128xf32>
    %491 = tpu.matmul %490, %5, %cst_107 {dimension_numbers = #tpu.dot_dimension_numbers<[1], [0], [0], [1], [0, 0, 1, 1], [], []>, precision = #tpu.contract_precision<fp32>} : vector<2x64xf32>, vector<64x128xf32>, vector<2x128xf32> -> vector<2x128xf32>
    %492 = vector.extract_strided_slice %491 {offsets = [0, 0], sizes = [2, 96], strides = [1, 1]} : vector<2x128xf32> to vector<2x96xf32>
    %493 = arith.addf %492, %9 : vector<2x96xf32>
    %494 = vector.extract_strided_slice %493 {offsets = [0, 0], sizes = [2, 64], strides = [1, 1]} : vector<2x96xf32> to vector<2x64xf32>
    %495 = arith.negf %494 : vector<2x64xf32>
    %496 = math.exp %495 : vector<2x64xf32>
    %cst_108 = arith.constant 1.000000e+00 : f32
    %497 = vector.broadcast %cst_108 : f32 to vector<2x64xf32>
    %498 = arith.addf %497, %496 : vector<2x64xf32>
    %499 = arith.divf %497, %498 : vector<2x64xf32>
    %500 = vector.extract_strided_slice %499 {offsets = [0, 0], sizes = [2, 32], strides = [1, 1]} : vector<2x64xf32> to vector<2x32xf32>
    %501 = vector.extract_strided_slice %499 {offsets = [0, 32], sizes = [2, 32], strides = [1, 1]} : vector<2x64xf32> to vector<2x32xf32>
    %502 = vector.extract_strided_slice %493 {offsets = [0, 64], sizes = [2, 32], strides = [1, 1]} : vector<2x96xf32> to vector<2x32xf32>
    %503 = vector.extract_strided_slice %491 {offsets = [0, 96], sizes = [2, 32], strides = [1, 1]} : vector<2x128xf32> to vector<2x32xf32>
    %504 = arith.addf %503, %13 : vector<2x32xf32>
    %505 = arith.mulf %500, %504 : vector<2x32xf32>
    %506 = arith.addf %502, %505 : vector<2x32xf32>
    %507 = math.tanh %506 : vector<2x32xf32>
    %cst_109 = arith.constant 1.000000e+00 : f32
    %508 = vector.broadcast %cst_109 : f32 to vector<2x32xf32>
    %509 = arith.subf %508, %501 : vector<2x32xf32>
    %510 = arith.mulf %509, %507 : vector<2x32xf32>
    %511 = arith.mulf %501, %454 : vector<2x32xf32>
    %512 = arith.addf %510, %511 : vector<2x32xf32>
    %513 = vector.broadcast %458 : vector<2x1xf32> to vector<2x32xf32>
    %514 = arith.mulf %513, %512 : vector<2x32xf32>
    %515 = vector.broadcast %460 : vector<2x1xf32> to vector<2x32xf32>
    %516 = arith.mulf %515, %454 : vector<2x32xf32>
    %517 = arith.addf %514, %516 : vector<2x32xf32>
    %518 = vector.broadcast %458 : vector<2x1xf32> to vector<2x32xf32>
    %519 = arith.mulf %518, %517 : vector<2x32xf32>
    %520 = vector.shape_cast %78 : vector<2x32xf32> to vector<1x2x32xf32>
    %521 = vector.shape_cast %141 : vector<2x32xf32> to vector<1x2x32xf32>
    %522 = vector.shape_cast %204 : vector<2x32xf32> to vector<1x2x32xf32>
    %523 = vector.shape_cast %267 : vector<2x32xf32> to vector<1x2x32xf32>
    %524 = vector.shape_cast %330 : vector<2x32xf32> to vector<1x2x32xf32>
    %525 = vector.shape_cast %393 : vector<2x32xf32> to vector<1x2x32xf32>
    %526 = vector.shape_cast %456 : vector<2x32xf32> to vector<1x2x32xf32>
    %527 = vector.shape_cast %519 : vector<2x32xf32> to vector<1x2x32xf32>
    %528 = tpu.concatenate %520, %521, %522, %523, %524, %525, %526, %527 in 0 : vector<1x2x32xf32>, vector<1x2x32xf32>, vector<1x2x32xf32>, vector<1x2x32xf32>, vector<1x2x32xf32>, vector<1x2x32xf32>, vector<1x2x32xf32>, vector<1x2x32xf32> -> vector<8x2x32xf32>
    %c0_110 = arith.constant 0 : index
    %c0_111 = arith.constant 0 : index
    %c0_112 = arith.constant 0 : index
    %529 = vector.load %arg8[%c0_110, %c0_111, %c0_112] : memref<8x2x32xf32, #tpu.memory_space<vmem>>, vector<8x2x32xf32>
    tpu.vector_store %arg8[%c0_110, %c0_111, %c0_112], %528 {strides = array<i32>} : memref<8x2x32xf32, #tpu.memory_space<vmem>>, vector<8x2x32xf32>,
    %530 = vector.shape_cast %489 : vector<2x32xf32> to vector<1x2x32xf32>
    %531 = vector.shape_cast %517 : vector<2x32xf32> to vector<1x2x32xf32>
    %532 = tpu.concatenate %530, %531 in 0 : vector<1x2x32xf32>, vector<1x2x32xf32> -> vector<2x2x32xf32>
    %c0_113 = arith.constant 0 : index
    %c0_114 = arith.constant 0 : index
    %c0_115 = arith.constant 0 : index
    %533 = vector.load %arg9[%c0_113, %c0_114, %c0_115] : memref<2x2x32xf32, #tpu.memory_space<vmem>>, vector<2x2x32xf32>
    tpu.vector_store %arg9[%c0_113, %c0_114, %c0_115], %532 {strides = array<i32>} : memref<2x2x32xf32, #tpu.memory_space<vmem>>, vector<2x2x32xf32>,
    return
  }
  func.func @transform_0(%arg0: i32) -> (i32, i32, i32) {
    %c0_i32 = arith.constant 0 : i32
    %c0_i32_0 = arith.constant 0 : i32
    %c0_i32_1 = arith.constant 0 : i32
    %c0_i32_2 = arith.constant 0 : i32
    return %c0_i32, %c0_i32_0, %c0_i32_1 : i32, i32, i32
  }
  func.func @transform_1(%arg0: i32) -> (i32, i32, i32) {
    %c0_i32 = arith.constant 0 : i32
    %c0_i32_0 = arith.constant 0 : i32
    %c0_i32_1 = arith.constant 0 : i32
    %c0_i32_2 = arith.constant 0 : i32
    return %c0_i32, %c0_i32_0, %c0_i32_1 : i32, i32, i32
  }
  func.func @transform_2(%arg0: i32) -> (i32, i32) {
    %c0_i32 = arith.constant 0 : i32
    %c0_i32_0 = arith.constant 0 : i32
    %c0_i32_1 = arith.constant 0 : i32
    return %c0_i32, %c0_i32_0 : i32, i32
  }
  func.func @transform_3(%arg0: i32) -> (i32, i32) {
    %c0_i32 = arith.constant 0 : i32
    %c0_i32_0 = arith.constant 0 : i32
    %c0_i32_1 = arith.constant 0 : i32
    return %c0_i32, %c0_i32_0 : i32, i32
  }
  func.func @transform_4(%arg0: i32) -> (i32, i32, i32) {
    %c0_i32 = arith.constant 0 : i32
    %c0_i32_0 = arith.constant 0 : i32
    %c0_i32_1 = arith.constant 0 : i32
    %c0_i32_2 = arith.constant 0 : i32
    return %c0_i32, %c0_i32_0, %c0_i32_1 : i32, i32, i32
  }
  func.func @transform_5(%arg0: i32) -> (i32, i32, i32) {
    %c0_i32 = arith.constant 0 : i32
    %c0_i32_0 = arith.constant 0 : i32
    %c0_i32_1 = arith.constant 0 : i32
    %c0_i32_2 = arith.constant 0 : i32
    return %c0_i32, %c0_i32_0, %c0_i32_1 : i32, i32, i32
  }
  func.func @transform_6(%arg0: i32) -> (i32, i32, i32) {
    %c0_i32 = arith.constant 0 : i32
    %c0_i32_0 = arith.constant 0 : i32
    %c0_i32_1 = arith.constant 0 : i32
    %c0_i32_2 = arith.constant 0 : i32
    return %c0_i32, %c0_i32_0, %c0_i32_1 : i32, i32, i32
  }
  func.func @transform_7(%arg0: i32) -> (i32, i32, i32) {
    %c0_i32 = arith.constant 0 : i32
    %c0_i32_0 = arith.constant 0 : i32
    %c0_i32_1 = arith.constant 0 : i32
    %c0_i32_2 = arith.constant 0 : i32
    return %c0_i32, %c0_i32_0, %c0_i32_1 : i32, i32, i32
  }
  func.func @transform_8(%arg0: i32) -> (i32, i32, i32) {
    %c0_i32 = arith.constant 0 : i32
    %c0_i32_0 = arith.constant 0 : i32
    %c0_i32_1 = arith.constant 0 : i32
    %c0_i32_2 = arith.constant 0 : i32
    return %c0_i32, %c0_i32_0, %c0_i32_1 : i32, i32, i32
  }
}

</mosaic_0001>

<llo_original>
// kernel: neg.1
$region0: #{neg.1}
  #allocation0 [shape = 's32[1]{0}', space=sflag, size = 0x4, scoped, tag = 'scoped memory for neg.1']
  %s0 = inlined_call_operand.vmem [shape: s32[2], index: 0, kind: input, shape index: {}]
  %s1 = inlined_call_operand.vmem [shape: s32[2], index: 1, kind: output, shape index: {}]
  %v2 = vld [vmem:[%s0] sm:$0x1]
  %3 = xla_tuple %v2
  %4 = xla_tuple %3
  %v5 = vsub.s32 0, %v2
  %6 = xla_tuple %v5
  %7 = vst [vmem:[%s1] sm:$0x1] %v5

// kernel: encoder_seq_forward.1
$region0: #{encoder_seq_forward.1}
  #allocation0 [shape = 'u32[]', space=smem, size = 0x4, offset = 0x4, fixed_abs, tag = 'smem constant byte address 0x4 - core index']
  #allocation1 [shape = 'u32[144,128]{1,0:T(1,128)}', space=vmem, size = 0x12000, scoped, tag = 'internal scratch']
  %s0 = inlined_call_operand.vmem [shape: f32[8,2,96], index: 0, kind: input, shape index: {}]
  %s1 = inlined_call_operand.vmem [shape: f32[8,2,1], index: 1, kind: input, shape index: {}]
  %s2 = inlined_call_operand.vmem [shape: f32[32,96], index: 2, kind: input, shape index: {}]
  %s3 = inlined_call_operand.vmem [shape: f32[1,32], index: 3, kind: input, shape index: {}]
  %s4 = inlined_call_operand.vmem [shape: f32[1,64,128], index: 4, kind: input, shape index: {}]
  %s5 = inlined_call_operand.vmem [shape: f32[1,1,96], index: 5, kind: input, shape index: {}]
  %s6 = inlined_call_operand.vmem [shape: f32[1,1,32], index: 6, kind: input, shape index: {}]
  %s7 = inlined_call_operand.vmem [shape: f32[8,2,32], index: 7, kind: output, shape index: {0}]
  %s8 = inlined_call_operand.hbm [shape: f32[2,2,32], index: 8, kind: output, shape index: {1}]
  %9 = xla_tuple %s7, %s8
  %s10 = sld [smem:[#allocation0]]
  $region46: #{encoder_seq_forward.1} parent=0
    _
  %s12 = ssub.s32 1, %s10
  %s13 = scalar_select 0, %s12, %s10
  $region1: #{encoder_seq_forward.1} parent=0
    #allocation2 [shape = 'u8[2048]{0}', space=vmem, size = 0x800, scoped, tag = 'output window, operand 1, single buffered']
    #allocation3 [shape = 's32[1]{0}', space=sflag, size = 0x4, scoped, tag = 'scoped memory for encoder_seq_forward.1']
    %14 = vsyncpa [#allocation3], 0
    // Predicated region
    $region2: #{encoder_seq_forward.1} parent=1 // pred_check
      _
    $region3: #{encoder_seq_forward.1} parent=1 // pred_check_branch
      %16 = sbr.rel (0) target = $region5
    $region4: #{encoder_seq_forward.1} parent=1 // pred_region
      _
    $region5: #{encoder_seq_forward.1} parent=1 // pred_fallthru
      _
    // Predicated region
    $region6: #{encoder_seq_forward.1} parent=1 // pred_check
      _
    $region7: #{encoder_seq_forward.1} parent=1 // pred_check_branch
      %18 = sbr.rel (0) target = $region9
    $region8: #{encoder_seq_forward.1} parent=1 // pred_region
      _
    $region9: #{encoder_seq_forward.1} parent=1 // pred_fallthru
      _
    // Predicated region
    $region10: #{encoder_seq_forward.1} parent=1 // pred_check
      _
    $region11: #{encoder_seq_forward.1} parent=1 // pred_check_branch
      %20 = sbr.rel (0) target = $region13
    $region12: #{encoder_seq_forward.1} parent=1 // pred_region
      _
    $region13: #{encoder_seq_forward.1} parent=1 // pred_fallthru
      _
    // Predicated region
    $region14: #{encoder_seq_forward.1} parent=1 // pred_check
      _
    $region15: #{encoder_seq_forward.1} parent=1 // pred_check_branch
      %22 = sbr.rel (0) target = $region17
    $region16: #{encoder_seq_forward.1} parent=1 // pred_region
      _
    $region17: #{encoder_seq_forward.1} parent=1 // pred_fallthru
      _
    // Predicated region
    $region18: #{encoder_seq_forward.1} parent=1 // pred_check
      _
    $region19: #{encoder_seq_forward.1} parent=1 // pred_check_branch
      %24 = sbr.rel (0) target = $region21
    $region20: #{encoder_seq_forward.1} parent=1 // pred_region
      _
    $region21: #{encoder_seq_forward.1} parent=1 // pred_fallthru
      _
    // Predicated region
    $region22: #{encoder_seq_forward.1} parent=1 // pred_check
      _
    $region23: #{encoder_seq_forward.1} parent=1 // pred_check_branch
      %26 = sbr.rel (0) target = $region25
    $region24: #{encoder_seq_forward.1} parent=1 // pred_region
      _
    $region25: #{encoder_seq_forward.1} parent=1 // pred_fallthru
      _
    // Predicated region
    $region26: #{encoder_seq_forward.1} parent=1 // pred_check
      _
    $region27: #{encoder_seq_forward.1} parent=1 // pred_check_branch
      %28 = sbr.rel (0) target = $region29
    $region28: #{encoder_seq_forward.1} parent=1 // pred_region
      _
    $region29: #{encoder_seq_forward.1} parent=1 // pred_fallthru
      _
    %v29 = vld [vmem:[%s2] sm:$0xff]
    %v30 = vld [vmem:[%s2 + $0x8] sm:$0xff]
    %v31 = vld [vmem:[%s2 + $0x10] sm:$0xff]
    %v32 = vld [vmem:[%s2 + $0x18] sm:$0xff]
    %v33 = vld [vmem:[%s3] sm:$0x1]
    %v35 = vlaneseq
    %v36 = vshrl.u32 %v35, 7
    %v37 = vsub.s32 0, %v36
    %v38 = vrot.slane %v33, %v37
    %v39 = vld [vmem:[%s4] sm:$0xff]
    %v40 = vld [vmem:[%s4 + $0x8] sm:$0xff]
    %v41 = vld [vmem:[%s4 + $0x10] sm:$0xff]
    %v42 = vld [vmem:[%s4 + $0x18] sm:$0xff]
    %v43 = vld [vmem:[%s4 + $0x20] sm:$0xff]
    %v44 = vld [vmem:[%s4 + $0x28] sm:$0xff]
    %v45 = vld [vmem:[%s4 + $0x30] sm:$0xff]
    %v46 = vld [vmem:[%s4 + $0x38] sm:$0xff]
    %v47 = vld [vmem:[%s5] sm:$0x1]
    %v49 = vlaneseq
    %v50 = vshrl.u32 %v49, 7
    %v51 = vsub.s32 0, %v50
    %v52 = vrot.slane %v47, %v51
    %v54 = vld [vmem:[%s6] sm:$0x1]
    %v56 = vlaneseq
    %v57 = vshrl.u32 %v56, 7
    %v58 = vsub.s32 0, %v57
    %v59 = vrot.slane %v54, %v58
    %v60 = vld [vmem:[%s1] sm:$0x3]
    %v61 = vsub.f32 1.0, %v60
    %v62 = vld [vmem:[%s0] sm:$0x3]
    %vm63 = vcmask 261120
    %v65 = vsel %vm63, 0.0, 0
    %67 = vmatprep.subr.mxu0 0.0
    %v68 = vand.u32 %v29, 4294901760
    %69 = vmatpush1.msra.mxu0 %v68
    %70 = vmatprep.subr.mxu0 0.0
    %v71 = vand.u32 %v30, 4294901760
    %72 = vmatpush1.msra.mxu0 %v71
    %73 = vmatprep.subr.mxu0 0.0
    %v74 = vand.u32 %v31, 4294901760
    %75 = vmatpush1.msra.mxu0 %v74
    %76 = vmatprep.subr.mxu0 0.0
    %v77 = vand.u32 %v32, 4294901760
    %78 = vmatpush1.msra.mxu0 %v77
    %79 = vmatprep.subr.mxu0 0.0
    %80 = vmatpush1.msra.mxu0 0.0
    %81 = vmatprep.subr.mxu0 0.0
    %82 = vmatpush1.msra.mxu0 0.0
    %83 = vmatprep.subr.mxu0 0.0
    %84 = vmatpush1.msra.mxu0 0.0
    %85 = vmatprep.subr.mxu0 0.0
    %86 = vmatpush1.msra.mxu0 0.0
    %87 = vmatprep.subr.mxu0 0.0
    %88 = vmatpush1.msra.mxu0 0.0
    %89 = vmatprep.subr.mxu0 0.0
    %90 = vmatpush1.msra.mxu0 0.0
    %91 = vmatprep.subr.mxu0 0.0
    %92 = vmatpush1.msra.mxu0 0.0
    %93 = vmatprep.subr.mxu0 0.0
    %94 = vmatpush1.msra.mxu0 0.0
    %95 = vmatprep.subr.mxu0 0.0
    %96 = vmatpush1.msra.mxu0 0.0
    %97 = vmatprep.subr.mxu0 0.0
    %98 = vmatpush1.msra.mxu0 0.0
    %99 = vmatprep.subr.mxu0 0.0
    %100 = vmatpush1.msra.mxu0 0.0
    %101 = vmatprep.subr.mxu0 0.0
    %102 = vmatpush1.msra.mxu0 0.0
    %103 = vmatprep.subr.mxu0 0.0
    %104 = vmatpush1.msra.mxu0 0.0
    %105 = vmatprep.subr.mxu0 0.0
    %106 = vmatpush1.msra.mxu0 0.0
    %107 = vmatprep.subr.mxu0 0.0
    %108 = vmatpush1.msra.mxu0 0.0
    %109 = vmatprep.subr.mxu0 0.0
    %110 = vmatpush1.msra.mxu0 0.0
    %111 = vmatprep.subr.mxu0 0.0
    %112 = vmatpush1.msra.mxu0 0.0
    %113 = vmatprep.subr.mxu0 0.0
    %114 = vmatpush1.msra.mxu0 0.0
    %115 = vmatprep.subr.mxu0 0.0
    %116 = vmatpush1.msra.mxu0 0.0
    %117 = vmatprep.subr.mxu0 0.0
    %118 = vmatpush1.msra.mxu0 0.0
    %119 = vmatprep.subr.mxu0 0.0
    %120 = vmatpush1.msra.mxu0 0.0
    %121 = vmatprep.subr.mxu0 0.0
    %122 = vmatpush1.msra.mxu0 0.0
    %123 = vmatprep.subr.mxu0 0.0
    %124 = vmatpush1.msra.mxu0 0.0
    %125 = vmatprep.subr.mxu0 0.0
    %126 = vmatpush1.msra.mxu0 0.0
    %127 = vmatprep.subr.mxu0 0.0
    %128 = vmatpush1.msra.mxu0 0.0
    %129 = vmatprep.subr.mxu0 0.0
    %130 = vmatpush1.msra.mxu0 0.0
    %131 = vmatprep.subr.mxu0 0.0
    %132 = vmatpush1.msra.mxu0 0.0
    %133 = vmatprep.subr.mxu0 0.0
    %134 = vmatpush1.msra.mxu0 0.0
    %135 = vmatprep.mubr.f32.mxu0 0.0
    %v136 = vand.u32 %v65, 4294901760
    %v137 = vsub.f32 %v65, %v136
    %v138 = vand.u32 %v137, 4294901760
    %v139 = vsub.f32 %v137, %v138
    %v140 = vand.u32 %v139, 4294901760
    %141 = vmatmul.mubr.f32.gmra.mrb[0].mxu0 %v140
    %v142 = vpop.f32.mrb[0].mxu0
    %v143 = vadd.f32 0.0, %v142
    %v144 = vpop.f32.mrb[0].mxu0
    %145 = vdwg.mxu0
    %146 = vmatprep.subr.mxu0 0.0
    %v147 = vand.u32 %v29, 4294901760
    %v148 = vsub.f32 %v29, %v147
    %v149 = vand.u32 %v148, 4294901760
    %v150 = vsub.f32 %v148, %v149
    %v151 = vand.u32 %v150, 4294901760
    %152 = vmatpush1.msra.mxu0 %v151
    %153 = vmatprep.subr.mxu0 0.0
    %v154 = vand.u32 %v30, 4294901760
    %v155 = vsub.f32 %v30, %v154
    %v156 = vand.u32 %v155, 4294901760
    %v157 = vsub.f32 %v155, %v156
    %v158 = vand.u32 %v157, 4294901760
    %159 = vmatpush1.msra.mxu0 %v158
    %160 = vmatprep.subr.mxu0 0.0
    %v161 = vand.u32 %v31, 4294901760
    %v162 = vsub.f32 %v31, %v161
    %v163 = vand.u32 %v162, 4294901760
    %v164 = vsub.f32 %v162, %v163
    %v165 = vand.u32 %v164, 4294901760
    %166 = vmatpush1.msra.mxu0 %v165
    %167 = vmatprep.subr.mxu0 0.0
    %v168 = vand.u32 %v32, 4294901760
    %v169 = vsub.f32 %v32, %v168
    %v170 = vand.u32 %v169, 4294901760
    %v171 = vsub.f32 %v169, %v170
    %v172 = vand.u32 %v171, 4294901760
    %173 = vmatpush1.msra.mxu0 %v172
    %174 = vmatprep.subr.mxu0 0.0
    %175 = vmatpush1.msra.mxu0 0.0
    %176 = vmatprep.subr.mxu0 0.0
    %177 = vmatpush1.msra.mxu0 0.0
    %178 = vmatprep.subr.mxu0 0.0
    %179 = vmatpush1.msra.mxu0 0.0
    %180 = vmatprep.subr.mxu0 0.0
    %181 = vmatpush1.msra.mxu0 0.0
    %182 = vmatprep.subr.mxu0 0.0
    %183 = vmatpush1.msra.mxu0 0.0
    %184 = vmatprep.subr.mxu0 0.0
    %185 = vmatpush1.msra.mxu0 0.0
    %186 = vmatprep.subr.mxu0 0.0
    %187 = vmatpush1.msra.mxu0 0.0
    %188 = vmatprep.subr.mxu0 0.0
    %189 = vmatpush1.msra.mxu0 0.0
    %190 = vmatprep.subr.mxu0 0.0
    %191 = vmatpush1.msra.mxu0 0.0
    %192 = vmatprep.subr.mxu0 0.0
    %193 = vmatpush1.msra.mxu0 0.0
    %194 = vmatprep.subr.mxu0 0.0
    %195 = vmatpush1.msra.mxu0 0.0
    %196 = vmatprep.subr.mxu0 0.0
    %197 = vmatpush1.msra.mxu0 0.0
    %198 = vmatprep.subr.mxu0 0.0
    %199 = vmatpush1.msra.mxu0 0.0
    %200 = vmatprep.subr.mxu0 0.0
    %201 = vmatpush1.msra.mxu0 0.0
    %202 = vmatprep.subr.mxu0 0.0
    %203 = vmatpush1.msra.mxu0 0.0
    %204 = vmatprep.subr.mxu0 0.0
    %205 = vmatpush1.msra.mxu0 0.0
    %206 = vmatprep.subr.mxu0 0.0
    %207 = vmatpush1.msra.mxu0 0.0
    %208 = vmatprep.subr.mxu0 0.0
    %209 = vmatpush1.msra.mxu0 0.0
    %210 = vmatprep.subr.mxu0 0.0
    %211 = vmatpush1.msra.mxu0 0.0
    %212 = vmatprep.subr.mxu0 0.0
    %213 = vmatpush1.msra.mxu0 0.0
    %214 = vmatprep.subr.mxu0 0.0
    %215 = vmatpush1.msra.mxu0 0.0
    %216 = vmatprep.subr.mxu0 0.0
    %217 = vmatpush1.msra.mxu0 0.0
    %218 = vmatprep.subr.mxu0 0.0
    %219 = vmatpush1.msra.mxu0 0.0
    %220 = vmatprep.subr.mxu0 0.0
    %221 = vmatpush1.msra.mxu0 0.0
    %222 = vmatprep.subr.mxu0 0.0
    %223 = vmatpush1.msra.mxu0 0.0
    %224 = vmatprep.subr.mxu0 0.0
    %225 = vmatpush1.msra.mxu0 0.0
    %226 = vmatprep.subr.mxu0 0.0
    %227 = vmatpush1.msra.mxu0 0.0
    %228 = vmatprep.subr.mxu0 0.0
    %229 = vmatpush1.msra.mxu0 0.0
    %230 = vmatprep.mubr.f32.mxu0 0.0
    %v231 = vand.u32 %v65, 4294901760
    %232 = vmatmul.mubr.f32.gmra.mrb[0].mxu0 %v231
    %v233 = vpop.f32.mrb[0].mxu0
    %v234 = vadd.f32 %v143, %v233
    %v235 = vpop.f32.mrb[0].mxu0
    %236 = vdwg.mxu0
    %237 = vmatprep.subr.mxu0 0.0
    %v238 = vand.u32 %v29, 4294901760
    %v239 = vsub.f32 %v29, %v238
    %240 = vmatpush1.msra.mxu0 %v239
    %241 = vmatprep.subr.mxu0 0.0
    %v242 = vand.u32 %v30, 4294901760
    %v243 = vsub.f32 %v30, %v242
    %244 = vmatpush1.msra.mxu0 %v243
    %245 = vmatprep.subr.mxu0 0.0
    %v246 = vand.u32 %v31, 4294901760
    %v247 = vsub.f32 %v31, %v246
    %248 = vmatpush1.msra.mxu0 %v247
    %249 = vmatprep.subr.mxu0 0.0
    %v250 = vand.u32 %v32, 4294901760
    %v251 = vsub.f32 %v32, %v250
    %252 = vmatpush1.msra.mxu0 %v251
    %253 = vmatprep.subr.mxu0 0.0
    %254 = vmatpush1.msra.mxu0 0.0
    %255 = vmatprep.subr.mxu0 0.0
    %256 = vmatpush1.msra.mxu0 0.0
    %257 = vmatprep.subr.mxu0 0.0
    %258 = vmatpush1.msra.mxu0 0.0
    %259 = vmatprep.subr.mxu0 0.0
    %260 = vmatpush1.msra.mxu0 0.0
    %261 = vmatprep.subr.mxu0 0.0
    %262 = vmatpush1.msra.mxu0 0.0
    %263 = vmatprep.subr.mxu0 0.0
    %264 = vmatpush1.msra.mxu0 0.0
    %265 = vmatprep.subr.mxu0 0.0
    %266 = vmatpush1.msra.mxu0 0.0
    %267 = vmatprep.subr.mxu0 0.0
    %268 = vmatpush1.msra.mxu0 0.0
    %269 = vmatprep.subr.mxu0 0.0
    %270 = vmatpush1.msra.mxu0 0.0
    %271 = vmatprep.subr.mxu0 0.0
    %272 = vmatpush1.msra.mxu0 0.0
    %273 = vmatprep.subr.mxu0 0.0
    %274 = vmatpush1.msra.mxu0 0.0
    %275 = vmatprep.subr.mxu0 0.0
    %276 = vmatpush1.msra.mxu0 0.0
    %277 = vmatprep.subr.mxu0 0.0
    %278 = vmatpush1.msra.mxu0 0.0
    %279 = vmatprep.subr.mxu0 0.0
    %280 = vmatpush1.msra.mxu0 0.0
    %281 = vmatprep.subr.mxu0 0.0
    %282 = vmatpush1.msra.mxu0 0.0
    %283 = vmatprep.subr.mxu0 0.0
    %284 = vmatpush1.msra.mxu0 0.0
    %285 = vmatprep.subr.mxu0 0.0
    %286 = vmatpush1.msra.mxu0 0.0
    %287 = vmatprep.subr.mxu0 0.0
    %288 = vmatpush1.msra.mxu0 0.0
    %289 = vmatprep.subr.mxu0 0.0
    %290 = vmatpush1.msra.mxu0 0.0
    %291 = vmatprep.subr.mxu0 0.0
    %292 = vmatpush1.msra.mxu0 0.0
    %293 = vmatprep.subr.mxu0 0.0
    %294 = vmatpush1.msra.mxu0 0.0
    %295 = vmatprep.subr.mxu0 0.0
    %296 = vmatpush1.msra.mxu0 0.0
    %297 = vmatprep.subr.mxu0 0.0
    %298 = vmatpush1.msra.mxu0 0.0
    %299 = vmatprep.subr.mxu0 0.0
    %300 = vmatpush1.msra.mxu0 0.0
    %301 = vmatprep.subr.mxu0 0.0
    %302 = vmatpush1.msra.mxu0 0.0
    %303 = vmatprep.subr.mxu0 0.0
    %304 = vmatpush1.msra.mxu0 0.0
    %305 = vmatprep.subr.mxu0 0.0
    %306 = vmatpush1.msra.mxu0 0.0
    %307 = vmatprep.subr.mxu0 0.0
    %308 = vmatpush1.msra.mxu0 0.0
    %309 = vmatprep.mubr.f32.mxu0 0.0
    %v310 = vand.u32 %v65, 4294901760
    %v311 = vsub.f32 %v65, %v310
    %312 = vmatmul.mubr.f32.gmra.mrb[0].mxu0 %v311
    %v313 = vpop.f32.mrb[0].mxu0
    %v314 = vadd.f32 %v234, %v313
    %v315 = vpop.f32.mrb[0].mxu0
    %316 = vdwg.mxu0
    %317 = vmatprep.subr.mxu0 0.0
    %v318 = vand.u32 %v29, 4294901760
    %319 = vmatpush1.msra.mxu0 %v318
    %320 = vmatprep.subr.mxu0 0.0
    %v321 = vand.u32 %v30, 4294901760
    %322 = vmatpush1.msra.mxu0 %v321
    %323 = vmatprep.subr.mxu0 0.0
    %v324 = vand.u32 %v31, 4294901760
    %325 = vmatpush1.msra.mxu0 %v324
    %326 = vmatprep.subr.mxu0 0.0
    %v327 = vand.u32 %v32, 4294901760
    %328 = vmatpush1.msra.mxu0 %v327
    %329 = vmatprep.subr.mxu0 0.0
    %330 = vmatpush1.msra.mxu0 0.0
    %331 = vmatprep.subr.mxu0 0.0
    %332 = vmatpush1.msra.mxu0 0.0
    %333 = vmatprep.subr.mxu0 0.0
    %334 = vmatpush1.msra.mxu0 0.0
    %335 = vmatprep.subr.mxu0 0.0
    %336 = vmatpush1.msra.mxu0 0.0
    %337 = vmatprep.subr.mxu0 0.0
    %338 = vmatpush1.msra.mxu0 0.0
    %339 = vmatprep.subr.mxu0 0.0
    %340 = vmatpush1.msra.mxu0 0.0
    %341 = vmatprep.subr.mxu0 0.0
    %342 = vmatpush1.msra.mxu0 0.0
    %343 = vmatprep.subr.mxu0 0.0
    %344 = vmatpush1.msra.mxu0 0.0
    %345 = vmatprep.subr.mxu0 0.0
    %346 = vmatpush1.msra.mxu0 0.0
    %347 = vmatprep.subr.mxu0 0.0
    %348 = vmatpush1.msra.mxu0 0.0
    %349 = vmatprep.subr.mxu0 0.0
    %350 = vmatpush1.msra.mxu0 0.0
    %351 = vmatprep.subr.mxu0 0.0
    %352 = vmatpush1.msra.mxu0 0.0
    %353 = vmatprep.subr.mxu0 0.0
    %354 = vmatpush1.msra.mxu0 0.0
    %355 = vmatprep.subr.mxu0 0.0
    %356 = vmatpush1.msra.mxu0 0.0
    %357 = vmatprep.subr.mxu0 0.0
    %358 = vmatpush1.msra.mxu0 0.0
    %359 = vmatprep.subr.mxu0 0.0
    %360 = vmatpush1.msra.mxu0 0.0
    %361 = vmatprep.subr.mxu0 0.0
    %362 = vmatpush1.msra.mxu0 0.0
    %363 = vmatprep.subr.mxu0 0.0
    %364 = vmatpush1.msra.mxu0 0.0
    %365 = vmatprep.subr.mxu0 0.0
    %366 = vmatpush1.msra.mxu0 0.0
    %367 = vmatprep.subr.mxu0 0.0
    %368 = vmatpush1.msra.mxu0 0.0
    %369 = vmatprep.subr.mxu0 0.0
    %370 = vmatpush1.msra.mxu0 0.0
    %371 = vmatprep.subr.mxu0 0.0
    %372 = vmatpush1.msra.mxu0 0.0
    %373 = vmatprep.subr.mxu0 0.0
    %374 = vmatpush1.msra.mxu0 0.0
    %375 = vmatprep.subr.mxu0 0.0
    %376 = vmatpush1.msra.mxu0 0.0
    %377 = vmatprep.subr.mxu0 0.0
    %378 = vmatpush1.msra.mxu0 0.0
    %379 = vmatprep.subr.mxu0 0.0
    %380 = vmatpush1.msra.mxu0 0.0
    %381 = vmatprep.subr.mxu0 0.0
    %382 = vmatpush1.msra.mxu0 0.0
    %383 = vmatprep.subr.mxu0 0.0
    %384 = vmatpush1.msra.mxu0 0.0
    %385 = vmatprep.mubr.f32.mxu0 0.0
    %v386 = vand.u32 %v65, 4294901760
    %v387 = vsub.f32 %v65, %v386
    %v388 = vand.u32 %v387, 4294901760
    %389 = vmatmul.mubr.f32.gmra.mrb[0].mxu0 %v388
    %v390 = vpop.f32.mrb[0].mxu0
    %v391 = vadd.f32 %v314, %v390
    %v392 = vpop.f32.mrb[0].mxu0
    %393 = vdwg.mxu0
    %394 = vmatprep.subr.mxu0 0.0
    %v395 = vand.u32 %v29, 4294901760
    %v396 = vsub.f32 %v29, %v395
    %v397 = vand.u32 %v396, 4294901760
    %398 = vmatpush1.msra.mxu0 %v397
    %399 = vmatprep.subr.mxu0 0.0
    %v400 = vand.u32 %v30, 4294901760
    %v401 = vsub.f32 %v30, %v400
    %v402 = vand.u32 %v401, 4294901760
    %403 = vmatpush1.msra.mxu0 %v402
    %404 = vmatprep.subr.mxu0 0.0
    %v405 = vand.u32 %v31, 4294901760
    %v406 = vsub.f32 %v31, %v405
    %v407 = vand.u32 %v406, 4294901760
    %408 = vmatpush1.msra.mxu0 %v407
    %409 = vmatprep.subr.mxu0 0.0
    %v410 = vand.u32 %v32, 4294901760
    %v411 = vsub.f32 %v32, %v410
    %v412 = vand.u32 %v411, 4294901760
    %413 = vmatpush1.msra.mxu0 %v412
    %414 = vmatprep.subr.mxu0 0.0
    %415 = vmatpush1.msra.mxu0 0.0
    %416 = vmatprep.subr.mxu0 0.0
    %417 = vmatpush1.msra.mxu0 0.0
    %418 = vmatprep.subr.mxu0 0.0
    %419 = vmatpush1.msra.mxu0 0.0
    %420 = vmatprep.subr.mxu0 0.0
    %421 = vmatpush1.msra.mxu0 0.0
    %422 = vmatprep.subr.mxu0 0.0
    %423 = vmatpush1.msra.mxu0 0.0
    %424 = vmatprep.subr.mxu0 0.0
    %425 = vmatpush1.msra.mxu0 0.0
    %426 = vmatprep.subr.mxu0 0.0
    %427 = vmatpush1.msra.mxu0 0.0
    %428 = vmatprep.subr.mxu0 0.0
    %429 = vmatpush1.msra.mxu0 0.0
    %430 = vmatprep.subr.mxu0 0.0
    %431 = vmatpush1.msra.mxu0 0.0
    %432 = vmatprep.subr.mxu0 0.0
    %433 = vmatpush1.msra.mxu0 0.0
    %434 = vmatprep.subr.mxu0 0.0
    %435 = vmatpush1.msra.mxu0 0.0
    %436 = vmatprep.subr.mxu0 0.0
    %437 = vmatpush1.msra.mxu0 0.0
    %438 = vmatprep.subr.mxu0 0.0
    %439 = vmatpush1.msra.mxu0 0.0
    %440 = vmatprep.subr.mxu0 0.0
    %441 = vmatpush1.msra.mxu0 0.0
    %442 = vmatprep.subr.mxu0 0.0
    %443 = vmatpush1.msra.mxu0 0.0
    %444 = vmatprep.subr.mxu0 0.0
    %445 = vmatpush1.msra.mxu0 0.0
    %446 = vmatprep.subr.mxu0 0.0
    %447 = vmatpush1.msra.mxu0 0.0
    %448 = vmatprep.subr.mxu0 0.0
    %449 = vmatpush1.msra.mxu0 0.0
    %450 = vmatprep.subr.mxu0 0.0
    %451 = vmatpush1.msra.mxu0 0.0
    %452 = vmatprep.subr.mxu0 0.0
    %453 = vmatpush1.msra.mxu0 0.0
    %454 = vmatprep.subr.mxu0 0.0
    %455 = vmatpush1.msra.mxu0 0.0
    %456 = vmatprep.subr.mxu0 0.0
    %457 = vmatpush1.msra.mxu0 0.0
    %458 = vmatprep.subr.mxu0 0.0
    %459 = vmatpush1.msra.mxu0 0.0
    %460 = vmatprep.subr.mxu0 0.0
    %461 = vmatpush1.msra.mxu0 0.0
    %462 = vmatprep.subr.mxu0 0.0
    %463 = vmatpush1.msra.mxu0 0.0
    %464 = vmatprep.subr.mxu0 0.0
    %465 = vmatpush1.msra.mxu0 0.0
    %466 = vmatprep.subr.mxu0 0.0
    %467 = vmatpush1.msra.mxu0 0.0
    %468 = vmatprep.subr.mxu0 0.0
    %469 = vmatpush1.msra.mxu0 0.0
    %470 = vmatprep.mubr.f32.mxu0 0.0
    %v471 = vand.u32 %v65, 4294901760
    %472 = vmatmul.mubr.f32.gmra.mrb[0].mxu0 %v471
    %v473 = vpop.f32.mrb[0].mxu0
    %v474 = vadd.f32 %v391, %v473
    %v475 = vpop.f32.mrb[0].mxu0
    %476 = vdwg.mxu0
    %477 = vmatprep.subr.mxu0 0.0
    %v478 = vand.u32 %v29, 4294901760
    %479 = vmatpush1.msra.mxu0 %v478
    %480 = vmatprep.subr.mxu0 0.0
    %v481 = vand.u32 %v30, 4294901760
    %482 = vmatpush1.msra.mxu0 %v481
    %483 = vmatprep.subr.mxu0 0.0
    %v484 = vand.u32 %v31, 4294901760
    %485 = vmatpush1.msra.mxu0 %v484
    %486 = vmatprep.subr.mxu0 0.0
    %v487 = vand.u32 %v32, 4294901760
    %488 = vmatpush1.msra.mxu0 %v487
    %489 = vmatprep.subr.mxu0 0.0
    %490 = vmatpush1.msra.mxu0 0.0
    %491 = vmatprep.subr.mxu0 0.0
    %492 = vmatpush1.msra.mxu0 0.0
    %493 = vmatprep.subr.mxu0 0.0
    %494 = vmatpush1.msra.mxu0 0.0
    %495 = vmatprep.subr.mxu0 0.0
    %496 = vmatpush1.msra.mxu0 0.0
    %497 = vmatprep.subr.mxu0 0.0
    %498 = vmatpush1.msra.mxu0 0.0
    %499 = vmatprep.subr.mxu0 0.0
    %500 = vmatpush1.msra.mxu0 0.0
    %501 = vmatprep.subr.mxu0 0.0
    %502 = vmatpush1.msra.mxu0 0.0
    %503 = vmatprep.subr.mxu0 0.0
    %504 = vmatpush1.msra.mxu0 0.0
    %505 = vmatprep.subr.mxu0 0.0
    %506 = vmatpush1.msra.mxu0 0.0
    %507 = vmatprep.subr.mxu0 0.0
    %508 = vmatpush1.msra.mxu0 0.0
    %509 = vmatprep.subr.mxu0 0.0
    %510 = vmatpush1.msra.mxu0 0.0
    %511 = vmatprep.subr.mxu0 0.0
    %512 = vmatpush1.msra.mxu0 0.0
    %513 = vmatprep.subr.mxu0 0.0
    %514 = vmatpush1.msra.mxu0 0.0
    %515 = vmatprep.subr.mxu0 0.0
    %516 = vmatpush1.msra.mxu0 0.0
    %517 = vmatprep.subr.mxu0 0.0
    %518 = vmatpush1.msra.mxu0 0.0
    %519 = vmatprep.subr.mxu0 0.0
    %520 = vmatpush1.msra.mxu0 0.0
    %521 = vmatprep.subr.mxu0 0.0
    %522 = vmatpush1.msra.mxu0 0.0
    %523 = vmatprep.subr.mxu0 0.0
    %524 = vmatpush1.msra.mxu0 0.0
    %525 = vmatprep.subr.mxu0 0.0
    %526 = vmatpush1.msra.mxu0 0.0
    %527 = vmatprep.subr.mxu0 0.0
    %528 = vmatpush1.msra.mxu0 0.0
    %529 = vmatprep.subr.mxu0 0.0
    %530 = vmatpush1.msra.mxu0 0.0
    %531 = vmatprep.subr.mxu0 0.0
    %532 = vmatpush1.msra.mxu0 0.0
    %533 = vmatprep.subr.mxu0 0.0
    %534 = vmatpush1.msra.mxu0 0.0
    %535 = vmatprep.subr.mxu0 0.0
    %536 = vmatpush1.msra.mxu0 0.0
    %537 = vmatprep.subr.mxu0 0.0
    %538 = vmatpush1.msra.mxu0 0.0
    %539 = vmatprep.subr.mxu0 0.0
    %540 = vmatpush1.msra.mxu0 0.0
    %541 = vmatprep.subr.mxu0 0.0
    %542 = vmatpush1.msra.mxu0 0.0
    %543 = vmatprep.subr.mxu0 0.0
    %544 = vmatpush1.msra.mxu0 0.0
    %545 = vmatprep.mubr.f32.mxu0 0.0
    %v546 = vand.u32 %v65, 4294901760
    %547 = vmatmul.mubr.f32.gmra.mrb[0].mxu0 %v546
    %v548 = vpop.f32.mrb[0].mxu0
    %v549 = vadd.f32 %v474, %v548
    %v550 = vpop.f32.mrb[0].mxu0
    %551 = vdwg.mxu0
    %v552 = vadd.f32 %v62, %v549
    %v553 = vxor.u32 %v552, 2147483648
    %v554 = vmul.f32 %v553, 1.442695
    %v555 = vpow.pop %v554
    %v556 = vadd.f32 %v555, 1.0
    %v557 = vrcp.pop %v556
    %v558 = vmul.f32 1.0, %v557
    %559 = vrot.lane.b32.xlu0 %v38, 64
    %v560 = vpop.permute.xlu0 %559
    %v562 = vadd.f32 %v549, %v560
    %564 = vrot.lane.b32.xlu0 %v562, 64
    %v565 = vpop.permute.xlu0 %564
    %v567 = vmul.f32 %v558, %v565
    %569 = vrot.lane.b32.xlu0 %v567, 64
    %v570 = vpop.permute.xlu0 %569
    %v572 = vadd.f32 %v62, %v570
    %v573 = vtanh.pop %v572
    %v574 = vsub.f32 1.0, %v558
    %576 = vrot.lane.b32.xlu0 %v573, 96
    %v577 = vpop.permute.xlu0 %576
    %v579 = vmul.f32 %v574, %v577
    %v580 = vmul.f32 %v558, 0.0
    %v581 = vadd.f32 %v579, %v580
    %583 = vset.pattern.permute.xlu0 0
    %584 = vperm.xlu0 %583, %v60
    %v585 = vpop.permute.xlu0 %584
    %v587 = vmul.f32 %v585, %v581
    %589 = vset.pattern.permute.xlu0 0
    %590 = vperm.xlu0 %589, %v61
    %v591 = vpop.permute.xlu0 %590
    %v593 = vmul.f32 %v591, 0.0
    %v594 = vadd.f32 %v587, %v593
    %596 = vrot.lane.b32.xlu0 %v594, 96
    %v597 = vpop.permute.xlu0 %596
    %v599 = vsel %vm63, %v597, 0.0
    %vm600 = vcmask 523264
    %v602 = vsel %vm600, %v599, 0
    %604 = vmatprep.subr.mxu0 0.0
    %v605 = vand.u32 %v39, 4294901760
    %606 = vmatpush1.msra.mxu0 %v605
    %607 = vmatprep.subr.mxu0 0.0
    %v608 = vand.u32 %v40, 4294901760
    %609 = vmatpush1.msra.mxu0 %v608
    %610 = vmatprep.subr.mxu0 0.0
    %v611 = vand.u32 %v41, 4294901760
    %612 = vmatpush1.msra.mxu0 %v611
    %613 = vmatprep.subr.mxu0 0.0
    %v614 = vand.u32 %v42, 4294901760
    %615 = vmatpush1.msra.mxu0 %v614
    %616 = vmatprep.subr.mxu0 0.0
    %v617 = vand.u32 %v43, 4294901760
    %618 = vmatpush1.msra.mxu0 %v617
    %619 = vmatprep.subr.mxu0 0.0
    %v620 = vand.u32 %v44, 4294901760
    %621 = vmatpush1.msra.mxu0 %v620
    %622 = vmatprep.subr.mxu0 0.0
    %v623 = vand.u32 %v45, 4294901760
    %624 = vmatpush1.msra.mxu0 %v623
    %625 = vmatprep.subr.mxu0 0.0
    %v626 = vand.u32 %v46, 4294901760
    %627 = vmatpush1.msra.mxu0 %v626
    %628 = vmatprep.subr.mxu0 0.0
    %629 = vmatpush1.msra.mxu0 0.0
    %630 = vmatprep.subr.mxu0 0.0
    %631 = vmatpush1.msra.mxu0 0.0
    %632 = vmatprep.subr.mxu0 0.0
    %633 = vmatpush1.msra.mxu0 0.0
    %634 = vmatprep.subr.mxu0 0.0
    %635 = vmatpush1.msra.mxu0 0.0
    %636 = vmatprep.subr.mxu0 0.0
    %637 = vmatpush1.msra.mxu0 0.0
    %638 = vmatprep.subr.mxu0 0.0
    %639 = vmatpush1.msra.mxu0 0.0
    %640 = vmatprep.subr.mxu0 0.0
    %641 = vmatpush1.msra.mxu0 0.0
    %642 = vmatprep.subr.mxu0 0.0
    %643 = vmatpush1.msra.mxu0 0.0
    %644 = vmatprep.subr.mxu0 0.0
    %645 = vmatpush1.msra.mxu0 0.0
    %646 = vmatprep.subr.mxu0 0.0
    %647 = vmatpush1.msra.mxu0 0.0
    %648 = vmatprep.subr.mxu0 0.0
    %649 = vmatpush1.msra.mxu0 0.0
    %650 = vmatprep.subr.mxu0 0.0
    %651 = vmatpush1.msra.mxu0 0.0
    %652 = vmatprep.subr.mxu0 0.0
    %653 = vmatpush1.msra.mxu0 0.0
    %654 = vmatprep.subr.mxu0 0.0
    %655 = vmatpush1.msra.mxu0 0.0
    %656 = vmatprep.subr.mxu0 0.0
    %657 = vmatpush1.msra.mxu0 0.0
    %658 = vmatprep.subr.mxu0 0.0
    %659 = vmatpush1.msra.mxu0 0.0
    %660 = vmatprep.subr.mxu0 0.0
    %661 = vmatpush1.msra.mxu0 0.0
    %662 = vmatprep.subr.mxu0 0.0
    %663 = vmatpush1.msra.mxu0 0.0
    %664 = vmatprep.subr.mxu0 0.0
    %665 = vmatpush1.msra.mxu0 0.0
    %666 = vmatprep.subr.mxu0 0.0
    %667 = vmatpush1.msra.mxu0 0.0
    %668 = vmatprep.subr.mxu0 0.0
    %669 = vmatpush1.msra.mxu0 0.0
    %670 = vmatprep.subr.mxu0 0.0
    %671 = vmatpush1.msra.mxu0 0.0
    %672 = vmatprep.subr.mxu0 0.0
    %673 = vmatpush1.msra.mxu0 0.0
    %674 = vmatprep.subr.mxu0 0.0
    %675 = vmatpush1.msra.mxu0 0.0
    %676 = vmatprep.mubr.f32.mxu0 0.0
    %v677 = vand.u32 %v602, 4294901760
    %v678 = vsub.f32 %v602, %v677
    %v679 = vand.u32 %v678, 4294901760
    %v680 = vsub.f32 %v678, %v679
    %v681 = vand.u32 %v680, 4294901760
    %682 = vmatmul.mubr.f32.gmra.mrb[0].mxu0 %v681
    %v683 = vpop.f32.mrb[0].mxu0
    %v684 = vadd.f32 0.0, %v683
    %v685 = vpop.f32.mrb[0].mxu0
    %686 = vdwg.mxu0
    %687 = vmatprep.subr.mxu0 0.0
    %v688 = vand.u32 %v39, 4294901760
    %v689 = vsub.f32 %v39, %v688
    %v690 = vand.u32 %v689, 4294901760
    %v691 = vsub.f32 %v689, %v690
    %v692 = vand.u32 %v691, 4294901760
    %693 = vmatpush1.msra.mxu0 %v692
    %694 = vmatprep.subr.mxu0 0.0
    %v695 = vand.u32 %v40, 4294901760
    %v696 = vsub.f32 %v40, %v695
    %v697 = vand.u32 %v696, 4294901760
    %v698 = vsub.f32 %v696, %v697
    %v699 = vand.u32 %v698, 4294901760
    %700 = vmatpush1.msra.mxu0 %v699
    %701 = vmatprep.subr.mxu0 0.0
    %v702 = vand.u32 %v41, 4294901760
    %v703 = vsub.f32 %v41, %v702
    %v704 = vand.u32 %v703, 4294901760
    %v705 = vsub.f32 %v703, %v704
    %v706 = vand.u32 %v705, 4294901760
    %707 = vmatpush1.msra.mxu0 %v706
    %708 = vmatprep.subr.mxu0 0.0
    %v709 = vand.u32 %v42, 4294901760
    %v710 = vsub.f32 %v42, %v709
    %v711 = vand.u32 %v710, 4294901760
    %v712 = vsub.f32 %v710, %v711
    %v713 = vand.u32 %v712, 4294901760
    %714 = vmatpush1.msra.mxu0 %v713
    %715 = vmatprep.subr.mxu0 0.0
    %v716 = vand.u32 %v43, 4294901760
    %v717 = vsub.f32 %v43, %v716
    %v718 = vand.u32 %v717, 4294901760
    %v719 = vsub.f32 %v717, %v718
    %v720 = vand.u32 %v719, 4294901760
    %721 = vmatpush1.msra.mxu0 %v720
    %722 = vmatprep.subr.mxu0 0.0
    %v723 = vand.u32 %v44, 4294901760
    %v724 = vsub.f32 %v44, %v723
    %v725 = vand.u32 %v724, 4294901760
    %v726 = vsub.f32 %v724, %v725
    %v727 = vand.u32 %v726, 4294901760
    %728 = vmatpush1.msra.mxu0 %v727
    %729 = vmatprep.subr.mxu0 0.0
    %v730 = vand.u32 %v45, 4294901760
    %v731 = vsub.f32 %v45, %v730
    %v732 = vand.u32 %v731, 4294901760
    %v733 = vsub.f32 %v731, %v732
    %v734 = vand.u32 %v733, 4294901760
    %735 = vmatpush1.msra.mxu0 %v734
    %736 = vmatprep.subr.mxu0 0.0
    %v737 = vand.u32 %v46, 4294901760
    %v738 = vsub.f32 %v46, %v737
    %v739 = vand.u32 %v738, 4294901760
    %v740 = vsub.f32 %v738, %v739
    %v741 = vand.u32 %v740, 4294901760
    %742 = vmatpush1.msra.mxu0 %v741
    %743 = vmatprep.subr.mxu0 0.0
    %744 = vmatpush1.msra.mxu0 0.0
    %745 = vmatprep.subr.mxu0 0.0
    %746 = vmatpush1.msra.mxu0 0.0
    %747 = vmatprep.subr.mxu0 0.0
    %748 = vmatpush1.msra.mxu0 0.0
    %749 = vmatprep.subr.mxu0 0.0
    %750 = vmatpush1.msra.mxu0 0.0
    %751 = vmatprep.subr.mxu0 0.0
    %752 = vmatpush1.msra.mxu0 0.0
    %753 = vmatprep.subr.mxu0 0.0
    %754 = vmatpush1.msra.mxu0 0.0
    %755 = vmatprep.subr.mxu0 0.0
    %756 = vmatpush1.msra.mxu0 0.0
    %757 = vmatprep.subr.mxu0 0.0
    %758 = vmatpush1.msra.mxu0 0.0
    %759 = vmatprep.subr.mxu0 0.0
    %760 = vmatpush1.msra.mxu0 0.0
    %761 = vmatprep.subr.mxu0 0.0
    %762 = vmatpush1.msra.mxu0 0.0
    %763 = vmatprep.subr.mxu0 0.0
    %764 = vmatpush1.msra.mxu0 0.0
    %765 = vmatprep.subr.mxu0 0.0
    %766 = vmatpush1.msra.mxu0 0.0
    %767 = vmatprep.subr.mxu0 0.0
    %768 = vmatpush1.msra.mxu0 0.0
    %769 = vmatprep.subr.mxu0 0.0
    %770 = vmatpush1.msra.mxu0 0.0
    %771 = vmatprep.subr.mxu0 0.0
    %772 = vmatpush1.msra.mxu0 0.0
    %773 = vmatprep.subr.mxu0 0.0
    %774 = vmatpush1.msra.mxu0 0.0
    %775 = vmatprep.subr.mxu0 0.0
    %776 = vmatpush1.msra.mxu0 0.0
    %777 = vmatprep.subr.mxu0 0.0
    %778 = vmatpush1.msra.mxu0 0.0
    %779 = vmatprep.subr.mxu0 0.0
    %780 = vmatpush1.msra.mxu0 0.0
    %781 = vmatprep.subr.mxu0 0.0
    %782 = vmatpush1.msra.mxu0 0.0
    %783 = vmatprep.subr.mxu0 0.0
    %784 = vmatpush1.msra.mxu0 0.0
    %785 = vmatprep.subr.mxu0 0.0
    %786 = vmatpush1.msra.mxu0 0.0
    %787 = vmatprep.subr.mxu0 0.0
    %788 = vmatpush1.msra.mxu0 0.0
    %789 = vmatprep.subr.mxu0 0.0
    %790 = vmatpush1.msra.mxu0 0.0
    %791 = vmatprep.mubr.f32.mxu0 0.0
    %v792 = vand.u32 %v602, 4294901760
    %793 = vmatmul.mubr.f32.gmra.mrb[0].mxu0 %v792
    %v794 = vpop.f32.mrb[0].mxu0
    %v795 = vadd.f32 %v684, %v794
    %v796 = vpop.f32.mrb[0].mxu0
    %797 = vdwg.mxu0
    %798 = vmatprep.subr.mxu0 0.0
    %v799 = vand.u32 %v39, 4294901760
    %v800 = vsub.f32 %v39, %v799
    %801 = vmatpush1.msra.mxu0 %v800
    %802 = vmatprep.subr.mxu0 0.0
    %v803 = vand.u32 %v40, 4294901760
    %v804 = vsub.f32 %v40, %v803
    %805 = vmatpush1.msra.mxu0 %v804
    %806 = vmatprep.subr.mxu0 0.0
    %v807 = vand.u32 %v41, 4294901760
    %v808 = vsub.f32 %v41, %v807
    %809 = vmatpush1.msra.mxu0 %v808
    %810 = vmatprep.subr.mxu0 0.0
    %v811 = vand.u32 %v42, 4294901760
    %v812 = vsub.f32 %v42, %v811
    %813 = vmatpush1.msra.mxu0 %v812
    %814 = vmatprep.subr.mxu0 0.0
    %v815 = vand.u32 %v43, 4294901760
    %v816 = vsub.f32 %v43, %v815
    %817 = vmatpush1.msra.mxu0 %v816
    %818 = vmatprep.subr.mxu0 0.0
    %v819 = vand.u32 %v44, 4294901760
    %v820 = vsub.f32 %v44, %v819
    %821 = vmatpush1.msra.mxu0 %v820
    %822 = vmatprep.subr.mxu0 0.0
    %v823 = vand.u32 %v45, 4294901760
    %v824 = vsub.f32 %v45, %v823
    %825 = vmatpush1.msra.mxu0 %v824
    %826 = vmatprep.subr.mxu0 0.0
    %v827 = vand.u32 %v46, 4294901760
    %v828 = vsub.f32 %v46, %v827
    %829 = vmatpush1.msra.mxu0 %v828
    %830 = vmatprep.subr.mxu0 0.0
    %831 = vmatpush1.msra.mxu0 0.0
    %832 = vmatprep.subr.mxu0 0.0
    %833 = vmatpush1.msra.mxu0 0.0
    %834 = vmatprep.subr.mxu0 0.0
    %835 = vmatpush1.msra.mxu0 0.0
    %836 = vmatprep.subr.mxu0 0.0
    %837 = vmatpush1.msra.mxu0 0.0
    %838 = vmatprep.subr.mxu0 0.0
    %839 = vmatpush1.msra.mxu0 0.0
    %840 = vmatprep.subr.mxu0 0.0
    %841 = vmatpush1.msra.mxu0 0.0
    %842 = vmatprep.subr.mxu0 0.0
    %843 = vmatpush1.msra.mxu0 0.0
    %844 = vmatprep.subr.mxu0 0.0
    %845 = vmatpush1.msra.mxu0 0.0
    %846 = vmatprep.subr.mxu0 0.0
    %847 = vmatpush1.msra.mxu0 0.0
    %848 = vmatprep.subr.mxu0 0.0
    %849 = vmatpush1.msra.mxu0 0.0
    %850 = vmatprep.subr.mxu0 0.0
    %851 = vmatpush1.msra.mxu0 0.0
    %852 = vmatprep.subr.mxu0 0.0
    %853 = vmatpush1.msra.mxu0 0.0
    %854 = vmatprep.subr.mxu0 0.0
    %855 = vmatpush1.msra.mxu0 0.0
    %856 = vmatprep.subr.mxu0 0.0
    %857 = vmatpush1.msra.mxu0 0.0
    %858 = vmatprep.subr.mxu0 0.0
    %859 = vmatpush1.msra.mxu0 0.0
    %860 = vmatprep.subr.mxu0 0.0
    %861 = vmatpush1.msra.mxu0 0.0
    %862 = vmatprep.subr.mxu0 0.0
    %863 = vmatpush1.msra.mxu0 0.0
    %864 = vmatprep.subr.mxu0 0.0
    %865 = vmatpush1.msra.mxu0 0.0
    %866 = vmatprep.subr.mxu0 0.0
    %867 = vmatpush1.msra.mxu0 0.0
    %868 = vmatprep.subr.mxu0 0.0
    %869 = vmatpush1.msra.mxu0 0.0
    %870 = vmatprep.subr.mxu0 0.0
    %871 = vmatpush1.msra.mxu0 0.0
    %872 = vmatprep.subr.mxu0 0.0
    %873 = vmatpush1.msra.mxu0 0.0
    %874 = vmatprep.subr.mxu0 0.0
    %875 = vmatpush1.msra.mxu0 0.0
    %876 = vmatprep.subr.mxu0 0.0
    %877 = vmatpush1.msra.mxu0 0.0
    %878 = vmatprep.mubr.f32.mxu0 0.0
    %v879 = vand.u32 %v602, 4294901760
    %v880 = vsub.f32 %v602, %v879
    %881 = vmatmul.mubr.f32.gmra.mrb[0].mxu0 %v880
    %v882 = vpop.f32.mrb[0].mxu0
    %v883 = vadd.f32 %v795, %v882
    %v884 = vpop.f32.mrb[0].mxu0
    %885 = vdwg.mxu0
    %886 = vmatprep.subr.mxu0 0.0
    %v887 = vand.u32 %v39, 4294901760
    %888 = vmatpush1.msra.mxu0 %v887
    %889 = vmatprep.subr.mxu0 0.0
    %v890 = vand.u32 %v40, 4294901760
    %891 = vmatpush1.msra.mxu0 %v890
    %892 = vmatprep.subr.mxu0 0.0
    %v893 = vand.u32 %v41, 4294901760
    %894 = vmatpush1.msra.mxu0 %v893
    %895 = vmatprep.subr.mxu0 0.0
    %v896 = vand.u32 %v42, 4294901760
    %897 = vmatpush1.msra.mxu0 %v896
    %898 = vmatprep.subr.mxu0 0.0
    %v899 = vand.u32 %v43, 4294901760
    %900 = vmatpush1.msra.mxu0 %v899
    %901 = vmatprep.subr.mxu0 0.0
    %v902 = vand.u32 %v44, 4294901760
    %903 = vmatpush1.msra.mxu0 %v902
    %904 = vmatprep.subr.mxu0 0.0
    %v905 = vand.u32 %v45, 4294901760
    %906 = vmatpush1.msra.mxu0 %v905
    %907 = vmatprep.subr.mxu0 0.0
    %v908 = vand.u32 %v46, 4294901760
    %909 = vmatpush1.msra.mxu0 %v908
    %910 = vmatprep.subr.mxu0 0.0
    %911 = vmatpush1.msra.mxu0 0.0
    %912 = vmatprep.subr.mxu0 0.0
    %913 = vmatpush1.msra.mxu0 0.0
    %914 = vmatprep.subr.mxu0 0.0
    %915 = vmatpush1.msra.mxu0 0.0
    %916 = vmatprep.subr.mxu0 0.0
    %917 = vmatpush1.msra.mxu0 0.0
    %918 = vmatprep.subr.mxu0 0.0
    %919 = vmatpush1.msra.mxu0 0.0
    %920 = vmatprep.subr.mxu0 0.0
    %921 = vmatpush1.msra.mxu0 0.0
    %922 = vmatprep.subr.mxu0 0.0
    %923 = vmatpush1.msra.mxu0 0.0
    %924 = vmatprep.subr.mxu0 0.0
    %925 = vmatpush1.msra.mxu0 0.0
    %926 = vmatprep.subr.mxu0 0.0
    %927 = vmatpush1.msra.mxu0 0.0
    %928 = vmatprep.subr.mxu0 0.0
    %929 = vmatpush1.msra.mxu0 0.0
    %930 = vmatprep.subr.mxu0 0.0
    %931 = vmatpush1.msra.mxu0 0.0
    %932 = vmatprep.subr.mxu0 0.0
    %933 = vmatpush1.msra.mxu0 0.0
    %934 = vmatprep.subr.mxu0 0.0
    %935 = vmatpush1.msra.mxu0 0.0
    %936 = vmatprep.subr.mxu0 0.0
    %937 = vmatpush1.msra.mxu0 0.0
    %938 = vmatprep.subr.mxu0 0.0
    %939 = vmatpush1.msra.mxu0 0.0
    %940 = vmatprep.subr.mxu0 0.0
    %941 = vmatpush1.msra.mxu0 0.0
    %942 = vmatprep.subr.mxu0 0.0
    %943 = vmatpush1.msra.mxu0 0.0
    %944 = vmatprep.subr.mxu0 0.0
    %945 = vmatpush1.msra.mxu0 0.0
    %946 = vmatprep.subr.mxu0 0.0
    %947 = vmatpush1.msra.mxu0 0.0
    %948 = vmatprep.subr.mxu0 0.0
    %949 = vmatpush1.msra.mxu0 0.0
    %950 = vmatprep.subr.mxu0 0.0
    %951 = vmatpush1.msra.mxu0 0.0
    %952 = vmatprep.subr.mxu0 0.0
    %953 = vmatpush1.msra.mxu0 0.0
    %954 = vmatprep.subr.mxu0 0.0
    %955 = vmatpush1.msra.mxu0 0.0
    %956 = vmatprep.subr.mxu0 0.0
    %957 = vmatpush1.msra.mxu0 0.0
    %958 = vmatprep.mubr.f32.mxu0 0.0
    %v959 = vand.u32 %v602, 4294901760
    %v960 = vsub.f32 %v602, %v959
    %v961 = vand.u32 %v960, 4294901760
    %962 = vmatmul.mubr.f32.gmra.mrb[0].mxu0 %v961
    %v963 = vpop.f32.mrb[0].mxu0
    %v964 = vadd.f32 %v883, %v963
    %v965 = vpop.f32.mrb[0].mxu0
    %966 = vdwg.mxu0
    %967 = vmatprep.subr.mxu0 0.0
    %v968 = vand.u32 %v39, 4294901760
    %v969 = vsub.f32 %v39, %v968
    %v970 = vand.u32 %v969, 4294901760
    %971 = vmatpush1.msra.mxu0 %v970
    %972 = vmatprep.subr.mxu0 0.0
    %v973 = vand.u32 %v40, 4294901760
    %v974 = vsub.f32 %v40, %v973
    %v975 = vand.u32 %v974, 4294901760
    %976 = vmatpush1.msra.mxu0 %v975
    %977 = vmatprep.subr.mxu0 0.0
    %v978 = vand.u32 %v41, 4294901760
    %v979 = vsub.f32 %v41, %v978
    %v980 = vand.u32 %v979, 4294901760
    %981 = vmatpush1.msra.mxu0 %v980
    %982 = vmatprep.subr.mxu0 0.0
    %v983 = vand.u32 %v42, 4294901760
    %v984 = vsub.f32 %v42, %v983
    %v985 = vand.u32 %v984, 4294901760
    %986 = vmatpush1.msra.mxu0 %v985
    %987 = vmatprep.subr.mxu0 0.0
    %v988 = vand.u32 %v43, 4294901760
    %v989 = vsub.f32 %v43, %v988
    %v990 = vand.u32 %v989, 4294901760
    %991 = vmatpush1.msra.mxu0 %v990
    %992 = vmatprep.subr.mxu0 0.0
    %v993 = vand.u32 %v44, 4294901760
    %v994 = vsub.f32 %v44, %v993
    %v995 = vand.u32 %v994, 4294901760
    %996 = vmatpush1.msra.mxu0 %v995
    %997 = vmatprep.subr.mxu0 0.0
    %v998 = vand.u32 %v45, 4294901760
    %v999 = vsub.f32 %v45, %v998
    %v1000 = vand.u32 %v999, 4294901760
    %1001 = vmatpush1.msra.mxu0 %v1000
    %1002 = vmatprep.subr.mxu0 0.0
    %v1003 = vand.u32 %v46, 4294901760
    %v1004 = vsub.f32 %v46, %v1003
    %v1005 = vand.u32 %v1004, 4294901760
    %1006 = vmatpush1.msra.mxu0 %v1005
    %1007 = vmatprep.subr.mxu0 0.0
    %1008 = vmatpush1.msra.mxu0 0.0
    %1009 = vmatprep.subr.mxu0 0.0
    %1010 = vmatpush1.msra.mxu0 0.0
    %1011 = vmatprep.subr.mxu0 0.0
    %1012 = vmatpush1.msra.mxu0 0.0
    %1013 = vmatprep.subr.mxu0 0.0
    %1014 = vmatpush1.msra.mxu0 0.0
    %1015 = vmatprep.subr.mxu0 0.0
    %1016 = vmatpush1.msra.mxu0 0.0
    %1017 = vmatprep.subr.mxu0 0.0
    %1018 = vmatpush1.msra.mxu0 0.0
    %1019 = vmatprep.subr.mxu0 0.0
    %1020 = vmatpush1.msra.mxu0 0.0
    %1021 = vmatprep.subr.mxu0 0.0
    %1022 = vmatpush1.msra.mxu0 0.0
    %1023 = vmatprep.subr.mxu0 0.0
    %1024 = vmatpush1.msra.mxu0 0.0
    %1025 = vmatprep.subr.mxu0 0.0
    %1026 = vmatpush1.msra.mxu0 0.0
    %1027 = vmatprep.subr.mxu0 0.0
    %1028 = vmatpush1.msra.mxu0 0.0
    %1029 = vmatprep.subr.mxu0 0.0
    %1030 = vmatpush1.msra.mxu0 0.0
    %1031 = vmatprep.subr.mxu0 0.0
    %1032 = vmatpush1.msra.mxu0 0.0
    %1033 = vmatprep.subr.mxu0 0.0
    %1034 = vmatpush1.msra.mxu0 0.0
    %1035 = vmatprep.subr.mxu0 0.0
    %1036 = vmatpush1.msra.mxu0 0.0
    %1037 = vmatprep.subr.mxu0 0.0
    %1038 = vmatpush1.msra.mxu0 0.0
    %1039 = vmatprep.subr.mxu0 0.0
    %1040 = vmatpush1.msra.mxu0 0.0
    %1041 = vmatprep.subr.mxu0 0.0
    %1042 = vmatpush1.msra.mxu0 0.0
    %1043 = vmatprep.subr.mxu0 0.0
    %1044 = vmatpush1.msra.mxu0 0.0
    %1045 = vmatprep.subr.mxu0 0.0
    %1046 = vmatpush1.msra.mxu0 0.0
    %1047 = vmatprep.subr.mxu0 0.0
    %1048 = vmatpush1.msra.mxu0 0.0
    %1049 = vmatprep.subr.mxu0 0.0
    %1050 = vmatpush1.msra.mxu0 0.0
    %1051 = vmatprep.subr.mxu0 0.0
    %1052 = vmatpush1.msra.mxu0 0.0
    %1053 = vmatprep.subr.mxu0 0.0
    %1054 = vmatpush1.msra.mxu0 0.0
    %1055 = vmatprep.mubr.f32.mxu0 0.0
    %v1056 = vand.u32 %v602, 4294901760
    %1057 = vmatmul.mubr.f32.gmra.mrb[0].mxu0 %v1056
    %v1058 = vpop.f32.mrb[0].mxu0
    %v1059 = vadd.f32 %v964, %v1058
    %v1060 = vpop.f32.mrb[0].mxu0
    %1061 = vdwg.mxu0
    %1062 = vmatprep.subr.mxu0 0.0
    %v1063 = vand.u32 %v39, 4294901760
    %1064 = vmatpush1.msra.mxu0 %v1063
    %1065 = vmatprep.subr.mxu0 0.0
    %v1066 = vand.u32 %v40, 4294901760
    %1067 = vmatpush1.msra.mxu0 %v1066
    %1068 = vmatprep.subr.mxu0 0.0
    %v1069 = vand.u32 %v41, 4294901760
    %1070 = vmatpush1.msra.mxu0 %v1069
    %1071 = vmatprep.subr.mxu0 0.0
    %v1072 = vand.u32 %v42, 4294901760
    %1073 = vmatpush1.msra.mxu0 %v1072
    %1074 = vmatprep.subr.mxu0 0.0
    %v1075 = vand.u32 %v43, 4294901760
    %1076 = vmatpush1.msra.mxu0 %v1075
    %1077 = vmatprep.subr.mxu0 0.0
    %v1078 = vand.u32 %v44, 4294901760
    %1079 = vmatpush1.msra.mxu0 %v1078
    %1080 = vmatprep.subr.mxu0 0.0
    %v1081 = vand.u32 %v45, 4294901760
    %1082 = vmatpush1.msra.mxu0 %v1081
    %1083 = vmatprep.subr.mxu0 0.0
    %v1084 = vand.u32 %v46, 4294901760
    %1085 = vmatpush1.msra.mxu0 %v1084
    %1086 = vmatprep.subr.mxu0 0.0
    %1087 = vmatpush1.msra.mxu0 0.0
    %1088 = vmatprep.subr.mxu0 0.0
    %1089 = vmatpush1.msra.mxu0 0.0
    %1090 = vmatprep.subr.mxu0 0.0
    %1091 = vmatpush1.msra.mxu0 0.0
    %1092 = vmatprep.subr.mxu0 0.0
    %1093 = vmatpush1.msra.mxu0 0.0
    %1094 = vmatprep.subr.mxu0 0.0
    %1095 = vmatpush1.msra.mxu0 0.0
    %1096 = vmatprep.subr.mxu0 0.0
    %1097 = vmatpush1.msra.mxu0 0.0
    %1098 = vmatprep.subr.mxu0 0.0
    %1099 = vmatpush1.msra.mxu0 0.0
    %1100 = vmatprep.subr.mxu0 0.0
    %1101 = vmatpush1.msra.mxu0 0.0
    %1102 = vmatprep.subr.mxu0 0.0
    %1103 = vmatpush1.msra.mxu0 0.0
    %1104 = vmatprep.subr.mxu0 0.0
    %1105 = vmatpush1.msra.mxu0 0.0
    %1106 = vmatprep.subr.mxu0 0.0
    %1107 = vmatpush1.msra.mxu0 0.0
    %1108 = vmatprep.subr.mxu0 0.0
    %1109 = vmatpush1.msra.mxu0 0.0
    %1110 = vmatprep.subr.mxu0 0.0
    %1111 = vmatpush1.msra.mxu0 0.0
    %1112 = vmatprep.subr.mxu0 0.0
    %1113 = vmatpush1.msra.mxu0 0.0
    %1114 = vmatprep.subr.mxu0 0.0
    %1115 = vmatpush1.msra.mxu0 0.0
    %1116 = vmatprep.subr.mxu0 0.0
    %1117 = vmatpush1.msra.mxu0 0.0
    %1118 = vmatprep.subr.mxu0 0.0
    %1119 = vmatpush1.msra.mxu0 0.0
    %1120 = vmatprep.subr.mxu0 0.0
    %1121 = vmatpush1.msra.mxu0 0.0
    %1122 = vmatprep.subr.mxu0 0.0
    %1123 = vmatpush1.msra.mxu0 0.0
    %1124 = vmatprep.subr.mxu0 0.0
    %1125 = vmatpush1.msra.mxu0 0.0
    %1126 = vmatprep.subr.mxu0 0.0
    %1127 = vmatpush1.msra.mxu0 0.0
    %1128 = vmatprep.subr.mxu0 0.0
    %1129 = vmatpush1.msra.mxu0 0.0
    %1130 = vmatprep.subr.mxu0 0.0
    %1131 = vmatpush1.msra.mxu0 0.0
    %1132 = vmatprep.subr.mxu0 0.0
    %1133 = vmatpush1.msra.mxu0 0.0
    %1134 = vmatprep.mubr.f32.mxu0 0.0
    %v1135 = vand.u32 %v602, 4294901760
    %1136 = vmatmul.mubr.f32.gmra.mrb[0].mxu0 %v1135
    %v1137 = vpop.f32.mrb[0].mxu0
    %v1138 = vadd.f32 %v1059, %v1137
    %v1139 = vpop.f32.mrb[0].mxu0
    %1140 = vdwg.mxu0
    %v1141 = vadd.f32 %v1138, %v52
    %v1142 = vxor.u32 %v1141, 2147483648
    %v1143 = vmul.f32 %v1142, 1.442695
    %v1144 = vpow.pop %v1143
    %v1145 = vadd.f32 %v1144, 1.0
    %v1146 = vrcp.pop %v1145
    %v1147 = vmul.f32 1.0, %v1146
    %1148 = vrot.lane.b32.xlu0 %v59, 96
    %v1149 = vpop.permute.xlu0 %1148
    %v1151 = vadd.f32 %v1138, %v1149
    %1153 = vrot.lane.b32.xlu0 %v1151, 32
    %v1154 = vpop.permute.xlu0 %1153
    %v1156 = vmul.f32 %v1147, %v1154
    %1158 = vrot.lane.b32.xlu0 %v1156, 64
    %v1159 = vpop.permute.xlu0 %1158
    %v1161 = vadd.f32 %v1141, %v1159
    %v1162 = vtanh.pop %v1161
    %v1163 = vsub.f32 1.0, %v1147
    %1165 = vrot.lane.b32.xlu0 %v1162, 96
    %v1166 = vpop.permute.xlu0 %1165
    %v1168 = vmul.f32 %v1163, %v1166
    %v1169 = vmul.f32 %v1147, 0.0
    %v1170 = vadd.f32 %v1168, %v1169
    %v1171 = vmul.f32 %v585, %v1170
    %v1172 = vadd.f32 %v1171, %v593
    %v1173 = vmul.f32 %v585, %v1172
    %s1174 = scalar_lea.vmem %s1, 2
    %v1175 = vld [vmem:[%s1174] sm:$0x3]
    %v1176 = vsub.f32 1.0, %v1175
    %s1177 = scalar_lea.vmem %s0, 2
    %v1178 = vld [vmem:[%s1177] sm:$0x3]
    %v1179 = vsel %vm63, %v597, 0
    %1181 = vmatprep.subr.mxu0 0.0
    %v1182 = vand.u32 %v29, 4294901760
    %1183 = vmatpush1.msra.mxu0 %v1182
    %1184 = vmatprep.subr.mxu0 0.0
    %v1185 = vand.u32 %v30, 4294901760
    %1186 = vmatpush1.msra.mxu0 %v1185
    %1187 = vmatprep.subr.mxu0 0.0
    %v1188 = vand.u32 %v31, 4294901760
    %1189 = vmatpush1.msra.mxu0 %v1188
    %1190 = vmatprep.subr.mxu0 0.0
    %v1191 = vand.u32 %v32, 4294901760
    %1192 = vmatpush1.msra.mxu0 %v1191
    %1193 = vmatprep.subr.mxu0 0.0
    %1194 = vmatpush1.msra.mxu0 0.0
    %1195 = vmatprep.subr.mxu0 0.0
    %1196 = vmatpush1.msra.mxu0 0.0
    %1197 = vmatprep.subr.mxu0 0.0
    %1198 = vmatpush1.msra.mxu0 0.0
    %1199 = vmatprep.subr.mxu0 0.0
    %1200 = vmatpush1.msra.mxu0 0.0
    %1201 = vmatprep.subr.mxu0 0.0
    %1202 = vmatpush1.msra.mxu0 0.0
    %1203 = vmatprep.subr.mxu0 0.0
    %1204 = vmatpush1.msra.mxu0 0.0
    %1205 = vmatprep.subr.mxu0 0.0
    %1206 = vmatpush1.msra.mxu0 0.0
    %1207 = vmatprep.subr.mxu0 0.0
    %1208 = vmatpush1.msra.mxu0 0.0
    %1209 = vmatprep.subr.mxu0 0.0
    %1210 = vmatpush1.msra.mxu0 0.0
    %1211 = vmatprep.subr.mxu0 0.0
    %1212 = vmatpush1.msra.mxu0 0.0
    %1213 = vmatprep.subr.mxu0 0.0
    %1214 = vmatpush1.msra.mxu0 0.0
    %1215 = vmatprep.subr.mxu0 0.0
    %1216 = vmatpush1.msra.mxu0 0.0
    %1217 = vmatprep.subr.mxu0 0.0
    %1218 = vmatpush1.msra.mxu0 0.0
    %1219 = vmatprep.subr.mxu0 0.0
    %1220 = vmatpush1.msra.mxu0 0.0
    %1221 = vmatprep.subr.mxu0 0.0
    %1222 = vmatpush1.msra.mxu0 0.0
    %1223 = vmatprep.subr.mxu0 0.0
    %1224 = vmatpush1.msra.mxu0 0.0
    %1225 = vmatprep.subr.mxu0 0.0
    %1226 = vmatpush1.msra.mxu0 0.0
    %1227 = vmatprep.subr.mxu0 0.0
    %1228 = vmatpush1.msra.mxu0 0.0
    %1229 = vmatprep.subr.mxu0 0.0
    %1230 = vmatpush1.msra.mxu0 0.0
    %1231 = vmatprep.subr.mxu0 0.0
    %1232 = vmatpush1.msra.mxu0 0.0
    %1233 = vmatprep.subr.mxu0 0.0
    %1234 = vmatpush1.msra.mxu0 0.0
    %1235 = vmatprep.subr.mxu0 0.0
    %1236 = vmatpush1.msra.mxu0 0.0
    %1237 = vmatprep.subr.mxu0 0.0
    %1238 = vmatpush1.msra.mxu0 0.0
    %1239 = vmatprep.subr.mxu0 0.0
    %1240 = vmatpush1.msra.mxu0 0.0
    %1241 = vmatprep.subr.mxu0 0.0
    %1242 = vmatpush1.msra.mxu0 0.0
    %1243 = vmatprep.subr.mxu0 0.0
    %1244 = vmatpush1.msra.mxu0 0.0
    %1245 = vmatprep.subr.mxu0 0.0
    %1246 = vmatpush1.msra.mxu0 0.0
    %1247 = vmatprep.subr.mxu0 0.0
    %1248 = vmatpush1.msra.mxu0 0.0
    %1249 = vmatprep.mubr.f32.mxu0 0.0
    %v1250 = vand.u32 %v1179, 4294901760
    %v1251 = vsub.f32 %v1179, %v1250
    %v1252 = vand.u32 %v1251, 4294901760
    %v1253 = vsub.f32 %v1251, %v1252
    %v1254 = vand.u32 %v1253, 4294901760
    %1255 = vmatmul.mubr.f32.gmra.mrb[0].mxu0 %v1254
    %v1256 = vpop.f32.mrb[0].mxu0
    %v1257 = vadd.f32 0.0, %v1256
    %v1258 = vpop.f32.mrb[0].mxu0
    %1259 = vdwg.mxu0
    %1260 = vmatprep.subr.mxu0 0.0
    %v1261 = vand.u32 %v29, 4294901760
    %v1262 = vsub.f32 %v29, %v1261
    %v1263 = vand.u32 %v1262, 4294901760
    %v1264 = vsub.f32 %v1262, %v1263
    %v1265 = vand.u32 %v1264, 4294901760
    %1266 = vmatpush1.msra.mxu0 %v1265
    %1267 = vmatprep.subr.mxu0 0.0
    %v1268 = vand.u32 %v30, 4294901760
    %v1269 = vsub.f32 %v30, %v1268
    %v1270 = vand.u32 %v1269, 4294901760
    %v1271 = vsub.f32 %v1269, %v1270
    %v1272 = vand.u32 %v1271, 4294901760
    %1273 = vmatpush1.msra.mxu0 %v1272
    %1274 = vmatprep.subr.mxu0 0.0
    %v1275 = vand.u32 %v31, 4294901760
    %v1276 = vsub.f32 %v31, %v1275
    %v1277 = vand.u32 %v1276, 4294901760
    %v1278 = vsub.f32 %v1276, %v1277
    %v1279 = vand.u32 %v1278, 4294901760
    %1280 = vmatpush1.msra.mxu0 %v1279
    %1281 = vmatprep.subr.mxu0 0.0
    %v1282 = vand.u32 %v32, 4294901760
    %v1283 = vsub.f32 %v32, %v1282
    %v1284 = vand.u32 %v1283, 4294901760
    %v1285 = vsub.f32 %v1283, %v1284
    %v1286 = vand.u32 %v1285, 4294901760
    %1287 = vmatpush1.msra.mxu0 %v1286
    %1288 = vmatprep.subr.mxu0 0.0
    %1289 = vmatpush1.msra.mxu0 0.0
    %1290 = vmatprep.subr.mxu0 0.0
    %1291 = vmatpush1.msra.mxu0 0.0
    %1292 = vmatprep.subr.mxu0 0.0
    %1293 = vmatpush1.msra.mxu0 0.0
    %1294 = vmatprep.subr.mxu0 0.0
    %1295 = vmatpush1.msra.mxu0 0.0
    %1296 = vmatprep.subr.mxu0 0.0
    %1297 = vmatpush1.msra.mxu0 0.0
    %1298 = vmatprep.subr.mxu0 0.0
    %1299 = vmatpush1.msra.mxu0 0.0
    %1300 = vmatprep.subr.mxu0 0.0
    %1301 = vmatpush1.msra.mxu0 0.0
    %1302 = vmatprep.subr.mxu0 0.0
    %1303 = vmatpush1.msra.mxu0 0.0
    %1304 = vmatprep.subr.mxu0 0.0
    %1305 = vmatpush1.msra.mxu0 0.0
    %1306 = vmatprep.subr.mxu0 0.0
    %1307 = vmatpush1.msra.mxu0 0.0
    %1308 = vmatprep.subr.mxu0 0.0
    %1309 = vmatpush1.msra.mxu0 0.0
    %1310 = vmatprep.subr.mxu0 0.0
    %1311 = vmatpush1.msra.mxu0 0.0
    %1312 = vmatprep.subr.mxu0 0.0
    %1313 = vmatpush1.msra.mxu0 0.0
    %1314 = vmatprep.subr.mxu0 0.0
    %1315 = vmatpush1.msra.mxu0 0.0
    %1316 = vmatprep.subr.mxu0 0.0
    %1317 = vmatpush1.msra.mxu0 0.0
    %1318 = vmatprep.subr.mxu0 0.0
    %1319 = vmatpush1.msra.mxu0 0.0
    %1320 = vmatprep.subr.mxu0 0.0
    %1321 = vmatpush1.msra.mxu0 0.0
    %1322 = vmatprep.subr.mxu0 0.0
    %1323 = vmatpush1.msra.mxu0 0.0
    %1324 = vmatprep.subr.mxu0 0.0
    %1325 = vmatpush1.msra.mxu0 0.0
    %1326 = vmatprep.subr.mxu0 0.0
    %1327 = vmatpush1.msra.mxu0 0.0
    %1328 = vmatprep.subr.mxu0 0.0
    %1329 = vmatpush1.msra.mxu0 0.0
    %1330 = vmatprep.subr.mxu0 0.0
    %1331 = vmatpush1.msra.mxu0 0.0
    %1332 = vmatprep.subr.mxu0 0.0
    %1333 = vmatpush1.msra.mxu0 0.0
    %1334 = vmatprep.subr.mxu0 0.0
    %1335 = vmatpush1.msra.mxu0 0.0
    %1336 = vmatprep.subr.mxu0 0.0
    %1337 = vmatpush1.msra.mxu0 0.0
    %1338 = vmatprep.subr.mxu0 0.0
    %1339 = vmatpush1.msra.mxu0 0.0
    %1340 = vmatprep.subr.mxu0 0.0
    %1341 = vmatpush1.msra.mxu0 0.0
    %1342 = vmatprep.subr.mxu0 0.0
    %1343 = vmatpush1.msra.mxu0 0.0
    %1344 = vmatprep.mubr.f32.mxu0 0.0
    %v1345 = vand.u32 %v1179, 4294901760
    %1346 = vmatmul.mubr.f32.gmra.mrb[0].mxu0 %v1345
    %v1347 = vpop.f32.mrb[0].mxu0
    %v1348 = vadd.f32 %v1257, %v1347
    %v1349 = vpop.f32.mrb[0].mxu0
    %1350 = vdwg.mxu0
    %1351 = vmatprep.subr.mxu0 0.0
    %v1352 = vand.u32 %v29, 4294901760
    %v1353 = vsub.f32 %v29, %v1352
    %1354 = vmatpush1.msra.mxu0 %v1353
    %1355 = vmatprep.subr.mxu0 0.0
    %v1356 = vand.u32 %v30, 4294901760
    %v1357 = vsub.f32 %v30, %v1356
    %1358 = vmatpush1.msra.mxu0 %v1357
    %1359 = vmatprep.subr.mxu0 0.0
    %v1360 = vand.u32 %v31, 4294901760
    %v1361 = vsub.f32 %v31, %v1360
    %1362 = vmatpush1.msra.mxu0 %v1361
    %1363 = vmatprep.subr.mxu0 0.0
    %v1364 = vand.u32 %v32, 4294901760
    %v1365 = vsub.f32 %v32, %v1364
    %1366 = vmatpush1.msra.mxu0 %v1365
    %1367 = vmatprep.subr.mxu0 0.0
    %1368 = vmatpush1.msra.mxu0 0.0
    %1369 = vmatprep.subr.mxu0 0.0
    %1370 = vmatpush1.msra.mxu0 0.0
    %1371 = vmatprep.subr.mxu0 0.0
    %1372 = vmatpush1.msra.mxu0 0.0
    %1373 = vmatprep.subr.mxu0 0.0
    %1374 = vmatpush1.msra.mxu0 0.0
    %1375 = vmatprep.subr.mxu0 0.0
    %1376 = vmatpush1.msra.mxu0 0.0
    %1377 = vmatprep.subr.mxu0 0.0
    %1378 = vmatpush1.msra.mxu0 0.0
    %1379 = vmatprep.subr.mxu0 0.0
    %1380 = vmatpush1.msra.mxu0 0.0
    %1381 = vmatprep.subr.mxu0 0.0
    %1382 = vmatpush1.msra.mxu0 0.0
    %1383 = vmatprep.subr.mxu0 0.0
    %1384 = vmatpush1.msra.mxu0 0.0
    %1385 = vmatprep.subr.mxu0 0.0
    %1386 = vmatpush1.msra.mxu0 0.0
    %1387 = vmatprep.subr.mxu0 0.0
    %1388 = vmatpush1.msra.mxu0 0.0
    %1389 = vmatprep.subr.mxu0 0.0
    %1390 = vmatpush1.msra.mxu0 0.0
    %1391 = vmatprep.subr.mxu0 0.0
    %1392 = vmatpush1.msra.mxu0 0.0
    %1393 = vmatprep.subr.mxu0 0.0
    %1394 = vmatpush1.msra.mxu0 0.0
    %1395 = vmatprep.subr.mxu0 0.0
    %1396 = vmatpush1.msra.mxu0 0.0
    %1397 = vmatprep.subr.mxu0 0.0
    %1398 = vmatpush1.msra.mxu0 0.0
    %1399 = vmatprep.subr.mxu0 0.0
    %1400 = vmatpush1.msra.mxu0 0.0
    %1401 = vmatprep.subr.mxu0 0.0
    %1402 = vmatpush1.msra.mxu0 0.0
    %1403 = vmatprep.subr.mxu0 0.0
    %1404 = vmatpush1.msra.mxu0 0.0
    %1405 = vmatprep.subr.mxu0 0.0
    %1406 = vmatpush1.msra.mxu0 0.0
    %1407 = vmatprep.subr.mxu0 0.0
    %1408 = vmatpush1.msra.mxu0 0.0
    %1409 = vmatprep.subr.mxu0 0.0
    %1410 = vmatpush1.msra.mxu0 0.0
    %1411 = vmatprep.subr.mxu0 0.0
    %1412 = vmatpush1.msra.mxu0 0.0
    %1413 = vmatprep.subr.mxu0 0.0
    %1414 = vmatpush1.msra.mxu0 0.0
    %1415 = vmatprep.subr.mxu0 0.0
    %1416 = vmatpush1.msra.mxu0 0.0
    %1417 = vmatprep.subr.mxu0 0.0
    %1418 = vmatpush1.msra.mxu0 0.0
    %1419 = vmatprep.subr.mxu0 0.0
    %1420 = vmatpush1.msra.mxu0 0.0
    %1421 = vmatprep.subr.mxu0 0.0
    %1422 = vmatpush1.msra.mxu0 0.0
    %1423 = vmatprep.mubr.f32.mxu0 0.0
    %v1424 = vand.u32 %v1179, 4294901760
    %v1425 = vsub.f32 %v1179, %v1424
    %1426 = vmatmul.mubr.f32.gmra.mrb[0].mxu0 %v1425
    %v1427 = vpop.f32.mrb[0].mxu0
    %v1428 = vadd.f32 %v1348, %v1427
    %v1429 = vpop.f32.mrb[0].mxu0
    %1430 = vdwg.mxu0
    %1431 = vmatprep.subr.mxu0 0.0
    %v1432 = vand.u32 %v29, 4294901760
    %1433 = vmatpush1.msra.mxu0 %v1432
    %1434 = vmatprep.subr.mxu0 0.0
    %v1435 = vand.u32 %v30, 4294901760
    %1436 = vmatpush1.msra.mxu0 %v1435
    %1437 = vmatprep.subr.mxu0 0.0
    %v1438 = vand.u32 %v31, 4294901760
    %1439 = vmatpush1.msra.mxu0 %v1438
    %1440 = vmatprep.subr.mxu0 0.0
    %v1441 = vand.u32 %v32, 4294901760
    %1442 = vmatpush1.msra.mxu0 %v1441
    %1443 = vmatprep.subr.mxu0 0.0
    %1444 = vmatpush1.msra.mxu0 0.0
    %1445 = vmatprep.subr.mxu0 0.0
    %1446 = vmatpush1.msra.mxu0 0.0
    %1447 = vmatprep.subr.mxu0 0.0
    %1448 = vmatpush1.msra.mxu0 0.0
    %1449 = vmatprep.subr.mxu0 0.0
    %1450 = vmatpush1.msra.mxu0 0.0
    %1451 = vmatprep.subr.mxu0 0.0
    %1452 = vmatpush1.msra.mxu0 0.0
    %1453 = vmatprep.subr.mxu0 0.0
    %1454 = vmatpush1.msra.mxu0 0.0
    %1455 = vmatprep.subr.mxu0 0.0
    %1456 = vmatpush1.msra.mxu0 0.0
    %1457 = vmatprep.subr.mxu0 0.0
    %1458 = vmatpush1.msra.mxu0 0.0
    %1459 = vmatprep.subr.mxu0 0.0
    %1460 = vmatpush1.msra.mxu0 0.0
    %1461 = vmatprep.subr.mxu0 0.0
    %1462 = vmatpush1.msra.mxu0 0.0
    %1463 = vmatprep.subr.mxu0 0.0
    %1464 = vmatpush1.msra.mxu0 0.0
    %1465 = vmatprep.subr.mxu0 0.0
    %1466 = vmatpush1.msra.mxu0 0.0
    %1467 = vmatprep.subr.mxu0 0.0
    %1468 = vmatpush1.msra.mxu0 0.0
    %1469 = vmatprep.subr.mxu0 0.0
    %1470 = vmatpush1.msra.mxu0 0.0
    %1471 = vmatprep.subr.mxu0 0.0
    %1472 = vmatpush1.msra.mxu0 0.0
    %1473 = vmatprep.subr.mxu0 0.0
    %1474 = vmatpush1.msra.mxu0 0.0
    %1475 = vmatprep.subr.mxu0 0.0
    %1476 = vmatpush1.msra.mxu0 0.0
    %1477 = vmatprep.subr.mxu0 0.0
    %1478 = vmatpush1.msra.mxu0 0.0
    %1479 = vmatprep.subr.mxu0 0.0
    %1480 = vmatpush1.msra.mxu0 0.0
    %1481 = vmatprep.subr.mxu0 0.0
    %1482 = vmatpush1.msra.mxu0 0.0
    %1483 = vmatprep.subr.mxu0 0.0
    %1484 = vmatpush1.msra.mxu0 0.0
    %1485 = vmatprep.subr.mxu0 0.0
    %1486 = vmatpush1.msra.mxu0 0.0
    %1487 = vmatprep.subr.mxu0 0.0
    %1488 = vmatpush1.msra.mxu0 0.0
    %1489 = vmatprep.subr.mxu0 0.0
    %1490 = vmatpush1.msra.mxu0 0.0
    %1491 = vmatprep.subr.mxu0 0.0
    %1492 = vmatpush1.msra.mxu0 0.0
    %1493 = vmatprep.subr.mxu0 0.0
    %1494 = vmatpush1.msra.mxu0 0.0
    %1495 = vmatprep.subr.mxu0 0.0
    %1496 = vmatpush1.msra.mxu0 0.0
    %1497 = vmatprep.subr.mxu0 0.0
    %1498 = vmatpush1.msra.mxu0 0.0
    %1499 = vmatprep.mubr.f32.mxu0 0.0
    %v1500 = vand.u32 %v1179, 4294901760
    %v1501 = vsub.f32 %v1179, %v1500
    %v1502 = vand.u32 %v1501, 4294901760
    %1503 = vmatmul.mubr.f32.gmra.mrb[0].mxu0 %v1502
    %v1504 = vpop.f32.mrb[0].mxu0
    %v1505 = vadd.f32 %v1428, %v1504
    %v1506 = vpop.f32.mrb[0].mxu0
    %1507 = vdwg.mxu0
    %1508 = vmatprep.subr.mxu0 0.0
    %v1509 = vand.u32 %v29, 4294901760
    %v1510 = vsub.f32 %v29, %v1509
    %v1511 = vand.u32 %v1510, 4294901760
    %1512 = vmatpush1.msra.mxu0 %v1511
    %1513 = vmatprep.subr.mxu0 0.0
    %v1514 = vand.u32 %v30, 4294901760
    %v1515 = vsub.f32 %v30, %v1514
    %v1516 = vand.u32 %v1515, 4294901760
    %1517 = vmatpush1.msra.mxu0 %v1516
    %1518 = vmatprep.subr.mxu0 0.0
    %v1519 = vand.u32 %v31, 4294901760
    %v1520 = vsub.f32 %v31, %v1519
    %v1521 = vand.u32 %v1520, 4294901760
    %1522 = vmatpush1.msra.mxu0 %v1521
    %1523 = vmatprep.subr.mxu0 0.0
    %v1524 = vand.u32 %v32, 4294901760
    %v1525 = vsub.f32 %v32, %v1524
    %v1526 = vand.u32 %v1525, 4294901760
    %1527 = vmatpush1.msra.mxu0 %v1526
    %1528 = vmatprep.subr.mxu0 0.0
    %1529 = vmatpush1.msra.mxu0 0.0
    %1530 = vmatprep.subr.mxu0 0.0
    %1531 = vmatpush1.msra.mxu0 0.0
    %1532 = vmatprep.subr.mxu0 0.0
    %1533 = vmatpush1.msra.mxu0 0.0
    %1534 = vmatprep.subr.mxu0 0.0
    %1535 = vmatpush1.msra.mxu0 0.0
    %1536 = vmatprep.subr.mxu0 0.0
    %1537 = vmatpush1.msra.mxu0 0.0
    %1538 = vmatprep.subr.mxu0 0.0
    %1539 = vmatpush1.msra.mxu0 0.0
    %1540 = vmatprep.subr.mxu0 0.0
    %1541 = vmatpush1.msra.mxu0 0.0
    %1542 = vmatprep.subr.mxu0 0.0
    %1543 = vmatpush1.msra.mxu0 0.0
    %1544 = vmatprep.subr.mxu0 0.0
    %1545 = vmatpush1.msra.mxu0 0.0
    %1546 = vmatprep.subr.mxu0 0.0
    %1547 = vmatpush1.msra.mxu0 0.0
    %1548 = vmatprep.subr.mxu0 0.0
    %1549 = vmatpush1.msra.mxu0 0.0
    %1550 = vmatprep.subr.mxu0 0.0
    %1551 = vmatpush1.msra.mxu0 0.0
    %1552 = vmatprep.subr.mxu0 0.0
    %1553 = vmatpush1.msra.mxu0 0.0
    %1554 = vmatprep.subr.mxu0 0.0
    %1555 = vmatpush1.msra.mxu0 0.0
    %1556 = vmatprep.subr.mxu0 0.0
    %1557 = vmatpush1.msra.mxu0 0.0
    %1558 = vmatprep.subr.mxu0 0.0
    %1559 = vmatpush1.msra.mxu0 0.0
    %1560 = vmatprep.subr.mxu0 0.0
    %1561 = vmatpush1.msra.mxu0 0.0
    %1562 = vmatprep.subr.mxu0 0.0
    %1563 = vmatpush1.msra.mxu0 0.0
    %1564 = vmatprep.subr.mxu0 0.0
    %1565 = vmatpush1.msra.mxu0 0.0
    %1566 = vmatprep.subr.mxu0 0.0
    %1567 = vmatpush1.msra.mxu0 0.0
    %1568 = vmatprep.subr.mxu0 0.0
    %1569 = vmatpush1.msra.mxu0 0.0
    %1570 = vmatprep.subr.mxu0 0.0
    %1571 = vmatpush1.msra.mxu0 0.0
    %1572 = vmatprep.subr.mxu0 0.0
    %1573 = vmatpush1.msra.mxu0 0.0
    %1574 = vmatprep.subr.mxu0 0.0
    %1575 = vmatpush1.msra.mxu0 0.0
    %1576 = vmatprep.subr.mxu0 0.0
    %1577 = vmatpush1.msra.mxu0 0.0
    %1578 = vmatprep.subr.mxu0 0.0
    %1579 = vmatpush1.msra.mxu0 0.0
    %1580 = vmatprep.subr.mxu0 0.0
    %1581 = vmatpush1.msra.mxu0 0.0
    %1582 = vmatprep.subr.mxu0 0.0
    %1583 = vmatpush1.msra.mxu0 0.0
    %1584 = vmatprep.mubr.f32.mxu0 0.0
    %v1585 = vand.u32 %v1179, 4294901760
    %1586 = vmatmul.mubr.f32.gmra.mrb[0].mxu0 %v1585
    %v1587 = vpop.f32.mrb[0].mxu0
    %v1588 = vadd.f32 %v1505, %v1587
    %v1589 = vpop.f32.mrb[0].mxu0
    %1590 = vdwg.mxu0
    %1591 = vmatprep.subr.mxu0 0.0
    %v1592 = vand.u32 %v29, 4294901760
    %1593 = vmatpush1.msra.mxu0 %v1592
    %1594 = vmatprep.subr.mxu0 0.0
    %v1595 = vand.u32 %v30, 4294901760
    %1596 = vmatpush1.msra.mxu0 %v1595
    %1597 = vmatprep.subr.mxu0 0.0
    %v1598 = vand.u32 %v31, 4294901760
    %1599 = vmatpush1.msra.mxu0 %v1598
    %1600 = vmatprep.subr.mxu0 0.0
    %v1601 = vand.u32 %v32, 4294901760
    %1602 = vmatpush1.msra.mxu0 %v1601
    %1603 = vmatprep.subr.mxu0 0.0
    %1604 = vmatpush1.msra.mxu0 0.0
    %1605 = vmatprep.subr.mxu0 0.0
    %1606 = vmatpush1.msra.mxu0 0.0
    %1607 = vmatprep.subr.mxu0 0.0
    %1608 = vmatpush1.msra.mxu0 0.0
    %1609 = vmatprep.subr.mxu0 0.0
    %1610 = vmatpush1.msra.mxu0 0.0
    %1611 = vmatprep.subr.mxu0 0.0
    %1612 = vmatpush1.msra.mxu0 0.0
    %1613 = vmatprep.subr.mxu0 0.0
    %1614 = vmatpush1.msra.mxu0 0.0
    %1615 = vmatprep.subr.mxu0 0.0
    %1616 = vmatpush1.msra.mxu0 0.0
    %1617 = vmatprep.subr.mxu0 0.0
    %1618 = vmatpush1.msra.mxu0 0.0
    %1619 = vmatprep.subr.mxu0 0.0
    %1620 = vmatpush1.msra.mxu0 0.0
    %1621 = vmatprep.subr.mxu0 0.0
    %1622 = vmatpush1.msra.mxu0 0.0
    %1623 = vmatprep.subr.mxu0 0.0
    %1624 = vmatpush1.msra.mxu0 0.0
    %1625 = vmatprep.subr.mxu0 0.0
    %1626 = vmatpush1.msra.mxu0 0.0
    %1627 = vmatprep.subr.mxu0 0.0
    %1628 = vmatpush1.msra.mxu0 0.0
    %1629 = vmatprep.subr.mxu0 0.0
    %1630 = vmatpush1.msra.mxu0 0.0
    %1631 = vmatprep.subr.mxu0 0.0
    %1632 = vmatpush1.msra.mxu0 0.0
    %1633 = vmatprep.subr.mxu0 0.0
    %1634 = vmatpush1.msra.mxu0 0.0
    %1635 = vmatprep.subr.mxu0 0.0
    %1636 = vmatpush1.msra.mxu0 0.0
    %1637 = vmatprep.subr.mxu0 0.0
    %1638 = vmatpush1.msra.mxu0 0.0
    %1639 = vmatprep.subr.mxu0 0.0
    %1640 = vmatpush1.msra.mxu0 0.0
    %1641 = vmatprep.subr.mxu0 0.0
    %1642 = vmatpush1.msra.mxu0 0.0
    %1643 = vmatprep.subr.mxu0 0.0
    %1644 = vmatpush1.msra.mxu0 0.0
    %1645 = vmatprep.subr.mxu0 0.0
    %1646 = vmatpush1.msra.mxu0 0.0
    %1647 = vmatprep.subr.mxu0 0.0
    %1648 = vmatpush1.msra.mxu0 0.0
    %1649 = vmatprep.subr.mxu0 0.0
    %1650 = vmatpush1.msra.mxu0 0.0
    %1651 = vmatprep.subr.mxu0 0.0
    %1652 = vmatpush1.msra.mxu0 0.0
    %1653 = vmatprep.subr.mxu0 0.0
    %1654 = vmatpush1.msra.mxu0 0.0
    %1655 = vmatprep.subr.mxu0 0.0
    %1656 = vmatpush1.msra.mxu0 0.0
    %1657 = vmatprep.subr.mxu0 0.0
    %1658 = vmatpush1.msra.mxu0 0.0
    %1659 = vmatprep.mubr.f32.mxu0 0.0
    %v1660 = vand.u32 %v1179, 4294901760
    %1661 = vmatmul.mubr.f32.gmra.mrb[0].mxu0 %v1660
    %v1662 = vpop.f32.mrb[0].mxu0
    %v1663 = vadd.f32 %v1588, %v1662
    %v1664 = vpop.f32.mrb[0].mxu0
    %1665 = vdwg.mxu0
    %v1666 = vadd.f32 %v1178, %v1663
    %v1667 = vxor.u32 %v1666, 2147483648
    %v1668 = vmul.f32 %v1667, 1.442695
    %v1669 = vpow.pop %v1668
    %v1670 = vadd.f32 %v1669, 1.0
    %v1671 = vrcp.pop %v1670
    %v1672 = vmul.f32 1.0, %v1671
    %v1673 = vadd.f32 %v1663, %v560
    %1675 = vrot.lane.b32.xlu0 %v1673, 64
    %v1676 = vpop.permute.xlu0 %1675
    %v1678 = vmul.f32 %v1672, %v1676
    %1680 = vrot.lane.b32.xlu0 %v1678, 64
    %v1681 = vpop.permute.xlu0 %1680
    %v1683 = vadd.f32 %v1178, %v1681
    %v1684 = vtanh.pop %v1683
    %v1685 = vsub.f32 1.0, %v1672
    %1687 = vrot.lane.b32.xlu0 %v1684, 96
    %v1688 = vpop.permute.xlu0 %1687
    %v1690 = vmul.f32 %v1685, %v1688
    %v1691 = vmul.f32 %v1672, %v594
    %v1692 = vadd.f32 %v1690, %v1691
    %1694 = vset.pattern.permute.xlu0 0
    %1695 = vperm.xlu0 %1694, %v1175
    %v1696 = vpop.permute.xlu0 %1695
    %v1698 = vmul.f32 %v1696, %v1692
    %1700 = vset.pattern.permute.xlu0 0
    %1701 = vperm.xlu0 %1700, %v1176
    %v1702 = vpop.permute.xlu0 %1701
    %v1704 = vmul.f32 %v1702, %v594
    %v1705 = vadd.f32 %v1698, %v1704
    %1707 = vrot.lane.b32.xlu0 %v1705, 96
    %v1708 = vpop.permute.xlu0 %1707
    %v1710 = vsel %vm63, %v1708, %v1172
    %v1712 = vsel %vm600, %v1710, 0
    %1714 = vmatprep.subr.mxu0 0.0
    %v1715 = vand.u32 %v39, 4294901760
    %1716 = vmatpush1.msra.mxu0 %v1715
    %1717 = vmatprep.subr.mxu0 0.0
    %v1718 = vand.u32 %v40, 4294901760
    %1719 = vmatpush1.msra.mxu0 %v1718
    %1720 = vmatprep.subr.mxu0 0.0
    %v1721 = vand.u32 %v41, 4294901760
    %1722 = vmatpush1.msra.mxu0 %v1721
    %1723 = vmatprep.subr.mxu0 0.0
    %v1724 = vand.u32 %v42, 4294901760
    %1725 = vmatpush1.msra.mxu0 %v1724
    %1726 = vmatprep.subr.mxu0 0.0
    %v1727 = vand.u32 %v43, 4294901760
    %1728 = vmatpush1.msra.mxu0 %v1727
    %1729 = vmatprep.subr.mxu0 0.0
    %v1730 = vand.u32 %v44, 4294901760
    %1731 = vmatpush1.msra.mxu0 %v1730
    %1732 = vmatprep.subr.mxu0 0.0
    %v1733 = vand.u32 %v45, 4294901760
    %1734 = vmatpush1.msra.mxu0 %v1733
    %1735 = vmatprep.subr.mxu0 0.0
    %v1736 = vand.u32 %v46, 4294901760
    %1737 = vmatpush1.msra.mxu0 %v1736
    %1738 = vmatprep.subr.mxu0 0.0
    %1739 = vmatpush1.msra.mxu0 0.0
    %1740 = vmatprep.subr.mxu0 0.0
    %1741 = vmatpush1.msra.mxu0 0.0
    %1742 = vmatprep.subr.mxu0 0.0
    %1743 = vmatpush1.msra.mxu0 0.0
    %1744 = vmatprep.subr.mxu0 0.0
    %1745 = vmatpush1.msra.mxu0 0.0
    %1746 = vmatprep.subr.mxu0 0.0
    %1747 = vmatpush1.msra.mxu0 0.0
    %1748 = vmatprep.subr.mxu0 0.0
    %1749 = vmatpush1.msra.mxu0 0.0
    %1750 = vmatprep.subr.mxu0 0.0
    %1751 = vmatpush1.msra.mxu0 0.0
    %1752 = vmatprep.subr.mxu0 0.0
    %1753 = vmatpush1.msra.mxu0 0.0
    %1754 = vmatprep.subr.mxu0 0.0
    %1755 = vmatpush1.msra.mxu0 0.0
    %1756 = vmatprep.subr.mxu0 0.0
    %1757 = vmatpush1.msra.mxu0 0.0
    %1758 = vmatprep.subr.mxu0 0.0
    %1759 = vmatpush1.msra.mxu0 0.0
    %1760 = vmatprep.subr.mxu0 0.0
    %1761 = vmatpush1.msra.mxu0 0.0
    %1762 = vmatprep.subr.mxu0 0.0
    %1763 = vmatpush1.msra.mxu0 0.0
    %1764 = vmatprep.subr.mxu0 0.0
    %1765 = vmatpush1.msra.mxu0 0.0
    %1766 = vmatprep.subr.mxu0 0.0
    %1767 = vmatpush1.msra.mxu0 0.0
    %1768 = vmatprep.subr.mxu0 0.0
    %1769 = vmatpush1.msra.mxu0 0.0
    %1770 = vmatprep.subr.mxu0 0.0
    %1771 = vmatpush1.msra.mxu0 0.0
    %1772 = vmatprep.subr.mxu0 0.0
    %1773 = vmatpush1.msra.mxu0 0.0
    %1774 = vmatprep.subr.mxu0 0.0
    %1775 = vmatpush1.msra.mxu0 0.0
    %1776 = vmatprep.subr.mxu0 0.0
    %1777 = vmatpush1.msra.mxu0 0.0
    %1778 = vmatprep.subr.mxu0 0.0
    %1779 = vmatpush1.msra.mxu0 0.0
    %1780 = vmatprep.subr.mxu0 0.0
    %1781 = vmatpush1.msra.mxu0 0.0
    %1782 = vmatprep.subr.mxu0 0.0
    %1783 = vmatpush1.msra.mxu0 0.0
    %1784 = vmatprep.subr.mxu0 0.0
    %1785 = vmatpush1.msra.mxu0 0.0
    %1786 = vmatprep.mubr.f32.mxu0 0.0
    %v1787 = vand.u32 %v1712, 4294901760
    %v1788 = vsub.f32 %v1712, %v1787
    %v1789 = vand.u32 %v1788, 4294901760
    %v1790 = vsub.f32 %v1788, %v1789
    %v1791 = vand.u32 %v1790, 4294901760
    %1792 = vmatmul.mubr.f32.gmra.mrb[0].mxu0 %v1791
    %v1793 = vpop.f32.mrb[0].mxu0
    %v1794 = vadd.f32 0.0, %v1793
    %v1795 = vpop.f32.mrb[0].mxu0
    %1796 = vdwg.mxu0
    %1797 = vmatprep.subr.mxu0 0.0
    %v1798 = vand.u32 %v39, 4294901760
    %v1799 = vsub.f32 %v39, %v1798
    %v1800 = vand.u32 %v1799, 4294901760
    %v1801 = vsub.f32 %v1799, %v1800
    %v1802 = vand.u32 %v1801, 4294901760
    %1803 = vmatpush1.msra.mxu0 %v1802
    %1804 = vmatprep.subr.mxu0 0.0
    %v1805 = vand.u32 %v40, 4294901760
    %v1806 = vsub.f32 %v40, %v1805
    %v1807 = vand.u32 %v1806, 4294901760
    %v1808 = vsub.f32 %v1806, %v1807
    %v1809 = vand.u32 %v1808, 4294901760
    %1810 = vmatpush1.msra.mxu0 %v1809
    %1811 = vmatprep.subr.mxu0 0.0
    %v1812 = vand.u32 %v41, 4294901760
    %v1813 = vsub.f32 %v41, %v1812
    %v1814 = vand.u32 %v1813, 4294901760
    %v1815 = vsub.f32 %v1813, %v1814
    %v1816 = vand.u32 %v1815, 4294901760
    %1817 = vmatpush1.msra.mxu0 %v1816
    %1818 = vmatprep.subr.mxu0 0.0
    %v1819 = vand.u32 %v42, 4294901760
    %v1820 = vsub.f32 %v42, %v1819
    %v1821 = vand.u32 %v1820, 4294901760
    %v1822 = vsub.f32 %v1820, %v1821
    %v1823 = vand.u32 %v1822, 4294901760
    %1824 = vmatpush1.msra.mxu0 %v1823
    %1825 = vmatprep.subr.mxu0 0.0
    %v1826 = vand.u32 %v43, 4294901760
    %v1827 = vsub.f32 %v43, %v1826
    %v1828 = vand.u32 %v1827, 4294901760
    %v1829 = vsub.f32 %v1827, %v1828
    %v1830 = vand.u32 %v1829, 4294901760
    %1831 = vmatpush1.msra.mxu0 %v1830
    %1832 = vmatprep.subr.mxu0 0.0
    %v1833 = vand.u32 %v44, 4294901760
    %v1834 = vsub.f32 %v44, %v1833
    %v1835 = vand.u32 %v1834, 4294901760
    %v1836 = vsub.f32 %v1834, %v1835
    %v1837 = vand.u32 %v1836, 4294901760
    %1838 = vmatpush1.msra.mxu0 %v1837
    %1839 = vmatprep.subr.mxu0 0.0
    %v1840 = vand.u32 %v45, 4294901760
    %v1841 = vsub.f32 %v45, %v1840
    %v1842 = vand.u32 %v1841, 4294901760
    %v1843 = vsub.f32 %v1841, %v1842
    %v1844 = vand.u32 %v1843, 4294901760
    %1845 = vmatpush1.msra.mxu0 %v1844
    %1846 = vmatprep.subr.mxu0 0.0
    %v1847 = vand.u32 %v46, 4294901760
    %v1848 = vsub.f32 %v46, %v1847
    %v1849 = vand.u32 %v1848, 4294901760
    %v1850 = vsub.f32 %v1848, %v1849
    %v1851 = vand.u32 %v1850, 4294901760
    %1852 = vmatpush1.msra.mxu0 %v1851
    %1853 = vmatprep.subr.mxu0 0.0
    %1854 = vmatpush1.msra.mxu0 0.0
    %1855 = vmatprep.subr.mxu0 0.0
    %1856 = vmatpush1.msra.mxu0 0.0
    %1857 = vmatprep.subr.mxu0 0.0
    %1858 = vmatpush1.msra.mxu0 0.0
    %1859 = vmatprep.subr.mxu0 0.0
    %1860 = vmatpush1.msra.mxu0 0.0
    %1861 = vmatprep.subr.mxu0 0.0
    %1862 = vmatpush1.msra.mxu0 0.0
    %1863 = vmatprep.subr.mxu0 0.0
    %1864 = vmatpush1.msra.mxu0 0.0
    %1865 = vmatprep.subr.mxu0 0.0
    %1866 = vmatpush1.msra.mxu0 0.0
    %1867 = vmatprep.subr.mxu0 0.0
    %1868 = vmatpush1.msra.mxu0 0.0
    %1869 = vmatprep.subr.mxu0 0.0
    %1870 = vmatpush1.msra.mxu0 0.0
    %1871 = vmatprep.subr.mxu0 0.0
    %1872 = vmatpush1.msra.mxu0 0.0
    %1873 = vmatprep.subr.mxu0 0.0
    %1874 = vmatpush1.msra.mxu0 0.0
    %1875 = vmatprep.subr.mxu0 0.0
    %1876 = vmatpush1.msra.mxu0 0.0
    %1877 = vmatprep.subr.mxu0 0.0
    %1878 = vmatpush1.msra.mxu0 0.0
    %1879 = vmatprep.subr.mxu0 0.0
    %1880 = vmatpush1.msra.mxu0 0.0
    %1881 = vmatprep.subr.mxu0 0.0
    %1882 = vmatpush1.msra.mxu0 0.0
    %1883 = vmatprep.subr.mxu0 0.0
    %1884 = vmatpush1.msra.mxu0 0.0
    %1885 = vmatprep.subr.mxu0 0.0
    %1886 = vmatpush1.msra.mxu0 0.0
    %1887 = vmatprep.subr.mxu0 0.0
    %1888 = vmatpush1.msra.mxu0 0.0
    %1889 = vmatprep.subr.mxu0 0.0
    %1890 = vmatpush1.msra.mxu0 0.0
    %1891 = vmatprep.subr.mxu0 0.0
    %1892 = vmatpush1.msra.mxu0 0.0
    %1893 = vmatprep.subr.mxu0 0.0
    %1894 = vmatpush1.msra.mxu0 0.0
    %1895 = vmatprep.subr.mxu0 0.0
    %1896 = vmatpush1.msra.mxu0 0.0
    %1897 = vmatprep.subr.mxu0 0.0
    %1898 = vmatpush1.msra.mxu0 0.0
    %1899 = vmatprep.subr.mxu0 0.0
    %1900 = vmatpush1.msra.mxu0 0.0
    %1901 = vmatprep.mubr.f32.mxu0 0.0
    %v1902 = vand.u32 %v1712, 4294901760
    %1903 = vmatmul.mubr.f32.gmra.mrb[0].mxu0 %v1902
    %v1904 = vpop.f32.mrb[0].mxu0
    %v1905 = vadd.f32 %v1794, %v1904
    %v1906 = vpop.f32.mrb[0].mxu0
    %1907 = vdwg.mxu0
    %1908 = vmatprep.subr.mxu0 0.0
    %v1909 = vand.u32 %v39, 4294901760
    %v1910 = vsub.f32 %v39, %v1909
    %1911 = vmatpush1.msra.mxu0 %v1910
    %1912 = vmatprep.subr.mxu0 0.0
    %v1913 = vand.u32 %v40, 4294901760
    %v1914 = vsub.f32 %v40, %v1913
    %1915 = vmatpush1.msra.mxu0 %v1914
    %1916 = vmatprep.subr.mxu0 0.0
    %v1917 = vand.u32 %v41, 4294901760
    %v1918 = vsub.f32 %v41, %v1917
    %1919 = vmatpush1.msra.mxu0 %v1918
    %1920 = vmatprep.subr.mxu0 0.0
    %v1921 = vand.u32 %v42, 4294901760
    %v1922 = vsub.f32 %v42, %v1921
    %1923 = vmatpush1.msra.mxu0 %v1922
    %1924 = vmatprep.subr.mxu0 0.0
    %v1925 = vand.u32 %v43, 4294901760
    %v1926 = vsub.f32 %v43, %v1925
    %1927 = vmatpush1.msra.mxu0 %v1926
    %1928 = vmatprep.subr.mxu0 0.0
    %v1929 = vand.u32 %v44, 4294901760
    %v1930 = vsub.f32 %v44, %v1929
    %1931 = vmatpush1.msra.mxu0 %v1930
    %1932 = vmatprep.subr.mxu0 0.0
    %v1933 = vand.u32 %v45, 4294901760
    %v1934 = vsub.f32 %v45, %v1933
    %1935 = vmatpush1.msra.mxu0 %v1934
    %1936 = vmatprep.subr.mxu0 0.0
    %v1937 = vand.u32 %v46, 4294901760
    %v1938 = vsub.f32 %v46, %v1937
    %1939 = vmatpush1.msra.mxu0 %v1938
    %1940 = vmatprep.subr.mxu0 0.0
    %1941 = vmatpush1.msra.mxu0 0.0
    %1942 = vmatprep.subr.mxu0 0.0
    %1943 = vmatpush1.msra.mxu0 0.0
    %1944 = vmatprep.subr.mxu0 0.0
    %1945 = vmatpush1.msra.mxu0 0.0
    %1946 = vmatprep.subr.mxu0 0.0
    %1947 = vmatpush1.msra.mxu0 0.0
    %1948 = vmatprep.subr.mxu0 0.0
    %1949 = vmatpush1.msra.mxu0 0.0
    %1950 = vmatprep.subr.mxu0 0.0
    %1951 = vmatpush1.msra.mxu0 0.0
    %1952 = vmatprep.subr.mxu0 0.0
    %1953 = vmatpush1.msra.mxu0 0.0
    %1954 = vmatprep.subr.mxu0 0.0
    %1955 = vmatpush1.msra.mxu0 0.0
    %1956 = vmatprep.subr.mxu0 0.0
    %1957 = vmatpush1.msra.mxu0 0.0
    %1958 = vmatprep.subr.mxu0 0.0
    %1959 = vmatpush1.msra.mxu0 0.0
    %1960 = vmatprep.subr.mxu0 0.0
    %1961 = vmatpush1.msra.mxu0 0.0
    %1962 = vmatprep.subr.mxu0 0.0
    %1963 = vmatpush1.msra.mxu0 0.0
    %1964 = vmatprep.subr.mxu0 0.0
    %1965 = vmatpush1.msra.mxu0 0.0
    %1966 = vmatprep.subr.mxu0 0.0
    %1967 = vmatpush1.msra.mxu0 0.0
    %1968 = vmatprep.subr.mxu0 0.0
    %1969 = vmatpush1.msra.mxu0 0.0
    %1970 = vmatprep.subr.mxu0 0.0
    %1971 = vmatpush1.msra.mxu0 0.0
    %1972 = vmatprep.subr.mxu0 0.0
    %1973 = vmatpush1.msra.mxu0 0.0
    %1974 = vmatprep.subr.mxu0 0.0
    %1975 = vmatpush1.msra.mxu0 0.0
    %1976 = vmatprep.subr.mxu0 0.0
    %1977 = vmatpush1.msra.mxu0 0.0
    %1978 = vmatprep.subr.mxu0 0.0
    %1979 = vmatpush1.msra.mxu0 0.0
    %1980 = vmatprep.subr.mxu0 0.0
    %1981 = vmatpush1.msra.mxu0 0.0
    %1982 = vmatprep.subr.mxu0 0.0
    %1983 = vmatpush1.msra.mxu0 0.0
    %1984 = vmatprep.subr.mxu0 0.0
    %1985 = vmatpush1.msra.mxu0 0.0
    %1986 = vmatprep.subr.mxu0 0.0
    %1987 = vmatpush1.msra.mxu0 0.0
    %1988 = vmatprep.mubr.f32.mxu0 0.0
    %v1989 = vand.u32 %v1712, 4294901760
    %v1990 = vsub.f32 %v1712, %v1989
    %1991 = vmatmul.mubr.f32.gmra.mrb[0].mxu0 %v1990
    %v1992 = vpop.f32.mrb[0].mxu0
    %v1993 = vadd.f32 %v1905, %v1992
    %v1994 = vpop.f32.mrb[0].mxu0
    %1995 = vdwg.mxu0
    %1996 = vmatprep.subr.mxu0 0.0
    %v1997 = vand.u32 %v39, 4294901760
    %1998 = vmatpush1.msra.mxu0 %v1997
    %1999 = vmatprep.subr.mxu0 0.0
    %v2000 = vand.u32 %v40, 4294901760
    %2001 = vmatpush1.msra.mxu0 %v2000
    %2002 = vmatprep.subr.mxu0 0.0
    %v2003 = vand.u32 %v41, 4294901760
    %2004 = vmatpush1.msra.mxu0 %v2003
    %2005 = vmatprep.subr.mxu0 0.0
    %v2006 = vand.u32 %v42, 4294901760
    %2007 = vmatpush1.msra.mxu0 %v2006
    %2008 = vmatprep.subr.mxu0 0.0
    %v2009 = vand.u32 %v43, 4294901760
    %2010 = vmatpush1.msra.mxu0 %v2009
    %2011 = vmatprep.subr.mxu0 0.0
    %v2012 = vand.u32 %v44, 4294901760
    %2013 = vmatpush1.msra.mxu0 %v2012
    %2014 = vmatprep.subr.mxu0 0.0
    %v2015 = vand.u32 %v45, 4294901760
    %2016 = vmatpush1.msra.mxu0 %v2015
    %2017 = vmatprep.subr.mxu0 0.0
    %v2018 = vand.u32 %v46, 4294901760
    %2019 = vmatpush1.msra.mxu0 %v2018
    %2020 = vmatprep.subr.mxu0 0.0
    %2021 = vmatpush1.msra.mxu0 0.0
    %2022 = vmatprep.subr.mxu0 0.0
    %2023 = vmatpush1.msra.mxu0 0.0
    %2024 = vmatprep.subr.mxu0 0.0
    %2025 = vmatpush1.msra.mxu0 0.0
    %2026 = vmatprep.subr.mxu0 0.0
    %2027 = vmatpush1.msra.mxu0 0.0
    %2028 = vmatprep.subr.mxu0 0.0
    %2029 = vmatpush1.msra.mxu0 0.0
    %2030 = vmatprep.subr.mxu0 0.0
    %2031 = vmatpush1.msra.mxu0 0.0
    %2032 = vmatprep.subr.mxu0 0.0
    %2033 = vmatpush1.msra.mxu0 0.0
    %2034 = vmatprep.subr.mxu0 0.0
    %2035 = vmatpush1.msra.mxu0 0.0
    %2036 = vmatprep.subr.mxu0 0.0
    %2037 = vmatpush1.msra.mxu0 0.0
    %2038 = vmatprep.subr.mxu0 0.0
    %2039 = vmatpush1.msra.mxu0 0.0
    %2040 = vmatprep.subr.mxu0 0.0
    %2041 = vmatpush1.msra.mxu0 0.0
    %2042 = vmatprep.subr.mxu0 0.0
    %2043 = vmatpush1.msra.mxu0 0.0
    %2044 = vmatprep.subr.mxu0 0.0
    %2045 = vmatpush1.msra.mxu0 0.0
    %2046 = vmatprep.subr.mxu0 0.0
    %2047 = vmatpush1.msra.mxu0 0.0
    %2048 = vmatprep.subr.mxu0 0.0
    %2049 = vmatpush1.msra.mxu0 0.0
    %2050 = vmatprep.subr.mxu0 0.0
    %2051 = vmatpush1.msra.mxu0 0.0
    %2052 = vmatprep.subr.mxu0 0.0
    %2053 = vmatpush1.msra.mxu0 0.0
    %2054 = vmatprep.subr.mxu0 0.0
    %2055 = vmatpush1.msra.mxu0 0.0
    %2056 = vmatprep.subr.mxu0 0.0
    %2057 = vmatpush1.msra.mxu0 0.0
    %2058 = vmatprep.subr.mxu0 0.0
    %2059 = vmatpush1.msra.mxu0 0.0
    %2060 = vmatprep.subr.mxu0 0.0
    %2061 = vmatpush1.msra.mxu0 0.0
    %2062 = vmatprep.subr.mxu0 0.0
    %2063 = vmatpush1.msra.mxu0 0.0
    %2064 = vmatprep.subr.mxu0 0.0
    %2065 = vmatpush1.msra.mxu0 0.0
    %2066 = vmatprep.subr.mxu0 0.0
    %2067 = vmatpush1.msra.mxu0 0.0
    %2068 = vmatprep.mubr.f32.mxu0 0.0
    %v2069 = vand.u32 %v1712, 4294901760
    %v2070 = vsub.f32 %v1712, %v2069
    %v2071 = vand.u32 %v2070, 4294901760
    %2072 = vmatmul.mubr.f32.gmra.mrb[0].mxu0 %v2071
    %v2073 = vpop.f32.mrb[0].mxu0
    %v2074 = vadd.f32 %v1993, %v2073
    %v2075 = vpop.f32.mrb[0].mxu0
    %2076 = vdwg.mxu0
    %2077 = vmatprep.subr.mxu0 0.0
    %v2078 = vand.u32 %v39, 4294901760
    %v2079 = vsub.f32 %v39, %v2078
    %v2080 = vand.u32 %v2079, 4294901760
    %2081 = vmatpush1.msra.mxu0 %v2080
    %2082 = vmatprep.subr.mxu0 0.0
    %v2083 = vand.u32 %v40, 4294901760
    %v2084 = vsub.f32 %v40, %v2083
    %v2085 = vand.u32 %v2084, 4294901760
    %2086 = vmatpush1.msra.mxu0 %v2085
    %2087 = vmatprep.subr.mxu0 0.0
    %v2088 = vand.u32 %v41, 4294901760
    %v2089 = vsub.f32 %v41, %v2088
    %v2090 = vand.u32 %v2089, 4294901760
    %2091 = vmatpush1.msra.mxu0 %v2090
    %2092 = vmatprep.subr.mxu0 0.0
    %v2093 = vand.u32 %v42, 4294901760
    %v2094 = vsub.f32 %v42, %v2093
    %v2095 = vand.u32 %v2094, 4294901760
    %2096 = vmatpush1.msra.mxu0 %v2095
    %2097 = vmatprep.subr.mxu0 0.0
    %v2098 = vand.u32 %v43, 4294901760
    %v2099 = vsub.f32 %v43, %v2098
    %v2100 = vand.u32 %v2099, 4294901760
    %2101 = vmatpush1.msra.mxu0 %v2100
    %2102 = vmatprep.subr.mxu0 0.0
    %v2103 = vand.u32 %v44, 4294901760
    %v2104 = vsub.f32 %v44, %v2103
    %v2105 = vand.u32 %v2104, 4294901760
    %2106 = vmatpush1.msra.mxu0 %v2105
    %2107 = vmatprep.subr.mxu0 0.0
    %v2108 = vand.u32 %v45, 4294901760
    %v2109 = vsub.f32 %v45, %v2108
    %v2110 = vand.u32 %v2109, 4294901760
    %2111 = vmatpush1.msra.mxu0 %v2110
    %2112 = vmatprep.subr.mxu0 0.0
    %v2113 = vand.u32 %v46, 4294901760
    %v2114 = vsub.f32 %v46, %v2113
    %v2115 = vand.u32 %v2114, 4294901760
    %2116 = vmatpush1.msra.mxu0 %v2115
    %2117 = vmatprep.subr.mxu0 0.0
    %2118 = vmatpush1.msra.mxu0 0.0
    %2119 = vmatprep.subr.mxu0 0.0
    %2120 = vmatpush1.msra.mxu0 0.0
    %2121 = vmatprep.subr.mxu0 0.0
    %2122 = vmatpush1.msra.mxu0 0.0
    %2123 = vmatprep.subr.mxu0 0.0
    %2124 = vmatpush1.msra.mxu0 0.0
    %2125 = vmatprep.subr.mxu0 0.0
    %2126 = vmatpush1.msra.mxu0 0.0
    %2127 = vmatprep.subr.mxu0 0.0
    %2128 = vmatpush1.msra.mxu0 0.0
    %2129 = vmatprep.subr.mxu0 0.0
    %2130 = vmatpush1.msra.mxu0 0.0
    %2131 = vmatprep.subr.mxu0 0.0
    %2132 = vmatpush1.msra.mxu0 0.0
    %2133 = vmatprep.subr.mxu0 0.0
    %2134 = vmatpush1.msra.mxu0 0.0
    %2135 = vmatprep.subr.mxu0 0.0
    %2136 = vmatpush1.msra.mxu0 0.0
    %2137 = vmatprep.subr.mxu0 0.0
    %2138 = vmatpush1.msra.mxu0 0.0
    %2139 = vmatprep.subr.mxu0 0.0
    %2140 = vmatpush1.msra.mxu0 0.0
    %2141 = vmatprep.subr.mxu0 0.0
    %2142 = vmatpush1.msra.mxu0 0.0
    %2143 = vmatprep.subr.mxu0 0.0
    %2144 = vmatpush1.msra.mxu0 0.0
    %2145 = vmatprep.subr.mxu0 0.0
    %2146 = vmatpush1.msra.mxu0 0.0
    %2147 = vmatprep.subr.mxu0 0.0
    %2148 = vmatpush1.msra.mxu0 0.0
    %2149 = vmatprep.subr.mxu0 0.0
    %2150 = vmatpush1.msra.mxu0 0.0
    %2151 = vmatprep.subr.mxu0 0.0
    %2152 = vmatpush1.msra.mxu0 0.0
    %2153 = vmatprep.subr.mxu0 0.0
    %2154 = vmatpush1.msra.mxu0 0.0
    %2155 = vmatprep.subr.mxu0 0.0
    %2156 = vmatpush1.msra.mxu0 0.0
    %2157 = vmatprep.subr.mxu0 0.0
    %2158 = vmatpush1.msra.mxu0 0.0
    %2159 = vmatprep.subr.mxu0 0.0
    %2160 = vmatpush1.msra.mxu0 0.0
    %2161 = vmatprep.subr.mxu0 0.0
    %2162 = vmatpush1.msra.mxu0 0.0
    %2163 = vmatprep.subr.mxu0 0.0
    %2164 = vmatpush1.msra.mxu0 0.0
    %2165 = vmatprep.mubr.f32.mxu0 0.0
    %v2166 = vand.u32 %v1712, 4294901760
    %2167 = vmatmul.mubr.f32.gmra.mrb[0].mxu0 %v2166
    %v2168 = vpop.f32.mrb[0].mxu0
    %v2169 = vadd.f32 %v2074, %v2168
    %v2170 = vpop.f32.mrb[0].mxu0
    %2171 = vdwg.mxu0
    %2172 = vmatprep.subr.mxu0 0.0
    %v2173 = vand.u32 %v39, 4294901760
    %2174 = vmatpush1.msra.mxu0 %v2173
    %2175 = vmatprep.subr.mxu0 0.0
    %v2176 = vand.u32 %v40, 4294901760
    %2177 = vmatpush1.msra.mxu0 %v2176
    %2178 = vmatprep.subr.mxu0 0.0
    %v2179 = vand.u32 %v41, 4294901760
    %2180 = vmatpush1.msra.mxu0 %v2179
    %2181 = vmatprep.subr.mxu0 0.0
    %v2182 = vand.u32 %v42, 4294901760
    %2183 = vmatpush1.msra.mxu0 %v2182
    %2184 = vmatprep.subr.mxu0 0.0
    %v2185 = vand.u32 %v43, 4294901760
    %2186 = vmatpush1.msra.mxu0 %v2185
    %2187 = vmatprep.subr.mxu0 0.0
    %v2188 = vand.u32 %v44, 4294901760
    %2189 = vmatpush1.msra.mxu0 %v2188
    %2190 = vmatprep.subr.mxu0 0.0
    %v2191 = vand.u32 %v45, 4294901760
    %2192 = vmatpush1.msra.mxu0 %v2191
    %2193 = vmatprep.subr.mxu0 0.0
    %v2194 = vand.u32 %v46, 4294901760
    %2195 = vmatpush1.msra.mxu0 %v2194
    %2196 = vmatprep.subr.mxu0 0.0
    %2197 = vmatpush1.msra.mxu0 0.0
    %2198 = vmatprep.subr.mxu0 0.0
    %2199 = vmatpush1.msra.mxu0 0.0
    %2200 = vmatprep.subr.mxu0 0.0
    %2201 = vmatpush1.msra.mxu0 0.0
    %2202 = vmatprep.subr.mxu0 0.0
    %2203 = vmatpush1.msra.mxu0 0.0
    %2204 = vmatprep.subr.mxu0 0.0
    %2205 = vmatpush1.msra.mxu0 0.0
    %2206 = vmatprep.subr.mxu0 0.0
    %2207 = vmatpush1.msra.mxu0 0.0
    %2208 = vmatprep.subr.mxu0 0.0
    %2209 = vmatpush1.msra.mxu0 0.0
    %2210 = vmatprep.subr.mxu0 0.0
    %2211 = vmatpush1.msra.mxu0 0.0
    %2212 = vmatprep.subr.mxu0 0.0
    %2213 = vmatpush1.msra.mxu0 0.0
    %2214 = vmatprep.subr.mxu0 0.0
    %2215 = vmatpush1.msra.mxu0 0.0
    %2216 = vmatprep.subr.mxu0 0.0
    %2217 = vmatpush1.msra.mxu0 0.0
    %2218 = vmatprep.subr.mxu0 0.0
    %2219 = vmatpush1.msra.mxu0 0.0
    %2220 = vmatprep.subr.mxu0 0.0
    %2221 = vmatpush1.msra.mxu0 0.0
    %2222 = vmatprep.subr.mxu0 0.0
    %2223 = vmatpush1.msra.mxu0 0.0
    %2224 = vmatprep.subr.mxu0 0.0
    %2225 = vmatpush1.msra.mxu0 0.0
    %2226 = vmatprep.subr.mxu0 0.0
    %2227 = vmatpush1.msra.mxu0 0.0
    %2228 = vmatprep.subr.mxu0 0.0
    %2229 = vmatpush1.msra.mxu0 0.0
    %2230 = vmatprep.subr.mxu0 0.0
    %2231 = vmatpush1.msra.mxu0 0.0
    %2232 = vmatprep.subr.mxu0 0.0
    %2233 = vmatpush1.msra.mxu0 0.0
    %2234 = vmatprep.subr.mxu0 0.0
    %2235 = vmatpush1.msra.mxu0 0.0
    %2236 = vmatprep.subr.mxu0 0.0
    %2237 = vmatpush1.msra.mxu0 0.0
    %2238 = vmatprep.subr.mxu0 0.0
    %2239 = vmatpush1.msra.mxu0 0.0
    %2240 = vmatprep.subr.mxu0 0.0
    %2241 = vmatpush1.msra.mxu0 0.0
    %2242 = vmatprep.subr.mxu0 0.0
    %2243 = vmatpush1.msra.mxu0 0.0
    %2244 = vmatprep.mubr.f32.mxu0 0.0
    %v2245 = vand.u32 %v1712, 4294901760
    %2246 = vmatmul.mubr.f32.gmra.mrb[0].mxu0 %v2245
    %v2247 = vpop.f32.mrb[0].mxu0
    %v2248 = vadd.f32 %v2169, %v2247
    %v2249 = vpop.f32.mrb[0].mxu0
    %2250 = vdwg.mxu0
    %v2251 = vadd.f32 %v2248, %v52
    %v2252 = vxor.u32 %v2251, 2147483648
    %v2253 = vmul.f32 %v2252, 1.442695
    %v2254 = vpow.pop %v2253
    %v2255 = vadd.f32 %v2254, 1.0
    %v2256 = vrcp.pop %v2255
    %v2257 = vmul.f32 1.0, %v2256
    %v2258 = vadd.f32 %v2248, %v1149
    %2260 = vrot.lane.b32.xlu0 %v2258, 32
    %v2261 = vpop.permute.xlu0 %2260
    %v2263 = vmul.f32 %v2257, %v2261
    %2265 = vrot.lane.b32.xlu0 %v2263, 64
    %v2266 = vpop.permute.xlu0 %2265
    %v2268 = vadd.f32 %v2251, %v2266
    %v2269 = vtanh.pop %v2268
    %v2270 = vsub.f32 1.0, %v2257
    %2272 = vrot.lane.b32.xlu0 %v2269, 96
    %v2273 = vpop.permute.xlu0 %2272
    %v2275 = vmul.f32 %v2270, %v2273
    %v2276 = vmul.f32 %v2257, %v1172
    %v2277 = vadd.f32 %v2275, %v2276
    %v2278 = vmul.f32 %v1696, %v2277
    %v2279 = vmul.f32 %v1702, %v1172
    %v2280 = vadd.f32 %v2278, %v2279
    %v2281 = vmul.f32 %v1696, %v2280
    %s2282 = scalar_lea.vmem %s1, 4
    %v2283 = vld [vmem:[%s2282] sm:$0x3]
    %v2284 = vsub.f32 1.0, %v2283
    %s2285 = scalar_lea.vmem %s0, 4
    %v2286 = vld [vmem:[%s2285] sm:$0x3]
    %v2287 = vsel %vm63, %v1708, 0
    %2289 = vmatprep.subr.mxu0 0.0
    %v2290 = vand.u32 %v29, 4294901760
    %2291 = vmatpush1.msra.mxu0 %v2290
    %2292 = vmatprep.subr.mxu0 0.0
    %v2293 = vand.u32 %v30, 4294901760
    %2294 = vmatpush1.msra.mxu0 %v2293
    %2295 = vmatprep.subr.mxu0 0.0
    %v2296 = vand.u32 %v31, 4294901760
    %2297 = vmatpush1.msra.mxu0 %v2296
    %2298 = vmatprep.subr.mxu0 0.0
    %v2299 = vand.u32 %v32, 4294901760
    %2300 = vmatpush1.msra.mxu0 %v2299
    %2301 = vmatprep.subr.mxu0 0.0
    %2302 = vmatpush1.msra.mxu0 0.0
    %2303 = vmatprep.subr.mxu0 0.0
    %2304 = vmatpush1.msra.mxu0 0.0
    %2305 = vmatprep.subr.mxu0 0.0
    %2306 = vmatpush1.msra.mxu0 0.0
    %2307 = vmatprep.subr.mxu0 0.0
    %2308 = vmatpush1.msra.mxu0 0.0
    %2309 = vmatprep.subr.mxu0 0.0
    %2310 = vmatpush1.msra.mxu0 0.0
    %2311 = vmatprep.subr.mxu0 0.0
    %2312 = vmatpush1.msra.mxu0 0.0
    %2313 = vmatprep.subr.mxu0 0.0
    %2314 = vmatpush1.msra.mxu0 0.0
    %2315 = vmatprep.subr.mxu0 0.0
    %2316 = vmatpush1.msra.mxu0 0.0
    %2317 = vmatprep.subr.mxu0 0.0
    %2318 = vmatpush1.msra.mxu0 0.0
    %2319 = vmatprep.subr.mxu0 0.0
    %2320 = vmatpush1.msra.mxu0 0.0
    %2321 = vmatprep.subr.mxu0 0.0
    %2322 = vmatpush1.msra.mxu0 0.0
    %2323 = vmatprep.subr.mxu0 0.0
    %2324 = vmatpush1.msra.mxu0 0.0
    %2325 = vmatprep.subr.mxu0 0.0
    %2326 = vmatpush1.msra.mxu0 0.0
    %2327 = vmatprep.subr.mxu0 0.0
    %2328 = vmatpush1.msra.mxu0 0.0
    %2329 = vmatprep.subr.mxu0 0.0
    %2330 = vmatpush1.msra.mxu0 0.0
    %2331 = vmatprep.subr.mxu0 0.0
    %2332 = vmatpush1.msra.mxu0 0.0
    %2333 = vmatprep.subr.mxu0 0.0
    %2334 = vmatpush1.msra.mxu0 0.0
    %2335 = vmatprep.subr.mxu0 0.0
    %2336 = vmatpush1.msra.mxu0 0.0
    %2337 = vmatprep.subr.mxu0 0.0
    %2338 = vmatpush1.msra.mxu0 0.0
    %2339 = vmatprep.subr.mxu0 0.0
    %2340 = vmatpush1.msra.mxu0 0.0
    %2341 = vmatprep.subr.mxu0 0.0
    %2342 = vmatpush1.msra.mxu0 0.0
    %2343 = vmatprep.subr.mxu0 0.0
    %2344 = vmatpush1.msra.mxu0 0.0
    %2345 = vmatprep.subr.mxu0 0.0
    %2346 = vmatpush1.msra.mxu0 0.0
    %2347 = vmatprep.subr.mxu0 0.0
    %2348 = vmatpush1.msra.mxu0 0.0
    %2349 = vmatprep.subr.mxu0 0.0
    %2350 = vmatpush1.msra.mxu0 0.0
    %2351 = vmatprep.subr.mxu0 0.0
    %2352 = vmatpush1.msra.mxu0 0.0
    %2353 = vmatprep.subr.mxu0 0.0
    %2354 = vmatpush1.msra.mxu0 0.0
    %2355 = vmatprep.subr.mxu0 0.0
    %2356 = vmatpush1.msra.mxu0 0.0
    %2357 = vmatprep.mubr.f32.mxu0 0.0
    %v2358 = vand.u32 %v2287, 4294901760
    %v2359 = vsub.f32 %v2287, %v2358
    %v2360 = vand.u32 %v2359, 4294901760
    %v2361 = vsub.f32 %v2359, %v2360
    %v2362 = vand.u32 %v2361, 4294901760
    %2363 = vmatmul.mubr.f32.gmra.mrb[0].mxu0 %v2362
    %v2364 = vpop.f32.mrb[0].mxu0
    %v2365 = vadd.f32 0.0, %v2364
    %v2366 = vpop.f32.mrb[0].mxu0
    %2367 = vdwg.mxu0
    %2368 = vmatprep.subr.mxu0 0.0
    %v2369 = vand.u32 %v29, 4294901760
    %v2370 = vsub.f32 %v29, %v2369
    %v2371 = vand.u32 %v2370, 4294901760
    %v2372 = vsub.f32 %v2370, %v2371
    %v2373 = vand.u32 %v2372, 4294901760
    %2374 = vmatpush1.msra.mxu0 %v2373
    %2375 = vmatprep.subr.mxu0 0.0
    %v2376 = vand.u32 %v30, 4294901760
    %v2377 = vsub.f32 %v30, %v2376
    %v2378 = vand.u32 %v2377, 4294901760
    %v2379 = vsub.f32 %v2377, %v2378
    %v2380 = vand.u32 %v2379, 4294901760
    %2381 = vmatpush1.msra.mxu0 %v2380
    %2382 = vmatprep.subr.mxu0 0.0
    %v2383 = vand.u32 %v31, 4294901760
    %v2384 = vsub.f32 %v31, %v2383
    %v2385 = vand.u32 %v2384, 4294901760
    %v2386 = vsub.f32 %v2384, %v2385
    %v2387 = vand.u32 %v2386, 4294901760
    %2388 = vmatpush1.msra.mxu0 %v2387
    %2389 = vmatprep.subr.mxu0 0.0
    %v2390 = vand.u32 %v32, 4294901760
    %v2391 = vsub.f32 %v32, %v2390
    %v2392 = vand.u32 %v2391, 4294901760
    %v2393 = vsub.f32 %v2391, %v2392
    %v2394 = vand.u32 %v2393, 4294901760
    %2395 = vmatpush1.msra.mxu0 %v2394
    %2396 = vmatprep.subr.mxu0 0.0
    %2397 = vmatpush1.msra.mxu0 0.0
    %2398 = vmatprep.subr.mxu0 0.0
    %2399 = vmatpush1.msra.mxu0 0.0
    %2400 = vmatprep.subr.mxu0 0.0
    %2401 = vmatpush1.msra.mxu0 0.0
    %2402 = vmatprep.subr.mxu0 0.0
    %2403 = vmatpush1.msra.mxu0 0.0
    %2404 = vmatprep.subr.mxu0 0.0
    %2405 = vmatpush1.msra.mxu0 0.0
    %2406 = vmatprep.subr.mxu0 0.0
    %2407 = vmatpush1.msra.mxu0 0.0
    %2408 = vmatprep.subr.mxu0 0.0
    %2409 = vmatpush1.msra.mxu0 0.0
    %2410 = vmatprep.subr.mxu0 0.0
    %2411 = vmatpush1.msra.mxu0 0.0
    %2412 = vmatprep.subr.mxu0 0.0
    %2413 = vmatpush1.msra.mxu0 0.0
    %2414 = vmatprep.subr.mxu0 0.0
    %2415 = vmatpush1.msra.mxu0 0.0
    %2416 = vmatprep.subr.mxu0 0.0
    %2417 = vmatpush1.msra.mxu0 0.0
    %2418 = vmatprep.subr.mxu0 0.0
    %2419 = vmatpush1.msra.mxu0 0.0
    %2420 = vmatprep.subr.mxu0 0.0
    %2421 = vmatpush1.msra.mxu0 0.0
    %2422 = vmatprep.subr.mxu0 0.0
    %2423 = vmatpush1.msra.mxu0 0.0
    %2424 = vmatprep.subr.mxu0 0.0
    %2425 = vmatpush1.msra.mxu0 0.0
    %2426 = vmatprep.subr.mxu0 0.0
    %2427 = vmatpush1.msra.mxu0 0.0
    %2428 = vmatprep.subr.mxu0 0.0
    %2429 = vmatpush1.msra.mxu0 0.0
    %2430 = vmatprep.subr.mxu0 0.0
    %2431 = vmatpush1.msra.mxu0 0.0
    %2432 = vmatprep.subr.mxu0 0.0
    %2433 = vmatpush1.msra.mxu0 0.0
    %2434 = vmatprep.subr.mxu0 0.0
    %2435 = vmatpush1.msra.mxu0 0.0
    %2436 = vmatprep.subr.mxu0 0.0
    %2437 = vmatpush1.msra.mxu0 0.0
    %2438 = vmatprep.subr.mxu0 0.0
    %2439 = vmatpush1.msra.mxu0 0.0
    %2440 = vmatprep.subr.mxu0 0.0
    %2441 = vmatpush1.msra.mxu0 0.0
    %2442 = vmatprep.subr.mxu0 0.0
    %2443 = vmatpush1.msra.mxu0 0.0
    %2444 = vmatprep.subr.mxu0 0.0
    %2445 = vmatpush1.msra.mxu0 0.0
    %2446 = vmatprep.subr.mxu0 0.0
    %2447 = vmatpush1.msra.mxu0 0.0
    %2448 = vmatprep.subr.mxu0 0.0
    %2449 = vmatpush1.msra.mxu0 0.0
    %2450 = vmatprep.subr.mxu0 0.0
    %2451 = vmatpush1.msra.mxu0 0.0
    %2452 = vmatprep.mubr.f32.mxu0 0.0
    %v2453 = vand.u32 %v2287, 4294901760
    %2454 = vmatmul.mubr.f32.gmra.mrb[0].mxu0 %v2453
    %v2455 = vpop.f32.mrb[0].mxu0
    %v2456 = vadd.f32 %v2365, %v2455
    %v2457 = vpop.f32.mrb[0].mxu0
    %2458 = vdwg.mxu0
    %2459 = vmatprep.subr.mxu0 0.0
    %v2460 = vand.u32 %v29, 4294901760
    %v2461 = vsub.f32 %v29, %v2460
    %2462 = vmatpush1.msra.mxu0 %v2461
    %2463 = vmatprep.subr.mxu0 0.0
    %v2464 = vand.u32 %v30, 4294901760
    %v2465 = vsub.f32 %v30, %v2464
    %2466 = vmatpush1.msra.mxu0 %v2465
    %2467 = vmatprep.subr.mxu0 0.0
    %v2468 = vand.u32 %v31, 4294901760
    %v2469 = vsub.f32 %v31, %v2468
    %2470 = vmatpush1.msra.mxu0 %v2469
    %2471 = vmatprep.subr.mxu0 0.0
    %v2472 = vand.u32 %v32, 4294901760
    %v2473 = vsub.f32 %v32, %v2472
    %2474 = vmatpush1.msra.mxu0 %v2473
    %2475 = vmatprep.subr.mxu0 0.0
    %2476 = vmatpush1.msra.mxu0 0.0
    %2477 = vmatprep.subr.mxu0 0.0
    %2478 = vmatpush1.msra.mxu0 0.0
    %2479 = vmatprep.subr.mxu0 0.0
    %2480 = vmatpush1.msra.mxu0 0.0
    %2481 = vmatprep.subr.mxu0 0.0
    %2482 = vmatpush1.msra.mxu0 0.0
    %2483 = vmatprep.subr.mxu0 0.0
    %2484 = vmatpush1.msra.mxu0 0.0
    %2485 = vmatprep.subr.mxu0 0.0
    %2486 = vmatpush1.msra.mxu0 0.0
    %2487 = vmatprep.subr.mxu0 0.0
    %2488 = vmatpush1.msra.mxu0 0.0
    %2489 = vmatprep.subr.mxu0 0.0
    %2490 = vmatpush1.msra.mxu0 0.0
    %2491 = vmatprep.subr.mxu0 0.0
    %2492 = vmatpush1.msra.mxu0 0.0
    %2493 = vmatprep.subr.mxu0 0.0
    %2494 = vmatpush1.msra.mxu0 0.0
    %2495 = vmatprep.subr.mxu0 0.0
    %2496 = vmatpush1.msra.mxu0 0.0
    %2497 = vmatprep.subr.mxu0 0.0
    %2498 = vmatpush1.msra.mxu0 0.0
    %2499 = vmatprep.subr.mxu0 0.0
    %2500 = vmatpush1.msra.mxu0 0.0
    %2501 = vmatprep.subr.mxu0 0.0
    %2502 = vmatpush1.msra.mxu0 0.0
    %2503 = vmatprep.subr.mxu0 0.0
    %2504 = vmatpush1.msra.mxu0 0.0
    %2505 = vmatprep.subr.mxu0 0.0
    %2506 = vmatpush1.msra.mxu0 0.0
    %2507 = vmatprep.subr.mxu0 0.0
    %2508 = vmatpush1.msra.mxu0 0.0
    %2509 = vmatprep.subr.mxu0 0.0
    %2510 = vmatpush1.msra.mxu0 0.0
    %2511 = vmatprep.subr.mxu0 0.0
    %2512 = vmatpush1.msra.mxu0 0.0
    %2513 = vmatprep.subr.mxu0 0.0
    %2514 = vmatpush1.msra.mxu0 0.0
    %2515 = vmatprep.subr.mxu0 0.0
    %2516 = vmatpush1.msra.mxu0 0.0
    %2517 = vmatprep.subr.mxu0 0.0
    %2518 = vmatpush1.msra.mxu0 0.0
    %2519 = vmatprep.subr.mxu0 0.0
    %2520 = vmatpush1.msra.mxu0 0.0
    %2521 = vmatprep.subr.mxu0 0.0
    %2522 = vmatpush1.msra.mxu0 0.0
    %2523 = vmatprep.subr.mxu0 0.0
    %2524 = vmatpush1.msra.mxu0 0.0
    %2525 = vmatprep.subr.mxu0 0.0
    %2526 = vmatpush1.msra.mxu0 0.0
    %2527 = vmatprep.subr.mxu0 0.0
    %2528 = vmatpush1.msra.mxu0 0.0
    %2529 = vmatprep.subr.mxu0 0.0
    %2530 = vmatpush1.msra.mxu0 0.0
    %2531 = vmatprep.mubr.f32.mxu0 0.0
    %v2532 = vand.u32 %v2287, 4294901760
    %v2533 = vsub.f32 %v2287, %v2532
    %2534 = vmatmul.mubr.f32.gmra.mrb[0].mxu0 %v2533
    %v2535 = vpop.f32.mrb[0].mxu0
    %v2536 = vadd.f32 %v2456, %v2535
    %v2537 = vpop.f32.mrb[0].mxu0
    %2538 = vdwg.mxu0
    %2539 = vmatprep.subr.mxu0 0.0
    %v2540 = vand.u32 %v29, 4294901760
    %2541 = vmatpush1.msra.mxu0 %v2540
    %2542 = vmatprep.subr.mxu0 0.0
    %v2543 = vand.u32 %v30, 4294901760
    %2544 = vmatpush1.msra.mxu0 %v2543
    %2545 = vmatprep.subr.mxu0 0.0
    %v2546 = vand.u32 %v31, 4294901760
    %2547 = vmatpush1.msra.mxu0 %v2546
    %2548 = vmatprep.subr.mxu0 0.0
    %v2549 = vand.u32 %v32, 4294901760
    %2550 = vmatpush1.msra.mxu0 %v2549
    %2551 = vmatprep.subr.mxu0 0.0
    %2552 = vmatpush1.msra.mxu0 0.0
    %2553 = vmatprep.subr.mxu0 0.0
    %2554 = vmatpush1.msra.mxu0 0.0
    %2555 = vmatprep.subr.mxu0 0.0
    %2556 = vmatpush1.msra.mxu0 0.0
    %2557 = vmatprep.subr.mxu0 0.0
    %2558 = vmatpush1.msra.mxu0 0.0
    %2559 = vmatprep.subr.mxu0 0.0
    %2560 = vmatpush1.msra.mxu0 0.0
    %2561 = vmatprep.subr.mxu0 0.0
    %2562 = vmatpush1.msra.mxu0 0.0
    %2563 = vmatprep.subr.mxu0 0.0
    %2564 = vmatpush1.msra.mxu0 0.0
    %2565 = vmatprep.subr.mxu0 0.0
    %2566 = vmatpush1.msra.mxu0 0.0
    %2567 = vmatprep.subr.mxu0 0.0
    %2568 = vmatpush1.msra.mxu0 0.0
    %2569 = vmatprep.subr.mxu0 0.0
    %2570 = vmatpush1.msra.mxu0 0.0
    %2571 = vmatprep.subr.mxu0 0.0
    %2572 = vmatpush1.msra.mxu0 0.0
    %2573 = vmatprep.subr.mxu0 0.0
    %2574 = vmatpush1.msra.mxu0 0.0
    %2575 = vmatprep.subr.mxu0 0.0
    %2576 = vmatpush1.msra.mxu0 0.0
    %2577 = vmatprep.subr.mxu0 0.0
    %2578 = vmatpush1.msra.mxu0 0.0
    %2579 = vmatprep.subr.mxu0 0.0
    %2580 = vmatpush1.msra.mxu0 0.0
    %2581 = vmatprep.subr.mxu0 0.0
    %2582 = vmatpush1.msra.mxu0 0.0
    %2583 = vmatprep.subr.mxu0 0.0
    %2584 = vmatpush1.msra.mxu0 0.0
    %2585 = vmatprep.subr.mxu0 0.0
    %2586 = vmatpush1.msra.mxu0 0.0
    %2587 = vmatprep.subr.mxu0 0.0
    %2588 = vmatpush1.msra.mxu0 0.0
    %2589 = vmatprep.subr.mxu0 0.0
    %2590 = vmatpush1.msra.mxu0 0.0
    %2591 = vmatprep.subr.mxu0 0.0
    %2592 = vmatpush1.msra.mxu0 0.0
    %2593 = vmatprep.subr.mxu0 0.0
    %2594 = vmatpush1.msra.mxu0 0.0
    %2595 = vmatprep.subr.mxu0 0.0
    %2596 = vmatpush1.msra.mxu0 0.0
    %2597 = vmatprep.subr.mxu0 0.0
    %2598 = vmatpush1.msra.mxu0 0.0
    %2599 = vmatprep.subr.mxu0 0.0
    %2600 = vmatpush1.msra.mxu0 0.0
    %2601 = vmatprep.subr.mxu0 0.0
    %2602 = vmatpush1.msra.mxu0 0.0
    %2603 = vmatprep.subr.mxu0 0.0
    %2604 = vmatpush1.msra.mxu0 0.0
    %2605 = vmatprep.subr.mxu0 0.0
    %2606 = vmatpush1.msra.mxu0 0.0
    %2607 = vmatprep.mubr.f32.mxu0 0.0
    %v2608 = vand.u32 %v2287, 4294901760
    %v2609 = vsub.f32 %v2287, %v2608
    %v2610 = vand.u32 %v2609, 4294901760
    %2611 = vmatmul.mubr.f32.gmra.mrb[0].mxu0 %v2610
    %v2612 = vpop.f32.mrb[0].mxu0
    %v2613 = vadd.f32 %v2536, %v2612
    %v2614 = vpop.f32.mrb[0].mxu0
    %2615 = vdwg.mxu0
    %2616 = vmatprep.subr.mxu0 0.0
    %v2617 = vand.u32 %v29, 4294901760
    %v2618 = vsub.f32 %v29, %v2617
    %v2619 = vand.u32 %v2618, 4294901760
    %2620 = vmatpush1.msra.mxu0 %v2619
    %2621 = vmatprep.subr.mxu0 0.0
    %v2622 = vand.u32 %v30, 4294901760
    %v2623 = vsub.f32 %v30, %v2622
    %v2624 = vand.u32 %v2623, 4294901760
    %2625 = vmatpush1.msra.mxu0 %v2624
    %2626 = vmatprep.subr.mxu0 0.0
    %v2627 = vand.u32 %v31, 4294901760
    %v2628 = vsub.f32 %v31, %v2627
    %v2629 = vand.u32 %v2628, 4294901760
    %2630 = vmatpush1.msra.mxu0 %v2629
    %2631 = vmatprep.subr.mxu0 0.0
    %v2632 = vand.u32 %v32, 4294901760
    %v2633 = vsub.f32 %v32, %v2632
    %v2634 = vand.u32 %v2633, 4294901760
    %2635 = vmatpush1.msra.mxu0 %v2634
    %2636 = vmatprep.subr.mxu0 0.0
    %2637 = vmatpush1.msra.mxu0 0.0
    %2638 = vmatprep.subr.mxu0 0.0
    %2639 = vmatpush1.msra.mxu0 0.0
    %2640 = vmatprep.subr.mxu0 0.0
    %2641 = vmatpush1.msra.mxu0 0.0
    %2642 = vmatprep.subr.mxu0 0.0
    %2643 = vmatpush1.msra.mxu0 0.0
    %2644 = vmatprep.subr.mxu0 0.0
    %2645 = vmatpush1.msra.mxu0 0.0
    %2646 = vmatprep.subr.mxu0 0.0
    %2647 = vmatpush1.msra.mxu0 0.0
    %2648 = vmatprep.subr.mxu0 0.0
    %2649 = vmatpush1.msra.mxu0 0.0
    %2650 = vmatprep.subr.mxu0 0.0
    %2651 = vmatpush1.msra.mxu0 0.0
    %2652 = vmatprep.subr.mxu0 0.0
    %2653 = vmatpush1.msra.mxu0 0.0
    %2654 = vmatprep.subr.mxu0 0.0
    %2655 = vmatpush1.msra.mxu0 0.0
    %2656 = vmatprep.subr.mxu0 0.0
    %2657 = vmatpush1.msra.mxu0 0.0
    %2658 = vmatprep.subr.mxu0 0.0
    %2659 = vmatpush1.msra.mxu0 0.0
    %2660 = vmatprep.subr.mxu0 0.0
    %2661 = vmatpush1.msra.mxu0 0.0
    %2662 = vmatprep.subr.mxu0 0.0
    %2663 = vmatpush1.msra.mxu0 0.0
    %2664 = vmatprep.subr.mxu0 0.0
    %2665 = vmatpush1.msra.mxu0 0.0
    %2666 = vmatprep.subr.mxu0 0.0
    %2667 = vmatpush1.msra.mxu0 0.0
    %2668 = vmatprep.subr.mxu0 0.0
    %2669 = vmatpush1.msra.mxu0 0.0
    %2670 = vmatprep.subr.mxu0 0.0
    %2671 = vmatpush1.msra.mxu0 0.0
    %2672 = vmatprep.subr.mxu0 0.0
    %2673 = vmatpush1.msra.mxu0 0.0
    %2674 = vmatprep.subr.mxu0 0.0
    %2675 = vmatpush1.msra.mxu0 0.0
    %2676 = vmatprep.subr.mxu0 0.0
    %2677 = vmatpush1.msra.mxu0 0.0
    %2678 = vmatprep.subr.mxu0 0.0
    %2679 = vmatpush1.msra.mxu0 0.0
    %2680 = vmatprep.subr.mxu0 0.0
    %2681 = vmatpush1.msra.mxu0 0.0
    %2682 = vmatprep.subr.mxu0 0.0
    %2683 = vmatpush1.msra.mxu0 0.0
    %2684 = vmatprep.subr.mxu0 0.0
    %2685 = vmatpush1.msra.mxu0 0.0
    %2686 = vmatprep.subr.mxu0 0.0
    %2687 = vmatpush1.msra.mxu0 0.0
    %2688 = vmatprep.subr.mxu0 0.0
    %2689 = vmatpush1.msra.mxu0 0.0
    %2690 = vmatprep.subr.mxu0 0.0
    %2691 = vmatpush1.msra.mxu0 0.0
    %2692 = vmatprep.mubr.f32.mxu0 0.0
    %v2693 = vand.u32 %v2287, 4294901760
    %2694 = vmatmul.mubr.f32.gmra.mrb[0].mxu0 %v2693
    %v2695 = vpop.f32.mrb[0].mxu0
    %v2696 = vadd.f32 %v2613, %v2695
    %v2697 = vpop.f32.mrb[0].mxu0
    %2698 = vdwg.mxu0
    %2699 = vmatprep.subr.mxu0 0.0
    %v2700 = vand.u32 %v29, 4294901760
    %2701 = vmatpush1.msra.mxu0 %v2700
    %2702 = vmatprep.subr.mxu0 0.0
    %v2703 = vand.u32 %v30, 4294901760
    %2704 = vmatpush1.msra.mxu0 %v2703
    %2705 = vmatprep.subr.mxu0 0.0
    %v2706 = vand.u32 %v31, 4294901760
    %2707 = vmatpush1.msra.mxu0 %v2706
    %2708 = vmatprep.subr.mxu0 0.0
    %v2709 = vand.u32 %v32, 4294901760
    %2710 = vmatpush1.msra.mxu0 %v2709
    %2711 = vmatprep.subr.mxu0 0.0
    %2712 = vmatpush1.msra.mxu0 0.0
    %2713 = vmatprep.subr.mxu0 0.0
    %2714 = vmatpush1.msra.mxu0 0.0
    %2715 = vmatprep.subr.mxu0 0.0
    %2716 = vmatpush1.msra.mxu0 0.0
    %2717 = vmatprep.subr.mxu0 0.0
    %2718 = vmatpush1.msra.mxu0 0.0
    %2719 = vmatprep.subr.mxu0 0.0
    %2720 = vmatpush1.msra.mxu0 0.0
    %2721 = vmatprep.subr.mxu0 0.0
    %2722 = vmatpush1.msra.mxu0 0.0
    %2723 = vmatprep.subr.mxu0 0.0
    %2724 = vmatpush1.msra.mxu0 0.0
    %2725 = vmatprep.subr.mxu0 0.0
    %2726 = vmatpush1.msra.mxu0 0.0
    %2727 = vmatprep.subr.mxu0 0.0
    %2728 = vmatpush1.msra.mxu0 0.0
    %2729 = vmatprep.subr.mxu0 0.0
    %2730 = vmatpush1.msra.mxu0 0.0
    %2731 = vmatprep.subr.mxu0 0.0
    %2732 = vmatpush1.msra.mxu0 0.0
    %2733 = vmatprep.subr.mxu0 0.0
    %2734 = vmatpush1.msra.mxu0 0.0
    %2735 = vmatprep.subr.mxu0 0.0
    %2736 = vmatpush1.msra.mxu0 0.0
    %2737 = vmatprep.subr.mxu0 0.0
    %2738 = vmatpush1.msra.mxu0 0.0
    %2739 = vmatprep.subr.mxu0 0.0
    %2740 = vmatpush1.msra.mxu0 0.0
    %2741 = vmatprep.subr.mxu0 0.0
    %2742 = vmatpush1.msra.mxu0 0.0
    %2743 = vmatprep.subr.mxu0 0.0
    %2744 = vmatpush1.msra.mxu0 0.0
    %2745 = vmatprep.subr.mxu0 0.0
    %2746 = vmatpush1.msra.mxu0 0.0
    %2747 = vmatprep.subr.mxu0 0.0
    %2748 = vmatpush1.msra.mxu0 0.0
    %2749 = vmatprep.subr.mxu0 0.0
    %2750 = vmatpush1.msra.mxu0 0.0
    %2751 = vmatprep.subr.mxu0 0.0
    %2752 = vmatpush1.msra.mxu0 0.0
    %2753 = vmatprep.subr.mxu0 0.0
    %2754 = vmatpush1.msra.mxu0 0.0
    %2755 = vmatprep.subr.mxu0 0.0
    %2756 = vmatpush1.msra.mxu0 0.0
    %2757 = vmatprep.subr.mxu0 0.0
    %2758 = vmatpush1.msra.mxu0 0.0
    %2759 = vmatprep.subr.mxu0 0.0
    %2760 = vmatpush1.msra.mxu0 0.0
    %2761 = vmatprep.subr.mxu0 0.0
    %2762 = vmatpush1.msra.mxu0 0.0
    %2763 = vmatprep.subr.mxu0 0.0
    %2764 = vmatpush1.msra.mxu0 0.0
    %2765 = vmatprep.subr.mxu0 0.0
    %2766 = vmatpush1.msra.mxu0 0.0
    %2767 = vmatprep.mubr.f32.mxu0 0.0
    %v2768 = vand.u32 %v2287, 4294901760
    %2769 = vmatmul.mubr.f32.gmra.mrb[0].mxu0 %v2768
    %v2770 = vpop.f32.mrb[0].mxu0
    %v2771 = vadd.f32 %v2696, %v2770
    %v2772 = vpop.f32.mrb[0].mxu0
    %2773 = vdwg.mxu0
    %v2774 = vadd.f32 %v2286, %v2771
    %v2775 = vxor.u32 %v2774, 2147483648
    %v2776 = vmul.f32 %v2775, 1.442695
    %v2777 = vpow.pop %v2776
    %v2778 = vadd.f32 %v2777, 1.0
    %v2779 = vrcp.pop %v2778
    %v2780 = vmul.f32 1.0, %v2779
    %v2781 = vadd.f32 %v2771, %v560
    %2783 = vrot.lane.b32.xlu0 %v2781, 64
    %v2784 = vpop.permute.xlu0 %2783
    %v2786 = vmul.f32 %v2780, %v2784
    %2788 = vrot.lane.b32.xlu0 %v2786, 64
    %v2789 = vpop.permute.xlu0 %2788
    %v2791 = vadd.f32 %v2286, %v2789
    %v2792 = vtanh.pop %v2791
    %v2793 = vsub.f32 1.0, %v2780
    %2795 = vrot.lane.b32.xlu0 %v2792, 96
    %v2796 = vpop.permute.xlu0 %2795
    %v2798 = vmul.f32 %v2793, %v2796
    %v2799 = vmul.f32 %v2780, %v1705
    %v2800 = vadd.f32 %v2798, %v2799
    %2802 = vset.pattern.permute.xlu0 0
    %2803 = vperm.xlu0 %2802, %v2283
    %v2804 = vpop.permute.xlu0 %2803
    %v2806 = vmul.f32 %v2804, %v2800
    %2808 = vset.pattern.permute.xlu0 0
    %2809 = vperm.xlu0 %2808, %v2284
    %v2810 = vpop.permute.xlu0 %2809
    %v2812 = vmul.f32 %v2810, %v1705
    %v2813 = vadd.f32 %v2806, %v2812
    %2815 = vrot.lane.b32.xlu0 %v2813, 96
    %v2816 = vpop.permute.xlu0 %2815
    %v2818 = vsel %vm63, %v2816, %v2280
    %v2820 = vsel %vm600, %v2818, 0
    %2822 = vmatprep.subr.mxu0 0.0
    %v2823 = vand.u32 %v39, 4294901760
    %2824 = vmatpush1.msra.mxu0 %v2823
    %2825 = vmatprep.subr.mxu0 0.0
    %v2826 = vand.u32 %v40, 4294901760
    %2827 = vmatpush1.msra.mxu0 %v2826
    %2828 = vmatprep.subr.mxu0 0.0
    %v2829 = vand.u32 %v41, 4294901760
    %2830 = vmatpush1.msra.mxu0 %v2829
    %2831 = vmatprep.subr.mxu0 0.0
    %v2832 = vand.u32 %v42, 4294901760
    %2833 = vmatpush1.msra.mxu0 %v2832
    %2834 = vmatprep.subr.mxu0 0.0
    %v2835 = vand.u32 %v43, 4294901760
    %2836 = vmatpush1.msra.mxu0 %v2835
    %2837 = vmatprep.subr.mxu0 0.0
    %v2838 = vand.u32 %v44, 4294901760
    %2839 = vmatpush1.msra.mxu0 %v2838
    %2840 = vmatprep.subr.mxu0 0.0
    %v2841 = vand.u32 %v45, 4294901760
    %2842 = vmatpush1.msra.mxu0 %v2841
    %2843 = vmatprep.subr.mxu0 0.0
    %v2844 = vand.u32 %v46, 4294901760
    %2845 = vmatpush1.msra.mxu0 %v2844
    %2846 = vmatprep.subr.mxu0 0.0
    %2847 = vmatpush1.msra.mxu0 0.0
    %2848 = vmatprep.subr.mxu0 0.0
    %2849 = vmatpush1.msra.mxu0 0.0
    %2850 = vmatprep.subr.mxu0 0.0
    %2851 = vmatpush1.msra.mxu0 0.0
    %2852 = vmatprep.subr.mxu0 0.0
    %2853 = vmatpush1.msra.mxu0 0.0
    %2854 = vmatprep.subr.mxu0 0.0
    %2855 = vmatpush1.msra.mxu0 0.0
    %2856 = vmatprep.subr.mxu0 0.0
    %2857 = vmatpush1.msra.mxu0 0.0
    %2858 = vmatprep.subr.mxu0 0.0
    %2859 = vmatpush1.msra.mxu0 0.0
    %2860 = vmatprep.subr.mxu0 0.0
    %2861 = vmatpush1.msra.mxu0 0.0
    %2862 = vmatprep.subr.mxu0 0.0
    %2863 = vmatpush1.msra.mxu0 0.0
    %2864 = vmatprep.subr.mxu0 0.0
    %2865 = vmatpush1.msra.mxu0 0.0
    %2866 = vmatprep.subr.mxu0 0.0
    %2867 = vmatpush1.msra.mxu0 0.0
    %2868 = vmatprep.subr.mxu0 0.0
    %2869 = vmatpush1.msra.mxu0 0.0
    %2870 = vmatprep.subr.mxu0 0.0
    %2871 = vmatpush1.msra.mxu0 0.0
    %2872 = vmatprep.subr.mxu0 0.0
    %2873 = vmatpush1.msra.mxu0 0.0
    %2874 = vmatprep.subr.mxu0 0.0
    %2875 = vmatpush1.msra.mxu0 0.0
    %2876 = vmatprep.subr.mxu0 0.0
    %2877 = vmatpush1.msra.mxu0 0.0
    %2878 = vmatprep.subr.mxu0 0.0
    %2879 = vmatpush1.msra.mxu0 0.0
    %2880 = vmatprep.subr.mxu0 0.0
    %2881 = vmatpush1.msra.mxu0 0.0
    %2882 = vmatprep.subr.mxu0 0.0
    %2883 = vmatpush1.msra.mxu0 0.0
    %2884 = vmatprep.subr.mxu0 0.0
    %2885 = vmatpush1.msra.mxu0 0.0
    %2886 = vmatprep.subr.mxu0 0.0
    %2887 = vmatpush1.msra.mxu0 0.0
    %2888 = vmatprep.subr.mxu0 0.0
    %2889 = vmatpush1.msra.mxu0 0.0
    %2890 = vmatprep.subr.mxu0 0.0
    %2891 = vmatpush1.msra.mxu0 0.0
    %2892 = vmatprep.subr.mxu0 0.0
    %2893 = vmatpush1.msra.mxu0 0.0
    %2894 = vmatprep.mubr.f32.mxu0 0.0
    %v2895 = vand.u32 %v2820, 4294901760
    %v2896 = vsub.f32 %v2820, %v2895
    %v2897 = vand.u32 %v2896, 4294901760
    %v2898 = vsub.f32 %v2896, %v2897
    %v2899 = vand.u32 %v2898, 4294901760
    %2900 = vmatmul.mubr.f32.gmra.mrb[0].mxu0 %v2899
    %v2901 = vpop.f32.mrb[0].mxu0
    %v2902 = vadd.f32 0.0, %v2901
    %v2903 = vpop.f32.mrb[0].mxu0
    %2904 = vdwg.mxu0
    %2905 = vmatprep.subr.mxu0 0.0
    %v2906 = vand.u32 %v39, 4294901760
    %v2907 = vsub.f32 %v39, %v2906
    %v2908 = vand.u32 %v2907, 4294901760
    %v2909 = vsub.f32 %v2907, %v2908
    %v2910 = vand.u32 %v2909, 4294901760
    %2911 = vmatpush1.msra.mxu0 %v2910
    %2912 = vmatprep.subr.mxu0 0.0
    %v2913 = vand.u32 %v40, 4294901760
    %v2914 = vsub.f32 %v40, %v2913
    %v2915 = vand.u32 %v2914, 4294901760
    %v2916 = vsub.f32 %v2914, %v2915
    %v2917 = vand.u32 %v2916, 4294901760
    %2918 = vmatpush1.msra.mxu0 %v2917
    %2919 = vmatprep.subr.mxu0 0.0
    %v2920 = vand.u32 %v41, 4294901760
    %v2921 = vsub.f32 %v41, %v2920
    %v2922 = vand.u32 %v2921, 4294901760
    %v2923 = vsub.f32 %v2921, %v2922
    %v2924 = vand.u32 %v2923, 4294901760
    %2925 = vmatpush1.msra.mxu0 %v2924
    %2926 = vmatprep.subr.mxu0 0.0
    %v2927 = vand.u32 %v42, 4294901760
    %v2928 = vsub.f32 %v42, %v2927
    %v2929 = vand.u32 %v2928, 4294901760
    %v2930 = vsub.f32 %v2928, %v2929
    %v2931 = vand.u32 %v2930, 4294901760
    %2932 = vmatpush1.msra.mxu0 %v2931
    %2933 = vmatprep.subr.mxu0 0.0
    %v2934 = vand.u32 %v43, 4294901760
    %v2935 = vsub.f32 %v43, %v2934
    %v2936 = vand.u32 %v2935, 4294901760
    %v2937 = vsub.f32 %v2935, %v2936
    %v2938 = vand.u32 %v2937, 4294901760
    %2939 = vmatpush1.msra.mxu0 %v2938
    %2940 = vmatprep.subr.mxu0 0.0
    %v2941 = vand.u32 %v44, 4294901760
    %v2942 = vsub.f32 %v44, %v2941
    %v2943 = vand.u32 %v2942, 4294901760
    %v2944 = vsub.f32 %v2942, %v2943
    %v2945 = vand.u32 %v2944, 4294901760
    %2946 = vmatpush1.msra.mxu0 %v2945
    %2947 = vmatprep.subr.mxu0 0.0
    %v2948 = vand.u32 %v45, 4294901760
    %v2949 = vsub.f32 %v45, %v2948
    %v2950 = vand.u32 %v2949, 4294901760
    %v2951 = vsub.f32 %v2949, %v2950
    %v2952 = vand.u32 %v2951, 4294901760
    %2953 = vmatpush1.msra.mxu0 %v2952
    %2954 = vmatprep.subr.mxu0 0.0
    %v2955 = vand.u32 %v46, 4294901760
    %v2956 = vsub.f32 %v46, %v2955
    %v2957 = vand.u32 %v2956, 4294901760
    %v2958 = vsub.f32 %v2956, %v2957
    %v2959 = vand.u32 %v2958, 4294901760
    %2960 = vmatpush1.msra.mxu0 %v2959
    %2961 = vmatprep.subr.mxu0 0.0
    %2962 = vmatpush1.msra.mxu0 0.0
    %2963 = vmatprep.subr.mxu0 0.0
    %2964 = vmatpush1.msra.mxu0 0.0
    %2965 = vmatprep.subr.mxu0 0.0
    %2966 = vmatpush1.msra.mxu0 0.0
    %2967 = vmatprep.subr.mxu0 0.0
    %2968 = vmatpush1.msra.mxu0 0.0
    %2969 = vmatprep.subr.mxu0 0.0
    %2970 = vmatpush1.msra.mxu0 0.0
    %2971 = vmatprep.subr.mxu0 0.0
    %2972 = vmatpush1.msra.mxu0 0.0
    %2973 = vmatprep.subr.mxu0 0.0
    %2974 = vmatpush1.msra.mxu0 0.0
    %2975 = vmatprep.subr.mxu0 0.0
    %2976 = vmatpush1.msra.mxu0 0.0
    %2977 = vmatprep.subr.mxu0 0.0
    %2978 = vmatpush1.msra.mxu0 0.0
    %2979 = vmatprep.subr.mxu0 0.0
    %2980 = vmatpush1.msra.mxu0 0.0
    %2981 = vmatprep.subr.mxu0 0.0
    %2982 = vmatpush1.msra.mxu0 0.0
    %2983 = vmatprep.subr.mxu0 0.0
    %2984 = vmatpush1.msra.mxu0 0.0
    %2985 = vmatprep.subr.mxu0 0.0
    %2986 = vmatpush1.msra.mxu0 0.0
    %2987 = vmatprep.subr.mxu0 0.0
    %2988 = vmatpush1.msra.mxu0 0.0
    %2989 = vmatprep.subr.mxu0 0.0
    %2990 = vmatpush1.msra.mxu0 0.0
    %2991 = vmatprep.subr.mxu0 0.0
    %2992 = vmatpush1.msra.mxu0 0.0
    %2993 = vmatprep.subr.mxu0 0.0
    %2994 = vmatpush1.msra.mxu0 0.0
    %2995 = vmatprep.subr.mxu0 0.0
    %2996 = vmatpush1.msra.mxu0 0.0
    %2997 = vmatprep.subr.mxu0 0.0
    %2998 = vmatpush1.msra.mxu0 0.0
    %2999 = vmatprep.subr.mxu0 0.0
    %3000 = vmatpush1.msra.mxu0 0.0
    %3001 = vmatprep.subr.mxu0 0.0
    %3002 = vmatpush1.msra.mxu0 0.0
    %3003 = vmatprep.subr.mxu0 0.0
    %3004 = vmatpush1.msra.mxu0 0.0
    %3005 = vmatprep.subr.mxu0 0.0
    %3006 = vmatpush1.msra.mxu0 0.0
    %3007 = vmatprep.subr.mxu0 0.0
    %3008 = vmatpush1.msra.mxu0 0.0
    %3009 = vmatprep.mubr.f32.mxu0 0.0
    %v3010 = vand.u32 %v2820, 4294901760
    %3011 = vmatmul.mubr.f32.gmra.mrb[0].mxu0 %v3010
    %v3012 = vpop.f32.mrb[0].mxu0
    %v3013 = vadd.f32 %v2902, %v3012
    %v3014 = vpop.f32.mrb[0].mxu0
    %3015 = vdwg.mxu0
    %3016 = vmatprep.subr.mxu0 0.0
    %v3017 = vand.u32 %v39, 4294901760
    %v3018 = vsub.f32 %v39, %v3017
    %3019 = vmatpush1.msra.mxu0 %v3018
    %3020 = vmatprep.subr.mxu0 0.0
    %v3021 = vand.u32 %v40, 4294901760
    %v3022 = vsub.f32 %v40, %v3021
    %3023 = vmatpush1.msra.mxu0 %v3022
    %3024 = vmatprep.subr.mxu0 0.0
    %v3025 = vand.u32 %v41, 4294901760
    %v3026 = vsub.f32 %v41, %v3025
    %3027 = vmatpush1.msra.mxu0 %v3026
    %3028 = vmatprep.subr.mxu0 0.0
    %v3029 = vand.u32 %v42, 4294901760
    %v3030 = vsub.f32 %v42, %v3029
    %3031 = vmatpush1.msra.mxu0 %v3030
    %3032 = vmatprep.subr.mxu0 0.0
    %v3033 = vand.u32 %v43, 4294901760
    %v3034 = vsub.f32 %v43, %v3033
    %3035 = vmatpush1.msra.mxu0 %v3034
    %3036 = vmatprep.subr.mxu0 0.0
    %v3037 = vand.u32 %v44, 4294901760
    %v3038 = vsub.f32 %v44, %v3037
    %3039 = vmatpush1.msra.mxu0 %v3038
    %3040 = vmatprep.subr.mxu0 0.0
    %v3041 = vand.u32 %v45, 4294901760
    %v3042 = vsub.f32 %v45, %v3041
    %3043 = vmatpush1.msra.mxu0 %v3042
    %3044 = vmatprep.subr.mxu0 0.0
    %v3045 = vand.u32 %v46, 4294901760
    %v3046 = vsub.f32 %v46, %v3045
    %3047 = vmatpush1.msra.mxu0 %v3046
    %3048 = vmatprep.subr.mxu0 0.0
    %3049 = vmatpush1.msra.mxu0 0.0
    %3050 = vmatprep.subr.mxu0 0.0
    %3051 = vmatpush1.msra.mxu0 0.0
    %3052 = vmatprep.subr.mxu0 0.0
    %3053 = vmatpush1.msra.mxu0 0.0
    %3054 = vmatprep.subr.mxu0 0.0
    %3055 = vmatpush1.msra.mxu0 0.0
    %3056 = vmatprep.subr.mxu0 0.0
    %3057 = vmatpush1.msra.mxu0 0.0
    %3058 = vmatprep.subr.mxu0 0.0
    %3059 = vmatpush1.msra.mxu0 0.0
    %3060 = vmatprep.subr.mxu0 0.0
    %3061 = vmatpush1.msra.mxu0 0.0
    %3062 = vmatprep.subr.mxu0 0.0
    %3063 = vmatpush1.msra.mxu0 0.0
    %3064 = vmatprep.subr.mxu0 0.0
    %3065 = vmatpush1.msra.mxu0 0.0
    %3066 = vmatprep.subr.mxu0 0.0
    %3067 = vmatpush1.msra.mxu0 0.0
    %3068 = vmatprep.subr.mxu0 0.0
    %3069 = vmatpush1.msra.mxu0 0.0
    %3070 = vmatprep.subr.mxu0 0.0
    %3071 = vmatpush1.msra.mxu0 0.0
    %3072 = vmatprep.subr.mxu0 0.0
    %3073 = vmatpush1.msra.mxu0 0.0
    %3074 = vmatprep.subr.mxu0 0.0
    %3075 = vmatpush1.msra.mxu0 0.0
    %3076 = vmatprep.subr.mxu0 0.0
    %3077 = vmatpush1.msra.mxu0 0.0
    %3078 = vmatprep.subr.mxu0 0.0
    %3079 = vmatpush1.msra.mxu0 0.0
    %3080 = vmatprep.subr.mxu0 0.0
    %3081 = vmatpush1.msra.mxu0 0.0
    %3082 = vmatprep.subr.mxu0 0.0
    %3083 = vmatpush1.msra.mxu0 0.0
    %3084 = vmatprep.subr.mxu0 0.0
    %3085 = vmatpush1.msra.mxu0 0.0
    %3086 = vmatprep.subr.mxu0 0.0
    %3087 = vmatpush1.msra.mxu0 0.0
    %3088 = vmatprep.subr.mxu0 0.0
    %3089 = vmatpush1.msra.mxu0 0.0
    %3090 = vmatprep.subr.mxu0 0.0
    %3091 = vmatpush1.msra.mxu0 0.0
    %3092 = vmatprep.subr.mxu0 0.0
    %3093 = vmatpush1.msra.mxu0 0.0
    %3094 = vmatprep.subr.mxu0 0.0
    %3095 = vmatpush1.msra.mxu0 0.0
    %3096 = vmatprep.mubr.f32.mxu0 0.0
    %v3097 = vand.u32 %v2820, 4294901760
    %v3098 = vsub.f32 %v2820, %v3097
    %3099 = vmatmul.mubr.f32.gmra.mrb[0].mxu0 %v3098
    %v3100 = vpop.f32.mrb[0].mxu0
    %v3101 = vadd.f32 %v3013, %v3100
    %v3102 = vpop.f32.mrb[0].mxu0
    %3103 = vdwg.mxu0
    %3104 = vmatprep.subr.mxu0 0.0
    %v3105 = vand.u32 %v39, 4294901760
    %3106 = vmatpush1.msra.mxu0 %v3105
    %3107 = vmatprep.subr.mxu0 0.0
    %v3108 = vand.u32 %v40, 4294901760
    %3109 = vmatpush1.msra.mxu0 %v3108
    %3110 = vmatprep.subr.mxu0 0.0
    %v3111 = vand.u32 %v41, 4294901760
    %3112 = vmatpush1.msra.mxu0 %v3111
    %3113 = vmatprep.subr.mxu0 0.0
    %v3114 = vand.u32 %v42, 4294901760
    %3115 = vmatpush1.msra.mxu0 %v3114
    %3116 = vmatprep.subr.mxu0 0.0
    %v3117 = vand.u32 %v43, 4294901760
    %3118 = vmatpush1.msra.mxu0 %v3117
    %3119 = vmatprep.subr.mxu0 0.0
    %v3120 = vand.u32 %v44, 4294901760
    %3121 = vmatpush1.msra.mxu0 %v3120
    %3122 = vmatprep.subr.mxu0 0.0
    %v3123 = vand.u32 %v45, 4294901760
    %3124 = vmatpush1.msra.mxu0 %v3123
    %3125 = vmatprep.subr.mxu0 0.0
    %v3126 = vand.u32 %v46, 4294901760
    %3127 = vmatpush1.msra.mxu0 %v3126
    %3128 = vmatprep.subr.mxu0 0.0
    %3129 = vmatpush1.msra.mxu0 0.0
    %3130 = vmatprep.subr.mxu0 0.0
    %3131 = vmatpush1.msra.mxu0 0.0
    %3132 = vmatprep.subr.mxu0 0.0
    %3133 = vmatpush1.msra.mxu0 0.0
    %3134 = vmatprep.subr.mxu0 0.0
    %3135 = vmatpush1.msra.mxu0 0.0
    %3136 = vmatprep.subr.mxu0 0.0
    %3137 = vmatpush1.msra.mxu0 0.0
    %3138 = vmatprep.subr.mxu0 0.0
    %3139 = vmatpush1.msra.mxu0 0.0
    %3140 = vmatprep.subr.mxu0 0.0
    %3141 = vmatpush1.msra.mxu0 0.0
    %3142 = vmatprep.subr.mxu0 0.0
    %3143 = vmatpush1.msra.mxu0 0.0
    %3144 = vmatprep.subr.mxu0 0.0
    %3145 = vmatpush1.msra.mxu0 0.0
    %3146 = vmatprep.subr.mxu0 0.0
    %3147 = vmatpush1.msra.mxu0 0.0
    %3148 = vmatprep.subr.mxu0 0.0
    %3149 = vmatpush1.msra.mxu0 0.0
    %3150 = vmatprep.subr.mxu0 0.0
    %3151 = vmatpush1.msra.mxu0 0.0
    %3152 = vmatprep.subr.mxu0 0.0
    %3153 = vmatpush1.msra.mxu0 0.0
    %3154 = vmatprep.subr.mxu0 0.0
    %3155 = vmatpush1.msra.mxu0 0.0
    %3156 = vmatprep.subr.mxu0 0.0
    %3157 = vmatpush1.msra.mxu0 0.0
    %3158 = vmatprep.subr.mxu0 0.0
    %3159 = vmatpush1.msra.mxu0 0.0
    %3160 = vmatprep.subr.mxu0 0.0
    %3161 = vmatpush1.msra.mxu0 0.0
    %3162 = vmatprep.subr.mxu0 0.0
    %3163 = vmatpush1.msra.mxu0 0.0
    %3164 = vmatprep.subr.mxu0 0.0
    %3165 = vmatpush1.msra.mxu0 0.0
    %3166 = vmatprep.subr.mxu0 0.0
    %3167 = vmatpush1.msra.mxu0 0.0
    %3168 = vmatprep.subr.mxu0 0.0
    %3169 = vmatpush1.msra.mxu0 0.0
    %3170 = vmatprep.subr.mxu0 0.0
    %3171 = vmatpush1.msra.mxu0 0.0
    %3172 = vmatprep.subr.mxu0 0.0
    %3173 = vmatpush1.msra.mxu0 0.0
    %3174 = vmatprep.subr.mxu0 0.0
    %3175 = vmatpush1.msra.mxu0 0.0
    %3176 = vmatprep.mubr.f32.mxu0 0.0
    %v3177 = vand.u32 %v2820, 4294901760
    %v3178 = vsub.f32 %v2820, %v3177
    %v3179 = vand.u32 %v3178, 4294901760
    %3180 = vmatmul.mubr.f32.gmra.mrb[0].mxu0 %v3179
    %v3181 = vpop.f32.mrb[0].mxu0
    %v3182 = vadd.f32 %v3101, %v3181
    %v3183 = vpop.f32.mrb[0].mxu0
    %3184 = vdwg.mxu0
    %3185 = vmatprep.subr.mxu0 0.0
    %v3186 = vand.u32 %v39, 4294901760
    %v3187 = vsub.f32 %v39, %v3186
    %v3188 = vand.u32 %v3187, 4294901760
    %3189 = vmatpush1.msra.mxu0 %v3188
    %3190 = vmatprep.subr.mxu0 0.0
    %v3191 = vand.u32 %v40, 4294901760
    %v3192 = vsub.f32 %v40, %v3191
    %v3193 = vand.u32 %v3192, 4294901760
    %3194 = vmatpush1.msra.mxu0 %v3193
    %3195 = vmatprep.subr.mxu0 0.0
    %v3196 = vand.u32 %v41, 4294901760
    %v3197 = vsub.f32 %v41, %v3196
    %v3198 = vand.u32 %v3197, 4294901760
    %3199 = vmatpush1.msra.mxu0 %v3198
    %3200 = vmatprep.subr.mxu0 0.0
    %v3201 = vand.u32 %v42, 4294901760
    %v3202 = vsub.f32 %v42, %v3201
    %v3203 = vand.u32 %v3202, 4294901760
    %3204 = vmatpush1.msra.mxu0 %v3203
    %3205 = vmatprep.subr.mxu0 0.0
    %v3206 = vand.u32 %v43, 4294901760
    %v3207 = vsub.f32 %v43, %v3206
    %v3208 = vand.u32 %v3207, 4294901760
    %3209 = vmatpush1.msra.mxu0 %v3208
    %3210 = vmatprep.subr.mxu0 0.0
    %v3211 = vand.u32 %v44, 4294901760
    %v3212 = vsub.f32 %v44, %v3211
    %v3213 = vand.u32 %v3212, 4294901760
    %3214 = vmatpush1.msra.mxu0 %v3213
    %3215 = vmatprep.subr.mxu0 0.0
    %v3216 = vand.u32 %v45, 4294901760
    %v3217 = vsub.f32 %v45, %v3216
    %v3218 = vand.u32 %v3217, 4294901760
    %3219 = vmatpush1.msra.mxu0 %v3218
    %3220 = vmatprep.subr.mxu0 0.0
    %v3221 = vand.u32 %v46, 4294901760
    %v3222 = vsub.f32 %v46, %v3221
    %v3223 = vand.u32 %v3222, 4294901760
    %3224 = vmatpush1.msra.mxu0 %v3223
    %3225 = vmatprep.subr.mxu0 0.0
    %3226 = vmatpush1.msra.mxu0 0.0
    %3227 = vmatprep.subr.mxu0 0.0
    %3228 = vmatpush1.msra.mxu0 0.0
    %3229 = vmatprep.subr.mxu0 0.0
    %3230 = vmatpush1.msra.mxu0 0.0
    %3231 = vmatprep.subr.mxu0 0.0
    %3232 = vmatpush1.msra.mxu0 0.0
    %3233 = vmatprep.subr.mxu0 0.0
    %3234 = vmatpush1.msra.mxu0 0.0
    %3235 = vmatprep.subr.mxu0 0.0
    %3236 = vmatpush1.msra.mxu0 0.0
    %3237 = vmatprep.subr.mxu0 0.0
    %3238 = vmatpush1.msra.mxu0 0.0
    %3239 = vmatprep.subr.mxu0 0.0
    %3240 = vmatpush1.msra.mxu0 0.0
    %3241 = vmatprep.subr.mxu0 0.0
    %3242 = vmatpush1.msra.mxu0 0.0
    %3243 = vmatprep.subr.mxu0 0.0
    %3244 = vmatpush1.msra.mxu0 0.0
    %3245 = vmatprep.subr.mxu0 0.0
    %3246 = vmatpush1.msra.mxu0 0.0
    %3247 = vmatprep.subr.mxu0 0.0
    %3248 = vmatpush1.msra.mxu0 0.0
    %3249 = vmatprep.subr.mxu0 0.0
    %3250 = vmatpush1.msra.mxu0 0.0
    %3251 = vmatprep.subr.mxu0 0.0
    %3252 = vmatpush1.msra.mxu0 0.0
    %3253 = vmatprep.subr.mxu0 0.0
    %3254 = vmatpush1.msra.mxu0 0.0
    %3255 = vmatprep.subr.mxu0 0.0
    %3256 = vmatpush1.msra.mxu0 0.0
    %3257 = vmatprep.subr.mxu0 0.0
    %3258 = vmatpush1.msra.mxu0 0.0
    %3259 = vmatprep.subr.mxu0 0.0
    %3260 = vmatpush1.msra.mxu0 0.0
    %3261 = vmatprep.subr.mxu0 0.0
    %3262 = vmatpush1.msra.mxu0 0.0
    %3263 = vmatprep.subr.mxu0 0.0
    %3264 = vmatpush1.msra.mxu0 0.0
    %3265 = vmatprep.subr.mxu0 0.0
    %3266 = vmatpush1.msra.mxu0 0.0
    %3267 = vmatprep.subr.mxu0 0.0
    %3268 = vmatpush1.msra.mxu0 0.0
    %3269 = vmatprep.subr.mxu0 0.0
    %3270 = vmatpush1.msra.mxu0 0.0
    %3271 = vmatprep.subr.mxu0 0.0
    %3272 = vmatpush1.msra.mxu0 0.0
    %3273 = vmatprep.mubr.f32.mxu0 0.0
    %v3274 = vand.u32 %v2820, 4294901760
    %3275 = vmatmul.mubr.f32.gmra.mrb[0].mxu0 %v3274
    %v3276 = vpop.f32.mrb[0].mxu0
    %v3277 = vadd.f32 %v3182, %v3276
    %v3278 = vpop.f32.mrb[0].mxu0
    %3279 = vdwg.mxu0
    %3280 = vmatprep.subr.mxu0 0.0
    %v3281 = vand.u32 %v39, 4294901760
    %3282 = vmatpush1.msra.mxu0 %v3281
    %3283 = vmatprep.subr.mxu0 0.0
    %v3284 = vand.u32 %v40, 4294901760
    %3285 = vmatpush1.msra.mxu0 %v3284
    %3286 = vmatprep.subr.mxu0 0.0
    %v3287 = vand.u32 %v41, 4294901760
    %3288 = vmatpush1.msra.mxu0 %v3287
    %3289 = vmatprep.subr.mxu0 0.0
    %v3290 = vand.u32 %v42, 4294901760
    %3291 = vmatpush1.msra.mxu0 %v3290
    %3292 = vmatprep.subr.mxu0 0.0
    %v3293 = vand.u32 %v43, 4294901760
    %3294 = vmatpush1.msra.mxu0 %v3293
    %3295 = vmatprep.subr.mxu0 0.0
    %v3296 = vand.u32 %v44, 4294901760
    %3297 = vmatpush1.msra.mxu0 %v3296
    %3298 = vmatprep.subr.mxu0 0.0
    %v3299 = vand.u32 %v45, 4294901760
    %3300 = vmatpush1.msra.mxu0 %v3299
    %3301 = vmatprep.subr.mxu0 0.0
    %v3302 = vand.u32 %v46, 4294901760
    %3303 = vmatpush1.msra.mxu0 %v3302
    %3304 = vmatprep.subr.mxu0 0.0
    %3305 = vmatpush1.msra.mxu0 0.0
    %3306 = vmatprep.subr.mxu0 0.0
    %3307 = vmatpush1.msra.mxu0 0.0
    %3308 = vmatprep.subr.mxu0 0.0
    %3309 = vmatpush1.msra.mxu0 0.0
    %3310 = vmatprep.subr.mxu0 0.0
    %3311 = vmatpush1.msra.mxu0 0.0
    %3312 = vmatprep.subr.mxu0 0.0
    %3313 = vmatpush1.msra.mxu0 0.0
    %3314 = vmatprep.subr.mxu0 0.0
    %3315 = vmatpush1.msra.mxu0 0.0
    %3316 = vmatprep.subr.mxu0 0.0
    %3317 = vmatpush1.msra.mxu0 0.0
    %3318 = vmatprep.subr.mxu0 0.0
    %3319 = vmatpush1.msra.mxu0 0.0
    %3320 = vmatprep.subr.mxu0 0.0
    %3321 = vmatpush1.msra.mxu0 0.0
    %3322 = vmatprep.subr.mxu0 0.0
    %3323 = vmatpush1.msra.mxu0 0.0
    %3324 = vmatprep.subr.mxu0 0.0
    %3325 = vmatpush1.msra.mxu0 0.0
    %3326 = vmatprep.subr.mxu0 0.0
    %3327 = vmatpush1.msra.mxu0 0.0
    %3328 = vmatprep.subr.mxu0 0.0
    %3329 = vmatpush1.msra.mxu0 0.0
    %3330 = vmatprep.subr.mxu0 0.0
    %3331 = vmatpush1.msra.mxu0 0.0
    %3332 = vmatprep.subr.mxu0 0.0
    %3333 = vmatpush1.msra.mxu0 0.0
    %3334 = vmatprep.subr.mxu0 0.0
    %3335 = vmatpush1.msra.mxu0 0.0
    %3336 = vmatprep.subr.mxu0 0.0
    %3337 = vmatpush1.msra.mxu0 0.0
    %3338 = vmatprep.subr.mxu0 0.0
    %3339 = vmatpush1.msra.mxu0 0.0
    %3340 = vmatprep.subr.mxu0 0.0
    %3341 = vmatpush1.msra.mxu0 0.0
    %3342 = vmatprep.subr.mxu0 0.0
    %3343 = vmatpush1.msra.mxu0 0.0
    %3344 = vmatprep.subr.mxu0 0.0
    %3345 = vmatpush1.msra.mxu0 0.0
    %3346 = vmatprep.subr.mxu0 0.0
    %3347 = vmatpush1.msra.mxu0 0.0
    %3348 = vmatprep.subr.mxu0 0.0
    %3349 = vmatpush1.msra.mxu0 0.0
    %3350 = vmatprep.subr.mxu0 0.0
    %3351 = vmatpush1.msra.mxu0 0.0
    %3352 = vmatprep.mubr.f32.mxu0 0.0
    %v3353 = vand.u32 %v2820, 4294901760
    %3354 = vmatmul.mubr.f32.gmra.mrb[0].mxu0 %v3353
    %v3355 = vpop.f32.mrb[0].mxu0
    %v3356 = vadd.f32 %v3277, %v3355
    %v3357 = vpop.f32.mrb[0].mxu0
    %3358 = vdwg.mxu0
    %v3359 = vadd.f32 %v3356, %v52
    %v3360 = vxor.u32 %v3359, 2147483648
    %v3361 = vmul.f32 %v3360, 1.442695
    %v3362 = vpow.pop %v3361
    %v3363 = vadd.f32 %v3362, 1.0
    %v3364 = vrcp.pop %v3363
    %v3365 = vmul.f32 1.0, %v3364
    %v3366 = vadd.f32 %v3356, %v1149
    %3368 = vrot.lane.b32.xlu0 %v3366, 32
    %v3369 = vpop.permute.xlu0 %3368
    %v3371 = vmul.f32 %v3365, %v3369
    %3373 = vrot.lane.b32.xlu0 %v3371, 64
    %v3374 = vpop.permute.xlu0 %3373
    %v3376 = vadd.f32 %v3359, %v3374
    %v3377 = vtanh.pop %v3376
    %v3378 = vsub.f32 1.0, %v3365
    %3380 = vrot.lane.b32.xlu0 %v3377, 96
    %v3381 = vpop.permute.xlu0 %3380
    %v3383 = vmul.f32 %v3378, %v3381
    %v3384 = vmul.f32 %v3365, %v2280
    %v3385 = vadd.f32 %v3383, %v3384
    %v3386 = vmul.f32 %v2804, %v3385
    %v3387 = vmul.f32 %v2810, %v2280
    %v3388 = vadd.f32 %v3386, %v3387
    %v3389 = vmul.f32 %v2804, %v3388
    %s3390 = scalar_lea.vmem %s1, 6
    %v3391 = vld [vmem:[%s3390] sm:$0x3]
    %v3392 = vsub.f32 1.0, %v3391
    %s3393 = scalar_lea.vmem %s0, 6
    %v3394 = vld [vmem:[%s3393] sm:$0x3]
    %v3395 = vsel %vm63, %v2816, 0
    %3397 = vmatprep.subr.mxu0 0.0
    %v3398 = vand.u32 %v29, 4294901760
    %3399 = vmatpush1.msra.mxu0 %v3398
    %3400 = vmatprep.subr.mxu0 0.0
    %v3401 = vand.u32 %v30, 4294901760
    %3402 = vmatpush1.msra.mxu0 %v3401
    %3403 = vmatprep.subr.mxu0 0.0
    %v3404 = vand.u32 %v31, 4294901760
    %3405 = vmatpush1.msra.mxu0 %v3404
    %3406 = vmatprep.subr.mxu0 0.0
    %v3407 = vand.u32 %v32, 4294901760
    %3408 = vmatpush1.msra.mxu0 %v3407
    %3409 = vmatprep.subr.mxu0 0.0
    %3410 = vmatpush1.msra.mxu0 0.0
    %3411 = vmatprep.subr.mxu0 0.0
    %3412 = vmatpush1.msra.mxu0 0.0
    %3413 = vmatprep.subr.mxu0 0.0
    %3414 = vmatpush1.msra.mxu0 0.0
    %3415 = vmatprep.subr.mxu0 0.0
    %3416 = vmatpush1.msra.mxu0 0.0
    %3417 = vmatprep.subr.mxu0 0.0
    %3418 = vmatpush1.msra.mxu0 0.0
    %3419 = vmatprep.subr.mxu0 0.0
    %3420 = vmatpush1.msra.mxu0 0.0
    %3421 = vmatprep.subr.mxu0 0.0
    %3422 = vmatpush1.msra.mxu0 0.0
    %3423 = vmatprep.subr.mxu0 0.0
    %3424 = vmatpush1.msra.mxu0 0.0
    %3425 = vmatprep.subr.mxu0 0.0
    %3426 = vmatpush1.msra.mxu0 0.0
    %3427 = vmatprep.subr.mxu0 0.0
    %3428 = vmatpush1.msra.mxu0 0.0
    %3429 = vmatprep.subr.mxu0 0.0
    %3430 = vmatpush1.msra.mxu0 0.0
    %3431 = vmatprep.subr.mxu0 0.0
    %3432 = vmatpush1.msra.mxu0 0.0
    %3433 = vmatprep.subr.mxu0 0.0
    %3434 = vmatpush1.msra.mxu0 0.0
    %3435 = vmatprep.subr.mxu0 0.0
    %3436 = vmatpush1.msra.mxu0 0.0
    %3437 = vmatprep.subr.mxu0 0.0
    %3438 = vmatpush1.msra.mxu0 0.0
    %3439 = vmatprep.subr.mxu0 0.0
    %3440 = vmatpush1.msra.mxu0 0.0
    %3441 = vmatprep.subr.mxu0 0.0
    %3442 = vmatpush1.msra.mxu0 0.0
    %3443 = vmatprep.subr.mxu0 0.0
    %3444 = vmatpush1.msra.mxu0 0.0
    %3445 = vmatprep.subr.mxu0 0.0
    %3446 = vmatpush1.msra.mxu0 0.0
    %3447 = vmatprep.subr.mxu0 0.0
    %3448 = vmatpush1.msra.mxu0 0.0
    %3449 = vmatprep.subr.mxu0 0.0
    %3450 = vmatpush1.msra.mxu0 0.0
    %3451 = vmatprep.subr.mxu0 0.0
    %3452 = vmatpush1.msra.mxu0 0.0
    %3453 = vmatprep.subr.mxu0 0.0
    %3454 = vmatpush1.msra.mxu0 0.0
    %3455 = vmatprep.subr.mxu0 0.0
    %3456 = vmatpush1.msra.mxu0 0.0
    %3457 = vmatprep.subr.mxu0 0.0
    %3458 = vmatpush1.msra.mxu0 0.0
    %3459 = vmatprep.subr.mxu0 0.0
    %3460 = vmatpush1.msra.mxu0 0.0
    %3461 = vmatprep.subr.mxu0 0.0
    %3462 = vmatpush1.msra.mxu0 0.0
    %3463 = vmatprep.subr.mxu0 0.0
    %3464 = vmatpush1.msra.mxu0 0.0
    %3465 = vmatprep.mubr.f32.mxu0 0.0
    %v3466 = vand.u32 %v3395, 4294901760
    %v3467 = vsub.f32 %v3395, %v3466
    %v3468 = vand.u32 %v3467, 4294901760
    %v3469 = vsub.f32 %v3467, %v3468
    %v3470 = vand.u32 %v3469, 4294901760
    %3471 = vmatmul.mubr.f32.gmra.mrb[0].mxu0 %v3470
    %v3472 = vpop.f32.mrb[0].mxu0
    %v3473 = vadd.f32 0.0, %v3472
    %v3474 = vpop.f32.mrb[0].mxu0
    %3475 = vdwg.mxu0
    %3476 = vmatprep.subr.mxu0 0.0
    %v3477 = vand.u32 %v29, 4294901760
    %v3478 = vsub.f32 %v29, %v3477
    %v3479 = vand.u32 %v3478, 4294901760
    %v3480 = vsub.f32 %v3478, %v3479
    %v3481 = vand.u32 %v3480, 4294901760
    %3482 = vmatpush1.msra.mxu0 %v3481
    %3483 = vmatprep.subr.mxu0 0.0
    %v3484 = vand.u32 %v30, 4294901760
    %v3485 = vsub.f32 %v30, %v3484
    %v3486 = vand.u32 %v3485, 4294901760
    %v3487 = vsub.f32 %v3485, %v3486
    %v3488 = vand.u32 %v3487, 4294901760
    %3489 = vmatpush1.msra.mxu0 %v3488
    %3490 = vmatprep.subr.mxu0 0.0
    %v3491 = vand.u32 %v31, 4294901760
    %v3492 = vsub.f32 %v31, %v3491
    %v3493 = vand.u32 %v3492, 4294901760
    %v3494 = vsub.f32 %v3492, %v3493
    %v3495 = vand.u32 %v3494, 4294901760
    %3496 = vmatpush1.msra.mxu0 %v3495
    %3497 = vmatprep.subr.mxu0 0.0
    %v3498 = vand.u32 %v32, 4294901760
    %v3499 = vsub.f32 %v32, %v3498
    %v3500 = vand.u32 %v3499, 4294901760
    %v3501 = vsub.f32 %v3499, %v3500
    %v3502 = vand.u32 %v3501, 4294901760
    %3503 = vmatpush1.msra.mxu0 %v3502
    %3504 = vmatprep.subr.mxu0 0.0
    %3505 = vmatpush1.msra.mxu0 0.0
    %3506 = vmatprep.subr.mxu0 0.0
    %3507 = vmatpush1.msra.mxu0 0.0
    %3508 = vmatprep.subr.mxu0 0.0
    %3509 = vmatpush1.msra.mxu0 0.0
    %3510 = vmatprep.subr.mxu0 0.0
    %3511 = vmatpush1.msra.mxu0 0.0
    %3512 = vmatprep.subr.mxu0 0.0
    %3513 = vmatpush1.msra.mxu0 0.0
    %3514 = vmatprep.subr.mxu0 0.0
    %3515 = vmatpush1.msra.mxu0 0.0
    %3516 = vmatprep.subr.mxu0 0.0
    %3517 = vmatpush1.msra.mxu0 0.0
    %3518 = vmatprep.subr.mxu0 0.0
    %3519 = vmatpush1.msra.mxu0 0.0
    %3520 = vmatprep.subr.mxu0 0.0
    %3521 = vmatpush1.msra.mxu0 0.0
    %3522 = vmatprep.subr.mxu0 0.0
    %3523 = vmatpush1.msra.mxu0 0.0
    %3524 = vmatprep.subr.mxu0 0.0
    %3525 = vmatpush1.msra.mxu0 0.0
    %3526 = vmatprep.subr.mxu0 0.0
    %3527 = vmatpush1.msra.mxu0 0.0
    %3528 = vmatprep.subr.mxu0 0.0
    %3529 = vmatpush1.msra.mxu0 0.0
    %3530 = vmatprep.subr.mxu0 0.0
    %3531 = vmatpush1.msra.mxu0 0.0
    %3532 = vmatprep.subr.mxu0 0.0
    %3533 = vmatpush1.msra.mxu0 0.0
    %3534 = vmatprep.subr.mxu0 0.0
    %3535 = vmatpush1.msra.mxu0 0.0
    %3536 = vmatprep.subr.mxu0 0.0
    %3537 = vmatpush1.msra.mxu0 0.0
    %3538 = vmatprep.subr.mxu0 0.0
    %3539 = vmatpush1.msra.mxu0 0.0
    %3540 = vmatprep.subr.mxu0 0.0
    %3541 = vmatpush1.msra.mxu0 0.0
    %3542 = vmatprep.subr.mxu0 0.0
    %3543 = vmatpush1.msra.mxu0 0.0
    %3544 = vmatprep.subr.mxu0 0.0
    %3545 = vmatpush1.msra.mxu0 0.0
    %3546 = vmatprep.subr.mxu0 0.0
    %3547 = vmatpush1.msra.mxu0 0.0
    %3548 = vmatprep.subr.mxu0 0.0
    %3549 = vmatpush1.msra.mxu0 0.0
    %3550 = vmatprep.subr.mxu0 0.0
    %3551 = vmatpush1.msra.mxu0 0.0
    %3552 = vmatprep.subr.mxu0 0.0
    %3553 = vmatpush1.msra.mxu0 0.0
    %3554 = vmatprep.subr.mxu0 0.0
    %3555 = vmatpush1.msra.mxu0 0.0
    %3556 = vmatprep.subr.mxu0 0.0
    %3557 = vmatpush1.msra.mxu0 0.0
    %3558 = vmatprep.subr.mxu0 0.0
    %3559 = vmatpush1.msra.mxu0 0.0
    %3560 = vmatprep.mubr.f32.mxu0 0.0
    %v3561 = vand.u32 %v3395, 4294901760
    %3562 = vmatmul.mubr.f32.gmra.mrb[0].mxu0 %v3561
    %v3563 = vpop.f32.mrb[0].mxu0
    %v3564 = vadd.f32 %v3473, %v3563
    %v3565 = vpop.f32.mrb[0].mxu0
    %3566 = vdwg.mxu0
    %3567 = vmatprep.subr.mxu0 0.0
    %v3568 = vand.u32 %v29, 4294901760
    %v3569 = vsub.f32 %v29, %v3568
    %3570 = vmatpush1.msra.mxu0 %v3569
    %3571 = vmatprep.subr.mxu0 0.0
    %v3572 = vand.u32 %v30, 4294901760
    %v3573 = vsub.f32 %v30, %v3572
    %3574 = vmatpush1.msra.mxu0 %v3573
    %3575 = vmatprep.subr.mxu0 0.0
    %v3576 = vand.u32 %v31, 4294901760
    %v3577 = vsub.f32 %v31, %v3576
    %3578 = vmatpush1.msra.mxu0 %v3577
    %3579 = vmatprep.subr.mxu0 0.0
    %v3580 = vand.u32 %v32, 4294901760
    %v3581 = vsub.f32 %v32, %v3580
    %3582 = vmatpush1.msra.mxu0 %v3581
    %3583 = vmatprep.subr.mxu0 0.0
    %3584 = vmatpush1.msra.mxu0 0.0
    %3585 = vmatprep.subr.mxu0 0.0
    %3586 = vmatpush1.msra.mxu0 0.0
    %3587 = vmatprep.subr.mxu0 0.0
    %3588 = vmatpush1.msra.mxu0 0.0
    %3589 = vmatprep.subr.mxu0 0.0
    %3590 = vmatpush1.msra.mxu0 0.0
    %3591 = vmatprep.subr.mxu0 0.0
    %3592 = vmatpush1.msra.mxu0 0.0
    %3593 = vmatprep.subr.mxu0 0.0
    %3594 = vmatpush1.msra.mxu0 0.0
    %3595 = vmatprep.subr.mxu0 0.0
    %3596 = vmatpush1.msra.mxu0 0.0
    %3597 = vmatprep.subr.mxu0 0.0
    %3598 = vmatpush1.msra.mxu0 0.0
    %3599 = vmatprep.subr.mxu0 0.0
    %3600 = vmatpush1.msra.mxu0 0.0
    %3601 = vmatprep.subr.mxu0 0.0
    %3602 = vmatpush1.msra.mxu0 0.0
    %3603 = vmatprep.subr.mxu0 0.0
    %3604 = vmatpush1.msra.mxu0 0.0
    %3605 = vmatprep.subr.mxu0 0.0
    %3606 = vmatpush1.msra.mxu0 0.0
    %3607 = vmatprep.subr.mxu0 0.0
    %3608 = vmatpush1.msra.mxu0 0.0
    %3609 = vmatprep.subr.mxu0 0.0
    %3610 = vmatpush1.msra.mxu0 0.0
    %3611 = vmatprep.subr.mxu0 0.0
    %3612 = vmatpush1.msra.mxu0 0.0
    %3613 = vmatprep.subr.mxu0 0.0
    %3614 = vmatpush1.msra.mxu0 0.0
    %3615 = vmatprep.subr.mxu0 0.0
    %3616 = vmatpush1.msra.mxu0 0.0
    %3617 = vmatprep.subr.mxu0 0.0
    %3618 = vmatpush1.msra.mxu0 0.0
    %3619 = vmatprep.subr.mxu0 0.0
    %3620 = vmatpush1.msra.mxu0 0.0
    %3621 = vmatprep.subr.mxu0 0.0
    %3622 = vmatpush1.msra.mxu0 0.0
    %3623 = vmatprep.subr.mxu0 0.0
    %3624 = vmatpush1.msra.mxu0 0.0
    %3625 = vmatprep.subr.mxu0 0.0
    %3626 = vmatpush1.msra.mxu0 0.0
    %3627 = vmatprep.subr.mxu0 0.0
    %3628 = vmatpush1.msra.mxu0 0.0
    %3629 = vmatprep.subr.mxu0 0.0
    %3630 = vmatpush1.msra.mxu0 0.0
    %3631 = vmatprep.subr.mxu0 0.0
    %3632 = vmatpush1.msra.mxu0 0.0
    %3633 = vmatprep.subr.mxu0 0.0
    %3634 = vmatpush1.msra.mxu0 0.0
    %3635 = vmatprep.subr.mxu0 0.0
    %3636 = vmatpush1.msra.mxu0 0.0
    %3637 = vmatprep.subr.mxu0 0.0
    %3638 = vmatpush1.msra.mxu0 0.0
    %3639 = vmatprep.mubr.f32.mxu0 0.0
    %v3640 = vand.u32 %v3395, 4294901760
    %v3641 = vsub.f32 %v3395, %v3640
    %3642 = vmatmul.mubr.f32.gmra.mrb[0].mxu0 %v3641
    %v3643 = vpop.f32.mrb[0].mxu0
    %v3644 = vadd.f32 %v3564, %v3643
    %v3645 = vpop.f32.mrb[0].mxu0
    %3646 = vdwg.mxu0
    %3647 = vmatprep.subr.mxu0 0.0
    %v3648 = vand.u32 %v29, 4294901760
    %3649 = vmatpush1.msra.mxu0 %v3648
    %3650 = vmatprep.subr.mxu0 0.0
    %v3651 = vand.u32 %v30, 4294901760
    %3652 = vmatpush1.msra.mxu0 %v3651
    %3653 = vmatprep.subr.mxu0 0.0
    %v3654 = vand.u32 %v31, 4294901760
    %3655 = vmatpush1.msra.mxu0 %v3654
    %3656 = vmatprep.subr.mxu0 0.0
    %v3657 = vand.u32 %v32, 4294901760
    %3658 = vmatpush1.msra.mxu0 %v3657
    %3659 = vmatprep.subr.mxu0 0.0
    %3660 = vmatpush1.msra.mxu0 0.0
    %3661 = vmatprep.subr.mxu0 0.0
    %3662 = vmatpush1.msra.mxu0 0.0
    %3663 = vmatprep.subr.mxu0 0.0
    %3664 = vmatpush1.msra.mxu0 0.0
    %3665 = vmatprep.subr.mxu0 0.0
    %3666 = vmatpush1.msra.mxu0 0.0
    %3667 = vmatprep.subr.mxu0 0.0
    %3668 = vmatpush1.msra.mxu0 0.0
    %3669 = vmatprep.subr.mxu0 0.0
    %3670 = vmatpush1.msra.mxu0 0.0
    %3671 = vmatprep.subr.mxu0 0.0
    %3672 = vmatpush1.msra.mxu0 0.0
    %3673 = vmatprep.subr.mxu0 0.0
    %3674 = vmatpush1.msra.mxu0 0.0
    %3675 = vmatprep.subr.mxu0 0.0
    %3676 = vmatpush1.msra.mxu0 0.0
    %3677 = vmatprep.subr.mxu0 0.0
    %3678 = vmatpush1.msra.mxu0 0.0
    %3679 = vmatprep.subr.mxu0 0.0
    %3680 = vmatpush1.msra.mxu0 0.0
    %3681 = vmatprep.subr.mxu0 0.0
    %3682 = vmatpush1.msra.mxu0 0.0
    %3683 = vmatprep.subr.mxu0 0.0
    %3684 = vmatpush1.msra.mxu0 0.0
    %3685 = vmatprep.subr.mxu0 0.0
    %3686 = vmatpush1.msra.mxu0 0.0
    %3687 = vmatprep.subr.mxu0 0.0
    %3688 = vmatpush1.msra.mxu0 0.0
    %3689 = vmatprep.subr.mxu0 0.0
    %3690 = vmatpush1.msra.mxu0 0.0
    %3691 = vmatprep.subr.mxu0 0.0
    %3692 = vmatpush1.msra.mxu0 0.0
    %3693 = vmatprep.subr.mxu0 0.0
    %3694 = vmatpush1.msra.mxu0 0.0
    %3695 = vmatprep.subr.mxu0 0.0
    %3696 = vmatpush1.msra.mxu0 0.0
    %3697 = vmatprep.subr.mxu0 0.0
    %3698 = vmatpush1.msra.mxu0 0.0
    %3699 = vmatprep.subr.mxu0 0.0
    %3700 = vmatpush1.msra.mxu0 0.0
    %3701 = vmatprep.subr.mxu0 0.0
    %3702 = vmatpush1.msra.mxu0 0.0
    %3703 = vmatprep.subr.mxu0 0.0
    %3704 = vmatpush1.msra.mxu0 0.0
    %3705 = vmatprep.subr.mxu0 0.0
    %3706 = vmatpush1.msra.mxu0 0.0
    %3707 = vmatprep.subr.mxu0 0.0
    %3708 = vmatpush1.msra.mxu0 0.0
    %3709 = vmatprep.subr.mxu0 0.0
    %3710 = vmatpush1.msra.mxu0 0.0
    %3711 = vmatprep.subr.mxu0 0.0
    %3712 = vmatpush1.msra.mxu0 0.0
    %3713 = vmatprep.subr.mxu0 0.0
    %3714 = vmatpush1.msra.mxu0 0.0
    %3715 = vmatprep.mubr.f32.mxu0 0.0
    %v3716 = vand.u32 %v3395, 4294901760
    %v3717 = vsub.f32 %v3395, %v3716
    %v3718 = vand.u32 %v3717, 4294901760
    %3719 = vmatmul.mubr.f32.gmra.mrb[0].mxu0 %v3718
    %v3720 = vpop.f32.mrb[0].mxu0
    %v3721 = vadd.f32 %v3644, %v3720
    %v3722 = vpop.f32.mrb[0].mxu0
    %3723 = vdwg.mxu0
    %3724 = vmatprep.subr.mxu0 0.0
    %v3725 = vand.u32 %v29, 4294901760
    %v3726 = vsub.f32 %v29, %v3725
    %v3727 = vand.u32 %v3726, 4294901760
    %3728 = vmatpush1.msra.mxu0 %v3727
    %3729 = vmatprep.subr.mxu0 0.0
    %v3730 = vand.u32 %v30, 4294901760
    %v3731 = vsub.f32 %v30, %v3730
    %v3732 = vand.u32 %v3731, 4294901760
    %3733 = vmatpush1.msra.mxu0 %v3732
    %3734 = vmatprep.subr.mxu0 0.0
    %v3735 = vand.u32 %v31, 4294901760
    %v3736 = vsub.f32 %v31, %v3735
    %v3737 = vand.u32 %v3736, 4294901760
    %3738 = vmatpush1.msra.mxu0 %v3737
    %3739 = vmatprep.subr.mxu0 0.0
    %v3740 = vand.u32 %v32, 4294901760
    %v3741 = vsub.f32 %v32, %v3740
    %v3742 = vand.u32 %v3741, 4294901760
    %3743 = vmatpush1.msra.mxu0 %v3742
    %3744 = vmatprep.subr.mxu0 0.0
    %3745 = vmatpush1.msra.mxu0 0.0
    %3746 = vmatprep.subr.mxu0 0.0
    %3747 = vmatpush1.msra.mxu0 0.0
    %3748 = vmatprep.subr.mxu0 0.0
    %3749 = vmatpush1.msra.mxu0 0.0
    %3750 = vmatprep.subr.mxu0 0.0
    %3751 = vmatpush1.msra.mxu0 0.0
    %3752 = vmatprep.subr.mxu0 0.0
    %3753 = vmatpush1.msra.mxu0 0.0
    %3754 = vmatprep.subr.mxu0 0.0
    %3755 = vmatpush1.msra.mxu0 0.0
    %3756 = vmatprep.subr.mxu0 0.0
    %3757 = vmatpush1.msra.mxu0 0.0
    %3758 = vmatprep.subr.mxu0 0.0
    %3759 = vmatpush1.msra.mxu0 0.0
    %3760 = vmatprep.subr.mxu0 0.0
    %3761 = vmatpush1.msra.mxu0 0.0
    %3762 = vmatprep.subr.mxu0 0.0
    %3763 = vmatpush1.msra.mxu0 0.0
    %3764 = vmatprep.subr.mxu0 0.0
    %3765 = vmatpush1.msra.mxu0 0.0
    %3766 = vmatprep.subr.mxu0 0.0
    %3767 = vmatpush1.msra.mxu0 0.0
    %3768 = vmatprep.subr.mxu0 0.0
    %3769 = vmatpush1.msra.mxu0 0.0
    %3770 = vmatprep.subr.mxu0 0.0
    %3771 = vmatpush1.msra.mxu0 0.0
    %3772 = vmatprep.subr.mxu0 0.0
    %3773 = vmatpush1.msra.mxu0 0.0
    %3774 = vmatprep.subr.mxu0 0.0
    %3775 = vmatpush1.msra.mxu0 0.0
    %3776 = vmatprep.subr.mxu0 0.0
    %3777 = vmatpush1.msra.mxu0 0.0
    %3778 = vmatprep.subr.mxu0 0.0
    %3779 = vmatpush1.msra.mxu0 0.0
    %3780 = vmatprep.subr.mxu0 0.0
    %3781 = vmatpush1.msra.mxu0 0.0
    %3782 = vmatprep.subr.mxu0 0.0
    %3783 = vmatpush1.msra.mxu0 0.0
    %3784 = vmatprep.subr.mxu0 0.0
    %3785 = vmatpush1.msra.mxu0 0.0
    %3786 = vmatprep.subr.mxu0 0.0
    %3787 = vmatpush1.msra.mxu0 0.0
    %3788 = vmatprep.subr.mxu0 0.0
    %3789 = vmatpush1.msra.mxu0 0.0
    %3790 = vmatprep.subr.mxu0 0.0
    %3791 = vmatpush1.msra.mxu0 0.0
    %3792 = vmatprep.subr.mxu0 0.0
    %3793 = vmatpush1.msra.mxu0 0.0
    %3794 = vmatprep.subr.mxu0 0.0
    %3795 = vmatpush1.msra.mxu0 0.0
    %3796 = vmatprep.subr.mxu0 0.0
    %3797 = vmatpush1.msra.mxu0 0.0
    %3798 = vmatprep.subr.mxu0 0.0
    %3799 = vmatpush1.msra.mxu0 0.0
    %3800 = vmatprep.mubr.f32.mxu0 0.0
    %v3801 = vand.u32 %v3395, 4294901760
    %3802 = vmatmul.mubr.f32.gmra.mrb[0].mxu0 %v3801
    %v3803 = vpop.f32.mrb[0].mxu0
    %v3804 = vadd.f32 %v3721, %v3803
    %v3805 = vpop.f32.mrb[0].mxu0
    %3806 = vdwg.mxu0
    %3807 = vmatprep.subr.mxu0 0.0
    %v3808 = vand.u32 %v29, 4294901760
    %3809 = vmatpush1.msra.mxu0 %v3808
    %3810 = vmatprep.subr.mxu0 0.0
    %v3811 = vand.u32 %v30, 4294901760
    %3812 = vmatpush1.msra.mxu0 %v3811
    %3813 = vmatprep.subr.mxu0 0.0
    %v3814 = vand.u32 %v31, 4294901760
    %3815 = vmatpush1.msra.mxu0 %v3814
    %3816 = vmatprep.subr.mxu0 0.0
    %v3817 = vand.u32 %v32, 4294901760
    %3818 = vmatpush1.msra.mxu0 %v3817
    %3819 = vmatprep.subr.mxu0 0.0
    %3820 = vmatpush1.msra.mxu0 0.0
    %3821 = vmatprep.subr.mxu0 0.0
    %3822 = vmatpush1.msra.mxu0 0.0
    %3823 = vmatprep.subr.mxu0 0.0
    %3824 = vmatpush1.msra.mxu0 0.0
    %3825 = vmatprep.subr.mxu0 0.0
    %3826 = vmatpush1.msra.mxu0 0.0
    %3827 = vmatprep.subr.mxu0 0.0
    %3828 = vmatpush1.msra.mxu0 0.0
    %3829 = vmatprep.subr.mxu0 0.0
    %3830 = vmatpush1.msra.mxu0 0.0
    %3831 = vmatprep.subr.mxu0 0.0
    %3832 = vmatpush1.msra.mxu0 0.0
    %3833 = vmatprep.subr.mxu0 0.0
    %3834 = vmatpush1.msra.mxu0 0.0
    %3835 = vmatprep.subr.mxu0 0.0
    %3836 = vmatpush1.msra.mxu0 0.0
    %3837 = vmatprep.subr.mxu0 0.0
    %3838 = vmatpush1.msra.mxu0 0.0
    %3839 = vmatprep.subr.mxu0 0.0
    %3840 = vmatpush1.msra.mxu0 0.0
    %3841 = vmatprep.subr.mxu0 0.0
    %3842 = vmatpush1.msra.mxu0 0.0
    %3843 = vmatprep.subr.mxu0 0.0
    %3844 = vmatpush1.msra.mxu0 0.0
    %3845 = vmatprep.subr.mxu0 0.0
    %3846 = vmatpush1.msra.mxu0 0.0
    %3847 = vmatprep.subr.mxu0 0.0
    %3848 = vmatpush1.msra.mxu0 0.0
    %3849 = vmatprep.subr.mxu0 0.0
    %3850 = vmatpush1.msra.mxu0 0.0
    %3851 = vmatprep.subr.mxu0 0.0
    %3852 = vmatpush1.msra.mxu0 0.0
    %3853 = vmatprep.subr.mxu0 0.0
    %3854 = vmatpush1.msra.mxu0 0.0
    %3855 = vmatprep.subr.mxu0 0.0
    %3856 = vmatpush1.msra.mxu0 0.0
    %3857 = vmatprep.subr.mxu0 0.0
    %3858 = vmatpush1.msra.mxu0 0.0
    %3859 = vmatprep.subr.mxu0 0.0
    %3860 = vmatpush1.msra.mxu0 0.0
    %3861 = vmatprep.subr.mxu0 0.0
    %3862 = vmatpush1.msra.mxu0 0.0
    %3863 = vmatprep.subr.mxu0 0.0
    %3864 = vmatpush1.msra.mxu0 0.0
    %3865 = vmatprep.subr.mxu0 0.0
    %3866 = vmatpush1.msra.mxu0 0.0
    %3867 = vmatprep.subr.mxu0 0.0
    %3868 = vmatpush1.msra.mxu0 0.0
    %3869 = vmatprep.subr.mxu0 0.0
    %3870 = vmatpush1.msra.mxu0 0.0
    %3871 = vmatprep.subr.mxu0 0.0
    %3872 = vmatpush1.msra.mxu0 0.0
    %3873 = vmatprep.subr.mxu0 0.0
    %3874 = vmatpush1.msra.mxu0 0.0
    %3875 = vmatprep.mubr.f32.mxu0 0.0
    %v3876 = vand.u32 %v3395, 4294901760
    %3877 = vmatmul.mubr.f32.gmra.mrb[0].mxu0 %v3876
    %v3878 = vpop.f32.mrb[0].mxu0
    %v3879 = vadd.f32 %v3804, %v3878
    %v3880 = vpop.f32.mrb[0].mxu0
    %3881 = vdwg.mxu0
    %v3882 = vadd.f32 %v3394, %v3879
    %v3883 = vxor.u32 %v3882, 2147483648
    %v3884 = vmul.f32 %v3883, 1.442695
    %v3885 = vpow.pop %v3884
    %v3886 = vadd.f32 %v3885, 1.0
    %v3887 = vrcp.pop %v3886
    %v3888 = vmul.f32 1.0, %v3887
    %v3889 = vadd.f32 %v3879, %v560
    %3891 = vrot.lane.b32.xlu0 %v3889, 64
    %v3892 = vpop.permute.xlu0 %3891
    %v3894 = vmul.f32 %v3888, %v3892
    %3896 = vrot.lane.b32.xlu0 %v3894, 64
    %v3897 = vpop.permute.xlu0 %3896
    %v3899 = vadd.f32 %v3394, %v3897
    %v3900 = vtanh.pop %v3899
    %v3901 = vsub.f32 1.0, %v3888
    %3903 = vrot.lane.b32.xlu0 %v3900, 96
    %v3904 = vpop.permute.xlu0 %3903
    %v3906 = vmul.f32 %v3901, %v3904
    %v3907 = vmul.f32 %v3888, %v2813
    %v3908 = vadd.f32 %v3906, %v3907
    %3910 = vset.pattern.permute.xlu0 0
    %3911 = vperm.xlu0 %3910, %v3391
    %v3912 = vpop.permute.xlu0 %3911
    %v3914 = vmul.f32 %v3912, %v3908
    %3916 = vset.pattern.permute.xlu0 0
    %3917 = vperm.xlu0 %3916, %v3392
    %v3918 = vpop.permute.xlu0 %3917
    %v3920 = vmul.f32 %v3918, %v2813
    %v3921 = vadd.f32 %v3914, %v3920
    %3923 = vrot.lane.b32.xlu0 %v3921, 96
    %v3924 = vpop.permute.xlu0 %3923
    %v3926 = vsel %vm63, %v3924, %v3388
    %v3928 = vsel %vm600, %v3926, 0
    %3930 = vmatprep.subr.mxu0 0.0
    %v3931 = vand.u32 %v39, 4294901760
    %3932 = vmatpush1.msra.mxu0 %v3931
    %3933 = vmatprep.subr.mxu0 0.0
    %v3934 = vand.u32 %v40, 4294901760
    %3935 = vmatpush1.msra.mxu0 %v3934
    %3936 = vmatprep.subr.mxu0 0.0
    %v3937 = vand.u32 %v41, 4294901760
    %3938 = vmatpush1.msra.mxu0 %v3937
    %3939 = vmatprep.subr.mxu0 0.0
    %v3940 = vand.u32 %v42, 4294901760
    %3941 = vmatpush1.msra.mxu0 %v3940
    %3942 = vmatprep.subr.mxu0 0.0
    %v3943 = vand.u32 %v43, 4294901760
    %3944 = vmatpush1.msra.mxu0 %v3943
    %3945 = vmatprep.subr.mxu0 0.0
    %v3946 = vand.u32 %v44, 4294901760
    %3947 = vmatpush1.msra.mxu0 %v3946
    %3948 = vmatprep.subr.mxu0 0.0
    %v3949 = vand.u32 %v45, 4294901760
    %3950 = vmatpush1.msra.mxu0 %v3949
    %3951 = vmatprep.subr.mxu0 0.0
    %v3952 = vand.u32 %v46, 4294901760
    %3953 = vmatpush1.msra.mxu0 %v3952
    %3954 = vmatprep.subr.mxu0 0.0
    %3955 = vmatpush1.msra.mxu0 0.0
    %3956 = vmatprep.subr.mxu0 0.0
    %3957 = vmatpush1.msra.mxu0 0.0
    %3958 = vmatprep.subr.mxu0 0.0
    %3959 = vmatpush1.msra.mxu0 0.0
    %3960 = vmatprep.subr.mxu0 0.0
    %3961 = vmatpush1.msra.mxu0 0.0
    %3962 = vmatprep.subr.mxu0 0.0
    %3963 = vmatpush1.msra.mxu0 0.0
    %3964 = vmatprep.subr.mxu0 0.0
    %3965 = vmatpush1.msra.mxu0 0.0
    %3966 = vmatprep.subr.mxu0 0.0
    %3967 = vmatpush1.msra.mxu0 0.0
    %3968 = vmatprep.subr.mxu0 0.0
    %3969 = vmatpush1.msra.mxu0 0.0
    %3970 = vmatprep.subr.mxu0 0.0
    %3971 = vmatpush1.msra.mxu0 0.0
    %3972 = vmatprep.subr.mxu0 0.0
    %3973 = vmatpush1.msra.mxu0 0.0
    %3974 = vmatprep.subr.mxu0 0.0
    %3975 = vmatpush1.msra.mxu0 0.0
    %3976 = vmatprep.subr.mxu0 0.0
    %3977 = vmatpush1.msra.mxu0 0.0
    %3978 = vmatprep.subr.mxu0 0.0
    %3979 = vmatpush1.msra.mxu0 0.0
    %3980 = vmatprep.subr.mxu0 0.0
    %3981 = vmatpush1.msra.mxu0 0.0
    %3982 = vmatprep.subr.mxu0 0.0
    %3983 = vmatpush1.msra.mxu0 0.0
    %3984 = vmatprep.subr.mxu0 0.0
    %3985 = vmatpush1.msra.mxu0 0.0
    %3986 = vmatprep.subr.mxu0 0.0
    %3987 = vmatpush1.msra.mxu0 0.0
    %3988 = vmatprep.subr.mxu0 0.0
    %3989 = vmatpush1.msra.mxu0 0.0
    %3990 = vmatprep.subr.mxu0 0.0
    %3991 = vmatpush1.msra.mxu0 0.0
    %3992 = vmatprep.subr.mxu0 0.0
    %3993 = vmatpush1.msra.mxu0 0.0
    %3994 = vmatprep.subr.mxu0 0.0
    %3995 = vmatpush1.msra.mxu0 0.0
    %3996 = vmatprep.subr.mxu0 0.0
    %3997 = vmatpush1.msra.mxu0 0.0
    %3998 = vmatprep.subr.mxu0 0.0
    %3999 = vmatpush1.msra.mxu0 0.0
    %4000 = vmatprep.subr.mxu0 0.0
    %4001 = vmatpush1.msra.mxu0 0.0
    %4002 = vmatprep.mubr.f32.mxu0 0.0
    %v4003 = vand.u32 %v3928, 4294901760
    %v4004 = vsub.f32 %v3928, %v4003
    %v4005 = vand.u32 %v4004, 4294901760
    %v4006 = vsub.f32 %v4004, %v4005
    %v4007 = vand.u32 %v4006, 4294901760
    %4008 = vmatmul.mubr.f32.gmra.mrb[0].mxu0 %v4007
    %v4009 = vpop.f32.mrb[0].mxu0
    %v4010 = vadd.f32 0.0, %v4009
    %v4011 = vpop.f32.mrb[0].mxu0
    %4012 = vdwg.mxu0
    %4013 = vmatprep.subr.mxu0 0.0
    %v4014 = vand.u32 %v39, 4294901760
    %v4015 = vsub.f32 %v39, %v4014
    %v4016 = vand.u32 %v4015, 4294901760
    %v4017 = vsub.f32 %v4015, %v4016
    %v4018 = vand.u32 %v4017, 4294901760
    %4019 = vmatpush1.msra.mxu0 %v4018
    %4020 = vmatprep.subr.mxu0 0.0
    %v4021 = vand.u32 %v40, 4294901760
    %v4022 = vsub.f32 %v40, %v4021
    %v4023 = vand.u32 %v4022, 4294901760
    %v4024 = vsub.f32 %v4022, %v4023
    %v4025 = vand.u32 %v4024, 4294901760
    %4026 = vmatpush1.msra.mxu0 %v4025
    %4027 = vmatprep.subr.mxu0 0.0
    %v4028 = vand.u32 %v41, 4294901760
    %v4029 = vsub.f32 %v41, %v4028
    %v4030 = vand.u32 %v4029, 4294901760
    %v4031 = vsub.f32 %v4029, %v4030
    %v4032 = vand.u32 %v4031, 4294901760
    %4033 = vmatpush1.msra.mxu0 %v4032
    %4034 = vmatprep.subr.mxu0 0.0
    %v4035 = vand.u32 %v42, 4294901760
    %v4036 = vsub.f32 %v42, %v4035
    %v4037 = vand.u32 %v4036, 4294901760
    %v4038 = vsub.f32 %v4036, %v4037
    %v4039 = vand.u32 %v4038, 4294901760
    %4040 = vmatpush1.msra.mxu0 %v4039
    %4041 = vmatprep.subr.mxu0 0.0
    %v4042 = vand.u32 %v43, 4294901760
    %v4043 = vsub.f32 %v43, %v4042
    %v4044 = vand.u32 %v4043, 4294901760
    %v4045 = vsub.f32 %v4043, %v4044
    %v4046 = vand.u32 %v4045, 4294901760
    %4047 = vmatpush1.msra.mxu0 %v4046
    %4048 = vmatprep.subr.mxu0 0.0
    %v4049 = vand.u32 %v44, 4294901760
    %v4050 = vsub.f32 %v44, %v4049
    %v4051 = vand.u32 %v4050, 4294901760
    %v4052 = vsub.f32 %v4050, %v4051
    %v4053 = vand.u32 %v4052, 4294901760
    %4054 = vmatpush1.msra.mxu0 %v4053
    %4055 = vmatprep.subr.mxu0 0.0
    %v4056 = vand.u32 %v45, 4294901760
    %v4057 = vsub.f32 %v45, %v4056
    %v4058 = vand.u32 %v4057, 4294901760
    %v4059 = vsub.f32 %v4057, %v4058
    %v4060 = vand.u32 %v4059, 4294901760
    %4061 = vmatpush1.msra.mxu0 %v4060
    %4062 = vmatprep.subr.mxu0 0.0
    %v4063 = vand.u32 %v46, 4294901760
    %v4064 = vsub.f32 %v46, %v4063
    %v4065 = vand.u32 %v4064, 4294901760
    %v4066 = vsub.f32 %v4064, %v4065
    %v4067 = vand.u32 %v4066, 4294901760
    %4068 = vmatpush1.msra.mxu0 %v4067
    %4069 = vmatprep.subr.mxu0 0.0
    %4070 = vmatpush1.msra.mxu0 0.0
    %4071 = vmatprep.subr.mxu0 0.0
    %4072 = vmatpush1.msra.mxu0 0.0
    %4073 = vmatprep.subr.mxu0 0.0
    %4074 = vmatpush1.msra.mxu0 0.0
    %4075 = vmatprep.subr.mxu0 0.0
    %4076 = vmatpush1.msra.mxu0 0.0
    %4077 = vmatprep.subr.mxu0 0.0
    %4078 = vmatpush1.msra.mxu0 0.0
    %4079 = vmatprep.subr.mxu0 0.0
    %4080 = vmatpush1.msra.mxu0 0.0
    %4081 = vmatprep.subr.mxu0 0.0
    %4082 = vmatpush1.msra.mxu0 0.0
    %4083 = vmatprep.subr.mxu0 0.0
    %4084 = vmatpush1.msra.mxu0 0.0
    %4085 = vmatprep.subr.mxu0 0.0
    %4086 = vmatpush1.msra.mxu0 0.0
    %4087 = vmatprep.subr.mxu0 0.0
    %4088 = vmatpush1.msra.mxu0 0.0
    %4089 = vmatprep.subr.mxu0 0.0
    %4090 = vmatpush1.msra.mxu0 0.0
    %4091 = vmatprep.subr.mxu0 0.0
    %4092 = vmatpush1.msra.mxu0 0.0
    %4093 = vmatprep.subr.mxu0 0.0
    %4094 = vmatpush1.msra.mxu0 0.0
    %4095 = vmatprep.subr.mxu0 0.0
    %4096 = vmatpush1.msra.mxu0 0.0
    %4097 = vmatprep.subr.mxu0 0.0
    %4098 = vmatpush1.msra.mxu0 0.0
    %4099 = vmatprep.subr.mxu0 0.0
    %4100 = vmatpush1.msra.mxu0 0.0
    %4101 = vmatprep.subr.mxu0 0.0
    %4102 = vmatpush1.msra.mxu0 0.0
    %4103 = vmatprep.subr.mxu0 0.0
    %4104 = vmatpush1.msra.mxu0 0.0
    %4105 = vmatprep.subr.mxu0 0.0
    %4106 = vmatpush1.msra.mxu0 0.0
    %4107 = vmatprep.subr.mxu0 0.0
    %4108 = vmatpush1.msra.mxu0 0.0
    %4109 = vmatprep.subr.mxu0 0.0
    %4110 = vmatpush1.msra.mxu0 0.0
    %4111 = vmatprep.subr.mxu0 0.0
    %4112 = vmatpush1.msra.mxu0 0.0
    %4113 = vmatprep.subr.mxu0 0.0
    %4114 = vmatpush1.msra.mxu0 0.0
    %4115 = vmatprep.subr.mxu0 0.0
    %4116 = vmatpush1.msra.mxu0 0.0
    %4117 = vmatprep.mubr.f32.mxu0 0.0
    %v4118 = vand.u32 %v3928, 4294901760
    %4119 = vmatmul.mubr.f32.gmra.mrb[0].mxu0 %v4118
    %v4120 = vpop.f32.mrb[0].mxu0
    %v4121 = vadd.f32 %v4010, %v4120
    %v4122 = vpop.f32.mrb[0].mxu0
    %4123 = vdwg.mxu0
    %4124 = vmatprep.subr.mxu0 0.0
    %v4125 = vand.u32 %v39, 4294901760
    %v4126 = vsub.f32 %v39, %v4125
    %4127 = vmatpush1.msra.mxu0 %v4126
    %4128 = vmatprep.subr.mxu0 0.0
    %v4129 = vand.u32 %v40, 4294901760
    %v4130 = vsub.f32 %v40, %v4129
    %4131 = vmatpush1.msra.mxu0 %v4130
    %4132 = vmatprep.subr.mxu0 0.0
    %v4133 = vand.u32 %v41, 4294901760
    %v4134 = vsub.f32 %v41, %v4133
    %4135 = vmatpush1.msra.mxu0 %v4134
    %4136 = vmatprep.subr.mxu0 0.0
    %v4137 = vand.u32 %v42, 4294901760
    %v4138 = vsub.f32 %v42, %v4137
    %4139 = vmatpush1.msra.mxu0 %v4138
    %4140 = vmatprep.subr.mxu0 0.0
    %v4141 = vand.u32 %v43, 4294901760
    %v4142 = vsub.f32 %v43, %v4141
    %4143 = vmatpush1.msra.mxu0 %v4142
    %4144 = vmatprep.subr.mxu0 0.0
    %v4145 = vand.u32 %v44, 4294901760
    %v4146 = vsub.f32 %v44, %v4145
    %4147 = vmatpush1.msra.mxu0 %v4146
    %4148 = vmatprep.subr.mxu0 0.0
    %v4149 = vand.u32 %v45, 4294901760
    %v4150 = vsub.f32 %v45, %v4149
    %4151 = vmatpush1.msra.mxu0 %v4150
    %4152 = vmatprep.subr.mxu0 0.0
    %v4153 = vand.u32 %v46, 4294901760
    %v4154 = vsub.f32 %v46, %v4153
    %4155 = vmatpush1.msra.mxu0 %v4154
    %4156 = vmatprep.subr.mxu0 0.0
    %4157 = vmatpush1.msra.mxu0 0.0
    %4158 = vmatprep.subr.mxu0 0.0
    %4159 = vmatpush1.msra.mxu0 0.0
    %4160 = vmatprep.subr.mxu0 0.0
    %4161 = vmatpush1.msra.mxu0 0.0
    %4162 = vmatprep.subr.mxu0 0.0
    %4163 = vmatpush1.msra.mxu0 0.0
    %4164 = vmatprep.subr.mxu0 0.0
    %4165 = vmatpush1.msra.mxu0 0.0
    %4166 = vmatprep.subr.mxu0 0.0
    %4167 = vmatpush1.msra.mxu0 0.0
    %4168 = vmatprep.subr.mxu0 0.0
    %4169 = vmatpush1.msra.mxu0 0.0
    %4170 = vmatprep.subr.mxu0 0.0
    %4171 = vmatpush1.msra.mxu0 0.0
    %4172 = vmatprep.subr.mxu0 0.0
    %4173 = vmatpush1.msra.mxu0 0.0
    %4174 = vmatprep.subr.mxu0 0.0
    %4175 = vmatpush1.msra.mxu0 0.0
    %4176 = vmatprep.subr.mxu0 0.0
    %4177 = vmatpush1.msra.mxu0 0.0
    %4178 = vmatprep.subr.mxu0 0.0
    %4179 = vmatpush1.msra.mxu0 0.0
    %4180 = vmatprep.subr.mxu0 0.0
    %4181 = vmatpush1.msra.mxu0 0.0
    %4182 = vmatprep.subr.mxu0 0.0
    %4183 = vmatpush1.msra.mxu0 0.0
    %4184 = vmatprep.subr.mxu0 0.0
    %4185 = vmatpush1.msra.mxu0 0.0
    %4186 = vmatprep.subr.mxu0 0.0
    %4187 = vmatpush1.msra.mxu0 0.0
    %4188 = vmatprep.subr.mxu0 0.0
    %4189 = vmatpush1.msra.mxu0 0.0
    %4190 = vmatprep.subr.mxu0 0.0
    %4191 = vmatpush1.msra.mxu0 0.0
    %4192 = vmatprep.subr.mxu0 0.0
    %4193 = vmatpush1.msra.mxu0 0.0
    %4194 = vmatprep.subr.mxu0 0.0
    %4195 = vmatpush1.msra.mxu0 0.0
    %4196 = vmatprep.subr.mxu0 0.0
    %4197 = vmatpush1.msra.mxu0 0.0
    %4198 = vmatprep.subr.mxu0 0.0
    %4199 = vmatpush1.msra.mxu0 0.0
    %4200 = vmatprep.subr.mxu0 0.0
    %4201 = vmatpush1.msra.mxu0 0.0
    %4202 = vmatprep.subr.mxu0 0.0
    %4203 = vmatpush1.msra.mxu0 0.0
    %4204 = vmatprep.mubr.f32.mxu0 0.0
    %v4205 = vand.u32 %v3928, 4294901760
    %v4206 = vsub.f32 %v3928, %v4205
    %4207 = vmatmul.mubr.f32.gmra.mrb[0].mxu0 %v4206
    %v4208 = vpop.f32.mrb[0].mxu0
    %v4209 = vadd.f32 %v4121, %v4208
    %v4210 = vpop.f32.mrb[0].mxu0
    %4211 = vdwg.mxu0
    %4212 = vmatprep.subr.mxu0 0.0
    %v4213 = vand.u32 %v39, 4294901760
    %4214 = vmatpush1.msra.mxu0 %v4213
    %4215 = vmatprep.subr.mxu0 0.0
    %v4216 = vand.u32 %v40, 4294901760
    %4217 = vmatpush1.msra.mxu0 %v4216
    %4218 = vmatprep.subr.mxu0 0.0
    %v4219 = vand.u32 %v41, 4294901760
    %4220 = vmatpush1.msra.mxu0 %v4219
    %4221 = vmatprep.subr.mxu0 0.0
    %v4222 = vand.u32 %v42, 4294901760
    %4223 = vmatpush1.msra.mxu0 %v4222
    %4224 = vmatprep.subr.mxu0 0.0
    %v4225 = vand.u32 %v43, 4294901760
    %4226 = vmatpush1.msra.mxu0 %v4225
    %4227 = vmatprep.subr.mxu0 0.0
    %v4228 = vand.u32 %v44, 4294901760
    %4229 = vmatpush1.msra.mxu0 %v4228
    %4230 = vmatprep.subr.mxu0 0.0
    %v4231 = vand.u32 %v45, 4294901760
    %4232 = vmatpush1.msra.mxu0 %v4231
    %4233 = vmatprep.subr.mxu0 0.0
    %v4234 = vand.u32 %v46, 4294901760
    %4235 = vmatpush1.msra.mxu0 %v4234
    %4236 = vmatprep.subr.mxu0 0.0
    %4237 = vmatpush1.msra.mxu0 0.0
    %4238 = vmatprep.subr.mxu0 0.0
    %4239 = vmatpush1.msra.mxu0 0.0
    %4240 = vmatprep.subr.mxu0 0.0
    %4241 = vmatpush1.msra.mxu0 0.0
    %4242 = vmatprep.subr.mxu0 0.0
    %4243 = vmatpush1.msra.mxu0 0.0
    %4244 = vmatprep.subr.mxu0 0.0
    %4245 = vmatpush1.msra.mxu0 0.0
    %4246 = vmatprep.subr.mxu0 0.0
    %4247 = vmatpush1.msra.mxu0 0.0
    %4248 = vmatprep.subr.mxu0 0.0
    %4249 = vmatpush1.msra.mxu0 0.0
    %4250 = vmatprep.subr.mxu0 0.0
    %4251 = vmatpush1.msra.mxu0 0.0
    %4252 = vmatprep.subr.mxu0 0.0
    %4253 = vmatpush1.msra.mxu0 0.0
    %4254 = vmatprep.subr.mxu0 0.0
    %4255 = vmatpush1.msra.mxu0 0.0
    %4256 = vmatprep.subr.mxu0 0.0
    %4257 = vmatpush1.msra.mxu0 0.0
    %4258 = vmatprep.subr.mxu0 0.0
    %4259 = vmatpush1.msra.mxu0 0.0
    %4260 = vmatprep.subr.mxu0 0.0
    %4261 = vmatpush1.msra.mxu0 0.0
    %4262 = vmatprep.subr.mxu0 0.0
    %4263 = vmatpush1.msra.mxu0 0.0
    %4264 = vmatprep.subr.mxu0 0.0
    %4265 = vmatpush1.msra.mxu0 0.0
    %4266 = vmatprep.subr.mxu0 0.0
    %4267 = vmatpush1.msra.mxu0 0.0
    %4268 = vmatprep.subr.mxu0 0.0
    %4269 = vmatpush1.msra.mxu0 0.0
    %4270 = vmatprep.subr.mxu0 0.0
    %4271 = vmatpush1.msra.mxu0 0.0
    %4272 = vmatprep.subr.mxu0 0.0
    %4273 = vmatpush1.msra.mxu0 0.0
    %4274 = vmatprep.subr.mxu0 0.0
    %4275 = vmatpush1.msra.mxu0 0.0
    %4276 = vmatprep.subr.mxu0 0.0
    %4277 = vmatpush1.msra.mxu0 0.0
    %4278 = vmatprep.subr.mxu0 0.0
    %4279 = vmatpush1.msra.mxu0 0.0
    %4280 = vmatprep.subr.mxu0 0.0
    %4281 = vmatpush1.msra.mxu0 0.0
    %4282 = vmatprep.subr.mxu0 0.0
    %4283 = vmatpush1.msra.mxu0 0.0
    %4284 = vmatprep.mubr.f32.mxu0 0.0
    %v4285 = vand.u32 %v3928, 4294901760
    %v4286 = vsub.f32 %v3928, %v4285
    %v4287 = vand.u32 %v4286, 4294901760
    %4288 = vmatmul.mubr.f32.gmra.mrb[0].mxu0 %v4287
    %v4289 = vpop.f32.mrb[0].mxu0
    %v4290 = vadd.f32 %v4209, %v4289
    %v4291 = vpop.f32.mrb[0].mxu0
    %4292 = vdwg.mxu0
    %4293 = vmatprep.subr.mxu0 0.0
    %v4294 = vand.u32 %v39, 4294901760
    %v4295 = vsub.f32 %v39, %v4294
    %v4296 = vand.u32 %v4295, 4294901760
    %4297 = vmatpush1.msra.mxu0 %v4296
    %4298 = vmatprep.subr.mxu0 0.0
    %v4299 = vand.u32 %v40, 4294901760
    %v4300 = vsub.f32 %v40, %v4299
    %v4301 = vand.u32 %v4300, 4294901760
    %4302 = vmatpush1.msra.mxu0 %v4301
    %4303 = vmatprep.subr.mxu0 0.0
    %v4304 = vand.u32 %v41, 4294901760
    %v4305 = vsub.f32 %v41, %v4304
    %v4306 = vand.u32 %v4305, 4294901760
    %4307 = vmatpush1.msra.mxu0 %v4306
    %4308 = vmatprep.subr.mxu0 0.0
    %v4309 = vand.u32 %v42, 4294901760
    %v4310 = vsub.f32 %v42, %v4309
    %v4311 = vand.u32 %v4310, 4294901760
    %4312 = vmatpush1.msra.mxu0 %v4311
    %4313 = vmatprep.subr.mxu0 0.0
    %v4314 = vand.u32 %v43, 4294901760
    %v4315 = vsub.f32 %v43, %v4314
    %v4316 = vand.u32 %v4315, 4294901760
    %4317 = vmatpush1.msra.mxu0 %v4316
    %4318 = vmatprep.subr.mxu0 0.0
    %v4319 = vand.u32 %v44, 4294901760
    %v4320 = vsub.f32 %v44, %v4319
    %v4321 = vand.u32 %v4320, 4294901760
    %4322 = vmatpush1.msra.mxu0 %v4321
    %4323 = vmatprep.subr.mxu0 0.0
    %v4324 = vand.u32 %v45, 4294901760
    %v4325 = vsub.f32 %v45, %v4324
    %v4326 = vand.u32 %v4325, 4294901760
    %4327 = vmatpush1.msra.mxu0 %v4326
    %4328 = vmatprep.subr.mxu0 0.0
    %v4329 = vand.u32 %v46, 4294901760
    %v4330 = vsub.f32 %v46, %v4329
    %v4331 = vand.u32 %v4330, 4294901760
    %4332 = vmatpush1.msra.mxu0 %v4331
    %4333 = vmatprep.subr.mxu0 0.0
    %4334 = vmatpush1.msra.mxu0 0.0
    %4335 = vmatprep.subr.mxu0 0.0
    %4336 = vmatpush1.msra.mxu0 0.0
    %4337 = vmatprep.subr.mxu0 0.0
    %4338 = vmatpush1.msra.mxu0 0.0
    %4339 = vmatprep.subr.mxu0 0.0
    %4340 = vmatpush1.msra.mxu0 0.0
    %4341 = vmatprep.subr.mxu0 0.0
    %4342 = vmatpush1.msra.mxu0 0.0
    %4343 = vmatprep.subr.mxu0 0.0
    %4344 = vmatpush1.msra.mxu0 0.0
    %4345 = vmatprep.subr.mxu0 0.0
    %4346 = vmatpush1.msra.mxu0 0.0
    %4347 = vmatprep.subr.mxu0 0.0
    %4348 = vmatpush1.msra.mxu0 0.0
    %4349 = vmatprep.subr.mxu0 0.0
    %4350 = vmatpush1.msra.mxu0 0.0
    %4351 = vmatprep.subr.mxu0 0.0
    %4352 = vmatpush1.msra.mxu0 0.0
    %4353 = vmatprep.subr.mxu0 0.0
    %4354 = vmatpush1.msra.mxu0 0.0
    %4355 = vmatprep.subr.mxu0 0.0
    %4356 = vmatpush1.msra.mxu0 0.0
    %4357 = vmatprep.subr.mxu0 0.0
    %4358 = vmatpush1.msra.mxu0 0.0
    %4359 = vmatprep.subr.mxu0 0.0
    %4360 = vmatpush1.msra.mxu0 0.0
    %4361 = vmatprep.subr.mxu0 0.0
    %4362 = vmatpush1.msra.mxu0 0.0
    %4363 = vmatprep.subr.mxu0 0.0
    %4364 = vmatpush1.msra.mxu0 0.0
    %4365 = vmatprep.subr.mxu0 0.0
    %4366 = vmatpush1.msra.mxu0 0.0
    %4367 = vmatprep.subr.mxu0 0.0
    %4368 = vmatpush1.msra.mxu0 0.0
    %4369 = vmatprep.subr.mxu0 0.0
    %4370 = vmatpush1.msra.mxu0 0.0
    %4371 = vmatprep.subr.mxu0 0.0
    %4372 = vmatpush1.msra.mxu0 0.0
    %4373 = vmatprep.subr.mxu0 0.0
    %4374 = vmatpush1.msra.mxu0 0.0
    %4375 = vmatprep.subr.mxu0 0.0
    %4376 = vmatpush1.msra.mxu0 0.0
    %4377 = vmatprep.subr.mxu0 0.0
    %4378 = vmatpush1.msra.mxu0 0.0
    %4379 = vmatprep.subr.mxu0 0.0
    %4380 = vmatpush1.msra.mxu0 0.0
    %4381 = vmatprep.mubr.f32.mxu0 0.0
    %v4382 = vand.u32 %v3928, 4294901760
    %4383 = vmatmul.mubr.f32.gmra.mrb[0].mxu0 %v4382
    %v4384 = vpop.f32.mrb[0].mxu0
    %v4385 = vadd.f32 %v4290, %v4384
    %v4386 = vpop.f32.mrb[0].mxu0
    %4387 = vdwg.mxu0
    %4388 = vmatprep.subr.mxu0 0.0
    %v4389 = vand.u32 %v39, 4294901760
    %4390 = vmatpush1.msra.mxu0 %v4389
    %4391 = vmatprep.subr.mxu0 0.0
    %v4392 = vand.u32 %v40, 4294901760
    %4393 = vmatpush1.msra.mxu0 %v4392
    %4394 = vmatprep.subr.mxu0 0.0
    %v4395 = vand.u32 %v41, 4294901760
    %4396 = vmatpush1.msra.mxu0 %v4395
    %4397 = vmatprep.subr.mxu0 0.0
    %v4398 = vand.u32 %v42, 4294901760
    %4399 = vmatpush1.msra.mxu0 %v4398
    %4400 = vmatprep.subr.mxu0 0.0
    %v4401 = vand.u32 %v43, 4294901760
    %4402 = vmatpush1.msra.mxu0 %v4401
    %4403 = vmatprep.subr.mxu0 0.0
    %v4404 = vand.u32 %v44, 4294901760
    %4405 = vmatpush1.msra.mxu0 %v4404
    %4406 = vmatprep.subr.mxu0 0.0
    %v4407 = vand.u32 %v45, 4294901760
    %4408 = vmatpush1.msra.mxu0 %v4407
    %4409 = vmatprep.subr.mxu0 0.0
    %v4410 = vand.u32 %v46, 4294901760
    %4411 = vmatpush1.msra.mxu0 %v4410
    %4412 = vmatprep.subr.mxu0 0.0
    %4413 = vmatpush1.msra.mxu0 0.0
    %4414 = vmatprep.subr.mxu0 0.0
    %4415 = vmatpush1.msra.mxu0 0.0
    %4416 = vmatprep.subr.mxu0 0.0
    %4417 = vmatpush1.msra.mxu0 0.0
    %4418 = vmatprep.subr.mxu0 0.0
    %4419 = vmatpush1.msra.mxu0 0.0
    %4420 = vmatprep.subr.mxu0 0.0
    %4421 = vmatpush1.msra.mxu0 0.0
    %4422 = vmatprep.subr.mxu0 0.0
    %4423 = vmatpush1.msra.mxu0 0.0
    %4424 = vmatprep.subr.mxu0 0.0
    %4425 = vmatpush1.msra.mxu0 0.0
    %4426 = vmatprep.subr.mxu0 0.0
    %4427 = vmatpush1.msra.mxu0 0.0
    %4428 = vmatprep.subr.mxu0 0.0
    %4429 = vmatpush1.msra.mxu0 0.0
    %4430 = vmatprep.subr.mxu0 0.0
    %4431 = vmatpush1.msra.mxu0 0.0
    %4432 = vmatprep.subr.mxu0 0.0
    %4433 = vmatpush1.msra.mxu0 0.0
    %4434 = vmatprep.subr.mxu0 0.0
    %4435 = vmatpush1.msra.mxu0 0.0
    %4436 = vmatprep.subr.mxu0 0.0
    %4437 = vmatpush1.msra.mxu0 0.0
    %4438 = vmatprep.subr.mxu0 0.0
    %4439 = vmatpush1.msra.mxu0 0.0
    %4440 = vmatprep.subr.mxu0 0.0
    %4441 = vmatpush1.msra.mxu0 0.0
    %4442 = vmatprep.subr.mxu0 0.0
    %4443 = vmatpush1.msra.mxu0 0.0
    %4444 = vmatprep.subr.mxu0 0.0
    %4445 = vmatpush1.msra.mxu0 0.0
    %4446 = vmatprep.subr.mxu0 0.0
    %4447 = vmatpush1.msra.mxu0 0.0
    %4448 = vmatprep.subr.mxu0 0.0
    %4449 = vmatpush1.msra.mxu0 0.0
    %4450 = vmatprep.subr.mxu0 0.0
    %4451 = vmatpush1.msra.mxu0 0.0
    %4452 = vmatprep.subr.mxu0 0.0
    %4453 = vmatpush1.msra.mxu0 0.0
    %4454 = vmatprep.subr.mxu0 0.0
    %4455 = vmatpush1.msra.mxu0 0.0
    %4456 = vmatprep.subr.mxu0 0.0
    %4457 = vmatpush1.msra.mxu0 0.0
    %4458 = vmatprep.subr.mxu0 0.0
    %4459 = vmatpush1.msra.mxu0 0.0
    %4460 = vmatprep.mubr.f32.mxu0 0.0
    %v4461 = vand.u32 %v3928, 4294901760
    %4462 = vmatmul.mubr.f32.gmra.mrb[0].mxu0 %v4461
    %v4463 = vpop.f32.mrb[0].mxu0
    %v4464 = vadd.f32 %v4385, %v4463
    %v4465 = vpop.f32.mrb[0].mxu0
    %4466 = vdwg.mxu0
    %v4467 = vadd.f32 %v4464, %v52
    %v4468 = vxor.u32 %v4467, 2147483648
    %v4469 = vmul.f32 %v4468, 1.442695
    %v4470 = vpow.pop %v4469
    %v4471 = vadd.f32 %v4470, 1.0
    %v4472 = vrcp.pop %v4471
    %v4473 = vmul.f32 1.0, %v4472
    %v4474 = vadd.f32 %v4464, %v1149
    %4476 = vrot.lane.b32.xlu0 %v4474, 32
    %v4477 = vpop.permute.xlu0 %4476
    %v4479 = vmul.f32 %v4473, %v4477
    %4481 = vrot.lane.b32.xlu0 %v4479, 64
    %v4482 = vpop.permute.xlu0 %4481
    %v4484 = vadd.f32 %v4467, %v4482
    %v4485 = vtanh.pop %v4484
    %v4486 = vsub.f32 1.0, %v4473
    %4488 = vrot.lane.b32.xlu0 %v4485, 96
    %v4489 = vpop.permute.xlu0 %4488
    %v4491 = vmul.f32 %v4486, %v4489
    %v4492 = vmul.f32 %v4473, %v3388
    %v4493 = vadd.f32 %v4491, %v4492
    %v4494 = vmul.f32 %v3912, %v4493
    %v4495 = vmul.f32 %v3918, %v3388
    %v4496 = vadd.f32 %v4494, %v4495
    %v4497 = vmul.f32 %v3912, %v4496
    %s4498 = scalar_lea.vmem %s1, 8
    %v4499 = vld [vmem:[%s4498] sm:$0x3]
    %v4500 = vsub.f32 1.0, %v4499
    %s4501 = scalar_lea.vmem %s0, 8
    %v4502 = vld [vmem:[%s4501] sm:$0x3]
    %v4503 = vsel %vm63, %v3924, 0
    %4505 = vmatprep.subr.mxu0 0.0
    %v4506 = vand.u32 %v29, 4294901760
    %4507 = vmatpush1.msra.mxu0 %v4506
    %4508 = vmatprep.subr.mxu0 0.0
    %v4509 = vand.u32 %v30, 4294901760
    %4510 = vmatpush1.msra.mxu0 %v4509
    %4511 = vmatprep.subr.mxu0 0.0
    %v4512 = vand.u32 %v31, 4294901760
    %4513 = vmatpush1.msra.mxu0 %v4512
    %4514 = vmatprep.subr.mxu0 0.0
    %v4515 = vand.u32 %v32, 4294901760
    %4516 = vmatpush1.msra.mxu0 %v4515
    %4517 = vmatprep.subr.mxu0 0.0
    %4518 = vmatpush1.msra.mxu0 0.0
    %4519 = vmatprep.subr.mxu0 0.0
    %4520 = vmatpush1.msra.mxu0 0.0
    %4521 = vmatprep.subr.mxu0 0.0
    %4522 = vmatpush1.msra.mxu0 0.0
    %4523 = vmatprep.subr.mxu0 0.0
    %4524 = vmatpush1.msra.mxu0 0.0
    %4525 = vmatprep.subr.mxu0 0.0
    %4526 = vmatpush1.msra.mxu0 0.0
    %4527 = vmatprep.subr.mxu0 0.0
    %4528 = vmatpush1.msra.mxu0 0.0
    %4529 = vmatprep.subr.mxu0 0.0
    %4530 = vmatpush1.msra.mxu0 0.0
    %4531 = vmatprep.subr.mxu0 0.0
    %4532 = vmatpush1.msra.mxu0 0.0
    %4533 = vmatprep.subr.mxu0 0.0
    %4534 = vmatpush1.msra.mxu0 0.0
    %4535 = vmatprep.subr.mxu0 0.0
    %4536 = vmatpush1.msra.mxu0 0.0
    %4537 = vmatprep.subr.mxu0 0.0
    %4538 = vmatpush1.msra.mxu0 0.0
    %4539 = vmatprep.subr.mxu0 0.0
    %4540 = vmatpush1.msra.mxu0 0.0
    %4541 = vmatprep.subr.mxu0 0.0
    %4542 = vmatpush1.msra.mxu0 0.0
    %4543 = vmatprep.subr.mxu0 0.0
    %4544 = vmatpush1.msra.mxu0 0.0
    %4545 = vmatprep.subr.mxu0 0.0
    %4546 = vmatpush1.msra.mxu0 0.0
    %4547 = vmatprep.subr.mxu0 0.0
    %4548 = vmatpush1.msra.mxu0 0.0
    %4549 = vmatprep.subr.mxu0 0.0
    %4550 = vmatpush1.msra.mxu0 0.0
    %4551 = vmatprep.subr.mxu0 0.0
    %4552 = vmatpush1.msra.mxu0 0.0
    %4553 = vmatprep.subr.mxu0 0.0
    %4554 = vmatpush1.msra.mxu0 0.0
    %4555 = vmatprep.subr.mxu0 0.0
    %4556 = vmatpush1.msra.mxu0 0.0
    %4557 = vmatprep.subr.mxu0 0.0
    %4558 = vmatpush1.msra.mxu0 0.0
    %4559 = vmatprep.subr.mxu0 0.0
    %4560 = vmatpush1.msra.mxu0 0.0
    %4561 = vmatprep.subr.mxu0 0.0
    %4562 = vmatpush1.msra.mxu0 0.0
    %4563 = vmatprep.subr.mxu0 0.0
    %4564 = vmatpush1.msra.mxu0 0.0
    %4565 = vmatprep.subr.mxu0 0.0
    %4566 = vmatpush1.msra.mxu0 0.0
    %4567 = vmatprep.subr.mxu0 0.0
    %4568 = vmatpush1.msra.mxu0 0.0
    %4569 = vmatprep.subr.mxu0 0.0
    %4570 = vmatpush1.msra.mxu0 0.0
    %4571 = vmatprep.subr.mxu0 0.0
    %4572 = vmatpush1.msra.mxu0 0.0
    %4573 = vmatprep.mubr.f32.mxu0 0.0
    %v4574 = vand.u32 %v4503, 4294901760
    %v4575 = vsub.f32 %v4503, %v4574
    %v4576 = vand.u32 %v4575, 4294901760
    %v4577 = vsub.f32 %v4575, %v4576
    %v4578 = vand.u32 %v4577, 4294901760
    %4579 = vmatmul.mubr.f32.gmra.mrb[0].mxu0 %v4578
    %v4580 = vpop.f32.mrb[0].mxu0
    %v4581 = vadd.f32 0.0, %v4580
    %v4582 = vpop.f32.mrb[0].mxu0
    %4583 = vdwg.mxu0
    %4584 = vmatprep.subr.mxu0 0.0
    %v4585 = vand.u32 %v29, 4294901760
    %v4586 = vsub.f32 %v29, %v4585
    %v4587 = vand.u32 %v4586, 4294901760
    %v4588 = vsub.f32 %v4586, %v4587
    %v4589 = vand.u32 %v4588, 4294901760
    %4590 = vmatpush1.msra.mxu0 %v4589
    %4591 = vmatprep.subr.mxu0 0.0
    %v4592 = vand.u32 %v30, 4294901760
    %v4593 = vsub.f32 %v30, %v4592
    %v4594 = vand.u32 %v4593, 4294901760
    %v4595 = vsub.f32 %v4593, %v4594
    %v4596 = vand.u32 %v4595, 4294901760
    %4597 = vmatpush1.msra.mxu0 %v4596
    %4598 = vmatprep.subr.mxu0 0.0
    %v4599 = vand.u32 %v31, 4294901760
    %v4600 = vsub.f32 %v31, %v4599
    %v4601 = vand.u32 %v4600, 4294901760
    %v4602 = vsub.f32 %v4600, %v4601
    %v4603 = vand.u32 %v4602, 4294901760
    %4604 = vmatpush1.msra.mxu0 %v4603
    %4605 = vmatprep.subr.mxu0 0.0
    %v4606 = vand.u32 %v32, 4294901760
    %v4607 = vsub.f32 %v32, %v4606
    %v4608 = vand.u32 %v4607, 4294901760
    %v4609 = vsub.f32 %v4607, %v4608
    %v4610 = vand.u32 %v4609, 4294901760
    %4611 = vmatpush1.msra.mxu0 %v4610
    %4612 = vmatprep.subr.mxu0 0.0
    %4613 = vmatpush1.msra.mxu0 0.0
    %4614 = vmatprep.subr.mxu0 0.0
    %4615 = vmatpush1.msra.mxu0 0.0
    %4616 = vmatprep.subr.mxu0 0.0
    %4617 = vmatpush1.msra.mxu0 0.0
    %4618 = vmatprep.subr.mxu0 0.0
    %4619 = vmatpush1.msra.mxu0 0.0
    %4620 = vmatprep.subr.mxu0 0.0
    %4621 = vmatpush1.msra.mxu0 0.0
    %4622 = vmatprep.subr.mxu0 0.0
    %4623 = vmatpush1.msra.mxu0 0.0
    %4624 = vmatprep.subr.mxu0 0.0
    %4625 = vmatpush1.msra.mxu0 0.0
    %4626 = vmatprep.subr.mxu0 0.0
    %4627 = vmatpush1.msra.mxu0 0.0
    %4628 = vmatprep.subr.mxu0 0.0
    %4629 = vmatpush1.msra.mxu0 0.0
    %4630 = vmatprep.subr.mxu0 0.0
    %4631 = vmatpush1.msra.mxu0 0.0
    %4632 = vmatprep.subr.mxu0 0.0
    %4633 = vmatpush1.msra.mxu0 0.0
    %4634 = vmatprep.subr.mxu0 0.0
    %4635 = vmatpush1.msra.mxu0 0.0
    %4636 = vmatprep.subr.mxu0 0.0
    %4637 = vmatpush1.msra.mxu0 0.0
    %4638 = vmatprep.subr.mxu0 0.0
    %4639 = vmatpush1.msra.mxu0 0.0
    %4640 = vmatprep.subr.mxu0 0.0
    %4641 = vmatpush1.msra.mxu0 0.0
    %4642 = vmatprep.subr.mxu0 0.0
    %4643 = vmatpush1.msra.mxu0 0.0
    %4644 = vmatprep.subr.mxu0 0.0
    %4645 = vmatpush1.msra.mxu0 0.0
    %4646 = vmatprep.subr.mxu0 0.0
    %4647 = vmatpush1.msra.mxu0 0.0
    %4648 = vmatprep.subr.mxu0 0.0
    %4649 = vmatpush1.msra.mxu0 0.0
    %4650 = vmatprep.subr.mxu0 0.0
    %4651 = vmatpush1.msra.mxu0 0.0
    %4652 = vmatprep.subr.mxu0 0.0
    %4653 = vmatpush1.msra.mxu0 0.0
    %4654 = vmatprep.subr.mxu0 0.0
    %4655 = vmatpush1.msra.mxu0 0.0
    %4656 = vmatprep.subr.mxu0 0.0
    %4657 = vmatpush1.msra.mxu0 0.0
    %4658 = vmatprep.subr.mxu0 0.0
    %4659 = vmatpush1.msra.mxu0 0.0
    %4660 = vmatprep.subr.mxu0 0.0
    %4661 = vmatpush1.msra.mxu0 0.0
    %4662 = vmatprep.subr.mxu0 0.0
    %4663 = vmatpush1.msra.mxu0 0.0
    %4664 = vmatprep.subr.mxu0 0.0
    %4665 = vmatpush1.msra.mxu0 0.0
    %4666 = vmatprep.subr.mxu0 0.0
    %4667 = vmatpush1.msra.mxu0 0.0
    %4668 = vmatprep.mubr.f32.mxu0 0.0
    %v4669 = vand.u32 %v4503, 4294901760
    %4670 = vmatmul.mubr.f32.gmra.mrb[0].mxu0 %v4669
    %v4671 = vpop.f32.mrb[0].mxu0
    %v4672 = vadd.f32 %v4581, %v4671
    %v4673 = vpop.f32.mrb[0].mxu0
    %4674 = vdwg.mxu0
    %4675 = vmatprep.subr.mxu0 0.0
    %v4676 = vand.u32 %v29, 4294901760
    %v4677 = vsub.f32 %v29, %v4676
    %4678 = vmatpush1.msra.mxu0 %v4677
    %4679 = vmatprep.subr.mxu0 0.0
    %v4680 = vand.u32 %v30, 4294901760
    %v4681 = vsub.f32 %v30, %v4680
    %4682 = vmatpush1.msra.mxu0 %v4681
    %4683 = vmatprep.subr.mxu0 0.0
    %v4684 = vand.u32 %v31, 4294901760
    %v4685 = vsub.f32 %v31, %v4684
    %4686 = vmatpush1.msra.mxu0 %v4685
    %4687 = vmatprep.subr.mxu0 0.0
    %v4688 = vand.u32 %v32, 4294901760
    %v4689 = vsub.f32 %v32, %v4688
    %4690 = vmatpush1.msra.mxu0 %v4689
    %4691 = vmatprep.subr.mxu0 0.0
    %4692 = vmatpush1.msra.mxu0 0.0
    %4693 = vmatprep.subr.mxu0 0.0
    %4694 = vmatpush1.msra.mxu0 0.0
    %4695 = vmatprep.subr.mxu0 0.0
    %4696 = vmatpush1.msra.mxu0 0.0
    %4697 = vmatprep.subr.mxu0 0.0
    %4698 = vmatpush1.msra.mxu0 0.0
    %4699 = vmatprep.subr.mxu0 0.0
    %4700 = vmatpush1.msra.mxu0 0.0
    %4701 = vmatprep.subr.mxu0 0.0
    %4702 = vmatpush1.msra.mxu0 0.0
    %4703 = vmatprep.subr.mxu0 0.0
    %4704 = vmatpush1.msra.mxu0 0.0
    %4705 = vmatprep.subr.mxu0 0.0
    %4706 = vmatpush1.msra.mxu0 0.0
    %4707 = vmatprep.subr.mxu0 0.0
    %4708 = vmatpush1.msra.mxu0 0.0
    %4709 = vmatprep.subr.mxu0 0.0
    %4710 = vmatpush1.msra.mxu0 0.0
    %4711 = vmatprep.subr.mxu0 0.0
    %4712 = vmatpush1.msra.mxu0 0.0
    %4713 = vmatprep.subr.mxu0 0.0
    %4714 = vmatpush1.msra.mxu0 0.0
    %4715 = vmatprep.subr.mxu0 0.0
    %4716 = vmatpush1.msra.mxu0 0.0
    %4717 = vmatprep.subr.mxu0 0.0
    %4718 = vmatpush1.msra.mxu0 0.0
    %4719 = vmatprep.subr.mxu0 0.0
    %4720 = vmatpush1.msra.mxu0 0.0
    %4721 = vmatprep.subr.mxu0 0.0
    %4722 = vmatpush1.msra.mxu0 0.0
    %4723 = vmatprep.subr.mxu0 0.0
    %4724 = vmatpush1.msra.mxu0 0.0
    %4725 = vmatprep.subr.mxu0 0.0
    %4726 = vmatpush1.msra.mxu0 0.0
    %4727 = vmatprep.subr.mxu0 0.0
    %4728 = vmatpush1.msra.mxu0 0.0
    %4729 = vmatprep.subr.mxu0 0.0
    %4730 = vmatpush1.msra.mxu0 0.0
    %4731 = vmatprep.subr.mxu0 0.0
    %4732 = vmatpush1.msra.mxu0 0.0
    %4733 = vmatprep.subr.mxu0 0.0
    %4734 = vmatpush1.msra.mxu0 0.0
    %4735 = vmatprep.subr.mxu0 0.0
    %4736 = vmatpush1.msra.mxu0 0.0
    %4737 = vmatprep.subr.mxu0 0.0
    %4738 = vmatpush1.msra.mxu0 0.0
    %4739 = vmatprep.subr.mxu0 0.0
    %4740 = vmatpush1.msra.mxu0 0.0
    %4741 = vmatprep.subr.mxu0 0.0
    %4742 = vmatpush1.msra.mxu0 0.0
    %4743 = vmatprep.subr.mxu0 0.0
    %4744 = vmatpush1.msra.mxu0 0.0
    %4745 = vmatprep.subr.mxu0 0.0
    %4746 = vmatpush1.msra.mxu0 0.0
    %4747 = vmatprep.mubr.f32.mxu0 0.0
    %v4748 = vand.u32 %v4503, 4294901760
    %v4749 = vsub.f32 %v4503, %v4748
    %4750 = vmatmul.mubr.f32.gmra.mrb[0].mxu0 %v4749
    %v4751 = vpop.f32.mrb[0].mxu0
    %v4752 = vadd.f32 %v4672, %v4751
    %v4753 = vpop.f32.mrb[0].mxu0
    %4754 = vdwg.mxu0
    %4755 = vmatprep.subr.mxu0 0.0
    %v4756 = vand.u32 %v29, 4294901760
    %4757 = vmatpush1.msra.mxu0 %v4756
    %4758 = vmatprep.subr.mxu0 0.0
    %v4759 = vand.u32 %v30, 4294901760
    %4760 = vmatpush1.msra.mxu0 %v4759
    %4761 = vmatprep.subr.mxu0 0.0
    %v4762 = vand.u32 %v31, 4294901760
    %4763 = vmatpush1.msra.mxu0 %v4762
    %4764 = vmatprep.subr.mxu0 0.0
    %v4765 = vand.u32 %v32, 4294901760
    %4766 = vmatpush1.msra.mxu0 %v4765
    %4767 = vmatprep.subr.mxu0 0.0
    %4768 = vmatpush1.msra.mxu0 0.0
    %4769 = vmatprep.subr.mxu0 0.0
    %4770 = vmatpush1.msra.mxu0 0.0
    %4771 = vmatprep.subr.mxu0 0.0
    %4772 = vmatpush1.msra.mxu0 0.0
    %4773 = vmatprep.subr.mxu0 0.0
    %4774 = vmatpush1.msra.mxu0 0.0
    %4775 = vmatprep.subr.mxu0 0.0
    %4776 = vmatpush1.msra.mxu0 0.0
    %4777 = vmatprep.subr.mxu0 0.0
    %4778 = vmatpush1.msra.mxu0 0.0
    %4779 = vmatprep.subr.mxu0 0.0
    %4780 = vmatpush1.msra.mxu0 0.0
    %4781 = vmatprep.subr.mxu0 0.0
    %4782 = vmatpush1.msra.mxu0 0.0
    %4783 = vmatprep.subr.mxu0 0.0
    %4784 = vmatpush1.msra.mxu0 0.0
    %4785 = vmatprep.subr.mxu0 0.0
    %4786 = vmatpush1.msra.mxu0 0.0
    %4787 = vmatprep.subr.mxu0 0.0
    %4788 = vmatpush1.msra.mxu0 0.0
    %4789 = vmatprep.subr.mxu0 0.0
    %4790 = vmatpush1.msra.mxu0 0.0
    %4791 = vmatprep.subr.mxu0 0.0
    %4792 = vmatpush1.msra.mxu0 0.0
    %4793 = vmatprep.subr.mxu0 0.0
    %4794 = vmatpush1.msra.mxu0 0.0
    %4795 = vmatprep.subr.mxu0 0.0
    %4796 = vmatpush1.msra.mxu0 0.0
    %4797 = vmatprep.subr.mxu0 0.0
    %4798 = vmatpush1.msra.mxu0 0.0
    %4799 = vmatprep.subr.mxu0 0.0
    %4800 = vmatpush1.msra.mxu0 0.0
    %4801 = vmatprep.subr.mxu0 0.0
    %4802 = vmatpush1.msra.mxu0 0.0
    %4803 = vmatprep.subr.mxu0 0.0
    %4804 = vmatpush1.msra.mxu0 0.0
    %4805 = vmatprep.subr.mxu0 0.0
    %4806 = vmatpush1.msra.mxu0 0.0
    %4807 = vmatprep.subr.mxu0 0.0
    %4808 = vmatpush1.msra.mxu0 0.0
    %4809 = vmatprep.subr.mxu0 0.0
    %4810 = vmatpush1.msra.mxu0 0.0
    %4811 = vmatprep.subr.mxu0 0.0
    %4812 = vmatpush1.msra.mxu0 0.0
    %4813 = vmatprep.subr.mxu0 0.0
    %4814 = vmatpush1.msra.mxu0 0.0
    %4815 = vmatprep.subr.mxu0 0.0
    %4816 = vmatpush1.msra.mxu0 0.0
    %4817 = vmatprep.subr.mxu0 0.0
    %4818 = vmatpush1.msra.mxu0 0.0
    %4819 = vmatprep.subr.mxu0 0.0
    %4820 = vmatpush1.msra.mxu0 0.0
    %4821 = vmatprep.subr.mxu0 0.0
    %4822 = vmatpush1.msra.mxu0 0.0
    %4823 = vmatprep.mubr.f32.mxu0 0.0
    %v4824 = vand.u32 %v4503, 4294901760
    %v4825 = vsub.f32 %v4503, %v4824
    %v4826 = vand.u32 %v4825, 4294901760
    %4827 = vmatmul.mubr.f32.gmra.mrb[0].mxu0 %v4826
    %v4828 = vpop.f32.mrb[0].mxu0
    %v4829 = vadd.f32 %v4752, %v4828
    %v4830 = vpop.f32.mrb[0].mxu0
    %4831 = vdwg.mxu0
    %4832 = vmatprep.subr.mxu0 0.0
    %v4833 = vand.u32 %v29, 4294901760
    %v4834 = vsub.f32 %v29, %v4833
    %v4835 = vand.u32 %v4834, 4294901760
    %4836 = vmatpush1.msra.mxu0 %v4835
    %4837 = vmatprep.subr.mxu0 0.0
    %v4838 = vand.u32 %v30, 4294901760
    %v4839 = vsub.f32 %v30, %v4838
    %v4840 = vand.u32 %v4839, 4294901760
    %4841 = vmatpush1.msra.mxu0 %v4840
    %4842 = vmatprep.subr.mxu0 0.0
    %v4843 = vand.u32 %v31, 4294901760
    %v4844 = vsub.f32 %v31, %v4843
    %v4845 = vand.u32 %v4844, 4294901760
    %4846 = vmatpush1.msra.mxu0 %v4845
    %4847 = vmatprep.subr.mxu0 0.0
    %v4848 = vand.u32 %v32, 4294901760
    %v4849 = vsub.f32 %v32, %v4848
    %v4850 = vand.u32 %v4849, 4294901760
    %4851 = vmatpush1.msra.mxu0 %v4850
    %4852 = vmatprep.subr.mxu0 0.0
    %4853 = vmatpush1.msra.mxu0 0.0
    %4854 = vmatprep.subr.mxu0 0.0
    %4855 = vmatpush1.msra.mxu0 0.0
    %4856 = vmatprep.subr.mxu0 0.0
    %4857 = vmatpush1.msra.mxu0 0.0
    %4858 = vmatprep.subr.mxu0 0.0
    %4859 = vmatpush1.msra.mxu0 0.0
    %4860 = vmatprep.subr.mxu0 0.0
    %4861 = vmatpush1.msra.mxu0 0.0
    %4862 = vmatprep.subr.mxu0 0.0
    %4863 = vmatpush1.msra.mxu0 0.0
    %4864 = vmatprep.subr.mxu0 0.0
    %4865 = vmatpush1.msra.mxu0 0.0
    %4866 = vmatprep.subr.mxu0 0.0
    %4867 = vmatpush1.msra.mxu0 0.0
    %4868 = vmatprep.subr.mxu0 0.0
    %4869 = vmatpush1.msra.mxu0 0.0
    %4870 = vmatprep.subr.mxu0 0.0
    %4871 = vmatpush1.msra.mxu0 0.0
    %4872 = vmatprep.subr.mxu0 0.0
    %4873 = vmatpush1.msra.mxu0 0.0
    %4874 = vmatprep.subr.mxu0 0.0
    %4875 = vmatpush1.msra.mxu0 0.0
    %4876 = vmatprep.subr.mxu0 0.0
    %4877 = vmatpush1.msra.mxu0 0.0
    %4878 = vmatprep.subr.mxu0 0.0
    %4879 = vmatpush1.msra.mxu0 0.0
    %4880 = vmatprep.subr.mxu0 0.0
    %4881 = vmatpush1.msra.mxu0 0.0
    %4882 = vmatprep.subr.mxu0 0.0
    %4883 = vmatpush1.msra.mxu0 0.0
    %4884 = vmatprep.subr.mxu0 0.0
    %4885 = vmatpush1.msra.mxu0 0.0
    %4886 = vmatprep.subr.mxu0 0.0
    %4887 = vmatpush1.msra.mxu0 0.0
    %4888 = vmatprep.subr.mxu0 0.0
    %4889 = vmatpush1.msra.mxu0 0.0
    %4890 = vmatprep.subr.mxu0 0.0
    %4891 = vmatpush1.msra.mxu0 0.0
    %4892 = vmatprep.subr.mxu0 0.0
    %4893 = vmatpush1.msra.mxu0 0.0
    %4894 = vmatprep.subr.mxu0 0.0
    %4895 = vmatpush1.msra.mxu0 0.0
    %4896 = vmatprep.subr.mxu0 0.0
    %4897 = vmatpush1.msra.mxu0 0.0
    %4898 = vmatprep.subr.mxu0 0.0
    %4899 = vmatpush1.msra.mxu0 0.0
    %4900 = vmatprep.subr.mxu0 0.0
    %4901 = vmatpush1.msra.mxu0 0.0
    %4902 = vmatprep.subr.mxu0 0.0
    %4903 = vmatpush1.msra.mxu0 0.0
    %4904 = vmatprep.subr.mxu0 0.0
    %4905 = vmatpush1.msra.mxu0 0.0
    %4906 = vmatprep.subr.mxu0 0.0
    %4907 = vmatpush1.msra.mxu0 0.0
    %4908 = vmatprep.mubr.f32.mxu0 0.0
    %v4909 = vand.u32 %v4503, 4294901760
    %4910 = vmatmul.mubr.f32.gmra.mrb[0].mxu0 %v4909
    %v4911 = vpop.f32.mrb[0].mxu0
    %v4912 = vadd.f32 %v4829, %v4911
    %v4913 = vpop.f32.mrb[0].mxu0
    %4914 = vdwg.mxu0
    %4915 = vmatprep.subr.mxu0 0.0
    %v4916 = vand.u32 %v29, 4294901760
    %4917 = vmatpush1.msra.mxu0 %v4916
    %4918 = vmatprep.subr.mxu0 0.0
    %v4919 = vand.u32 %v30, 4294901760
    %4920 = vmatpush1.msra.mxu0 %v4919
    %4921 = vmatprep.subr.mxu0 0.0
    %v4922 = vand.u32 %v31, 4294901760
    %4923 = vmatpush1.msra.mxu0 %v4922
    %4924 = vmatprep.subr.mxu0 0.0
    %v4925 = vand.u32 %v32, 4294901760
    %4926 = vmatpush1.msra.mxu0 %v4925
    %4927 = vmatprep.subr.mxu0 0.0
    %4928 = vmatpush1.msra.mxu0 0.0
    %4929 = vmatprep.subr.mxu0 0.0
    %4930 = vmatpush1.msra.mxu0 0.0
    %4931 = vmatprep.subr.mxu0 0.0
    %4932 = vmatpush1.msra.mxu0 0.0
    %4933 = vmatprep.subr.mxu0 0.0
    %4934 = vmatpush1.msra.mxu0 0.0
    %4935 = vmatprep.subr.mxu0 0.0
    %4936 = vmatpush1.msra.mxu0 0.0
    %4937 = vmatprep.subr.mxu0 0.0
    %4938 = vmatpush1.msra.mxu0 0.0
    %4939 = vmatprep.subr.mxu0 0.0
    %4940 = vmatpush1.msra.mxu0 0.0
    %4941 = vmatprep.subr.mxu0 0.0
    %4942 = vmatpush1.msra.mxu0 0.0
    %4943 = vmatprep.subr.mxu0 0.0
    %4944 = vmatpush1.msra.mxu0 0.0
    %4945 = vmatprep.subr.mxu0 0.0
    %4946 = vmatpush1.msra.mxu0 0.0
    %4947 = vmatprep.subr.mxu0 0.0
    %4948 = vmatpush1.msra.mxu0 0.0
    %4949 = vmatprep.subr.mxu0 0.0
    %4950 = vmatpush1.msra.mxu0 0.0
    %4951 = vmatprep.subr.mxu0 0.0
    %4952 = vmatpush1.msra.mxu0 0.0
    %4953 = vmatprep.subr.mxu0 0.0
    %4954 = vmatpush1.msra.mxu0 0.0
    %4955 = vmatprep.subr.mxu0 0.0
    %4956 = vmatpush1.msra.mxu0 0.0
    %4957 = vmatprep.subr.mxu0 0.0
    %4958 = vmatpush1.msra.mxu0 0.0
    %4959 = vmatprep.subr.mxu0 0.0
    %4960 = vmatpush1.msra.mxu0 0.0
    %4961 = vmatprep.subr.mxu0 0.0
    %4962 = vmatpush1.msra.mxu0 0.0
    %4963 = vmatprep.subr.mxu0 0.0
    %4964 = vmatpush1.msra.mxu0 0.0
    %4965 = vmatprep.subr.mxu0 0.0
    %4966 = vmatpush1.msra.mxu0 0.0
    %4967 = vmatprep.subr.mxu0 0.0
    %4968 = vmatpush1.msra.mxu0 0.0
    %4969 = vmatprep.subr.mxu0 0.0
    %4970 = vmatpush1.msra.mxu0 0.0
    %4971 = vmatprep.subr.mxu0 0.0
    %4972 = vmatpush1.msra.mxu0 0.0
    %4973 = vmatprep.subr.mxu0 0.0
    %4974 = vmatpush1.msra.mxu0 0.0
    %4975 = vmatprep.subr.mxu0 0.0
    %4976 = vmatpush1.msra.mxu0 0.0
    %4977 = vmatprep.subr.mxu0 0.0
    %4978 = vmatpush1.msra.mxu0 0.0
    %4979 = vmatprep.subr.mxu0 0.0
    %4980 = vmatpush1.msra.mxu0 0.0
    %4981 = vmatprep.subr.mxu0 0.0
    %4982 = vmatpush1.msra.mxu0 0.0
    %4983 = vmatprep.mubr.f32.mxu0 0.0
    %v4984 = vand.u32 %v4503, 4294901760
    %4985 = vmatmul.mubr.f32.gmra.mrb[0].mxu0 %v4984
    %v4986 = vpop.f32.mrb[0].mxu0
    %v4987 = vadd.f32 %v4912, %v4986
    %v4988 = vpop.f32.mrb[0].mxu0
    %4989 = vdwg.mxu0
    %v4990 = vadd.f32 %v4502, %v4987
    %v4991 = vxor.u32 %v4990, 2147483648
    %v4992 = vmul.f32 %v4991, 1.442695
    %v4993 = vpow.pop %v4992
    %v4994 = vadd.f32 %v4993, 1.0
    %v4995 = vrcp.pop %v4994
    %v4996 = vmul.f32 1.0, %v4995
    %v4997 = vadd.f32 %v4987, %v560
    %4999 = vrot.lane.b32.xlu0 %v4997, 64
    %v5000 = vpop.permute.xlu0 %4999
    %v5002 = vmul.f32 %v4996, %v5000
    %5004 = vrot.lane.b32.xlu0 %v5002, 64
    %v5005 = vpop.permute.xlu0 %5004
    %v5007 = vadd.f32 %v4502, %v5005
    %v5008 = vtanh.pop %v5007
    %v5009 = vsub.f32 1.0, %v4996
    %5011 = vrot.lane.b32.xlu0 %v5008, 96
    %v5012 = vpop.permute.xlu0 %5011
    %v5014 = vmul.f32 %v5009, %v5012
    %v5015 = vmul.f32 %v4996, %v3921
    %v5016 = vadd.f32 %v5014, %v5015
    %5018 = vset.pattern.permute.xlu0 0
    %5019 = vperm.xlu0 %5018, %v4499
    %v5020 = vpop.permute.xlu0 %5019
    %v5022 = vmul.f32 %v5020, %v5016
    %5024 = vset.pattern.permute.xlu0 0
    %5025 = vperm.xlu0 %5024, %v4500
    %v5026 = vpop.permute.xlu0 %5025
    %v5028 = vmul.f32 %v5026, %v3921
    %v5029 = vadd.f32 %v5022, %v5028
    %5031 = vrot.lane.b32.xlu0 %v5029, 96
    %v5032 = vpop.permute.xlu0 %5031
    %v5034 = vsel %vm63, %v5032, %v4496
    %v5036 = vsel %vm600, %v5034, 0
    %5038 = vmatprep.subr.mxu0 0.0
    %v5039 = vand.u32 %v39, 4294901760
    %5040 = vmatpush1.msra.mxu0 %v5039
    %5041 = vmatprep.subr.mxu0 0.0
    %v5042 = vand.u32 %v40, 4294901760
    %5043 = vmatpush1.msra.mxu0 %v5042
    %5044 = vmatprep.subr.mxu0 0.0
    %v5045 = vand.u32 %v41, 4294901760
    %5046 = vmatpush1.msra.mxu0 %v5045
    %5047 = vmatprep.subr.mxu0 0.0
    %v5048 = vand.u32 %v42, 4294901760
    %5049 = vmatpush1.msra.mxu0 %v5048
    %5050 = vmatprep.subr.mxu0 0.0
    %v5051 = vand.u32 %v43, 4294901760
    %5052 = vmatpush1.msra.mxu0 %v5051
    %5053 = vmatprep.subr.mxu0 0.0
    %v5054 = vand.u32 %v44, 4294901760
    %5055 = vmatpush1.msra.mxu0 %v5054
    %5056 = vmatprep.subr.mxu0 0.0
    %v5057 = vand.u32 %v45, 4294901760
    %5058 = vmatpush1.msra.mxu0 %v5057
    %5059 = vmatprep.subr.mxu0 0.0
    %v5060 = vand.u32 %v46, 4294901760
    %5061 = vmatpush1.msra.mxu0 %v5060
    %5062 = vmatprep.subr.mxu0 0.0
    %5063 = vmatpush1.msra.mxu0 0.0
    %5064 = vmatprep.subr.mxu0 0.0
    %5065 = vmatpush1.msra.mxu0 0.0
    %5066 = vmatprep.subr.mxu0 0.0
    %5067 = vmatpush1.msra.mxu0 0.0
    %5068 = vmatprep.subr.mxu0 0.0
    %5069 = vmatpush1.msra.mxu0 0.0
    %5070 = vmatprep.subr.mxu0 0.0
    %5071 = vmatpush1.msra.mxu0 0.0
    %5072 = vmatprep.subr.mxu0 0.0
    %5073 = vmatpush1.msra.mxu0 0.0
    %5074 = vmatprep.subr.mxu0 0.0
    %5075 = vmatpush1.msra.mxu0 0.0
    %5076 = vmatprep.subr.mxu0 0.0
    %5077 = vmatpush1.msra.mxu0 0.0
    %5078 = vmatprep.subr.mxu0 0.0
    %5079 = vmatpush1.msra.mxu0 0.0
    %5080 = vmatprep.subr.mxu0 0.0
    %5081 = vmatpush1.msra.mxu0 0.0
    %5082 = vmatprep.subr.mxu0 0.0
    %5083 = vmatpush1.msra.mxu0 0.0
    %5084 = vmatprep.subr.mxu0 0.0
    %5085 = vmatpush1.msra.mxu0 0.0
    %5086 = vmatprep.subr.mxu0 0.0
    %5087 = vmatpush1.msra.mxu0 0.0
    %5088 = vmatprep.subr.mxu0 0.0
    %5089 = vmatpush1.msra.mxu0 0.0
    %5090 = vmatprep.subr.mxu0 0.0
    %5091 = vmatpush1.msra.mxu0 0.0
    %5092 = vmatprep.subr.mxu0 0.0
    %5093 = vmatpush1.msra.mxu0 0.0
    %5094 = vmatprep.subr.mxu0 0.0
    %5095 = vmatpush1.msra.mxu0 0.0
    %5096 = vmatprep.subr.mxu0 0.0
    %5097 = vmatpush1.msra.mxu0 0.0
    %5098 = vmatprep.subr.mxu0 0.0
    %5099 = vmatpush1.msra.mxu0 0.0
    %5100 = vmatprep.subr.mxu0 0.0
    %5101 = vmatpush1.msra.mxu0 0.0
    %5102 = vmatprep.subr.mxu0 0.0
    %5103 = vmatpush1.msra.mxu0 0.0
    %5104 = vmatprep.subr.mxu0 0.0
    %5105 = vmatpush1.msra.mxu0 0.0
    %5106 = vmatprep.subr.mxu0 0.0
    %5107 = vmatpush1.msra.mxu0 0.0
    %5108 = vmatprep.subr.mxu0 0.0
    %5109 = vmatpush1.msra.mxu0 0.0
    %5110 = vmatprep.mubr.f32.mxu0 0.0
    %v5111 = vand.u32 %v5036, 4294901760
    %v5112 = vsub.f32 %v5036, %v5111
    %v5113 = vand.u32 %v5112, 4294901760
    %v5114 = vsub.f32 %v5112, %v5113
    %v5115 = vand.u32 %v5114, 4294901760
    %5116 = vmatmul.mubr.f32.gmra.mrb[0].mxu0 %v5115
    %v5117 = vpop.f32.mrb[0].mxu0
    %v5118 = vadd.f32 0.0, %v5117
    %v5119 = vpop.f32.mrb[0].mxu0
    %5120 = vdwg.mxu0
    %5121 = vmatprep.subr.mxu0 0.0
    %v5122 = vand.u32 %v39, 4294901760
    %v5123 = vsub.f32 %v39, %v5122
    %v5124 = vand.u32 %v5123, 4294901760
    %v5125 = vsub.f32 %v5123, %v5124
    %v5126 = vand.u32 %v5125, 4294901760
    %5127 = vmatpush1.msra.mxu0 %v5126
    %5128 = vmatprep.subr.mxu0 0.0
    %v5129 = vand.u32 %v40, 4294901760
    %v5130 = vsub.f32 %v40, %v5129
    %v5131 = vand.u32 %v5130, 4294901760
    %v5132 = vsub.f32 %v5130, %v5131
    %v5133 = vand.u32 %v5132, 4294901760
    %5134 = vmatpush1.msra.mxu0 %v5133
    %5135 = vmatprep.subr.mxu0 0.0
    %v5136 = vand.u32 %v41, 4294901760
    %v5137 = vsub.f32 %v41, %v5136
    %v5138 = vand.u32 %v5137, 4294901760
    %v5139 = vsub.f32 %v5137, %v5138
    %v5140 = vand.u32 %v5139, 4294901760
    %5141 = vmatpush1.msra.mxu0 %v5140
    %5142 = vmatprep.subr.mxu0 0.0
    %v5143 = vand.u32 %v42, 4294901760
    %v5144 = vsub.f32 %v42, %v5143
    %v5145 = vand.u32 %v5144, 4294901760
    %v5146 = vsub.f32 %v5144, %v5145
    %v5147 = vand.u32 %v5146, 4294901760
    %5148 = vmatpush1.msra.mxu0 %v5147
    %5149 = vmatprep.subr.mxu0 0.0
    %v5150 = vand.u32 %v43, 4294901760
    %v5151 = vsub.f32 %v43, %v5150
    %v5152 = vand.u32 %v5151, 4294901760
    %v5153 = vsub.f32 %v5151, %v5152
    %v5154 = vand.u32 %v5153, 4294901760
    %5155 = vmatpush1.msra.mxu0 %v5154
    %5156 = vmatprep.subr.mxu0 0.0
    %v5157 = vand.u32 %v44, 4294901760
    %v5158 = vsub.f32 %v44, %v5157
    %v5159 = vand.u32 %v5158, 4294901760
    %v5160 = vsub.f32 %v5158, %v5159
    %v5161 = vand.u32 %v5160, 4294901760
    %5162 = vmatpush1.msra.mxu0 %v5161
    %5163 = vmatprep.subr.mxu0 0.0
    %v5164 = vand.u32 %v45, 4294901760
    %v5165 = vsub.f32 %v45, %v5164
    %v5166 = vand.u32 %v5165, 4294901760
    %v5167 = vsub.f32 %v5165, %v5166
    %v5168 = vand.u32 %v5167, 4294901760
    %5169 = vmatpush1.msra.mxu0 %v5168
    %5170 = vmatprep.subr.mxu0 0.0
    %v5171 = vand.u32 %v46, 4294901760
    %v5172 = vsub.f32 %v46, %v5171
    %v5173 = vand.u32 %v5172, 4294901760
    %v5174 = vsub.f32 %v5172, %v5173
    %v5175 = vand.u32 %v5174, 4294901760
    %5176 = vmatpush1.msra.mxu0 %v5175
    %5177 = vmatprep.subr.mxu0 0.0
    %5178 = vmatpush1.msra.mxu0 0.0
    %5179 = vmatprep.subr.mxu0 0.0
    %5180 = vmatpush1.msra.mxu0 0.0
    %5181 = vmatprep.subr.mxu0 0.0
    %5182 = vmatpush1.msra.mxu0 0.0
    %5183 = vmatprep.subr.mxu0 0.0
    %5184 = vmatpush1.msra.mxu0 0.0
    %5185 = vmatprep.subr.mxu0 0.0
    %5186 = vmatpush1.msra.mxu0 0.0
    %5187 = vmatprep.subr.mxu0 0.0
    %5188 = vmatpush1.msra.mxu0 0.0
    %5189 = vmatprep.subr.mxu0 0.0
    %5190 = vmatpush1.msra.mxu0 0.0
    %5191 = vmatprep.subr.mxu0 0.0
    %5192 = vmatpush1.msra.mxu0 0.0
    %5193 = vmatprep.subr.mxu0 0.0
    %5194 = vmatpush1.msra.mxu0 0.0
    %5195 = vmatprep.subr.mxu0 0.0
    %5196 = vmatpush1.msra.mxu0 0.0
    %5197 = vmatprep.subr.mxu0 0.0
    %5198 = vmatpush1.msra.mxu0 0.0
    %5199 = vmatprep.subr.mxu0 0.0
    %5200 = vmatpush1.msra.mxu0 0.0
    %5201 = vmatprep.subr.mxu0 0.0
    %5202 = vmatpush1.msra.mxu0 0.0
    %5203 = vmatprep.subr.mxu0 0.0
    %5204 = vmatpush1.msra.mxu0 0.0
    %5205 = vmatprep.subr.mxu0 0.0
    %5206 = vmatpush1.msra.mxu0 0.0
    %5207 = vmatprep.subr.mxu0 0.0
    %5208 = vmatpush1.msra.mxu0 0.0
    %5209 = vmatprep.subr.mxu0 0.0
    %5210 = vmatpush1.msra.mxu0 0.0
    %5211 = vmatprep.subr.mxu0 0.0
    %5212 = vmatpush1.msra.mxu0 0.0
    %5213 = vmatprep.subr.mxu0 0.0
    %5214 = vmatpush1.msra.mxu0 0.0
    %5215 = vmatprep.subr.mxu0 0.0
    %5216 = vmatpush1.msra.mxu0 0.0
    %5217 = vmatprep.subr.mxu0 0.0
    %5218 = vmatpush1.msra.mxu0 0.0
    %5219 = vmatprep.subr.mxu0 0.0
    %5220 = vmatpush1.msra.mxu0 0.0
    %5221 = vmatprep.subr.mxu0 0.0
    %5222 = vmatpush1.msra.mxu0 0.0
    %5223 = vmatprep.subr.mxu0 0.0
    %5224 = vmatpush1.msra.mxu0 0.0
    %5225 = vmatprep.mubr.f32.mxu0 0.0
    %v5226 = vand.u32 %v5036, 4294901760
    %5227 = vmatmul.mubr.f32.gmra.mrb[0].mxu0 %v5226
    %v5228 = vpop.f32.mrb[0].mxu0
    %v5229 = vadd.f32 %v5118, %v5228
    %v5230 = vpop.f32.mrb[0].mxu0
    %5231 = vdwg.mxu0
    %5232 = vmatprep.subr.mxu0 0.0
    %v5233 = vand.u32 %v39, 4294901760
    %v5234 = vsub.f32 %v39, %v5233
    %5235 = vmatpush1.msra.mxu0 %v5234
    %5236 = vmatprep.subr.mxu0 0.0
    %v5237 = vand.u32 %v40, 4294901760
    %v5238 = vsub.f32 %v40, %v5237
    %5239 = vmatpush1.msra.mxu0 %v5238
    %5240 = vmatprep.subr.mxu0 0.0
    %v5241 = vand.u32 %v41, 4294901760
    %v5242 = vsub.f32 %v41, %v5241
    %5243 = vmatpush1.msra.mxu0 %v5242
    %5244 = vmatprep.subr.mxu0 0.0
    %v5245 = vand.u32 %v42, 4294901760
    %v5246 = vsub.f32 %v42, %v5245
    %5247 = vmatpush1.msra.mxu0 %v5246
    %5248 = vmatprep.subr.mxu0 0.0
    %v5249 = vand.u32 %v43, 4294901760
    %v5250 = vsub.f32 %v43, %v5249
    %5251 = vmatpush1.msra.mxu0 %v5250
    %5252 = vmatprep.subr.mxu0 0.0
    %v5253 = vand.u32 %v44, 4294901760
    %v5254 = vsub.f32 %v44, %v5253
    %5255 = vmatpush1.msra.mxu0 %v5254
    %5256 = vmatprep.subr.mxu0 0.0
    %v5257 = vand.u32 %v45, 4294901760
    %v5258 = vsub.f32 %v45, %v5257
    %5259 = vmatpush1.msra.mxu0 %v5258
    %5260 = vmatprep.subr.mxu0 0.0
    %v5261 = vand.u32 %v46, 4294901760
    %v5262 = vsub.f32 %v46, %v5261
    %5263 = vmatpush1.msra.mxu0 %v5262
    %5264 = vmatprep.subr.mxu0 0.0
    %5265 = vmatpush1.msra.mxu0 0.0
    %5266 = vmatprep.subr.mxu0 0.0
    %5267 = vmatpush1.msra.mxu0 0.0
    %5268 = vmatprep.subr.mxu0 0.0
    %5269 = vmatpush1.msra.mxu0 0.0
    %5270 = vmatprep.subr.mxu0 0.0
    %5271 = vmatpush1.msra.mxu0 0.0
    %5272 = vmatprep.subr.mxu0 0.0
    %5273 = vmatpush1.msra.mxu0 0.0
    %5274 = vmatprep.subr.mxu0 0.0
    %5275 = vmatpush1.msra.mxu0 0.0
    %5276 = vmatprep.subr.mxu0 0.0
    %5277 = vmatpush1.msra.mxu0 0.0
    %5278 = vmatprep.subr.mxu0 0.0
    %5279 = vmatpush1.msra.mxu0 0.0
    %5280 = vmatprep.subr.mxu0 0.0
    %5281 = vmatpush1.msra.mxu0 0.0
    %5282 = vmatprep.subr.mxu0 0.0
    %5283 = vmatpush1.msra.mxu0 0.0
    %5284 = vmatprep.subr.mxu0 0.0
    %5285 = vmatpush1.msra.mxu0 0.0
    %5286 = vmatprep.subr.mxu0 0.0
    %5287 = vmatpush1.msra.mxu0 0.0
    %5288 = vmatprep.subr.mxu0 0.0
    %5289 = vmatpush1.msra.mxu0 0.0
    %5290 = vmatprep.subr.mxu0 0.0
    %5291 = vmatpush1.msra.mxu0 0.0
    %5292 = vmatprep.subr.mxu0 0.0
    %5293 = vmatpush1.msra.mxu0 0.0
    %5294 = vmatprep.subr.mxu0 0.0
    %5295 = vmatpush1.msra.mxu0 0.0
    %5296 = vmatprep.subr.mxu0 0.0
    %5297 = vmatpush1.msra.mxu0 0.0
    %5298 = vmatprep.subr.mxu0 0.0
    %5299 = vmatpush1.msra.mxu0 0.0
    %5300 = vmatprep.subr.mxu0 0.0
    %5301 = vmatpush1.msra.mxu0 0.0
    %5302 = vmatprep.subr.mxu0 0.0
    %5303 = vmatpush1.msra.mxu0 0.0
    %5304 = vmatprep.subr.mxu0 0.0
    %5305 = vmatpush1.msra.mxu0 0.0
    %5306 = vmatprep.subr.mxu0 0.0
    %5307 = vmatpush1.msra.mxu0 0.0
    %5308 = vmatprep.subr.mxu0 0.0
    %5309 = vmatpush1.msra.mxu0 0.0
    %5310 = vmatprep.subr.mxu0 0.0
    %5311 = vmatpush1.msra.mxu0 0.0
    %5312 = vmatprep.mubr.f32.mxu0 0.0
    %v5313 = vand.u32 %v5036, 4294901760
    %v5314 = vsub.f32 %v5036, %v5313
    %5315 = vmatmul.mubr.f32.gmra.mrb[0].mxu0 %v5314
    %v5316 = vpop.f32.mrb[0].mxu0
    %v5317 = vadd.f32 %v5229, %v5316
    %v5318 = vpop.f32.mrb[0].mxu0
    %5319 = vdwg.mxu0
    %5320 = vmatprep.subr.mxu0 0.0
    %v5321 = vand.u32 %v39, 4294901760
    %5322 = vmatpush1.msra.mxu0 %v5321
    %5323 = vmatprep.subr.mxu0 0.0
    %v5324 = vand.u32 %v40, 4294901760
    %5325 = vmatpush1.msra.mxu0 %v5324
    %5326 = vmatprep.subr.mxu0 0.0
    %v5327 = vand.u32 %v41, 4294901760
    %5328 = vmatpush1.msra.mxu0 %v5327
    %5329 = vmatprep.subr.mxu0 0.0
    %v5330 = vand.u32 %v42, 4294901760
    %5331 = vmatpush1.msra.mxu0 %v5330
    %5332 = vmatprep.subr.mxu0 0.0
    %v5333 = vand.u32 %v43, 4294901760
    %5334 = vmatpush1.msra.mxu0 %v5333
    %5335 = vmatprep.subr.mxu0 0.0
    %v5336 = vand.u32 %v44, 4294901760
    %5337 = vmatpush1.msra.mxu0 %v5336
    %5338 = vmatprep.subr.mxu0 0.0
    %v5339 = vand.u32 %v45, 4294901760
    %5340 = vmatpush1.msra.mxu0 %v5339
    %5341 = vmatprep.subr.mxu0 0.0
    %v5342 = vand.u32 %v46, 4294901760
    %5343 = vmatpush1.msra.mxu0 %v5342
    %5344 = vmatprep.subr.mxu0 0.0
    %5345 = vmatpush1.msra.mxu0 0.0
    %5346 = vmatprep.subr.mxu0 0.0
    %5347 = vmatpush1.msra.mxu0 0.0
    %5348 = vmatprep.subr.mxu0 0.0
    %5349 = vmatpush1.msra.mxu0 0.0
    %5350 = vmatprep.subr.mxu0 0.0
    %5351 = vmatpush1.msra.mxu0 0.0
    %5352 = vmatprep.subr.mxu0 0.0
    %5353 = vmatpush1.msra.mxu0 0.0
    %5354 = vmatprep.subr.mxu0 0.0
    %5355 = vmatpush1.msra.mxu0 0.0
    %5356 = vmatprep.subr.mxu0 0.0
    %5357 = vmatpush1.msra.mxu0 0.0
    %5358 = vmatprep.subr.mxu0 0.0
    %5359 = vmatpush1.msra.mxu0 0.0
    %5360 = vmatprep.subr.mxu0 0.0
    %5361 = vmatpush1.msra.mxu0 0.0
    %5362 = vmatprep.subr.mxu0 0.0
    %5363 = vmatpush1.msra.mxu0 0.0
    %5364 = vmatprep.subr.mxu0 0.0
    %5365 = vmatpush1.msra.mxu0 0.0
    %5366 = vmatprep.subr.mxu0 0.0
    %5367 = vmatpush1.msra.mxu0 0.0
    %5368 = vmatprep.subr.mxu0 0.0
    %5369 = vmatpush1.msra.mxu0 0.0
    %5370 = vmatprep.subr.mxu0 0.0
    %5371 = vmatpush1.msra.mxu0 0.0
    %5372 = vmatprep.subr.mxu0 0.0
    %5373 = vmatpush1.msra.mxu0 0.0
    %5374 = vmatprep.subr.mxu0 0.0
    %5375 = vmatpush1.msra.mxu0 0.0
    %5376 = vmatprep.subr.mxu0 0.0
    %5377 = vmatpush1.msra.mxu0 0.0
    %5378 = vmatprep.subr.mxu0 0.0
    %5379 = vmatpush1.msra.mxu0 0.0
    %5380 = vmatprep.subr.mxu0 0.0
    %5381 = vmatpush1.msra.mxu0 0.0
    %5382 = vmatprep.subr.mxu0 0.0
    %5383 = vmatpush1.msra.mxu0 0.0
    %5384 = vmatprep.subr.mxu0 0.0
    %5385 = vmatpush1.msra.mxu0 0.0
    %5386 = vmatprep.subr.mxu0 0.0
    %5387 = vmatpush1.msra.mxu0 0.0
    %5388 = vmatprep.subr.mxu0 0.0
    %5389 = vmatpush1.msra.mxu0 0.0
    %5390 = vmatprep.subr.mxu0 0.0
    %5391 = vmatpush1.msra.mxu0 0.0
    %5392 = vmatprep.mubr.f32.mxu0 0.0
    %v5393 = vand.u32 %v5036, 4294901760
    %v5394 = vsub.f32 %v5036, %v5393
    %v5395 = vand.u32 %v5394, 4294901760
    %5396 = vmatmul.mubr.f32.gmra.mrb[0].mxu0 %v5395
    %v5397 = vpop.f32.mrb[0].mxu0
    %v5398 = vadd.f32 %v5317, %v5397
    %v5399 = vpop.f32.mrb[0].mxu0
    %5400 = vdwg.mxu0
    %5401 = vmatprep.subr.mxu0 0.0
    %v5402 = vand.u32 %v39, 4294901760
    %v5403 = vsub.f32 %v39, %v5402
    %v5404 = vand.u32 %v5403, 4294901760
    %5405 = vmatpush1.msra.mxu0 %v5404
    %5406 = vmatprep.subr.mxu0 0.0
    %v5407 = vand.u32 %v40, 4294901760
    %v5408 = vsub.f32 %v40, %v5407
    %v5409 = vand.u32 %v5408, 4294901760
    %5410 = vmatpush1.msra.mxu0 %v5409
    %5411 = vmatprep.subr.mxu0 0.0
    %v5412 = vand.u32 %v41, 4294901760
    %v5413 = vsub.f32 %v41, %v5412
    %v5414 = vand.u32 %v5413, 4294901760
    %5415 = vmatpush1.msra.mxu0 %v5414
    %5416 = vmatprep.subr.mxu0 0.0
    %v5417 = vand.u32 %v42, 4294901760
    %v5418 = vsub.f32 %v42, %v5417
    %v5419 = vand.u32 %v5418, 4294901760
    %5420 = vmatpush1.msra.mxu0 %v5419
    %5421 = vmatprep.subr.mxu0 0.0
    %v5422 = vand.u32 %v43, 4294901760
    %v5423 = vsub.f32 %v43, %v5422
    %v5424 = vand.u32 %v5423, 4294901760
    %5425 = vmatpush1.msra.mxu0 %v5424
    %5426 = vmatprep.subr.mxu0 0.0
    %v5427 = vand.u32 %v44, 4294901760
    %v5428 = vsub.f32 %v44, %v5427
    %v5429 = vand.u32 %v5428, 4294901760
    %5430 = vmatpush1.msra.mxu0 %v5429
    %5431 = vmatprep.subr.mxu0 0.0
    %v5432 = vand.u32 %v45, 4294901760
    %v5433 = vsub.f32 %v45, %v5432
    %v5434 = vand.u32 %v5433, 4294901760
    %5435 = vmatpush1.msra.mxu0 %v5434
    %5436 = vmatprep.subr.mxu0 0.0
    %v5437 = vand.u32 %v46, 4294901760
    %v5438 = vsub.f32 %v46, %v5437
    %v5439 = vand.u32 %v5438, 4294901760
    %5440 = vmatpush1.msra.mxu0 %v5439
    %5441 = vmatprep.subr.mxu0 0.0
    %5442 = vmatpush1.msra.mxu0 0.0
    %5443 = vmatprep.subr.mxu0 0.0
    %5444 = vmatpush1.msra.mxu0 0.0
    %5445 = vmatprep.subr.mxu0 0.0
    %5446 = vmatpush1.msra.mxu0 0.0
    %5447 = vmatprep.subr.mxu0 0.0
    %5448 = vmatpush1.msra.mxu0 0.0
    %5449 = vmatprep.subr.mxu0 0.0
    %5450 = vmatpush1.msra.mxu0 0.0
    %5451 = vmatprep.subr.mxu0 0.0
    %5452 = vmatpush1.msra.mxu0 0.0
    %5453 = vmatprep.subr.mxu0 0.0
    %5454 = vmatpush1.msra.mxu0 0.0
    %5455 = vmatprep.subr.mxu0 0.0
    %5456 = vmatpush1.msra.mxu0 0.0
    %5457 = vmatprep.subr.mxu0 0.0
    %5458 = vmatpush1.msra.mxu0 0.0
    %5459 = vmatprep.subr.mxu0 0.0
    %5460 = vmatpush1.msra.mxu0 0.0
    %5461 = vmatprep.subr.mxu0 0.0
    %5462 = vmatpush1.msra.mxu0 0.0
    %5463 = vmatprep.subr.mxu0 0.0
    %5464 = vmatpush1.msra.mxu0 0.0
    %5465 = vmatprep.subr.mxu0 0.0
    %5466 = vmatpush1.msra.mxu0 0.0
    %5467 = vmatprep.subr.mxu0 0.0
    %5468 = vmatpush1.msra.mxu0 0.0
    %5469 = vmatprep.subr.mxu0 0.0
    %5470 = vmatpush1.msra.mxu0 0.0
    %5471 = vmatprep.subr.mxu0 0.0
    %5472 = vmatpush1.msra.mxu0 0.0
    %5473 = vmatprep.subr.mxu0 0.0
    %5474 = vmatpush1.msra.mxu0 0.0
    %5475 = vmatprep.subr.mxu0 0.0
    %5476 = vmatpush1.msra.mxu0 0.0
    %5477 = vmatprep.subr.mxu0 0.0
    %5478 = vmatpush1.msra.mxu0 0.0
    %5479 = vmatprep.subr.mxu0 0.0
    %5480 = vmatpush1.msra.mxu0 0.0
    %5481 = vmatprep.subr.mxu0 0.0
    %5482 = vmatpush1.msra.mxu0 0.0
    %5483 = vmatprep.subr.mxu0 0.0
    %5484 = vmatpush1.msra.mxu0 0.0
    %5485 = vmatprep.subr.mxu0 0.0
    %5486 = vmatpush1.msra.mxu0 0.0
    %5487 = vmatprep.subr.mxu0 0.0
    %5488 = vmatpush1.msra.mxu0 0.0
    %5489 = vmatprep.mubr.f32.mxu0 0.0
    %v5490 = vand.u32 %v5036, 4294901760
    %5491 = vmatmul.mubr.f32.gmra.mrb[0].mxu0 %v5490
    %v5492 = vpop.f32.mrb[0].mxu0
    %v5493 = vadd.f32 %v5398, %v5492
    %v5494 = vpop.f32.mrb[0].mxu0
    %5495 = vdwg.mxu0
    %5496 = vmatprep.subr.mxu0 0.0
    %v5497 = vand.u32 %v39, 4294901760
    %5498 = vmatpush1.msra.mxu0 %v5497
    %5499 = vmatprep.subr.mxu0 0.0
    %v5500 = vand.u32 %v40, 4294901760
    %5501 = vmatpush1.msra.mxu0 %v5500
    %5502 = vmatprep.subr.mxu0 0.0
    %v5503 = vand.u32 %v41, 4294901760
    %5504 = vmatpush1.msra.mxu0 %v5503
    %5505 = vmatprep.subr.mxu0 0.0
    %v5506 = vand.u32 %v42, 4294901760
    %5507 = vmatpush1.msra.mxu0 %v5506
    %5508 = vmatprep.subr.mxu0 0.0
    %v5509 = vand.u32 %v43, 4294901760
    %5510 = vmatpush1.msra.mxu0 %v5509
    %5511 = vmatprep.subr.mxu0 0.0
    %v5512 = vand.u32 %v44, 4294901760
    %5513 = vmatpush1.msra.mxu0 %v5512
    %5514 = vmatprep.subr.mxu0 0.0
    %v5515 = vand.u32 %v45, 4294901760
    %5516 = vmatpush1.msra.mxu0 %v5515
    %5517 = vmatprep.subr.mxu0 0.0
    %v5518 = vand.u32 %v46, 4294901760
    %5519 = vmatpush1.msra.mxu0 %v5518
    %5520 = vmatprep.subr.mxu0 0.0
    %5521 = vmatpush1.msra.mxu0 0.0
    %5522 = vmatprep.subr.mxu0 0.0
    %5523 = vmatpush1.msra.mxu0 0.0
    %5524 = vmatprep.subr.mxu0 0.0
    %5525 = vmatpush1.msra.mxu0 0.0
    %5526 = vmatprep.subr.mxu0 0.0
    %5527 = vmatpush1.msra.mxu0 0.0
    %5528 = vmatprep.subr.mxu0 0.0
    %5529 = vmatpush1.msra.mxu0 0.0
    %5530 = vmatprep.subr.mxu0 0.0
    %5531 = vmatpush1.msra.mxu0 0.0
    %5532 = vmatprep.subr.mxu0 0.0
    %5533 = vmatpush1.msra.mxu0 0.0
    %5534 = vmatprep.subr.mxu0 0.0
    %5535 = vmatpush1.msra.mxu0 0.0
    %5536 = vmatprep.subr.mxu0 0.0
    %5537 = vmatpush1.msra.mxu0 0.0
    %5538 = vmatprep.subr.mxu0 0.0
    %5539 = vmatpush1.msra.mxu0 0.0
    %5540 = vmatprep.subr.mxu0 0.0
    %5541 = vmatpush1.msra.mxu0 0.0
    %5542 = vmatprep.subr.mxu0 0.0
    %5543 = vmatpush1.msra.mxu0 0.0
    %5544 = vmatprep.subr.mxu0 0.0
    %5545 = vmatpush1.msra.mxu0 0.0
    %5546 = vmatprep.subr.mxu0 0.0
    %5547 = vmatpush1.msra.mxu0 0.0
    %5548 = vmatprep.subr.mxu0 0.0
    %5549 = vmatpush1.msra.mxu0 0.0
    %5550 = vmatprep.subr.mxu0 0.0
    %5551 = vmatpush1.msra.mxu0 0.0
    %5552 = vmatprep.subr.mxu0 0.0
    %5553 = vmatpush1.msra.mxu0 0.0
    %5554 = vmatprep.subr.mxu0 0.0
    %5555 = vmatpush1.msra.mxu0 0.0
    %5556 = vmatprep.subr.mxu0 0.0
    %5557 = vmatpush1.msra.mxu0 0.0
    %5558 = vmatprep.subr.mxu0 0.0
    %5559 = vmatpush1.msra.mxu0 0.0
    %5560 = vmatprep.subr.mxu0 0.0
    %5561 = vmatpush1.msra.mxu0 0.0
    %5562 = vmatprep.subr.mxu0 0.0
    %5563 = vmatpush1.msra.mxu0 0.0
    %5564 = vmatprep.subr.mxu0 0.0
    %5565 = vmatpush1.msra.mxu0 0.0
    %5566 = vmatprep.subr.mxu0 0.0
    %5567 = vmatpush1.msra.mxu0 0.0
    %5568 = vmatprep.mubr.f32.mxu0 0.0
    %v5569 = vand.u32 %v5036, 4294901760
    %5570 = vmatmul.mubr.f32.gmra.mrb[0].mxu0 %v5569
    %v5571 = vpop.f32.mrb[0].mxu0
    %v5572 = vadd.f32 %v5493, %v5571
    %v5573 = vpop.f32.mrb[0].mxu0
    %5574 = vdwg.mxu0
    %v5575 = vadd.f32 %v5572, %v52
    %v5576 = vxor.u32 %v5575, 2147483648
    %v5577 = vmul.f32 %v5576, 1.442695
    %v5578 = vpow.pop %v5577
    %v5579 = vadd.f32 %v5578, 1.0
    %v5580 = vrcp.pop %v5579
    %v5581 = vmul.f32 1.0, %v5580
    %v5582 = vadd.f32 %v5572, %v1149
    %5584 = vrot.lane.b32.xlu0 %v5582, 32
    %v5585 = vpop.permute.xlu0 %5584
    %v5587 = vmul.f32 %v5581, %v5585
    %5589 = vrot.lane.b32.xlu0 %v5587, 64
    %v5590 = vpop.permute.xlu0 %5589
    %v5592 = vadd.f32 %v5575, %v5590
    %v5593 = vtanh.pop %v5592
    %v5594 = vsub.f32 1.0, %v5581
    %5596 = vrot.lane.b32.xlu0 %v5593, 96
    %v5597 = vpop.permute.xlu0 %5596
    %v5599 = vmul.f32 %v5594, %v5597
    %v5600 = vmul.f32 %v5581, %v4496
    %v5601 = vadd.f32 %v5599, %v5600
    %v5602 = vmul.f32 %v5020, %v5601
    %v5603 = vmul.f32 %v5026, %v4496
    %v5604 = vadd.f32 %v5602, %v5603
    %v5605 = vmul.f32 %v5020, %v5604
    %s5606 = scalar_lea.vmem %s1, 10
    %v5607 = vld [vmem:[%s5606] sm:$0x3]
    %v5608 = vsub.f32 1.0, %v5607
    %s5609 = scalar_lea.vmem %s0, 10
    %v5610 = vld [vmem:[%s5609] sm:$0x3]
    %v5611 = vsel %vm63, %v5032, 0
    %5613 = vmatprep.subr.mxu0 0.0
    %v5614 = vand.u32 %v29, 4294901760
    %5615 = vmatpush1.msra.mxu0 %v5614
    %5616 = vmatprep.subr.mxu0 0.0
    %v5617 = vand.u32 %v30, 4294901760
    %5618 = vmatpush1.msra.mxu0 %v5617
    %5619 = vmatprep.subr.mxu0 0.0
    %v5620 = vand.u32 %v31, 4294901760
    %5621 = vmatpush1.msra.mxu0 %v5620
    %5622 = vmatprep.subr.mxu0 0.0
    %v5623 = vand.u32 %v32, 4294901760
    %5624 = vmatpush1.msra.mxu0 %v5623
    %5625 = vmatprep.subr.mxu0 0.0
    %5626 = vmatpush1.msra.mxu0 0.0
    %5627 = vmatprep.subr.mxu0 0.0
    %5628 = vmatpush1.msra.mxu0 0.0
    %5629 = vmatprep.subr.mxu0 0.0
    %5630 = vmatpush1.msra.mxu0 0.0
    %5631 = vmatprep.subr.mxu0 0.0
    %5632 = vmatpush1.msra.mxu0 0.0
    %5633 = vmatprep.subr.mxu0 0.0
    %5634 = vmatpush1.msra.mxu0 0.0
    %5635 = vmatprep.subr.mxu0 0.0
    %5636 = vmatpush1.msra.mxu0 0.0
    %5637 = vmatprep.subr.mxu0 0.0
    %5638 = vmatpush1.msra.mxu0 0.0
    %5639 = vmatprep.subr.mxu0 0.0
    %5640 = vmatpush1.msra.mxu0 0.0
    %5641 = vmatprep.subr.mxu0 0.0
    %5642 = vmatpush1.msra.mxu0 0.0
    %5643 = vmatprep.subr.mxu0 0.0
    %5644 = vmatpush1.msra.mxu0 0.0
    %5645 = vmatprep.subr.mxu0 0.0
    %5646 = vmatpush1.msra.mxu0 0.0
    %5647 = vmatprep.subr.mxu0 0.0
    %5648 = vmatpush1.msra.mxu0 0.0
    %5649 = vmatprep.subr.mxu0 0.0
    %5650 = vmatpush1.msra.mxu0 0.0
    %5651 = vmatprep.subr.mxu0 0.0
    %5652 = vmatpush1.msra.mxu0 0.0
    %5653 = vmatprep.subr.mxu0 0.0
    %5654 = vmatpush1.msra.mxu0 0.0
    %5655 = vmatprep.subr.mxu0 0.0
    %5656 = vmatpush1.msra.mxu0 0.0
    %5657 = vmatprep.subr.mxu0 0.0
    %5658 = vmatpush1.msra.mxu0 0.0
    %5659 = vmatprep.subr.mxu0 0.0
    %5660 = vmatpush1.msra.mxu0 0.0
    %5661 = vmatprep.subr.mxu0 0.0
    %5662 = vmatpush1.msra.mxu0 0.0
    %5663 = vmatprep.subr.mxu0 0.0
    %5664 = vmatpush1.msra.mxu0 0.0
    %5665 = vmatprep.subr.mxu0 0.0
    %5666 = vmatpush1.msra.mxu0 0.0
    %5667 = vmatprep.subr.mxu0 0.0
    %5668 = vmatpush1.msra.mxu0 0.0
    %5669 = vmatprep.subr.mxu0 0.0
    %5670 = vmatpush1.msra.mxu0 0.0
    %5671 = vmatprep.subr.mxu0 0.0
    %5672 = vmatpush1.msra.mxu0 0.0
    %5673 = vmatprep.subr.mxu0 0.0
    %5674 = vmatpush1.msra.mxu0 0.0
    %5675 = vmatprep.subr.mxu0 0.0
    %5676 = vmatpush1.msra.mxu0 0.0
    %5677 = vmatprep.subr.mxu0 0.0
    %5678 = vmatpush1.msra.mxu0 0.0
    %5679 = vmatprep.subr.mxu0 0.0
    %5680 = vmatpush1.msra.mxu0 0.0
    %5681 = vmatprep.mubr.f32.mxu0 0.0
    %v5682 = vand.u32 %v5611, 4294901760
    %v5683 = vsub.f32 %v5611, %v5682
    %v5684 = vand.u32 %v5683, 4294901760
    %v5685 = vsub.f32 %v5683, %v5684
    %v5686 = vand.u32 %v5685, 4294901760
    %5687 = vmatmul.mubr.f32.gmra.mrb[0].mxu0 %v5686
    %v5688 = vpop.f32.mrb[0].mxu0
    %v5689 = vadd.f32 0.0, %v5688
    %v5690 = vpop.f32.mrb[0].mxu0
    %5691 = vdwg.mxu0
    %5692 = vmatprep.subr.mxu0 0.0
    %v5693 = vand.u32 %v29, 4294901760
    %v5694 = vsub.f32 %v29, %v5693
    %v5695 = vand.u32 %v5694, 4294901760
    %v5696 = vsub.f32 %v5694, %v5695
    %v5697 = vand.u32 %v5696, 4294901760
    %5698 = vmatpush1.msra.mxu0 %v5697
    %5699 = vmatprep.subr.mxu0 0.0
    %v5700 = vand.u32 %v30, 4294901760
    %v5701 = vsub.f32 %v30, %v5700
    %v5702 = vand.u32 %v5701, 4294901760
    %v5703 = vsub.f32 %v5701, %v5702
    %v5704 = vand.u32 %v5703, 4294901760
    %5705 = vmatpush1.msra.mxu0 %v5704
    %5706 = vmatprep.subr.mxu0 0.0
    %v5707 = vand.u32 %v31, 4294901760
    %v5708 = vsub.f32 %v31, %v5707
    %v5709 = vand.u32 %v5708, 4294901760
    %v5710 = vsub.f32 %v5708, %v5709
    %v5711 = vand.u32 %v5710, 4294901760
    %5712 = vmatpush1.msra.mxu0 %v5711
    %5713 = vmatprep.subr.mxu0 0.0
    %v5714 = vand.u32 %v32, 4294901760
    %v5715 = vsub.f32 %v32, %v5714
    %v5716 = vand.u32 %v5715, 4294901760
    %v5717 = vsub.f32 %v5715, %v5716
    %v5718 = vand.u32 %v5717, 4294901760
    %5719 = vmatpush1.msra.mxu0 %v5718
    %5720 = vmatprep.subr.mxu0 0.0
    %5721 = vmatpush1.msra.mxu0 0.0
    %5722 = vmatprep.subr.mxu0 0.0
    %5723 = vmatpush1.msra.mxu0 0.0
    %5724 = vmatprep.subr.mxu0 0.0
    %5725 = vmatpush1.msra.mxu0 0.0
    %5726 = vmatprep.subr.mxu0 0.0
    %5727 = vmatpush1.msra.mxu0 0.0
    %5728 = vmatprep.subr.mxu0 0.0
    %5729 = vmatpush1.msra.mxu0 0.0
    %5730 = vmatprep.subr.mxu0 0.0
    %5731 = vmatpush1.msra.mxu0 0.0
    %5732 = vmatprep.subr.mxu0 0.0
    %5733 = vmatpush1.msra.mxu0 0.0
    %5734 = vmatprep.subr.mxu0 0.0
    %5735 = vmatpush1.msra.mxu0 0.0
    %5736 = vmatprep.subr.mxu0 0.0
    %5737 = vmatpush1.msra.mxu0 0.0
    %5738 = vmatprep.subr.mxu0 0.0
    %5739 = vmatpush1.msra.mxu0 0.0
    %5740 = vmatprep.subr.mxu0 0.0
    %5741 = vmatpush1.msra.mxu0 0.0
    %5742 = vmatprep.subr.mxu0 0.0
    %5743 = vmatpush1.msra.mxu0 0.0
    %5744 = vmatprep.subr.mxu0 0.0
    %5745 = vmatpush1.msra.mxu0 0.0
    %5746 = vmatprep.subr.mxu0 0.0
    %5747 = vmatpush1.msra.mxu0 0.0
    %5748 = vmatprep.subr.mxu0 0.0
    %5749 = vmatpush1.msra.mxu0 0.0
    %5750 = vmatprep.subr.mxu0 0.0
    %5751 = vmatpush1.msra.mxu0 0.0
    %5752 = vmatprep.subr.mxu0 0.0
    %5753 = vmatpush1.msra.mxu0 0.0
    %5754 = vmatprep.subr.mxu0 0.0
    %5755 = vmatpush1.msra.mxu0 0.0
    %5756 = vmatprep.subr.mxu0 0.0
    %5757 = vmatpush1.msra.mxu0 0.0
    %5758 = vmatprep.subr.mxu0 0.0
    %5759 = vmatpush1.msra.mxu0 0.0
    %5760 = vmatprep.subr.mxu0 0.0
    %5761 = vmatpush1.msra.mxu0 0.0
    %5762 = vmatprep.subr.mxu0 0.0
    %5763 = vmatpush1.msra.mxu0 0.0
    %5764 = vmatprep.subr.mxu0 0.0
    %5765 = vmatpush1.msra.mxu0 0.0
    %5766 = vmatprep.subr.mxu0 0.0
    %5767 = vmatpush1.msra.mxu0 0.0
    %5768 = vmatprep.subr.mxu0 0.0
    %5769 = vmatpush1.msra.mxu0 0.0
    %5770 = vmatprep.subr.mxu0 0.0
    %5771 = vmatpush1.msra.mxu0 0.0
    %5772 = vmatprep.subr.mxu0 0.0
    %5773 = vmatpush1.msra.mxu0 0.0
    %5774 = vmatprep.subr.mxu0 0.0
    %5775 = vmatpush1.msra.mxu0 0.0
    %5776 = vmatprep.mubr.f32.mxu0 0.0
    %v5777 = vand.u32 %v5611, 4294901760
    %5778 = vmatmul.mubr.f32.gmra.mrb[0].mxu0 %v5777
    %v5779 = vpop.f32.mrb[0].mxu0
    %v5780 = vadd.f32 %v5689, %v5779
    %v5781 = vpop.f32.mrb[0].mxu0
    %5782 = vdwg.mxu0
    %5783 = vmatprep.subr.mxu0 0.0
    %v5784 = vand.u32 %v29, 4294901760
    %v5785 = vsub.f32 %v29, %v5784
    %5786 = vmatpush1.msra.mxu0 %v5785
    %5787 = vmatprep.subr.mxu0 0.0
    %v5788 = vand.u32 %v30, 4294901760
    %v5789 = vsub.f32 %v30, %v5788
    %5790 = vmatpush1.msra.mxu0 %v5789
    %5791 = vmatprep.subr.mxu0 0.0
    %v5792 = vand.u32 %v31, 4294901760
    %v5793 = vsub.f32 %v31, %v5792
    %5794 = vmatpush1.msra.mxu0 %v5793
    %5795 = vmatprep.subr.mxu0 0.0
    %v5796 = vand.u32 %v32, 4294901760
    %v5797 = vsub.f32 %v32, %v5796
    %5798 = vmatpush1.msra.mxu0 %v5797
    %5799 = vmatprep.subr.mxu0 0.0
    %5800 = vmatpush1.msra.mxu0 0.0
    %5801 = vmatprep.subr.mxu0 0.0
    %5802 = vmatpush1.msra.mxu0 0.0
    %5803 = vmatprep.subr.mxu0 0.0
    %5804 = vmatpush1.msra.mxu0 0.0
    %5805 = vmatprep.subr.mxu0 0.0
    %5806 = vmatpush1.msra.mxu0 0.0
    %5807 = vmatprep.subr.mxu0 0.0
    %5808 = vmatpush1.msra.mxu0 0.0
    %5809 = vmatprep.subr.mxu0 0.0
    %5810 = vmatpush1.msra.mxu0 0.0
    %5811 = vmatprep.subr.mxu0 0.0
    %5812 = vmatpush1.msra.mxu0 0.0
    %5813 = vmatprep.subr.mxu0 0.0
    %5814 = vmatpush1.msra.mxu0 0.0
    %5815 = vmatprep.subr.mxu0 0.0
    %5816 = vmatpush1.msra.mxu0 0.0
    %5817 = vmatprep.subr.mxu0 0.0
    %5818 = vmatpush1.msra.mxu0 0.0
    %5819 = vmatprep.subr.mxu0 0.0
    %5820 = vmatpush1.msra.mxu0 0.0
    %5821 = vmatprep.subr.mxu0 0.0
    %5822 = vmatpush1.msra.mxu0 0.0
    %5823 = vmatprep.subr.mxu0 0.0
    %5824 = vmatpush1.msra.mxu0 0.0
    %5825 = vmatprep.subr.mxu0 0.0
    %5826 = vmatpush1.msra.mxu0 0.0
    %5827 = vmatprep.subr.mxu0 0.0
    %5828 = vmatpush1.msra.mxu0 0.0
    %5829 = vmatprep.subr.mxu0 0.0
    %5830 = vmatpush1.msra.mxu0 0.0
    %5831 = vmatprep.subr.mxu0 0.0
    %5832 = vmatpush1.msra.mxu0 0.0
    %5833 = vmatprep.subr.mxu0 0.0
    %5834 = vmatpush1.msra.mxu0 0.0
    %5835 = vmatprep.subr.mxu0 0.0
    %5836 = vmatpush1.msra.mxu0 0.0
    %5837 = vmatprep.subr.mxu0 0.0
    %5838 = vmatpush1.msra.mxu0 0.0
    %5839 = vmatprep.subr.mxu0 0.0
    %5840 = vmatpush1.msra.mxu0 0.0
    %5841 = vmatprep.subr.mxu0 0.0
    %5842 = vmatpush1.msra.mxu0 0.0
    %5843 = vmatprep.subr.mxu0 0.0
    %5844 = vmatpush1.msra.mxu0 0.0
    %5845 = vmatprep.subr.mxu0 0.0
    %5846 = vmatpush1.msra.mxu0 0.0
    %5847 = vmatprep.subr.mxu0 0.0
    %5848 = vmatpush1.msra.mxu0 0.0
    %5849 = vmatprep.subr.mxu0 0.0
    %5850 = vmatpush1.msra.mxu0 0.0
    %5851 = vmatprep.subr.mxu0 0.0
    %5852 = vmatpush1.msra.mxu0 0.0
    %5853 = vmatprep.subr.mxu0 0.0
    %5854 = vmatpush1.msra.mxu0 0.0
    %5855 = vmatprep.mubr.f32.mxu0 0.0
    %v5856 = vand.u32 %v5611, 4294901760
    %v5857 = vsub.f32 %v5611, %v5856
    %5858 = vmatmul.mubr.f32.gmra.mrb[0].mxu0 %v5857
    %v5859 = vpop.f32.mrb[0].mxu0
    %v5860 = vadd.f32 %v5780, %v5859
    %v5861 = vpop.f32.mrb[0].mxu0
    %5862 = vdwg.mxu0
    %5863 = vmatprep.subr.mxu0 0.0
    %v5864 = vand.u32 %v29, 4294901760
    %5865 = vmatpush1.msra.mxu0 %v5864
    %5866 = vmatprep.subr.mxu0 0.0
    %v5867 = vand.u32 %v30, 4294901760
    %5868 = vmatpush1.msra.mxu0 %v5867
    %5869 = vmatprep.subr.mxu0 0.0
    %v5870 = vand.u32 %v31, 4294901760
    %5871 = vmatpush1.msra.mxu0 %v5870
    %5872 = vmatprep.subr.mxu0 0.0
    %v5873 = vand.u32 %v32, 4294901760
    %5874 = vmatpush1.msra.mxu0 %v5873
    %5875 = vmatprep.subr.mxu0 0.0
    %5876 = vmatpush1.msra.mxu0 0.0
    %5877 = vmatprep.subr.mxu0 0.0
    %5878 = vmatpush1.msra.mxu0 0.0
    %5879 = vmatprep.subr.mxu0 0.0
    %5880 = vmatpush1.msra.mxu0 0.0
    %5881 = vmatprep.subr.mxu0 0.0
    %5882 = vmatpush1.msra.mxu0 0.0
    %5883 = vmatprep.subr.mxu0 0.0
    %5884 = vmatpush1.msra.mxu0 0.0
    %5885 = vmatprep.subr.mxu0 0.0
    %5886 = vmatpush1.msra.mxu0 0.0
    %5887 = vmatprep.subr.mxu0 0.0
    %5888 = vmatpush1.msra.mxu0 0.0
    %5889 = vmatprep.subr.mxu0 0.0
    %5890 = vmatpush1.msra.mxu0 0.0
    %5891 = vmatprep.subr.mxu0 0.0
    %5892 = vmatpush1.msra.mxu0 0.0
    %5893 = vmatprep.subr.mxu0 0.0
    %5894 = vmatpush1.msra.mxu0 0.0
    %5895 = vmatprep.subr.mxu0 0.0
    %5896 = vmatpush1.msra.mxu0 0.0
    %5897 = vmatprep.subr.mxu0 0.0
    %5898 = vmatpush1.msra.mxu0 0.0
    %5899 = vmatprep.subr.mxu0 0.0
    %5900 = vmatpush1.msra.mxu0 0.0
    %5901 = vmatprep.subr.mxu0 0.0
    %5902 = vmatpush1.msra.mxu0 0.0
    %5903 = vmatprep.subr.mxu0 0.0
    %5904 = vmatpush1.msra.mxu0 0.0
    %5905 = vmatprep.subr.mxu0 0.0
    %5906 = vmatpush1.msra.mxu0 0.0
    %5907 = vmatprep.subr.mxu0 0.0
    %5908 = vmatpush1.msra.mxu0 0.0
    %5909 = vmatprep.subr.mxu0 0.0
    %5910 = vmatpush1.msra.mxu0 0.0
    %5911 = vmatprep.subr.mxu0 0.0
    %5912 = vmatpush1.msra.mxu0 0.0
    %5913 = vmatprep.subr.mxu0 0.0
    %5914 = vmatpush1.msra.mxu0 0.0
    %5915 = vmatprep.subr.mxu0 0.0
    %5916 = vmatpush1.msra.mxu0 0.0
    %5917 = vmatprep.subr.mxu0 0.0
    %5918 = vmatpush1.msra.mxu0 0.0
    %5919 = vmatprep.subr.mxu0 0.0
    %5920 = vmatpush1.msra.mxu0 0.0
    %5921 = vmatprep.subr.mxu0 0.0
    %5922 = vmatpush1.msra.mxu0 0.0
    %5923 = vmatprep.subr.mxu0 0.0
    %5924 = vmatpush1.msra.mxu0 0.0
    %5925 = vmatprep.subr.mxu0 0.0
    %5926 = vmatpush1.msra.mxu0 0.0
    %5927 = vmatprep.subr.mxu0 0.0
    %5928 = vmatpush1.msra.mxu0 0.0
    %5929 = vmatprep.subr.mxu0 0.0
    %5930 = vmatpush1.msra.mxu0 0.0
    %5931 = vmatprep.mubr.f32.mxu0 0.0
    %v5932 = vand.u32 %v5611, 4294901760
    %v5933 = vsub.f32 %v5611, %v5932
    %v5934 = vand.u32 %v5933, 4294901760
    %5935 = vmatmul.mubr.f32.gmra.mrb[0].mxu0 %v5934
    %v5936 = vpop.f32.mrb[0].mxu0
    %v5937 = vadd.f32 %v5860, %v5936
    %v5938 = vpop.f32.mrb[0].mxu0
    %5939 = vdwg.mxu0
    %5940 = vmatprep.subr.mxu0 0.0
    %v5941 = vand.u32 %v29, 4294901760
    %v5942 = vsub.f32 %v29, %v5941
    %v5943 = vand.u32 %v5942, 4294901760
    %5944 = vmatpush1.msra.mxu0 %v5943
    %5945 = vmatprep.subr.mxu0 0.0
    %v5946 = vand.u32 %v30, 4294901760
    %v5947 = vsub.f32 %v30, %v5946
    %v5948 = vand.u32 %v5947, 4294901760
    %5949 = vmatpush1.msra.mxu0 %v5948
    %5950 = vmatprep.subr.mxu0 0.0
    %v5951 = vand.u32 %v31, 4294901760
    %v5952 = vsub.f32 %v31, %v5951
    %v5953 = vand.u32 %v5952, 4294901760
    %5954 = vmatpush1.msra.mxu0 %v5953
    %5955 = vmatprep.subr.mxu0 0.0
    %v5956 = vand.u32 %v32, 4294901760
    %v5957 = vsub.f32 %v32, %v5956
    %v5958 = vand.u32 %v5957, 4294901760
    %5959 = vmatpush1.msra.mxu0 %v5958
    %5960 = vmatprep.subr.mxu0 0.0
    %5961 = vmatpush1.msra.mxu0 0.0
    %5962 = vmatprep.subr.mxu0 0.0
    %5963 = vmatpush1.msra.mxu0 0.0
    %5964 = vmatprep.subr.mxu0 0.0
    %5965 = vmatpush1.msra.mxu0 0.0
    %5966 = vmatprep.subr.mxu0 0.0
    %5967 = vmatpush1.msra.mxu0 0.0
    %5968 = vmatprep.subr.mxu0 0.0
    %5969 = vmatpush1.msra.mxu0 0.0
    %5970 = vmatprep.subr.mxu0 0.0
    %5971 = vmatpush1.msra.mxu0 0.0
    %5972 = vmatprep.subr.mxu0 0.0
    %5973 = vmatpush1.msra.mxu0 0.0
    %5974 = vmatprep.subr.mxu0 0.0
    %5975 = vmatpush1.msra.mxu0 0.0
    %5976 = vmatprep.subr.mxu0 0.0
    %5977 = vmatpush1.msra.mxu0 0.0
    %5978 = vmatprep.subr.mxu0 0.0
    %5979 = vmatpush1.msra.mxu0 0.0
    %5980 = vmatprep.subr.mxu0 0.0
    %5981 = vmatpush1.msra.mxu0 0.0
    %5982 = vmatprep.subr.mxu0 0.0
    %5983 = vmatpush1.msra.mxu0 0.0
    %5984 = vmatprep.subr.mxu0 0.0
    %5985 = vmatpush1.msra.mxu0 0.0
    %5986 = vmatprep.subr.mxu0 0.0
    %5987 = vmatpush1.msra.mxu0 0.0
    %5988 = vmatprep.subr.mxu0 0.0
    %5989 = vmatpush1.msra.mxu0 0.0
    %5990 = vmatprep.subr.mxu0 0.0
    %5991 = vmatpush1.msra.mxu0 0.0
    %5992 = vmatprep.subr.mxu0 0.0
    %5993 = vmatpush1.msra.mxu0 0.0
    %5994 = vmatprep.subr.mxu0 0.0
    %5995 = vmatpush1.msra.mxu0 0.0
    %5996 = vmatprep.subr.mxu0 0.0
    %5997 = vmatpush1.msra.mxu0 0.0
    %5998 = vmatprep.subr.mxu0 0.0
    %5999 = vmatpush1.msra.mxu0 0.0
    %6000 = vmatprep.subr.mxu0 0.0
    %6001 = vmatpush1.msra.mxu0 0.0
    %6002 = vmatprep.subr.mxu0 0.0
    %6003 = vmatpush1.msra.mxu0 0.0
    %6004 = vmatprep.subr.mxu0 0.0
    %6005 = vmatpush1.msra.mxu0 0.0
    %6006 = vmatprep.subr.mxu0 0.0
    %6007 = vmatpush1.msra.mxu0 0.0
    %6008 = vmatprep.subr.mxu0 0.0
    %6009 = vmatpush1.msra.mxu0 0.0
    %6010 = vmatprep.subr.mxu0 0.0
    %6011 = vmatpush1.msra.mxu0 0.0
    %6012 = vmatprep.subr.mxu0 0.0
    %6013 = vmatpush1.msra.mxu0 0.0
    %6014 = vmatprep.subr.mxu0 0.0
    %6015 = vmatpush1.msra.mxu0 0.0
    %6016 = vmatprep.mubr.f32.mxu0 0.0
    %v6017 = vand.u32 %v5611, 4294901760
    %6018 = vmatmul.mubr.f32.gmra.mrb[0].mxu0 %v6017
    %v6019 = vpop.f32.mrb[0].mxu0
    %v6020 = vadd.f32 %v5937, %v6019
    %v6021 = vpop.f32.mrb[0].mxu0
    %6022 = vdwg.mxu0
    %6023 = vmatprep.subr.mxu0 0.0
    %v6024 = vand.u32 %v29, 4294901760
    %6025 = vmatpush1.msra.mxu0 %v6024
    %6026 = vmatprep.subr.mxu0 0.0
    %v6027 = vand.u32 %v30, 4294901760
    %6028 = vmatpush1.msra.mxu0 %v6027
    %6029 = vmatprep.subr.mxu0 0.0
    %v6030 = vand.u32 %v31, 4294901760
    %6031 = vmatpush1.msra.mxu0 %v6030
    %6032 = vmatprep.subr.mxu0 0.0
    %v6033 = vand.u32 %v32, 4294901760
    %6034 = vmatpush1.msra.mxu0 %v6033
    %6035 = vmatprep.subr.mxu0 0.0
    %6036 = vmatpush1.msra.mxu0 0.0
    %6037 = vmatprep.subr.mxu0 0.0
    %6038 = vmatpush1.msra.mxu0 0.0
    %6039 = vmatprep.subr.mxu0 0.0
    %6040 = vmatpush1.msra.mxu0 0.0
    %6041 = vmatprep.subr.mxu0 0.0
    %6042 = vmatpush1.msra.mxu0 0.0
    %6043 = vmatprep.subr.mxu0 0.0
    %6044 = vmatpush1.msra.mxu0 0.0
    %6045 = vmatprep.subr.mxu0 0.0
    %6046 = vmatpush1.msra.mxu0 0.0
    %6047 = vmatprep.subr.mxu0 0.0
    %6048 = vmatpush1.msra.mxu0 0.0
    %6049 = vmatprep.subr.mxu0 0.0
    %6050 = vmatpush1.msra.mxu0 0.0
    %6051 = vmatprep.subr.mxu0 0.0
    %6052 = vmatpush1.msra.mxu0 0.0
    %6053 = vmatprep.subr.mxu0 0.0
    %6054 = vmatpush1.msra.mxu0 0.0
    %6055 = vmatprep.subr.mxu0 0.0
    %6056 = vmatpush1.msra.mxu0 0.0
    %6057 = vmatprep.subr.mxu0 0.0
    %6058 = vmatpush1.msra.mxu0 0.0
    %6059 = vmatprep.subr.mxu0 0.0
    %6060 = vmatpush1.msra.mxu0 0.0
    %6061 = vmatprep.subr.mxu0 0.0
    %6062 = vmatpush1.msra.mxu0 0.0
    %6063 = vmatprep.subr.mxu0 0.0
    %6064 = vmatpush1.msra.mxu0 0.0
    %6065 = vmatprep.subr.mxu0 0.0
    %6066 = vmatpush1.msra.mxu0 0.0
    %6067 = vmatprep.subr.mxu0 0.0
    %6068 = vmatpush1.msra.mxu0 0.0
    %6069 = vmatprep.subr.mxu0 0.0
    %6070 = vmatpush1.msra.mxu0 0.0
    %6071 = vmatprep.subr.mxu0 0.0
    %6072 = vmatpush1.msra.mxu0 0.0
    %6073 = vmatprep.subr.mxu0 0.0
    %6074 = vmatpush1.msra.mxu0 0.0
    %6075 = vmatprep.subr.mxu0 0.0
    %6076 = vmatpush1.msra.mxu0 0.0
    %6077 = vmatprep.subr.mxu0 0.0
    %6078 = vmatpush1.msra.mxu0 0.0
    %6079 = vmatprep.subr.mxu0 0.0
    %6080 = vmatpush1.msra.mxu0 0.0
    %6081 = vmatprep.subr.mxu0 0.0
    %6082 = vmatpush1.msra.mxu0 0.0
    %6083 = vmatprep.subr.mxu0 0.0
    %6084 = vmatpush1.msra.mxu0 0.0
    %6085 = vmatprep.subr.mxu0 0.0
    %6086 = vmatpush1.msra.mxu0 0.0
    %6087 = vmatprep.subr.mxu0 0.0
    %6088 = vmatpush1.msra.mxu0 0.0
    %6089 = vmatprep.subr.mxu0 0.0
    %6090 = vmatpush1.msra.mxu0 0.0
    %6091 = vmatprep.mubr.f32.mxu0 0.0
    %v6092 = vand.u32 %v5611, 4294901760
    %6093 = vmatmul.mubr.f32.gmra.mrb[0].mxu0 %v6092
    %v6094 = vpop.f32.mrb[0].mxu0
    %v6095 = vadd.f32 %v6020, %v6094
    %v6096 = vpop.f32.mrb[0].mxu0
    %6097 = vdwg.mxu0
    %v6098 = vadd.f32 %v5610, %v6095
    %v6099 = vxor.u32 %v6098, 2147483648
    %v6100 = vmul.f32 %v6099, 1.442695
    %v6101 = vpow.pop %v6100
    %v6102 = vadd.f32 %v6101, 1.0
    %v6103 = vrcp.pop %v6102
    %v6104 = vmul.f32 1.0, %v6103
    %v6105 = vadd.f32 %v6095, %v560
    %6107 = vrot.lane.b32.xlu0 %v6105, 64
    %v6108 = vpop.permute.xlu0 %6107
    %v6110 = vmul.f32 %v6104, %v6108
    %6112 = vrot.lane.b32.xlu0 %v6110, 64
    %v6113 = vpop.permute.xlu0 %6112
    %v6115 = vadd.f32 %v5610, %v6113
    %v6116 = vtanh.pop %v6115
    %v6117 = vsub.f32 1.0, %v6104
    %6119 = vrot.lane.b32.xlu0 %v6116, 96
    %v6120 = vpop.permute.xlu0 %6119
    %v6122 = vmul.f32 %v6117, %v6120
    %v6123 = vmul.f32 %v6104, %v5029
    %v6124 = vadd.f32 %v6122, %v6123
    %6126 = vset.pattern.permute.xlu0 0
    %6127 = vperm.xlu0 %6126, %v5607
    %v6128 = vpop.permute.xlu0 %6127
    %v6130 = vmul.f32 %v6128, %v6124
    %6132 = vset.pattern.permute.xlu0 0
    %6133 = vperm.xlu0 %6132, %v5608
    %v6134 = vpop.permute.xlu0 %6133
    %v6136 = vmul.f32 %v6134, %v5029
    %v6137 = vadd.f32 %v6130, %v6136
    %6139 = vrot.lane.b32.xlu0 %v6137, 96
    %v6140 = vpop.permute.xlu0 %6139
    %v6142 = vsel %vm63, %v6140, %v5604
    %v6144 = vsel %vm600, %v6142, 0
    %6146 = vmatprep.subr.mxu0 0.0
    %v6147 = vand.u32 %v39, 4294901760
    %6148 = vmatpush1.msra.mxu0 %v6147
    %6149 = vmatprep.subr.mxu0 0.0
    %v6150 = vand.u32 %v40, 4294901760
    %6151 = vmatpush1.msra.mxu0 %v6150
    %6152 = vmatprep.subr.mxu0 0.0
    %v6153 = vand.u32 %v41, 4294901760
    %6154 = vmatpush1.msra.mxu0 %v6153
    %6155 = vmatprep.subr.mxu0 0.0
    %v6156 = vand.u32 %v42, 4294901760
    %6157 = vmatpush1.msra.mxu0 %v6156
    %6158 = vmatprep.subr.mxu0 0.0
    %v6159 = vand.u32 %v43, 4294901760
    %6160 = vmatpush1.msra.mxu0 %v6159
    %6161 = vmatprep.subr.mxu0 0.0
    %v6162 = vand.u32 %v44, 4294901760
    %6163 = vmatpush1.msra.mxu0 %v6162
    %6164 = vmatprep.subr.mxu0 0.0
    %v6165 = vand.u32 %v45, 4294901760
    %6166 = vmatpush1.msra.mxu0 %v6165
    %6167 = vmatprep.subr.mxu0 0.0
    %v6168 = vand.u32 %v46, 4294901760
    %6169 = vmatpush1.msra.mxu0 %v6168
    %6170 = vmatprep.subr.mxu0 0.0
    %6171 = vmatpush1.msra.mxu0 0.0
    %6172 = vmatprep.subr.mxu0 0.0
    %6173 = vmatpush1.msra.mxu0 0.0
    %6174 = vmatprep.subr.mxu0 0.0
    %6175 = vmatpush1.msra.mxu0 0.0
    %6176 = vmatprep.subr.mxu0 0.0
    %6177 = vmatpush1.msra.mxu0 0.0
    %6178 = vmatprep.subr.mxu0 0.0
    %6179 = vmatpush1.msra.mxu0 0.0
    %6180 = vmatprep.subr.mxu0 0.0
    %6181 = vmatpush1.msra.mxu0 0.0
    %6182 = vmatprep.subr.mxu0 0.0
    %6183 = vmatpush1.msra.mxu0 0.0
    %6184 = vmatprep.subr.mxu0 0.0
    %6185 = vmatpush1.msra.mxu0 0.0
    %6186 = vmatprep.subr.mxu0 0.0
    %6187 = vmatpush1.msra.mxu0 0.0
    %6188 = vmatprep.subr.mxu0 0.0
    %6189 = vmatpush1.msra.mxu0 0.0
    %6190 = vmatprep.subr.mxu0 0.0
    %6191 = vmatpush1.msra.mxu0 0.0
    %6192 = vmatprep.subr.mxu0 0.0
    %6193 = vmatpush1.msra.mxu0 0.0
    %6194 = vmatprep.subr.mxu0 0.0
    %6195 = vmatpush1.msra.mxu0 0.0
    %6196 = vmatprep.subr.mxu0 0.0
    %6197 = vmatpush1.msra.mxu0 0.0
    %6198 = vmatprep.subr.mxu0 0.0
    %6199 = vmatpush1.msra.mxu0 0.0
    %6200 = vmatprep.subr.mxu0 0.0
    %6201 = vmatpush1.msra.mxu0 0.0
    %6202 = vmatprep.subr.mxu0 0.0
    %6203 = vmatpush1.msra.mxu0 0.0
    %6204 = vmatprep.subr.mxu0 0.0
    %6205 = vmatpush1.msra.mxu0 0.0
    %6206 = vmatprep.subr.mxu0 0.0
    %6207 = vmatpush1.msra.mxu0 0.0
    %6208 = vmatprep.subr.mxu0 0.0
    %6209 = vmatpush1.msra.mxu0 0.0
    %6210 = vmatprep.subr.mxu0 0.0
    %6211 = vmatpush1.msra.mxu0 0.0
    %6212 = vmatprep.subr.mxu0 0.0
    %6213 = vmatpush1.msra.mxu0 0.0
    %6214 = vmatprep.subr.mxu0 0.0
    %6215 = vmatpush1.msra.mxu0 0.0
    %6216 = vmatprep.subr.mxu0 0.0
    %6217 = vmatpush1.msra.mxu0 0.0
    %6218 = vmatprep.mubr.f32.mxu0 0.0
    %v6219 = vand.u32 %v6144, 4294901760
    %v6220 = vsub.f32 %v6144, %v6219
    %v6221 = vand.u32 %v6220, 4294901760
    %v6222 = vsub.f32 %v6220, %v6221
    %v6223 = vand.u32 %v6222, 4294901760
    %6224 = vmatmul.mubr.f32.gmra.mrb[0].mxu0 %v6223
    %v6225 = vpop.f32.mrb[0].mxu0
    %v6226 = vadd.f32 0.0, %v6225
    %v6227 = vpop.f32.mrb[0].mxu0
    %6228 = vdwg.mxu0
    %6229 = vmatprep.subr.mxu0 0.0
    %v6230 = vand.u32 %v39, 4294901760
    %v6231 = vsub.f32 %v39, %v6230
    %v6232 = vand.u32 %v6231, 4294901760
    %v6233 = vsub.f32 %v6231, %v6232
    %v6234 = vand.u32 %v6233, 4294901760
    %6235 = vmatpush1.msra.mxu0 %v6234
    %6236 = vmatprep.subr.mxu0 0.0
    %v6237 = vand.u32 %v40, 4294901760
    %v6238 = vsub.f32 %v40, %v6237
    %v6239 = vand.u32 %v6238, 4294901760
    %v6240 = vsub.f32 %v6238, %v6239
    %v6241 = vand.u32 %v6240, 4294901760
    %6242 = vmatpush1.msra.mxu0 %v6241
    %6243 = vmatprep.subr.mxu0 0.0
    %v6244 = vand.u32 %v41, 4294901760
    %v6245 = vsub.f32 %v41, %v6244
    %v6246 = vand.u32 %v6245, 4294901760
    %v6247 = vsub.f32 %v6245, %v6246
    %v6248 = vand.u32 %v6247, 4294901760
    %6249 = vmatpush1.msra.mxu0 %v6248
    %6250 = vmatprep.subr.mxu0 0.0
    %v6251 = vand.u32 %v42, 4294901760
    %v6252 = vsub.f32 %v42, %v6251
    %v6253 = vand.u32 %v6252, 4294901760
    %v6254 = vsub.f32 %v6252, %v6253
    %v6255 = vand.u32 %v6254, 4294901760
    %6256 = vmatpush1.msra.mxu0 %v6255
    %6257 = vmatprep.subr.mxu0 0.0
    %v6258 = vand.u32 %v43, 4294901760
    %v6259 = vsub.f32 %v43, %v6258
    %v6260 = vand.u32 %v6259, 4294901760
    %v6261 = vsub.f32 %v6259, %v6260
    %v6262 = vand.u32 %v6261, 4294901760
    %6263 = vmatpush1.msra.mxu0 %v6262
    %6264 = vmatprep.subr.mxu0 0.0
    %v6265 = vand.u32 %v44, 4294901760
    %v6266 = vsub.f32 %v44, %v6265
    %v6267 = vand.u32 %v6266, 4294901760
    %v6268 = vsub.f32 %v6266, %v6267
    %v6269 = vand.u32 %v6268, 4294901760
    %6270 = vmatpush1.msra.mxu0 %v6269
    %6271 = vmatprep.subr.mxu0 0.0
    %v6272 = vand.u32 %v45, 4294901760
    %v6273 = vsub.f32 %v45, %v6272
    %v6274 = vand.u32 %v6273, 4294901760
    %v6275 = vsub.f32 %v6273, %v6274
    %v6276 = vand.u32 %v6275, 4294901760
    %6277 = vmatpush1.msra.mxu0 %v6276
    %6278 = vmatprep.subr.mxu0 0.0
    %v6279 = vand.u32 %v46, 4294901760
    %v6280 = vsub.f32 %v46, %v6279
    %v6281 = vand.u32 %v6280, 4294901760
    %v6282 = vsub.f32 %v6280, %v6281
    %v6283 = vand.u32 %v6282, 4294901760
    %6284 = vmatpush1.msra.mxu0 %v6283
    %6285 = vmatprep.subr.mxu0 0.0
    %6286 = vmatpush1.msra.mxu0 0.0
    %6287 = vmatprep.subr.mxu0 0.0
    %6288 = vmatpush1.msra.mxu0 0.0
    %6289 = vmatprep.subr.mxu0 0.0
    %6290 = vmatpush1.msra.mxu0 0.0
    %6291 = vmatprep.subr.mxu0 0.0
    %6292 = vmatpush1.msra.mxu0 0.0
    %6293 = vmatprep.subr.mxu0 0.0
    %6294 = vmatpush1.msra.mxu0 0.0
    %6295 = vmatprep.subr.mxu0 0.0
    %6296 = vmatpush1.msra.mxu0 0.0
    %6297 = vmatprep.subr.mxu0 0.0
    %6298 = vmatpush1.msra.mxu0 0.0
    %6299 = vmatprep.subr.mxu0 0.0
    %6300 = vmatpush1.msra.mxu0 0.0
    %6301 = vmatprep.subr.mxu0 0.0
    %6302 = vmatpush1.msra.mxu0 0.0
    %6303 = vmatprep.subr.mxu0 0.0
    %6304 = vmatpush1.msra.mxu0 0.0
    %6305 = vmatprep.subr.mxu0 0.0
    %6306 = vmatpush1.msra.mxu0 0.0
    %6307 = vmatprep.subr.mxu0 0.0
    %6308 = vmatpush1.msra.mxu0 0.0
    %6309 = vmatprep.subr.mxu0 0.0
    %6310 = vmatpush1.msra.mxu0 0.0
    %6311 = vmatprep.subr.mxu0 0.0
    %6312 = vmatpush1.msra.mxu0 0.0
    %6313 = vmatprep.subr.mxu0 0.0
    %6314 = vmatpush1.msra.mxu0 0.0
    %6315 = vmatprep.subr.mxu0 0.0
    %6316 = vmatpush1.msra.mxu0 0.0
    %6317 = vmatprep.subr.mxu0 0.0
    %6318 = vmatpush1.msra.mxu0 0.0
    %6319 = vmatprep.subr.mxu0 0.0
    %6320 = vmatpush1.msra.mxu0 0.0
    %6321 = vmatprep.subr.mxu0 0.0
    %6322 = vmatpush1.msra.mxu0 0.0
    %6323 = vmatprep.subr.mxu0 0.0
    %6324 = vmatpush1.msra.mxu0 0.0
    %6325 = vmatprep.subr.mxu0 0.0
    %6326 = vmatpush1.msra.mxu0 0.0
    %6327 = vmatprep.subr.mxu0 0.0
    %6328 = vmatpush1.msra.mxu0 0.0
    %6329 = vmatprep.subr.mxu0 0.0
    %6330 = vmatpush1.msra.mxu0 0.0
    %6331 = vmatprep.subr.mxu0 0.0
    %6332 = vmatpush1.msra.mxu0 0.0
    %6333 = vmatprep.mubr.f32.mxu0 0.0
    %v6334 = vand.u32 %v6144, 4294901760
    %6335 = vmatmul.mubr.f32.gmra.mrb[0].mxu0 %v6334
    %v6336 = vpop.f32.mrb[0].mxu0
    %v6337 = vadd.f32 %v6226, %v6336
    %v6338 = vpop.f32.mrb[0].mxu0
    %6339 = vdwg.mxu0
    %6340 = vmatprep.subr.mxu0 0.0
    %v6341 = vand.u32 %v39, 4294901760
    %v6342 = vsub.f32 %v39, %v6341
    %6343 = vmatpush1.msra.mxu0 %v6342
    %6344 = vmatprep.subr.mxu0 0.0
    %v6345 = vand.u32 %v40, 4294901760
    %v6346 = vsub.f32 %v40, %v6345
    %6347 = vmatpush1.msra.mxu0 %v6346
    %6348 = vmatprep.subr.mxu0 0.0
    %v6349 = vand.u32 %v41, 4294901760
    %v6350 = vsub.f32 %v41, %v6349
    %6351 = vmatpush1.msra.mxu0 %v6350
    %6352 = vmatprep.subr.mxu0 0.0
    %v6353 = vand.u32 %v42, 4294901760
    %v6354 = vsub.f32 %v42, %v6353
    %6355 = vmatpush1.msra.mxu0 %v6354
    %6356 = vmatprep.subr.mxu0 0.0
    %v6357 = vand.u32 %v43, 4294901760
    %v6358 = vsub.f32 %v43, %v6357
    %6359 = vmatpush1.msra.mxu0 %v6358
    %6360 = vmatprep.subr.mxu0 0.0
    %v6361 = vand.u32 %v44, 4294901760
    %v6362 = vsub.f32 %v44, %v6361
    %6363 = vmatpush1.msra.mxu0 %v6362
    %6364 = vmatprep.subr.mxu0 0.0
    %v6365 = vand.u32 %v45, 4294901760
    %v6366 = vsub.f32 %v45, %v6365
    %6367 = vmatpush1.msra.mxu0 %v6366
    %6368 = vmatprep.subr.mxu0 0.0
    %v6369 = vand.u32 %v46, 4294901760
    %v6370 = vsub.f32 %v46, %v6369
    %6371 = vmatpush1.msra.mxu0 %v6370
    %6372 = vmatprep.subr.mxu0 0.0
    %6373 = vmatpush1.msra.mxu0 0.0
    %6374 = vmatprep.subr.mxu0 0.0
    %6375 = vmatpush1.msra.mxu0 0.0
    %6376 = vmatprep.subr.mxu0 0.0
    %6377 = vmatpush1.msra.mxu0 0.0
    %6378 = vmatprep.subr.mxu0 0.0
    %6379 = vmatpush1.msra.mxu0 0.0
    %6380 = vmatprep.subr.mxu0 0.0
    %6381 = vmatpush1.msra.mxu0 0.0
    %6382 = vmatprep.subr.mxu0 0.0
    %6383 = vmatpush1.msra.mxu0 0.0
    %6384 = vmatprep.subr.mxu0 0.0
    %6385 = vmatpush1.msra.mxu0 0.0
    %6386 = vmatprep.subr.mxu0 0.0
    %6387 = vmatpush1.msra.mxu0 0.0
    %6388 = vmatprep.subr.mxu0 0.0
    %6389 = vmatpush1.msra.mxu0 0.0
    %6390 = vmatprep.subr.mxu0 0.0
    %6391 = vmatpush1.msra.mxu0 0.0
    %6392 = vmatprep.subr.mxu0 0.0
    %6393 = vmatpush1.msra.mxu0 0.0
    %6394 = vmatprep.subr.mxu0 0.0
    %6395 = vmatpush1.msra.mxu0 0.0
    %6396 = vmatprep.subr.mxu0 0.0
    %6397 = vmatpush1.msra.mxu0 0.0
    %6398 = vmatprep.subr.mxu0 0.0
    %6399 = vmatpush1.msra.mxu0 0.0
    %6400 = vmatprep.subr.mxu0 0.0
    %6401 = vmatpush1.msra.mxu0 0.0
    %6402 = vmatprep.subr.mxu0 0.0
    %6403 = vmatpush1.msra.mxu0 0.0
    %6404 = vmatprep.subr.mxu0 0.0
    %6405 = vmatpush1.msra.mxu0 0.0
    %6406 = vmatprep.subr.mxu0 0.0
    %6407 = vmatpush1.msra.mxu0 0.0
    %6408 = vmatprep.subr.mxu0 0.0
    %6409 = vmatpush1.msra.mxu0 0.0
    %6410 = vmatprep.subr.mxu0 0.0
    %6411 = vmatpush1.msra.mxu0 0.0
    %6412 = vmatprep.subr.mxu0 0.0
    %6413 = vmatpush1.msra.mxu0 0.0
    %6414 = vmatprep.subr.mxu0 0.0
    %6415 = vmatpush1.msra.mxu0 0.0
    %6416 = vmatprep.subr.mxu0 0.0
    %6417 = vmatpush1.msra.mxu0 0.0
    %6418 = vmatprep.subr.mxu0 0.0
    %6419 = vmatpush1.msra.mxu0 0.0
    %6420 = vmatprep.mubr.f32.mxu0 0.0
    %v6421 = vand.u32 %v6144, 4294901760
    %v6422 = vsub.f32 %v6144, %v6421
    %6423 = vmatmul.mubr.f32.gmra.mrb[0].mxu0 %v6422
    %v6424 = vpop.f32.mrb[0].mxu0
    %v6425 = vadd.f32 %v6337, %v6424
    %v6426 = vpop.f32.mrb[0].mxu0
    %6427 = vdwg.mxu0
    %6428 = vmatprep.subr.mxu0 0.0
    %v6429 = vand.u32 %v39, 4294901760
    %6430 = vmatpush1.msra.mxu0 %v6429
    %6431 = vmatprep.subr.mxu0 0.0
    %v6432 = vand.u32 %v40, 4294901760
    %6433 = vmatpush1.msra.mxu0 %v6432
    %6434 = vmatprep.subr.mxu0 0.0
    %v6435 = vand.u32 %v41, 4294901760
    %6436 = vmatpush1.msra.mxu0 %v6435
    %6437 = vmatprep.subr.mxu0 0.0
    %v6438 = vand.u32 %v42, 4294901760
    %6439 = vmatpush1.msra.mxu0 %v6438
    %6440 = vmatprep.subr.mxu0 0.0
    %v6441 = vand.u32 %v43, 4294901760
    %6442 = vmatpush1.msra.mxu0 %v6441
    %6443 = vmatprep.subr.mxu0 0.0
    %v6444 = vand.u32 %v44, 4294901760
    %6445 = vmatpush1.msra.mxu0 %v6444
    %6446 = vmatprep.subr.mxu0 0.0
    %v6447 = vand.u32 %v45, 4294901760
    %6448 = vmatpush1.msra.mxu0 %v6447
    %6449 = vmatprep.subr.mxu0 0.0
    %v6450 = vand.u32 %v46, 4294901760
    %6451 = vmatpush1.msra.mxu0 %v6450
    %6452 = vmatprep.subr.mxu0 0.0
    %6453 = vmatpush1.msra.mxu0 0.0
    %6454 = vmatprep.subr.mxu0 0.0
    %6455 = vmatpush1.msra.mxu0 0.0
    %6456 = vmatprep.subr.mxu0 0.0
    %6457 = vmatpush1.msra.mxu0 0.0
    %6458 = vmatprep.subr.mxu0 0.0
    %6459 = vmatpush1.msra.mxu0 0.0
    %6460 = vmatprep.subr.mxu0 0.0
    %6461 = vmatpush1.msra.mxu0 0.0
    %6462 = vmatprep.subr.mxu0 0.0
    %6463 = vmatpush1.msra.mxu0 0.0
    %6464 = vmatprep.subr.mxu0 0.0
    %6465 = vmatpush1.msra.mxu0 0.0
    %6466 = vmatprep.subr.mxu0 0.0
    %6467 = vmatpush1.msra.mxu0 0.0
    %6468 = vmatprep.subr.mxu0 0.0
    %6469 = vmatpush1.msra.mxu0 0.0
    %6470 = vmatprep.subr.mxu0 0.0
    %6471 = vmatpush1.msra.mxu0 0.0
    %6472 = vmatprep.subr.mxu0 0.0
    %6473 = vmatpush1.msra.mxu0 0.0
    %6474 = vmatprep.subr.mxu0 0.0
    %6475 = vmatpush1.msra.mxu0 0.0
    %6476 = vmatprep.subr.mxu0 0.0
    %6477 = vmatpush1.msra.mxu0 0.0
    %6478 = vmatprep.subr.mxu0 0.0
    %6479 = vmatpush1.msra.mxu0 0.0
    %6480 = vmatprep.subr.mxu0 0.0
    %6481 = vmatpush1.msra.mxu0 0.0
    %6482 = vmatprep.subr.mxu0 0.0
    %6483 = vmatpush1.msra.mxu0 0.0
    %6484 = vmatprep.subr.mxu0 0.0
    %6485 = vmatpush1.msra.mxu0 0.0
    %6486 = vmatprep.subr.mxu0 0.0
    %6487 = vmatpush1.msra.mxu0 0.0
    %6488 = vmatprep.subr.mxu0 0.0
    %6489 = vmatpush1.msra.mxu0 0.0
    %6490 = vmatprep.subr.mxu0 0.0
    %6491 = vmatpush1.msra.mxu0 0.0
    %6492 = vmatprep.subr.mxu0 0.0
    %6493 = vmatpush1.msra.mxu0 0.0
    %6494 = vmatprep.subr.mxu0 0.0
    %6495 = vmatpush1.msra.mxu0 0.0
    %6496 = vmatprep.subr.mxu0 0.0
    %6497 = vmatpush1.msra.mxu0 0.0
    %6498 = vmatprep.subr.mxu0 0.0
    %6499 = vmatpush1.msra.mxu0 0.0
    %6500 = vmatprep.mubr.f32.mxu0 0.0
    %v6501 = vand.u32 %v6144, 4294901760
    %v6502 = vsub.f32 %v6144, %v6501
    %v6503 = vand.u32 %v6502, 4294901760
    %6504 = vmatmul.mubr.f32.gmra.mrb[0].mxu0 %v6503
    %v6505 = vpop.f32.mrb[0].mxu0
    %v6506 = vadd.f32 %v6425, %v6505
    %v6507 = vpop.f32.mrb[0].mxu0
    %6508 = vdwg.mxu0
    %6509 = vmatprep.subr.mxu0 0.0
    %v6510 = vand.u32 %v39, 4294901760
    %v6511 = vsub.f32 %v39, %v6510
    %v6512 = vand.u32 %v6511, 4294901760
    %6513 = vmatpush1.msra.mxu0 %v6512
    %6514 = vmatprep.subr.mxu0 0.0
    %v6515 = vand.u32 %v40, 4294901760
    %v6516 = vsub.f32 %v40, %v6515
    %v6517 = vand.u32 %v6516, 4294901760
    %6518 = vmatpush1.msra.mxu0 %v6517
    %6519 = vmatprep.subr.mxu0 0.0
    %v6520 = vand.u32 %v41, 4294901760
    %v6521 = vsub.f32 %v41, %v6520
    %v6522 = vand.u32 %v6521, 4294901760
    %6523 = vmatpush1.msra.mxu0 %v6522
    %6524 = vmatprep.subr.mxu0 0.0
    %v6525 = vand.u32 %v42, 4294901760
    %v6526 = vsub.f32 %v42, %v6525
    %v6527 = vand.u32 %v6526, 4294901760
    %6528 = vmatpush1.msra.mxu0 %v6527
    %6529 = vmatprep.subr.mxu0 0.0
    %v6530 = vand.u32 %v43, 4294901760
    %v6531 = vsub.f32 %v43, %v6530
    %v6532 = vand.u32 %v6531, 4294901760
    %6533 = vmatpush1.msra.mxu0 %v6532
    %6534 = vmatprep.subr.mxu0 0.0
    %v6535 = vand.u32 %v44, 4294901760
    %v6536 = vsub.f32 %v44, %v6535
    %v6537 = vand.u32 %v6536, 4294901760
    %6538 = vmatpush1.msra.mxu0 %v6537
    %6539 = vmatprep.subr.mxu0 0.0
    %v6540 = vand.u32 %v45, 4294901760
    %v6541 = vsub.f32 %v45, %v6540
    %v6542 = vand.u32 %v6541, 4294901760
    %6543 = vmatpush1.msra.mxu0 %v6542
    %6544 = vmatprep.subr.mxu0 0.0
    %v6545 = vand.u32 %v46, 4294901760
    %v6546 = vsub.f32 %v46, %v6545
    %v6547 = vand.u32 %v6546, 4294901760
    %6548 = vmatpush1.msra.mxu0 %v6547
    %6549 = vmatprep.subr.mxu0 0.0
    %6550 = vmatpush1.msra.mxu0 0.0
    %6551 = vmatprep.subr.mxu0 0.0
    %6552 = vmatpush1.msra.mxu0 0.0
    %6553 = vmatprep.subr.mxu0 0.0
    %6554 = vmatpush1.msra.mxu0 0.0
    %6555 = vmatprep.subr.mxu0 0.0
    %6556 = vmatpush1.msra.mxu0 0.0
    %6557 = vmatprep.subr.mxu0 0.0
    %6558 = vmatpush1.msra.mxu0 0.0
    %6559 = vmatprep.subr.mxu0 0.0
    %6560 = vmatpush1.msra.mxu0 0.0
    %6561 = vmatprep.subr.mxu0 0.0
    %6562 = vmatpush1.msra.mxu0 0.0
    %6563 = vmatprep.subr.mxu0 0.0
    %6564 = vmatpush1.msra.mxu0 0.0
    %6565 = vmatprep.subr.mxu0 0.0
    %6566 = vmatpush1.msra.mxu0 0.0
    %6567 = vmatprep.subr.mxu0 0.0
    %6568 = vmatpush1.msra.mxu0 0.0
    %6569 = vmatprep.subr.mxu0 0.0
    %6570 = vmatpush1.msra.mxu0 0.0
    %6571 = vmatprep.subr.mxu0 0.0
    %6572 = vmatpush1.msra.mxu0 0.0
    %6573 = vmatprep.subr.mxu0 0.0
    %6574 = vmatpush1.msra.mxu0 0.0
    %6575 = vmatprep.subr.mxu0 0.0
    %6576 = vmatpush1.msra.mxu0 0.0
    %6577 = vmatprep.subr.mxu0 0.0
    %6578 = vmatpush1.msra.mxu0 0.0
    %6579 = vmatprep.subr.mxu0 0.0
    %6580 = vmatpush1.msra.mxu0 0.0
    %6581 = vmatprep.subr.mxu0 0.0
    %6582 = vmatpush1.msra.mxu0 0.0
    %6583 = vmatprep.subr.mxu0 0.0
    %6584 = vmatpush1.msra.mxu0 0.0
    %6585 = vmatprep.subr.mxu0 0.0
    %6586 = vmatpush1.msra.mxu0 0.0
    %6587 = vmatprep.subr.mxu0 0.0
    %6588 = vmatpush1.msra.mxu0 0.0
    %6589 = vmatprep.subr.mxu0 0.0
    %6590 = vmatpush1.msra.mxu0 0.0
    %6591 = vmatprep.subr.mxu0 0.0
    %6592 = vmatpush1.msra.mxu0 0.0
    %6593 = vmatprep.subr.mxu0 0.0
    %6594 = vmatpush1.msra.mxu0 0.0
    %6595 = vmatprep.subr.mxu0 0.0
    %6596 = vmatpush1.msra.mxu0 0.0
    %6597 = vmatprep.mubr.f32.mxu0 0.0
    %v6598 = vand.u32 %v6144, 4294901760
    %6599 = vmatmul.mubr.f32.gmra.mrb[0].mxu0 %v6598
    %v6600 = vpop.f32.mrb[0].mxu0
    %v6601 = vadd.f32 %v6506, %v6600
    %v6602 = vpop.f32.mrb[0].mxu0
    %6603 = vdwg.mxu0
    %6604 = vmatprep.subr.mxu0 0.0
    %v6605 = vand.u32 %v39, 4294901760
    %6606 = vmatpush1.msra.mxu0 %v6605
    %6607 = vmatprep.subr.mxu0 0.0
    %v6608 = vand.u32 %v40, 4294901760
    %6609 = vmatpush1.msra.mxu0 %v6608
    %6610 = vmatprep.subr.mxu0 0.0
    %v6611 = vand.u32 %v41, 4294901760
    %6612 = vmatpush1.msra.mxu0 %v6611
    %6613 = vmatprep.subr.mxu0 0.0
    %v6614 = vand.u32 %v42, 4294901760
    %6615 = vmatpush1.msra.mxu0 %v6614
    %6616 = vmatprep.subr.mxu0 0.0
    %v6617 = vand.u32 %v43, 4294901760
    %6618 = vmatpush1.msra.mxu0 %v6617
    %6619 = vmatprep.subr.mxu0 0.0
    %v6620 = vand.u32 %v44, 4294901760
    %6621 = vmatpush1.msra.mxu0 %v6620
    %6622 = vmatprep.subr.mxu0 0.0
    %v6623 = vand.u32 %v45, 4294901760
    %6624 = vmatpush1.msra.mxu0 %v6623
    %6625 = vmatprep.subr.mxu0 0.0
    %v6626 = vand.u32 %v46, 4294901760
    %6627 = vmatpush1.msra.mxu0 %v6626
    %6628 = vmatprep.subr.mxu0 0.0
    %6629 = vmatpush1.msra.mxu0 0.0
    %6630 = vmatprep.subr.mxu0 0.0
    %6631 = vmatpush1.msra.mxu0 0.0
    %6632 = vmatprep.subr.mxu0 0.0
    %6633 = vmatpush1.msra.mxu0 0.0
    %6634 = vmatprep.subr.mxu0 0.0
    %6635 = vmatpush1.msra.mxu0 0.0
    %6636 = vmatprep.subr.mxu0 0.0
    %6637 = vmatpush1.msra.mxu0 0.0
    %6638 = vmatprep.subr.mxu0 0.0
    %6639 = vmatpush1.msra.mxu0 0.0
    %6640 = vmatprep.subr.mxu0 0.0
    %6641 = vmatpush1.msra.mxu0 0.0
    %6642 = vmatprep.subr.mxu0 0.0
    %6643 = vmatpush1.msra.mxu0 0.0
    %6644 = vmatprep.subr.mxu0 0.0
    %6645 = vmatpush1.msra.mxu0 0.0
    %6646 = vmatprep.subr.mxu0 0.0
    %6647 = vmatpush1.msra.mxu0 0.0
    %6648 = vmatprep.subr.mxu0 0.0
    %6649 = vmatpush1.msra.mxu0 0.0
    %6650 = vmatprep.subr.mxu0 0.0
    %6651 = vmatpush1.msra.mxu0 0.0
    %6652 = vmatprep.subr.mxu0 0.0
    %6653 = vmatpush1.msra.mxu0 0.0
    %6654 = vmatprep.subr.mxu0 0.0
    %6655 = vmatpush1.msra.mxu0 0.0
    %6656 = vmatprep.subr.mxu0 0.0
    %6657 = vmatpush1.msra.mxu0 0.0
    %6658 = vmatprep.subr.mxu0 0.0
    %6659 = vmatpush1.msra.mxu0 0.0
    %6660 = vmatprep.subr.mxu0 0.0
    %6661 = vmatpush1.msra.mxu0 0.0
    %6662 = vmatprep.subr.mxu0 0.0
    %6663 = vmatpush1.msra.mxu0 0.0
    %6664 = vmatprep.subr.mxu0 0.0
    %6665 = vmatpush1.msra.mxu0 0.0
    %6666 = vmatprep.subr.mxu0 0.0
    %6667 = vmatpush1.msra.mxu0 0.0
    %6668 = vmatprep.subr.mxu0 0.0
    %6669 = vmatpush1.msra.mxu0 0.0
    %6670 = vmatprep.subr.mxu0 0.0
    %6671 = vmatpush1.msra.mxu0 0.0
    %6672 = vmatprep.subr.mxu0 0.0
    %6673 = vmatpush1.msra.mxu0 0.0
    %6674 = vmatprep.subr.mxu0 0.0
    %6675 = vmatpush1.msra.mxu0 0.0
    %6676 = vmatprep.mubr.f32.mxu0 0.0
    %v6677 = vand.u32 %v6144, 4294901760
    %6678 = vmatmul.mubr.f32.gmra.mrb[0].mxu0 %v6677
    %v6679 = vpop.f32.mrb[0].mxu0
    %v6680 = vadd.f32 %v6601, %v6679
    %v6681 = vpop.f32.mrb[0].mxu0
    %6682 = vdwg.mxu0
    %v6683 = vadd.f32 %v6680, %v52
    %v6684 = vxor.u32 %v6683, 2147483648
    %v6685 = vmul.f32 %v6684, 1.442695
    %v6686 = vpow.pop %v6685
    %v6687 = vadd.f32 %v6686, 1.0
    %v6688 = vrcp.pop %v6687
    %v6689 = vmul.f32 1.0, %v6688
    %v6690 = vadd.f32 %v6680, %v1149
    %6692 = vrot.lane.b32.xlu0 %v6690, 32
    %v6693 = vpop.permute.xlu0 %6692
    %v6695 = vmul.f32 %v6689, %v6693
    %6697 = vrot.lane.b32.xlu0 %v6695, 64
    %v6698 = vpop.permute.xlu0 %6697
    %v6700 = vadd.f32 %v6683, %v6698
    %v6701 = vtanh.pop %v6700
    %v6702 = vsub.f32 1.0, %v6689
    %6704 = vrot.lane.b32.xlu0 %v6701, 96
    %v6705 = vpop.permute.xlu0 %6704
    %v6707 = vmul.f32 %v6702, %v6705
    %v6708 = vmul.f32 %v6689, %v5604
    %v6709 = vadd.f32 %v6707, %v6708
    %v6710 = vmul.f32 %v6128, %v6709
    %v6711 = vmul.f32 %v6134, %v5604
    %v6712 = vadd.f32 %v6710, %v6711
    %v6713 = vmul.f32 %v6128, %v6712
    %s6714 = scalar_lea.vmem %s1, 12
    %v6715 = vld [vmem:[%s6714] sm:$0x3]
    %v6716 = vsub.f32 1.0, %v6715
    %s6717 = scalar_lea.vmem %s0, 12
    %v6718 = vld [vmem:[%s6717] sm:$0x3]
    %v6719 = vsel %vm63, %v6140, 0
    %6721 = vmatprep.subr.mxu0 0.0
    %v6722 = vand.u32 %v29, 4294901760
    %6723 = vmatpush1.msra.mxu0 %v6722
    %6724 = vmatprep.subr.mxu0 0.0
    %v6725 = vand.u32 %v30, 4294901760
    %6726 = vmatpush1.msra.mxu0 %v6725
    %6727 = vmatprep.subr.mxu0 0.0
    %v6728 = vand.u32 %v31, 4294901760
    %6729 = vmatpush1.msra.mxu0 %v6728
    %6730 = vmatprep.subr.mxu0 0.0
    %v6731 = vand.u32 %v32, 4294901760
    %6732 = vmatpush1.msra.mxu0 %v6731
    %6733 = vmatprep.subr.mxu0 0.0
    %6734 = vmatpush1.msra.mxu0 0.0
    %6735 = vmatprep.subr.mxu0 0.0
    %6736 = vmatpush1.msra.mxu0 0.0
    %6737 = vmatprep.subr.mxu0 0.0
    %6738 = vmatpush1.msra.mxu0 0.0
    %6739 = vmatprep.subr.mxu0 0.0
    %6740 = vmatpush1.msra.mxu0 0.0
    %6741 = vmatprep.subr.mxu0 0.0
    %6742 = vmatpush1.msra.mxu0 0.0
    %6743 = vmatprep.subr.mxu0 0.0
    %6744 = vmatpush1.msra.mxu0 0.0
    %6745 = vmatprep.subr.mxu0 0.0
    %6746 = vmatpush1.msra.mxu0 0.0
    %6747 = vmatprep.subr.mxu0 0.0
    %6748 = vmatpush1.msra.mxu0 0.0
    %6749 = vmatprep.subr.mxu0 0.0
    %6750 = vmatpush1.msra.mxu0 0.0
    %6751 = vmatprep.subr.mxu0 0.0
    %6752 = vmatpush1.msra.mxu0 0.0
    %6753 = vmatprep.subr.mxu0 0.0
    %6754 = vmatpush1.msra.mxu0 0.0
    %6755 = vmatprep.subr.mxu0 0.0
    %6756 = vmatpush1.msra.mxu0 0.0
    %6757 = vmatprep.subr.mxu0 0.0
    %6758 = vmatpush1.msra.mxu0 0.0
    %6759 = vmatprep.subr.mxu0 0.0
    %6760 = vmatpush1.msra.mxu0 0.0
    %6761 = vmatprep.subr.mxu0 0.0
    %6762 = vmatpush1.msra.mxu0 0.0
    %6763 = vmatprep.subr.mxu0 0.0
    %6764 = vmatpush1.msra.mxu0 0.0
    %6765 = vmatprep.subr.mxu0 0.0
    %6766 = vmatpush1.msra.mxu0 0.0
    %6767 = vmatprep.subr.mxu0 0.0
    %6768 = vmatpush1.msra.mxu0 0.0
    %6769 = vmatprep.subr.mxu0 0.0
    %6770 = vmatpush1.msra.mxu0 0.0
    %6771 = vmatprep.subr.mxu0 0.0
    %6772 = vmatpush1.msra.mxu0 0.0
    %6773 = vmatprep.subr.mxu0 0.0
    %6774 = vmatpush1.msra.mxu0 0.0
    %6775 = vmatprep.subr.mxu0 0.0
    %6776 = vmatpush1.msra.mxu0 0.0
    %6777 = vmatprep.subr.mxu0 0.0
    %6778 = vmatpush1.msra.mxu0 0.0
    %6779 = vmatprep.subr.mxu0 0.0
    %6780 = vmatpush1.msra.mxu0 0.0
    %6781 = vmatprep.subr.mxu0 0.0
    %6782 = vmatpush1.msra.mxu0 0.0
    %6783 = vmatprep.subr.mxu0 0.0
    %6784 = vmatpush1.msra.mxu0 0.0
    %6785 = vmatprep.subr.mxu0 0.0
    %6786 = vmatpush1.msra.mxu0 0.0
    %6787 = vmatprep.subr.mxu0 0.0
    %6788 = vmatpush1.msra.mxu0 0.0
    %6789 = vmatprep.mubr.f32.mxu0 0.0
    %v6790 = vand.u32 %v6719, 4294901760
    %v6791 = vsub.f32 %v6719, %v6790
    %v6792 = vand.u32 %v6791, 4294901760
    %v6793 = vsub.f32 %v6791, %v6792
    %v6794 = vand.u32 %v6793, 4294901760
    %6795 = vmatmul.mubr.f32.gmra.mrb[0].mxu0 %v6794
    %v6796 = vpop.f32.mrb[0].mxu0
    %v6797 = vadd.f32 0.0, %v6796
    %v6798 = vpop.f32.mrb[0].mxu0
    %6799 = vdwg.mxu0
    %6800 = vmatprep.subr.mxu0 0.0
    %v6801 = vand.u32 %v29, 4294901760
    %v6802 = vsub.f32 %v29, %v6801
    %v6803 = vand.u32 %v6802, 4294901760
    %v6804 = vsub.f32 %v6802, %v6803
    %v6805 = vand.u32 %v6804, 4294901760
    %6806 = vmatpush1.msra.mxu0 %v6805
    %6807 = vmatprep.subr.mxu0 0.0
    %v6808 = vand.u32 %v30, 4294901760
    %v6809 = vsub.f32 %v30, %v6808
    %v6810 = vand.u32 %v6809, 4294901760
    %v6811 = vsub.f32 %v6809, %v6810
    %v6812 = vand.u32 %v6811, 4294901760
    %6813 = vmatpush1.msra.mxu0 %v6812
    %6814 = vmatprep.subr.mxu0 0.0
    %v6815 = vand.u32 %v31, 4294901760
    %v6816 = vsub.f32 %v31, %v6815
    %v6817 = vand.u32 %v6816, 4294901760
    %v6818 = vsub.f32 %v6816, %v6817
    %v6819 = vand.u32 %v6818, 4294901760
    %6820 = vmatpush1.msra.mxu0 %v6819
    %6821 = vmatprep.subr.mxu0 0.0
    %v6822 = vand.u32 %v32, 4294901760
    %v6823 = vsub.f32 %v32, %v6822
    %v6824 = vand.u32 %v6823, 4294901760
    %v6825 = vsub.f32 %v6823, %v6824
    %v6826 = vand.u32 %v6825, 4294901760
    %6827 = vmatpush1.msra.mxu0 %v6826
    %6828 = vmatprep.subr.mxu0 0.0
    %6829 = vmatpush1.msra.mxu0 0.0
    %6830 = vmatprep.subr.mxu0 0.0
    %6831 = vmatpush1.msra.mxu0 0.0
    %6832 = vmatprep.subr.mxu0 0.0
    %6833 = vmatpush1.msra.mxu0 0.0
    %6834 = vmatprep.subr.mxu0 0.0
    %6835 = vmatpush1.msra.mxu0 0.0
    %6836 = vmatprep.subr.mxu0 0.0
    %6837 = vmatpush1.msra.mxu0 0.0
    %6838 = vmatprep.subr.mxu0 0.0
    %6839 = vmatpush1.msra.mxu0 0.0
    %6840 = vmatprep.subr.mxu0 0.0
    %6841 = vmatpush1.msra.mxu0 0.0
    %6842 = vmatprep.subr.mxu0 0.0
    %6843 = vmatpush1.msra.mxu0 0.0
    %6844 = vmatprep.subr.mxu0 0.0
    %6845 = vmatpush1.msra.mxu0 0.0
    %6846 = vmatprep.subr.mxu0 0.0
    %6847 = vmatpush1.msra.mxu0 0.0
    %6848 = vmatprep.subr.mxu0 0.0
    %6849 = vmatpush1.msra.mxu0 0.0
    %6850 = vmatprep.subr.mxu0 0.0
    %6851 = vmatpush1.msra.mxu0 0.0
    %6852 = vmatprep.subr.mxu0 0.0
    %6853 = vmatpush1.msra.mxu0 0.0
    %6854 = vmatprep.subr.mxu0 0.0
    %6855 = vmatpush1.msra.mxu0 0.0
    %6856 = vmatprep.subr.mxu0 0.0
    %6857 = vmatpush1.msra.mxu0 0.0
    %6858 = vmatprep.subr.mxu0 0.0
    %6859 = vmatpush1.msra.mxu0 0.0
    %6860 = vmatprep.subr.mxu0 0.0
    %6861 = vmatpush1.msra.mxu0 0.0
    %6862 = vmatprep.subr.mxu0 0.0
    %6863 = vmatpush1.msra.mxu0 0.0
    %6864 = vmatprep.subr.mxu0 0.0
    %6865 = vmatpush1.msra.mxu0 0.0
    %6866 = vmatprep.subr.mxu0 0.0
    %6867 = vmatpush1.msra.mxu0 0.0
    %6868 = vmatprep.subr.mxu0 0.0
    %6869 = vmatpush1.msra.mxu0 0.0
    %6870 = vmatprep.subr.mxu0 0.0
    %6871 = vmatpush1.msra.mxu0 0.0
    %6872 = vmatprep.subr.mxu0 0.0
    %6873 = vmatpush1.msra.mxu0 0.0
    %6874 = vmatprep.subr.mxu0 0.0
    %6875 = vmatpush1.msra.mxu0 0.0
    %6876 = vmatprep.subr.mxu0 0.0
    %6877 = vmatpush1.msra.mxu0 0.0
    %6878 = vmatprep.subr.mxu0 0.0
    %6879 = vmatpush1.msra.mxu0 0.0
    %6880 = vmatprep.subr.mxu0 0.0
    %6881 = vmatpush1.msra.mxu0 0.0
    %6882 = vmatprep.subr.mxu0 0.0
    %6883 = vmatpush1.msra.mxu0 0.0
    %6884 = vmatprep.mubr.f32.mxu0 0.0
    %v6885 = vand.u32 %v6719, 4294901760
    %6886 = vmatmul.mubr.f32.gmra.mrb[0].mxu0 %v6885
    %v6887 = vpop.f32.mrb[0].mxu0
    %v6888 = vadd.f32 %v6797, %v6887
    %v6889 = vpop.f32.mrb[0].mxu0
    %6890 = vdwg.mxu0
    %6891 = vmatprep.subr.mxu0 0.0
    %v6892 = vand.u32 %v29, 4294901760
    %v6893 = vsub.f32 %v29, %v6892
    %6894 = vmatpush1.msra.mxu0 %v6893
    %6895 = vmatprep.subr.mxu0 0.0
    %v6896 = vand.u32 %v30, 4294901760
    %v6897 = vsub.f32 %v30, %v6896
    %6898 = vmatpush1.msra.mxu0 %v6897
    %6899 = vmatprep.subr.mxu0 0.0
    %v6900 = vand.u32 %v31, 4294901760
    %v6901 = vsub.f32 %v31, %v6900
    %6902 = vmatpush1.msra.mxu0 %v6901
    %6903 = vmatprep.subr.mxu0 0.0
    %v6904 = vand.u32 %v32, 4294901760
    %v6905 = vsub.f32 %v32, %v6904
    %6906 = vmatpush1.msra.mxu0 %v6905
    %6907 = vmatprep.subr.mxu0 0.0
    %6908 = vmatpush1.msra.mxu0 0.0
    %6909 = vmatprep.subr.mxu0 0.0
    %6910 = vmatpush1.msra.mxu0 0.0
    %6911 = vmatprep.subr.mxu0 0.0
    %6912 = vmatpush1.msra.mxu0 0.0
    %6913 = vmatprep.subr.mxu0 0.0
    %6914 = vmatpush1.msra.mxu0 0.0
    %6915 = vmatprep.subr.mxu0 0.0
    %6916 = vmatpush1.msra.mxu0 0.0
    %6917 = vmatprep.subr.mxu0 0.0
    %6918 = vmatpush1.msra.mxu0 0.0
    %6919 = vmatprep.subr.mxu0 0.0
    %6920 = vmatpush1.msra.mxu0 0.0
    %6921 = vmatprep.subr.mxu0 0.0
    %6922 = vmatpush1.msra.mxu0 0.0
    %6923 = vmatprep.subr.mxu0 0.0
    %6924 = vmatpush1.msra.mxu0 0.0
    %6925 = vmatprep.subr.mxu0 0.0
    %6926 = vmatpush1.msra.mxu0 0.0
    %6927 = vmatprep.subr.mxu0 0.0
    %6928 = vmatpush1.msra.mxu0 0.0
    %6929 = vmatprep.subr.mxu0 0.0
    %6930 = vmatpush1.msra.mxu0 0.0
    %6931 = vmatprep.subr.mxu0 0.0
    %6932 = vmatpush1.msra.mxu0 0.0
    %6933 = vmatprep.subr.mxu0 0.0
    %6934 = vmatpush1.msra.mxu0 0.0
    %6935 = vmatprep.subr.mxu0 0.0
    %6936 = vmatpush1.msra.mxu0 0.0
    %6937 = vmatprep.subr.mxu0 0.0
    %6938 = vmatpush1.msra.mxu0 0.0
    %6939 = vmatprep.subr.mxu0 0.0
    %6940 = vmatpush1.msra.mxu0 0.0
    %6941 = vmatprep.subr.mxu0 0.0
    %6942 = vmatpush1.msra.mxu0 0.0
    %6943 = vmatprep.subr.mxu0 0.0
    %6944 = vmatpush1.msra.mxu0 0.0
    %6945 = vmatprep.subr.mxu0 0.0
    %6946 = vmatpush1.msra.mxu0 0.0
    %6947 = vmatprep.subr.mxu0 0.0
    %6948 = vmatpush1.msra.mxu0 0.0
    %6949 = vmatprep.subr.mxu0 0.0
    %6950 = vmatpush1.msra.mxu0 0.0
    %6951 = vmatprep.subr.mxu0 0.0
    %6952 = vmatpush1.msra.mxu0 0.0
    %6953 = vmatprep.subr.mxu0 0.0
    %6954 = vmatpush1.msra.mxu0 0.0
    %6955 = vmatprep.subr.mxu0 0.0
    %6956 = vmatpush1.msra.mxu0 0.0
    %6957 = vmatprep.subr.mxu0 0.0
    %6958 = vmatpush1.msra.mxu0 0.0
    %6959 = vmatprep.subr.mxu0 0.0
    %6960 = vmatpush1.msra.mxu0 0.0
    %6961 = vmatprep.subr.mxu0 0.0
    %6962 = vmatpush1.msra.mxu0 0.0
    %6963 = vmatprep.mubr.f32.mxu0 0.0
    %v6964 = vand.u32 %v6719, 4294901760
    %v6965 = vsub.f32 %v6719, %v6964
    %6966 = vmatmul.mubr.f32.gmra.mrb[0].mxu0 %v6965
    %v6967 = vpop.f32.mrb[0].mxu0
    %v6968 = vadd.f32 %v6888, %v6967
    %v6969 = vpop.f32.mrb[0].mxu0
    %6970 = vdwg.mxu0
    %6971 = vmatprep.subr.mxu0 0.0
    %v6972 = vand.u32 %v29, 4294901760
    %6973 = vmatpush1.msra.mxu0 %v6972
    %6974 = vmatprep.subr.mxu0 0.0
    %v6975 = vand.u32 %v30, 4294901760
    %6976 = vmatpush1.msra.mxu0 %v6975
    %6977 = vmatprep.subr.mxu0 0.0
    %v6978 = vand.u32 %v31, 4294901760
    %6979 = vmatpush1.msra.mxu0 %v6978
    %6980 = vmatprep.subr.mxu0 0.0
    %v6981 = vand.u32 %v32, 4294901760
    %6982 = vmatpush1.msra.mxu0 %v6981
    %6983 = vmatprep.subr.mxu0 0.0
    %6984 = vmatpush1.msra.mxu0 0.0
    %6985 = vmatprep.subr.mxu0 0.0
    %6986 = vmatpush1.msra.mxu0 0.0
    %6987 = vmatprep.subr.mxu0 0.0
    %6988 = vmatpush1.msra.mxu0 0.0
    %6989 = vmatprep.subr.mxu0 0.0
    %6990 = vmatpush1.msra.mxu0 0.0
    %6991 = vmatprep.subr.mxu0 0.0
    %6992 = vmatpush1.msra.mxu0 0.0
    %6993 = vmatprep.subr.mxu0 0.0
    %6994 = vmatpush1.msra.mxu0 0.0
    %6995 = vmatprep.subr.mxu0 0.0
    %6996 = vmatpush1.msra.mxu0 0.0
    %6997 = vmatprep.subr.mxu0 0.0
    %6998 = vmatpush1.msra.mxu0 0.0
    %6999 = vmatprep.subr.mxu0 0.0
    %7000 = vmatpush1.msra.mxu0 0.0
    %7001 = vmatprep.subr.mxu0 0.0
    %7002 = vmatpush1.msra.mxu0 0.0
    %7003 = vmatprep.subr.mxu0 0.0
    %7004 = vmatpush1.msra.mxu0 0.0
    %7005 = vmatprep.subr.mxu0 0.0
    %7006 = vmatpush1.msra.mxu0 0.0
    %7007 = vmatprep.subr.mxu0 0.0
    %7008 = vmatpush1.msra.mxu0 0.0
    %7009 = vmatprep.subr.mxu0 0.0
    %7010 = vmatpush1.msra.mxu0 0.0
    %7011 = vmatprep.subr.mxu0 0.0
    %7012 = vmatpush1.msra.mxu0 0.0
    %7013 = vmatprep.subr.mxu0 0.0
    %7014 = vmatpush1.msra.mxu0 0.0
    %7015 = vmatprep.subr.mxu0 0.0
    %7016 = vmatpush1.msra.mxu0 0.0
    %7017 = vmatprep.subr.mxu0 0.0
    %7018 = vmatpush1.msra.mxu0 0.0
    %7019 = vmatprep.subr.mxu0 0.0
    %7020 = vmatpush1.msra.mxu0 0.0
    %7021 = vmatprep.subr.mxu0 0.0
    %7022 = vmatpush1.msra.mxu0 0.0
    %7023 = vmatprep.subr.mxu0 0.0
    %7024 = vmatpush1.msra.mxu0 0.0
    %7025 = vmatprep.subr.mxu0 0.0
    %7026 = vmatpush1.msra.mxu0 0.0
    %7027 = vmatprep.subr.mxu0 0.0
    %7028 = vmatpush1.msra.mxu0 0.0
    %7029 = vmatprep.subr.mxu0 0.0
    %7030 = vmatpush1.msra.mxu0 0.0
    %7031 = vmatprep.subr.mxu0 0.0
    %7032 = vmatpush1.msra.mxu0 0.0
    %7033 = vmatprep.subr.mxu0 0.0
    %7034 = vmatpush1.msra.mxu0 0.0
    %7035 = vmatprep.subr.mxu0 0.0
    %7036 = vmatpush1.msra.mxu0 0.0
    %7037 = vmatprep.subr.mxu0 0.0
    %7038 = vmatpush1.msra.mxu0 0.0
    %7039 = vmatprep.mubr.f32.mxu0 0.0
    %v7040 = vand.u32 %v6719, 4294901760
    %v7041 = vsub.f32 %v6719, %v7040
    %v7042 = vand.u32 %v7041, 4294901760
    %7043 = vmatmul.mubr.f32.gmra.mrb[0].mxu0 %v7042
    %v7044 = vpop.f32.mrb[0].mxu0
    %v7045 = vadd.f32 %v6968, %v7044
    %v7046 = vpop.f32.mrb[0].mxu0
    %7047 = vdwg.mxu0
    %7048 = vmatprep.subr.mxu0 0.0
    %v7049 = vand.u32 %v29, 4294901760
    %v7050 = vsub.f32 %v29, %v7049
    %v7051 = vand.u32 %v7050, 4294901760
    %7052 = vmatpush1.msra.mxu0 %v7051
    %7053 = vmatprep.subr.mxu0 0.0
    %v7054 = vand.u32 %v30, 4294901760
    %v7055 = vsub.f32 %v30, %v7054
    %v7056 = vand.u32 %v7055, 4294901760
    %7057 = vmatpush1.msra.mxu0 %v7056
    %7058 = vmatprep.subr.mxu0 0.0
    %v7059 = vand.u32 %v31, 4294901760
    %v7060 = vsub.f32 %v31, %v7059
    %v7061 = vand.u32 %v7060, 4294901760
    %7062 = vmatpush1.msra.mxu0 %v7061
    %7063 = vmatprep.subr.mxu0 0.0
    %v7064 = vand.u32 %v32, 4294901760
    %v7065 = vsub.f32 %v32, %v7064
    %v7066 = vand.u32 %v7065, 4294901760
    %7067 = vmatpush1.msra.mxu0 %v7066
    %7068 = vmatprep.subr.mxu0 0.0
    %7069 = vmatpush1.msra.mxu0 0.0
    %7070 = vmatprep.subr.mxu0 0.0
    %7071 = vmatpush1.msra.mxu0 0.0
    %7072 = vmatprep.subr.mxu0 0.0
    %7073 = vmatpush1.msra.mxu0 0.0
    %7074 = vmatprep.subr.mxu0 0.0
    %7075 = vmatpush1.msra.mxu0 0.0
    %7076 = vmatprep.subr.mxu0 0.0
    %7077 = vmatpush1.msra.mxu0 0.0
    %7078 = vmatprep.subr.mxu0 0.0
    %7079 = vmatpush1.msra.mxu0 0.0
    %7080 = vmatprep.subr.mxu0 0.0
    %7081 = vmatpush1.msra.mxu0 0.0
    %7082 = vmatprep.subr.mxu0 0.0
    %7083 = vmatpush1.msra.mxu0 0.0
    %7084 = vmatprep.subr.mxu0 0.0
    %7085 = vmatpush1.msra.mxu0 0.0
    %7086 = vmatprep.subr.mxu0 0.0
    %7087 = vmatpush1.msra.mxu0 0.0
    %7088 = vmatprep.subr.mxu0 0.0
    %7089 = vmatpush1.msra.mxu0 0.0
    %7090 = vmatprep.subr.mxu0 0.0
    %7091 = vmatpush1.msra.mxu0 0.0
    %7092 = vmatprep.subr.mxu0 0.0
    %7093 = vmatpush1.msra.mxu0 0.0
    %7094 = vmatprep.subr.mxu0 0.0
    %7095 = vmatpush1.msra.mxu0 0.0
    %7096 = vmatprep.subr.mxu0 0.0
    %7097 = vmatpush1.msra.mxu0 0.0
    %7098 = vmatprep.subr.mxu0 0.0
    %7099 = vmatpush1.msra.mxu0 0.0
    %7100 = vmatprep.subr.mxu0 0.0
    %7101 = vmatpush1.msra.mxu0 0.0
    %7102 = vmatprep.subr.mxu0 0.0
    %7103 = vmatpush1.msra.mxu0 0.0
    %7104 = vmatprep.subr.mxu0 0.0
    %7105 = vmatpush1.msra.mxu0 0.0
    %7106 = vmatprep.subr.mxu0 0.0
    %7107 = vmatpush1.msra.mxu0 0.0
    %7108 = vmatprep.subr.mxu0 0.0
    %7109 = vmatpush1.msra.mxu0 0.0
    %7110 = vmatprep.subr.mxu0 0.0
    %7111 = vmatpush1.msra.mxu0 0.0
    %7112 = vmatprep.subr.mxu0 0.0
    %7113 = vmatpush1.msra.mxu0 0.0
    %7114 = vmatprep.subr.mxu0 0.0
    %7115 = vmatpush1.msra.mxu0 0.0
    %7116 = vmatprep.subr.mxu0 0.0
    %7117 = vmatpush1.msra.mxu0 0.0
    %7118 = vmatprep.subr.mxu0 0.0
    %7119 = vmatpush1.msra.mxu0 0.0
    %7120 = vmatprep.subr.mxu0 0.0
    %7121 = vmatpush1.msra.mxu0 0.0
    %7122 = vmatprep.subr.mxu0 0.0
    %7123 = vmatpush1.msra.mxu0 0.0
    %7124 = vmatprep.mubr.f32.mxu0 0.0
    %v7125 = vand.u32 %v6719, 4294901760
    %7126 = vmatmul.mubr.f32.gmra.mrb[0].mxu0 %v7125
    %v7127 = vpop.f32.mrb[0].mxu0
    %v7128 = vadd.f32 %v7045, %v7127
    %v7129 = vpop.f32.mrb[0].mxu0
    %7130 = vdwg.mxu0
    %7131 = vmatprep.subr.mxu0 0.0
    %v7132 = vand.u32 %v29, 4294901760
    %7133 = vmatpush1.msra.mxu0 %v7132
    %7134 = vmatprep.subr.mxu0 0.0
    %v7135 = vand.u32 %v30, 4294901760
    %7136 = vmatpush1.msra.mxu0 %v7135
    %7137 = vmatprep.subr.mxu0 0.0
    %v7138 = vand.u32 %v31, 4294901760
    %7139 = vmatpush1.msra.mxu0 %v7138
    %7140 = vmatprep.subr.mxu0 0.0
    %v7141 = vand.u32 %v32, 4294901760
    %7142 = vmatpush1.msra.mxu0 %v7141
    %7143 = vmatprep.subr.mxu0 0.0
    %7144 = vmatpush1.msra.mxu0 0.0
    %7145 = vmatprep.subr.mxu0 0.0
    %7146 = vmatpush1.msra.mxu0 0.0
    %7147 = vmatprep.subr.mxu0 0.0
    %7148 = vmatpush1.msra.mxu0 0.0
    %7149 = vmatprep.subr.mxu0 0.0
    %7150 = vmatpush1.msra.mxu0 0.0
    %7151 = vmatprep.subr.mxu0 0.0
    %7152 = vmatpush1.msra.mxu0 0.0
    %7153 = vmatprep.subr.mxu0 0.0
    %7154 = vmatpush1.msra.mxu0 0.0
    %7155 = vmatprep.subr.mxu0 0.0
    %7156 = vmatpush1.msra.mxu0 0.0
    %7157 = vmatprep.subr.mxu0 0.0
    %7158 = vmatpush1.msra.mxu0 0.0
    %7159 = vmatprep.subr.mxu0 0.0
    %7160 = vmatpush1.msra.mxu0 0.0
    %7161 = vmatprep.subr.mxu0 0.0
    %7162 = vmatpush1.msra.mxu0 0.0
    %7163 = vmatprep.subr.mxu0 0.0
    %7164 = vmatpush1.msra.mxu0 0.0
    %7165 = vmatprep.subr.mxu0 0.0
    %7166 = vmatpush1.msra.mxu0 0.0
    %7167 = vmatprep.subr.mxu0 0.0
    %7168 = vmatpush1.msra.mxu0 0.0
    %7169 = vmatprep.subr.mxu0 0.0
    %7170 = vmatpush1.msra.mxu0 0.0
    %7171 = vmatprep.subr.mxu0 0.0
    %7172 = vmatpush1.msra.mxu0 0.0
    %7173 = vmatprep.subr.mxu0 0.0
    %7174 = vmatpush1.msra.mxu0 0.0
    %7175 = vmatprep.subr.mxu0 0.0
    %7176 = vmatpush1.msra.mxu0 0.0
    %7177 = vmatprep.subr.mxu0 0.0
    %7178 = vmatpush1.msra.mxu0 0.0
    %7179 = vmatprep.subr.mxu0 0.0
    %7180 = vmatpush1.msra.mxu0 0.0
    %7181 = vmatprep.subr.mxu0 0.0
    %7182 = vmatpush1.msra.mxu0 0.0
    %7183 = vmatprep.subr.mxu0 0.0
    %7184 = vmatpush1.msra.mxu0 0.0
    %7185 = vmatprep.subr.mxu0 0.0
    %7186 = vmatpush1.msra.mxu0 0.0
    %7187 = vmatprep.subr.mxu0 0.0
    %7188 = vmatpush1.msra.mxu0 0.0
    %7189 = vmatprep.subr.mxu0 0.0
    %7190 = vmatpush1.msra.mxu0 0.0
    %7191 = vmatprep.subr.mxu0 0.0
    %7192 = vmatpush1.msra.mxu0 0.0
    %7193 = vmatprep.subr.mxu0 0.0
    %7194 = vmatpush1.msra.mxu0 0.0
    %7195 = vmatprep.subr.mxu0 0.0
    %7196 = vmatpush1.msra.mxu0 0.0
    %7197 = vmatprep.subr.mxu0 0.0
    %7198 = vmatpush1.msra.mxu0 0.0
    %7199 = vmatprep.mubr.f32.mxu0 0.0
    %v7200 = vand.u32 %v6719, 4294901760
    %7201 = vmatmul.mubr.f32.gmra.mrb[0].mxu0 %v7200
    %v7202 = vpop.f32.mrb[0].mxu0
    %v7203 = vadd.f32 %v7128, %v7202
    %v7204 = vpop.f32.mrb[0].mxu0
    %7205 = vdwg.mxu0
    %v7206 = vadd.f32 %v6718, %v7203
    %v7207 = vxor.u32 %v7206, 2147483648
    %v7208 = vmul.f32 %v7207, 1.442695
    %v7209 = vpow.pop %v7208
    %v7210 = vadd.f32 %v7209, 1.0
    %v7211 = vrcp.pop %v7210
    %v7212 = vmul.f32 1.0, %v7211
    %v7213 = vadd.f32 %v7203, %v560
    %7215 = vrot.lane.b32.xlu0 %v7213, 64
    %v7216 = vpop.permute.xlu0 %7215
    %v7218 = vmul.f32 %v7212, %v7216
    %7220 = vrot.lane.b32.xlu0 %v7218, 64
    %v7221 = vpop.permute.xlu0 %7220
    %v7223 = vadd.f32 %v6718, %v7221
    %v7224 = vtanh.pop %v7223
    %v7225 = vsub.f32 1.0, %v7212
    %7227 = vrot.lane.b32.xlu0 %v7224, 96
    %v7228 = vpop.permute.xlu0 %7227
    %v7230 = vmul.f32 %v7225, %v7228
    %v7231 = vmul.f32 %v7212, %v6137
    %v7232 = vadd.f32 %v7230, %v7231
    %7234 = vset.pattern.permute.xlu0 0
    %7235 = vperm.xlu0 %7234, %v6715
    %v7236 = vpop.permute.xlu0 %7235
    %v7238 = vmul.f32 %v7236, %v7232
    %7240 = vset.pattern.permute.xlu0 0
    %7241 = vperm.xlu0 %7240, %v6716
    %v7242 = vpop.permute.xlu0 %7241
    %v7244 = vmul.f32 %v7242, %v6137
    %v7245 = vadd.f32 %v7238, %v7244
    %7247 = vrot.lane.b32.xlu0 %v7245, 96
    %v7248 = vpop.permute.xlu0 %7247
    %v7250 = vsel %vm63, %v7248, %v6712
    %v7252 = vsel %vm600, %v7250, 0
    %7254 = vmatprep.subr.mxu0 0.0
    %v7255 = vand.u32 %v39, 4294901760
    %7256 = vmatpush1.msra.mxu0 %v7255
    %7257 = vmatprep.subr.mxu0 0.0
    %v7258 = vand.u32 %v40, 4294901760
    %7259 = vmatpush1.msra.mxu0 %v7258
    %7260 = vmatprep.subr.mxu0 0.0
    %v7261 = vand.u32 %v41, 4294901760
    %7262 = vmatpush1.msra.mxu0 %v7261
    %7263 = vmatprep.subr.mxu0 0.0
    %v7264 = vand.u32 %v42, 4294901760
    %7265 = vmatpush1.msra.mxu0 %v7264
    %7266 = vmatprep.subr.mxu0 0.0
    %v7267 = vand.u32 %v43, 4294901760
    %7268 = vmatpush1.msra.mxu0 %v7267
    %7269 = vmatprep.subr.mxu0 0.0
    %v7270 = vand.u32 %v44, 4294901760
    %7271 = vmatpush1.msra.mxu0 %v7270
    %7272 = vmatprep.subr.mxu0 0.0
    %v7273 = vand.u32 %v45, 4294901760
    %7274 = vmatpush1.msra.mxu0 %v7273
    %7275 = vmatprep.subr.mxu0 0.0
    %v7276 = vand.u32 %v46, 4294901760
    %7277 = vmatpush1.msra.mxu0 %v7276
    %7278 = vmatprep.subr.mxu0 0.0
    %7279 = vmatpush1.msra.mxu0 0.0
    %7280 = vmatprep.subr.mxu0 0.0
    %7281 = vmatpush1.msra.mxu0 0.0
    %7282 = vmatprep.subr.mxu0 0.0
    %7283 = vmatpush1.msra.mxu0 0.0
    %7284 = vmatprep.subr.mxu0 0.0
    %7285 = vmatpush1.msra.mxu0 0.0
    %7286 = vmatprep.subr.mxu0 0.0
    %7287 = vmatpush1.msra.mxu0 0.0
    %7288 = vmatprep.subr.mxu0 0.0
    %7289 = vmatpush1.msra.mxu0 0.0
    %7290 = vmatprep.subr.mxu0 0.0
    %7291 = vmatpush1.msra.mxu0 0.0
    %7292 = vmatprep.subr.mxu0 0.0
    %7293 = vmatpush1.msra.mxu0 0.0
    %7294 = vmatprep.subr.mxu0 0.0
    %7295 = vmatpush1.msra.mxu0 0.0
    %7296 = vmatprep.subr.mxu0 0.0
    %7297 = vmatpush1.msra.mxu0 0.0
    %7298 = vmatprep.subr.mxu0 0.0
    %7299 = vmatpush1.msra.mxu0 0.0
    %7300 = vmatprep.subr.mxu0 0.0
    %7301 = vmatpush1.msra.mxu0 0.0
    %7302 = vmatprep.subr.mxu0 0.0
    %7303 = vmatpush1.msra.mxu0 0.0
    %7304 = vmatprep.subr.mxu0 0.0
    %7305 = vmatpush1.msra.mxu0 0.0
    %7306 = vmatprep.subr.mxu0 0.0
    %7307 = vmatpush1.msra.mxu0 0.0
    %7308 = vmatprep.subr.mxu0 0.0
    %7309 = vmatpush1.msra.mxu0 0.0
    %7310 = vmatprep.subr.mxu0 0.0
    %7311 = vmatpush1.msra.mxu0 0.0
    %7312 = vmatprep.subr.mxu0 0.0
    %7313 = vmatpush1.msra.mxu0 0.0
    %7314 = vmatprep.subr.mxu0 0.0
    %7315 = vmatpush1.msra.mxu0 0.0
    %7316 = vmatprep.subr.mxu0 0.0
    %7317 = vmatpush1.msra.mxu0 0.0
    %7318 = vmatprep.subr.mxu0 0.0
    %7319 = vmatpush1.msra.mxu0 0.0
    %7320 = vmatprep.subr.mxu0 0.0
    %7321 = vmatpush1.msra.mxu0 0.0
    %7322 = vmatprep.subr.mxu0 0.0
    %7323 = vmatpush1.msra.mxu0 0.0
    %7324 = vmatprep.subr.mxu0 0.0
    %7325 = vmatpush1.msra.mxu0 0.0
    %7326 = vmatprep.mubr.f32.mxu0 0.0
    %v7327 = vand.u32 %v7252, 4294901760
    %v7328 = vsub.f32 %v7252, %v7327
    %v7329 = vand.u32 %v7328, 4294901760
    %v7330 = vsub.f32 %v7328, %v7329
    %v7331 = vand.u32 %v7330, 4294901760
    %7332 = vmatmul.mubr.f32.gmra.mrb[0].mxu0 %v7331
    %v7333 = vpop.f32.mrb[0].mxu0
    %v7334 = vadd.f32 0.0, %v7333
    %v7335 = vpop.f32.mrb[0].mxu0
    %7336 = vdwg.mxu0
    %7337 = vmatprep.subr.mxu0 0.0
    %v7338 = vand.u32 %v39, 4294901760
    %v7339 = vsub.f32 %v39, %v7338
    %v7340 = vand.u32 %v7339, 4294901760
    %v7341 = vsub.f32 %v7339, %v7340
    %v7342 = vand.u32 %v7341, 4294901760
    %7343 = vmatpush1.msra.mxu0 %v7342
    %7344 = vmatprep.subr.mxu0 0.0
    %v7345 = vand.u32 %v40, 4294901760
    %v7346 = vsub.f32 %v40, %v7345
    %v7347 = vand.u32 %v7346, 4294901760
    %v7348 = vsub.f32 %v7346, %v7347
    %v7349 = vand.u32 %v7348, 4294901760
    %7350 = vmatpush1.msra.mxu0 %v7349
    %7351 = vmatprep.subr.mxu0 0.0
    %v7352 = vand.u32 %v41, 4294901760
    %v7353 = vsub.f32 %v41, %v7352
    %v7354 = vand.u32 %v7353, 4294901760
    %v7355 = vsub.f32 %v7353, %v7354
    %v7356 = vand.u32 %v7355, 4294901760
    %7357 = vmatpush1.msra.mxu0 %v7356
    %7358 = vmatprep.subr.mxu0 0.0
    %v7359 = vand.u32 %v42, 4294901760
    %v7360 = vsub.f32 %v42, %v7359
    %v7361 = vand.u32 %v7360, 4294901760
    %v7362 = vsub.f32 %v7360, %v7361
    %v7363 = vand.u32 %v7362, 4294901760
    %7364 = vmatpush1.msra.mxu0 %v7363
    %7365 = vmatprep.subr.mxu0 0.0
    %v7366 = vand.u32 %v43, 4294901760
    %v7367 = vsub.f32 %v43, %v7366
    %v7368 = vand.u32 %v7367, 4294901760
    %v7369 = vsub.f32 %v7367, %v7368
    %v7370 = vand.u32 %v7369, 4294901760
    %7371 = vmatpush1.msra.mxu0 %v7370
    %7372 = vmatprep.subr.mxu0 0.0
    %v7373 = vand.u32 %v44, 4294901760
    %v7374 = vsub.f32 %v44, %v7373
    %v7375 = vand.u32 %v7374, 4294901760
    %v7376 = vsub.f32 %v7374, %v7375
    %v7377 = vand.u32 %v7376, 4294901760
    %7378 = vmatpush1.msra.mxu0 %v7377
    %7379 = vmatprep.subr.mxu0 0.0
    %v7380 = vand.u32 %v45, 4294901760
    %v7381 = vsub.f32 %v45, %v7380
    %v7382 = vand.u32 %v7381, 4294901760
    %v7383 = vsub.f32 %v7381, %v7382
    %v7384 = vand.u32 %v7383, 4294901760
    %7385 = vmatpush1.msra.mxu0 %v7384
    %7386 = vmatprep.subr.mxu0 0.0
    %v7387 = vand.u32 %v46, 4294901760
    %v7388 = vsub.f32 %v46, %v7387
    %v7389 = vand.u32 %v7388, 4294901760
    %v7390 = vsub.f32 %v7388, %v7389
    %v7391 = vand.u32 %v7390, 4294901760
    %7392 = vmatpush1.msra.mxu0 %v7391
    %7393 = vmatprep.subr.mxu0 0.0
    %7394 = vmatpush1.msra.mxu0 0.0
    %7395 = vmatprep.subr.mxu0 0.0
    %7396 = vmatpush1.msra.mxu0 0.0
    %7397 = vmatprep.subr.mxu0 0.0
    %7398 = vmatpush1.msra.mxu0 0.0
    %7399 = vmatprep.subr.mxu0 0.0
    %7400 = vmatpush1.msra.mxu0 0.0
    %7401 = vmatprep.subr.mxu0 0.0
    %7402 = vmatpush1.msra.mxu0 0.0
    %7403 = vmatprep.subr.mxu0 0.0
    %7404 = vmatpush1.msra.mxu0 0.0
    %7405 = vmatprep.subr.mxu0 0.0
    %7406 = vmatpush1.msra.mxu0 0.0
    %7407 = vmatprep.subr.mxu0 0.0
    %7408 = vmatpush1.msra.mxu0 0.0
    %7409 = vmatprep.subr.mxu0 0.0
    %7410 = vmatpush1.msra.mxu0 0.0
    %7411 = vmatprep.subr.mxu0 0.0
    %7412 = vmatpush1.msra.mxu0 0.0
    %7413 = vmatprep.subr.mxu0 0.0
    %7414 = vmatpush1.msra.mxu0 0.0
    %7415 = vmatprep.subr.mxu0 0.0
    %7416 = vmatpush1.msra.mxu0 0.0
    %7417 = vmatprep.subr.mxu0 0.0
    %7418 = vmatpush1.msra.mxu0 0.0
    %7419 = vmatprep.subr.mxu0 0.0
    %7420 = vmatpush1.msra.mxu0 0.0
    %7421 = vmatprep.subr.mxu0 0.0
    %7422 = vmatpush1.msra.mxu0 0.0
    %7423 = vmatprep.subr.mxu0 0.0
    %7424 = vmatpush1.msra.mxu0 0.0
    %7425 = vmatprep.subr.mxu0 0.0
    %7426 = vmatpush1.msra.mxu0 0.0
    %7427 = vmatprep.subr.mxu0 0.0
    %7428 = vmatpush1.msra.mxu0 0.0
    %7429 = vmatprep.subr.mxu0 0.0
    %7430 = vmatpush1.msra.mxu0 0.0
    %7431 = vmatprep.subr.mxu0 0.0
    %7432 = vmatpush1.msra.mxu0 0.0
    %7433 = vmatprep.subr.mxu0 0.0
    %7434 = vmatpush1.msra.mxu0 0.0
    %7435 = vmatprep.subr.mxu0 0.0
    %7436 = vmatpush1.msra.mxu0 0.0
    %7437 = vmatprep.subr.mxu0 0.0
    %7438 = vmatpush1.msra.mxu0 0.0
    %7439 = vmatprep.subr.mxu0 0.0
    %7440 = vmatpush1.msra.mxu0 0.0
    %7441 = vmatprep.mubr.f32.mxu0 0.0
    %v7442 = vand.u32 %v7252, 4294901760
    %7443 = vmatmul.mubr.f32.gmra.mrb[0].mxu0 %v7442
    %v7444 = vpop.f32.mrb[0].mxu0
    %v7445 = vadd.f32 %v7334, %v7444
    %v7446 = vpop.f32.mrb[0].mxu0
    %7447 = vdwg.mxu0
    %7448 = vmatprep.subr.mxu0 0.0
    %v7449 = vand.u32 %v39, 4294901760
    %v7450 = vsub.f32 %v39, %v7449
    %7451 = vmatpush1.msra.mxu0 %v7450
    %7452 = vmatprep.subr.mxu0 0.0
    %v7453 = vand.u32 %v40, 4294901760
    %v7454 = vsub.f32 %v40, %v7453
    %7455 = vmatpush1.msra.mxu0 %v7454
    %7456 = vmatprep.subr.mxu0 0.0
    %v7457 = vand.u32 %v41, 4294901760
    %v7458 = vsub.f32 %v41, %v7457
    %7459 = vmatpush1.msra.mxu0 %v7458
    %7460 = vmatprep.subr.mxu0 0.0
    %v7461 = vand.u32 %v42, 4294901760
    %v7462 = vsub.f32 %v42, %v7461
    %7463 = vmatpush1.msra.mxu0 %v7462
    %7464 = vmatprep.subr.mxu0 0.0
    %v7465 = vand.u32 %v43, 4294901760
    %v7466 = vsub.f32 %v43, %v7465
    %7467 = vmatpush1.msra.mxu0 %v7466
    %7468 = vmatprep.subr.mxu0 0.0
    %v7469 = vand.u32 %v44, 4294901760
    %v7470 = vsub.f32 %v44, %v7469
    %7471 = vmatpush1.msra.mxu0 %v7470
    %7472 = vmatprep.subr.mxu0 0.0
    %v7473 = vand.u32 %v45, 4294901760
    %v7474 = vsub.f32 %v45, %v7473
    %7475 = vmatpush1.msra.mxu0 %v7474
    %7476 = vmatprep.subr.mxu0 0.0
    %v7477 = vand.u32 %v46, 4294901760
    %v7478 = vsub.f32 %v46, %v7477
    %7479 = vmatpush1.msra.mxu0 %v7478
    %7480 = vmatprep.subr.mxu0 0.0
    %7481 = vmatpush1.msra.mxu0 0.0
    %7482 = vmatprep.subr.mxu0 0.0
    %7483 = vmatpush1.msra.mxu0 0.0
    %7484 = vmatprep.subr.mxu0 0.0
    %7485 = vmatpush1.msra.mxu0 0.0
    %7486 = vmatprep.subr.mxu0 0.0
    %7487 = vmatpush1.msra.mxu0 0.0
    %7488 = vmatprep.subr.mxu0 0.0
    %7489 = vmatpush1.msra.mxu0 0.0
    %7490 = vmatprep.subr.mxu0 0.0
    %7491 = vmatpush1.msra.mxu0 0.0
    %7492 = vmatprep.subr.mxu0 0.0
    %7493 = vmatpush1.msra.mxu0 0.0
    %7494 = vmatprep.subr.mxu0 0.0
    %7495 = vmatpush1.msra.mxu0 0.0
    %7496 = vmatprep.subr.mxu0 0.0
    %7497 = vmatpush1.msra.mxu0 0.0
    %7498 = vmatprep.subr.mxu0 0.0
    %7499 = vmatpush1.msra.mxu0 0.0
    %7500 = vmatprep.subr.mxu0 0.0
    %7501 = vmatpush1.msra.mxu0 0.0
    %7502 = vmatprep.subr.mxu0 0.0
    %7503 = vmatpush1.msra.mxu0 0.0
    %7504 = vmatprep.subr.mxu0 0.0
    %7505 = vmatpush1.msra.mxu0 0.0
    %7506 = vmatprep.subr.mxu0 0.0
    %7507 = vmatpush1.msra.mxu0 0.0
    %7508 = vmatprep.subr.mxu0 0.0
    %7509 = vmatpush1.msra.mxu0 0.0
    %7510 = vmatprep.subr.mxu0 0.0
    %7511 = vmatpush1.msra.mxu0 0.0
    %7512 = vmatprep.subr.mxu0 0.0
    %7513 = vmatpush1.msra.mxu0 0.0
    %7514 = vmatprep.subr.mxu0 0.0
    %7515 = vmatpush1.msra.mxu0 0.0
    %7516 = vmatprep.subr.mxu0 0.0
    %7517 = vmatpush1.msra.mxu0 0.0
    %7518 = vmatprep.subr.mxu0 0.0
    %7519 = vmatpush1.msra.mxu0 0.0
    %7520 = vmatprep.subr.mxu0 0.0
    %7521 = vmatpush1.msra.mxu0 0.0
    %7522 = vmatprep.subr.mxu0 0.0
    %7523 = vmatpush1.msra.mxu0 0.0
    %7524 = vmatprep.subr.mxu0 0.0
    %7525 = vmatpush1.msra.mxu0 0.0
    %7526 = vmatprep.subr.mxu0 0.0
    %7527 = vmatpush1.msra.mxu0 0.0
    %7528 = vmatprep.mubr.f32.mxu0 0.0
    %v7529 = vand.u32 %v7252, 4294901760
    %v7530 = vsub.f32 %v7252, %v7529
    %7531 = vmatmul.mubr.f32.gmra.mrb[0].mxu0 %v7530
    %v7532 = vpop.f32.mrb[0].mxu0
    %v7533 = vadd.f32 %v7445, %v7532
    %v7534 = vpop.f32.mrb[0].mxu0
    %7535 = vdwg.mxu0
    %7536 = vmatprep.subr.mxu0 0.0
    %v7537 = vand.u32 %v39, 4294901760
    %7538 = vmatpush1.msra.mxu0 %v7537
    %7539 = vmatprep.subr.mxu0 0.0
    %v7540 = vand.u32 %v40, 4294901760
    %7541 = vmatpush1.msra.mxu0 %v7540
    %7542 = vmatprep.subr.mxu0 0.0
    %v7543 = vand.u32 %v41, 4294901760
    %7544 = vmatpush1.msra.mxu0 %v7543
    %7545 = vmatprep.subr.mxu0 0.0
    %v7546 = vand.u32 %v42, 4294901760
    %7547 = vmatpush1.msra.mxu0 %v7546
    %7548 = vmatprep.subr.mxu0 0.0
    %v7549 = vand.u32 %v43, 4294901760
    %7550 = vmatpush1.msra.mxu0 %v7549
    %7551 = vmatprep.subr.mxu0 0.0
    %v7552 = vand.u32 %v44, 4294901760
    %7553 = vmatpush1.msra.mxu0 %v7552
    %7554 = vmatprep.subr.mxu0 0.0
    %v7555 = vand.u32 %v45, 4294901760
    %7556 = vmatpush1.msra.mxu0 %v7555
    %7557 = vmatprep.subr.mxu0 0.0
    %v7558 = vand.u32 %v46, 4294901760
    %7559 = vmatpush1.msra.mxu0 %v7558
    %7560 = vmatprep.subr.mxu0 0.0
    %7561 = vmatpush1.msra.mxu0 0.0
    %7562 = vmatprep.subr.mxu0 0.0
    %7563 = vmatpush1.msra.mxu0 0.0
    %7564 = vmatprep.subr.mxu0 0.0
    %7565 = vmatpush1.msra.mxu0 0.0
    %7566 = vmatprep.subr.mxu0 0.0
    %7567 = vmatpush1.msra.mxu0 0.0
    %7568 = vmatprep.subr.mxu0 0.0
    %7569 = vmatpush1.msra.mxu0 0.0
    %7570 = vmatprep.subr.mxu0 0.0
    %7571 = vmatpush1.msra.mxu0 0.0
    %7572 = vmatprep.subr.mxu0 0.0
    %7573 = vmatpush1.msra.mxu0 0.0
    %7574 = vmatprep.subr.mxu0 0.0
    %7575 = vmatpush1.msra.mxu0 0.0
    %7576 = vmatprep.subr.mxu0 0.0
    %7577 = vmatpush1.msra.mxu0 0.0
    %7578 = vmatprep.subr.mxu0 0.0
    %7579 = vmatpush1.msra.mxu0 0.0
    %7580 = vmatprep.subr.mxu0 0.0
    %7581 = vmatpush1.msra.mxu0 0.0
    %7582 = vmatprep.subr.mxu0 0.0
    %7583 = vmatpush1.msra.mxu0 0.0
    %7584 = vmatprep.subr.mxu0 0.0
    %7585 = vmatpush1.msra.mxu0 0.0
    %7586 = vmatprep.subr.mxu0 0.0
    %7587 = vmatpush1.msra.mxu0 0.0
    %7588 = vmatprep.subr.mxu0 0.0
    %7589 = vmatpush1.msra.mxu0 0.0
    %7590 = vmatprep.subr.mxu0 0.0
    %7591 = vmatpush1.msra.mxu0 0.0
    %7592 = vmatprep.subr.mxu0 0.0
    %7593 = vmatpush1.msra.mxu0 0.0
    %7594 = vmatprep.subr.mxu0 0.0
    %7595 = vmatpush1.msra.mxu0 0.0
    %7596 = vmatprep.subr.mxu0 0.0
    %7597 = vmatpush1.msra.mxu0 0.0
    %7598 = vmatprep.subr.mxu0 0.0
    %7599 = vmatpush1.msra.mxu0 0.0
    %7600 = vmatprep.subr.mxu0 0.0
    %7601 = vmatpush1.msra.mxu0 0.0
    %7602 = vmatprep.subr.mxu0 0.0
    %7603 = vmatpush1.msra.mxu0 0.0
    %7604 = vmatprep.subr.mxu0 0.0
    %7605 = vmatpush1.msra.mxu0 0.0
    %7606 = vmatprep.subr.mxu0 0.0
    %7607 = vmatpush1.msra.mxu0 0.0
    %7608 = vmatprep.mubr.f32.mxu0 0.0
    %v7609 = vand.u32 %v7252, 4294901760
    %v7610 = vsub.f32 %v7252, %v7609
    %v7611 = vand.u32 %v7610, 4294901760
    %7612 = vmatmul.mubr.f32.gmra.mrb[0].mxu0 %v7611
    %v7613 = vpop.f32.mrb[0].mxu0
    %v7614 = vadd.f32 %v7533, %v7613
    %v7615 = vpop.f32.mrb[0].mxu0
    %7616 = vdwg.mxu0
    %7617 = vmatprep.subr.mxu0 0.0
    %v7618 = vand.u32 %v39, 4294901760
    %v7619 = vsub.f32 %v39, %v7618
    %v7620 = vand.u32 %v7619, 4294901760
    %7621 = vmatpush1.msra.mxu0 %v7620
    %7622 = vmatprep.subr.mxu0 0.0
    %v7623 = vand.u32 %v40, 4294901760
    %v7624 = vsub.f32 %v40, %v7623
    %v7625 = vand.u32 %v7624, 4294901760
    %7626 = vmatpush1.msra.mxu0 %v7625
    %7627 = vmatprep.subr.mxu0 0.0
    %v7628 = vand.u32 %v41, 4294901760
    %v7629 = vsub.f32 %v41, %v7628
    %v7630 = vand.u32 %v7629, 4294901760
    %7631 = vmatpush1.msra.mxu0 %v7630
    %7632 = vmatprep.subr.mxu0 0.0
    %v7633 = vand.u32 %v42, 4294901760
    %v7634 = vsub.f32 %v42, %v7633
    %v7635 = vand.u32 %v7634, 4294901760
    %7636 = vmatpush1.msra.mxu0 %v7635
    %7637 = vmatprep.subr.mxu0 0.0
    %v7638 = vand.u32 %v43, 4294901760
    %v7639 = vsub.f32 %v43, %v7638
    %v7640 = vand.u32 %v7639, 4294901760
    %7641 = vmatpush1.msra.mxu0 %v7640
    %7642 = vmatprep.subr.mxu0 0.0
    %v7643 = vand.u32 %v44, 4294901760
    %v7644 = vsub.f32 %v44, %v7643
    %v7645 = vand.u32 %v7644, 4294901760
    %7646 = vmatpush1.msra.mxu0 %v7645
    %7647 = vmatprep.subr.mxu0 0.0
    %v7648 = vand.u32 %v45, 4294901760
    %v7649 = vsub.f32 %v45, %v7648
    %v7650 = vand.u32 %v7649, 4294901760
    %7651 = vmatpush1.msra.mxu0 %v7650
    %7652 = vmatprep.subr.mxu0 0.0
    %v7653 = vand.u32 %v46, 4294901760
    %v7654 = vsub.f32 %v46, %v7653
    %v7655 = vand.u32 %v7654, 4294901760
    %7656 = vmatpush1.msra.mxu0 %v7655
    %7657 = vmatprep.subr.mxu0 0.0
    %7658 = vmatpush1.msra.mxu0 0.0
    %7659 = vmatprep.subr.mxu0 0.0
    %7660 = vmatpush1.msra.mxu0 0.0
    %7661 = vmatprep.subr.mxu0 0.0
    %7662 = vmatpush1.msra.mxu0 0.0
    %7663 = vmatprep.subr.mxu0 0.0
    %7664 = vmatpush1.msra.mxu0 0.0
    %7665 = vmatprep.subr.mxu0 0.0
    %7666 = vmatpush1.msra.mxu0 0.0
    %7667 = vmatprep.subr.mxu0 0.0
    %7668 = vmatpush1.msra.mxu0 0.0
    %7669 = vmatprep.subr.mxu0 0.0
    %7670 = vmatpush1.msra.mxu0 0.0
    %7671 = vmatprep.subr.mxu0 0.0
    %7672 = vmatpush1.msra.mxu0 0.0
    %7673 = vmatprep.subr.mxu0 0.0
    %7674 = vmatpush1.msra.mxu0 0.0
    %7675 = vmatprep.subr.mxu0 0.0
    %7676 = vmatpush1.msra.mxu0 0.0
    %7677 = vmatprep.subr.mxu0 0.0
    %7678 = vmatpush1.msra.mxu0 0.0
    %7679 = vmatprep.subr.mxu0 0.0
    %7680 = vmatpush1.msra.mxu0 0.0
    %7681 = vmatprep.subr.mxu0 0.0
    %7682 = vmatpush1.msra.mxu0 0.0
    %7683 = vmatprep.subr.mxu0 0.0
    %7684 = vmatpush1.msra.mxu0 0.0
    %7685 = vmatprep.subr.mxu0 0.0
    %7686 = vmatpush1.msra.mxu0 0.0
    %7687 = vmatprep.subr.mxu0 0.0
    %7688 = vmatpush1.msra.mxu0 0.0
    %7689 = vmatprep.subr.mxu0 0.0
    %7690 = vmatpush1.msra.mxu0 0.0
    %7691 = vmatprep.subr.mxu0 0.0
    %7692 = vmatpush1.msra.mxu0 0.0
    %7693 = vmatprep.subr.mxu0 0.0
    %7694 = vmatpush1.msra.mxu0 0.0
    %7695 = vmatprep.subr.mxu0 0.0
    %7696 = vmatpush1.msra.mxu0 0.0
    %7697 = vmatprep.subr.mxu0 0.0
    %7698 = vmatpush1.msra.mxu0 0.0
    %7699 = vmatprep.subr.mxu0 0.0
    %7700 = vmatpush1.msra.mxu0 0.0
    %7701 = vmatprep.subr.mxu0 0.0
    %7702 = vmatpush1.msra.mxu0 0.0
    %7703 = vmatprep.subr.mxu0 0.0
    %7704 = vmatpush1.msra.mxu0 0.0
    %7705 = vmatprep.mubr.f32.mxu0 0.0
    %v7706 = vand.u32 %v7252, 4294901760
    %7707 = vmatmul.mubr.f32.gmra.mrb[0].mxu0 %v7706
    %v7708 = vpop.f32.mrb[0].mxu0
    %v7709 = vadd.f32 %v7614, %v7708
    %v7710 = vpop.f32.mrb[0].mxu0
    %7711 = vdwg.mxu0
    %7712 = vmatprep.subr.mxu0 0.0
    %v7713 = vand.u32 %v39, 4294901760
    %7714 = vmatpush1.msra.mxu0 %v7713
    %7715 = vmatprep.subr.mxu0 0.0
    %v7716 = vand.u32 %v40, 4294901760
    %7717 = vmatpush1.msra.mxu0 %v7716
    %7718 = vmatprep.subr.mxu0 0.0
    %v7719 = vand.u32 %v41, 4294901760
    %7720 = vmatpush1.msra.mxu0 %v7719
    %7721 = vmatprep.subr.mxu0 0.0
    %v7722 = vand.u32 %v42, 4294901760
    %7723 = vmatpush1.msra.mxu0 %v7722
    %7724 = vmatprep.subr.mxu0 0.0
    %v7725 = vand.u32 %v43, 4294901760
    %7726 = vmatpush1.msra.mxu0 %v7725
    %7727 = vmatprep.subr.mxu0 0.0
    %v7728 = vand.u32 %v44, 4294901760
    %7729 = vmatpush1.msra.mxu0 %v7728
    %7730 = vmatprep.subr.mxu0 0.0
    %v7731 = vand.u32 %v45, 4294901760
    %7732 = vmatpush1.msra.mxu0 %v7731
    %7733 = vmatprep.subr.mxu0 0.0
    %v7734 = vand.u32 %v46, 4294901760
    %7735 = vmatpush1.msra.mxu0 %v7734
    %7736 = vmatprep.subr.mxu0 0.0
    %7737 = vmatpush1.msra.mxu0 0.0
    %7738 = vmatprep.subr.mxu0 0.0
    %7739 = vmatpush1.msra.mxu0 0.0
    %7740 = vmatprep.subr.mxu0 0.0
    %7741 = vmatpush1.msra.mxu0 0.0
    %7742 = vmatprep.subr.mxu0 0.0
    %7743 = vmatpush1.msra.mxu0 0.0
    %7744 = vmatprep.subr.mxu0 0.0
    %7745 = vmatpush1.msra.mxu0 0.0
    %7746 = vmatprep.subr.mxu0 0.0
    %7747 = vmatpush1.msra.mxu0 0.0
    %7748 = vmatprep.subr.mxu0 0.0
    %7749 = vmatpush1.msra.mxu0 0.0
    %7750 = vmatprep.subr.mxu0 0.0
    %7751 = vmatpush1.msra.mxu0 0.0
    %7752 = vmatprep.subr.mxu0 0.0
    %7753 = vmatpush1.msra.mxu0 0.0
    %7754 = vmatprep.subr.mxu0 0.0
    %7755 = vmatpush1.msra.mxu0 0.0
    %7756 = vmatprep.subr.mxu0 0.0
    %7757 = vmatpush1.msra.mxu0 0.0
    %7758 = vmatprep.subr.mxu0 0.0
    %7759 = vmatpush1.msra.mxu0 0.0
    %7760 = vmatprep.subr.mxu0 0.0
    %7761 = vmatpush1.msra.mxu0 0.0
    %7762 = vmatprep.subr.mxu0 0.0
    %7763 = vmatpush1.msra.mxu0 0.0
    %7764 = vmatprep.subr.mxu0 0.0
    %7765 = vmatpush1.msra.mxu0 0.0
    %7766 = vmatprep.subr.mxu0 0.0
    %7767 = vmatpush1.msra.mxu0 0.0
    %7768 = vmatprep.subr.mxu0 0.0
    %7769 = vmatpush1.msra.mxu0 0.0
    %7770 = vmatprep.subr.mxu0 0.0
    %7771 = vmatpush1.msra.mxu0 0.0
    %7772 = vmatprep.subr.mxu0 0.0
    %7773 = vmatpush1.msra.mxu0 0.0
    %7774 = vmatprep.subr.mxu0 0.0
    %7775 = vmatpush1.msra.mxu0 0.0
    %7776 = vmatprep.subr.mxu0 0.0
    %7777 = vmatpush1.msra.mxu0 0.0
    %7778 = vmatprep.subr.mxu0 0.0
    %7779 = vmatpush1.msra.mxu0 0.0
    %7780 = vmatprep.subr.mxu0 0.0
    %7781 = vmatpush1.msra.mxu0 0.0
    %7782 = vmatprep.subr.mxu0 0.0
    %7783 = vmatpush1.msra.mxu0 0.0
    %7784 = vmatprep.mubr.f32.mxu0 0.0
    %v7785 = vand.u32 %v7252, 4294901760
    %7786 = vmatmul.mubr.f32.gmra.mrb[0].mxu0 %v7785
    %v7787 = vpop.f32.mrb[0].mxu0
    %v7788 = vadd.f32 %v7709, %v7787
    %v7789 = vpop.f32.mrb[0].mxu0
    %7790 = vdwg.mxu0
    %v7791 = vadd.f32 %v7788, %v52
    %v7792 = vxor.u32 %v7791, 2147483648
    %v7793 = vmul.f32 %v7792, 1.442695
    %v7794 = vpow.pop %v7793
    %v7795 = vadd.f32 %v7794, 1.0
    %v7796 = vrcp.pop %v7795
    %v7797 = vmul.f32 1.0, %v7796
    %v7798 = vadd.f32 %v7788, %v1149
    %7800 = vrot.lane.b32.xlu0 %v7798, 32
    %v7801 = vpop.permute.xlu0 %7800
    %v7803 = vmul.f32 %v7797, %v7801
    %7805 = vrot.lane.b32.xlu0 %v7803, 64
    %v7806 = vpop.permute.xlu0 %7805
    %v7808 = vadd.f32 %v7791, %v7806
    %v7809 = vtanh.pop %v7808
    %v7810 = vsub.f32 1.0, %v7797
    %7812 = vrot.lane.b32.xlu0 %v7809, 96
    %v7813 = vpop.permute.xlu0 %7812
    %v7815 = vmul.f32 %v7810, %v7813
    %v7816 = vmul.f32 %v7797, %v6712
    %v7817 = vadd.f32 %v7815, %v7816
    %v7818 = vmul.f32 %v7236, %v7817
    %v7819 = vmul.f32 %v7242, %v6712
    %v7820 = vadd.f32 %v7818, %v7819
    %v7821 = vmul.f32 %v7236, %v7820
    %s7822 = scalar_lea.vmem %s1, 14
    %v7823 = vld [vmem:[%s7822] sm:$0x3]
    %v7824 = vsub.f32 1.0, %v7823
    %s7825 = scalar_lea.vmem %s0, 14
    %v7826 = vld [vmem:[%s7825] sm:$0x3]
    %v7827 = vsel %vm63, %v7248, 0
    %7829 = vmatprep.subr.mxu0 0.0
    %v7830 = vand.u32 %v29, 4294901760
    %7831 = vmatpush1.msra.mxu0 %v7830
    %7832 = vmatprep.subr.mxu0 0.0
    %v7833 = vand.u32 %v30, 4294901760
    %7834 = vmatpush1.msra.mxu0 %v7833
    %7835 = vmatprep.subr.mxu0 0.0
    %v7836 = vand.u32 %v31, 4294901760
    %7837 = vmatpush1.msra.mxu0 %v7836
    %7838 = vmatprep.subr.mxu0 0.0
    %v7839 = vand.u32 %v32, 4294901760
    %7840 = vmatpush1.msra.mxu0 %v7839
    %7841 = vmatprep.subr.mxu0 0.0
    %7842 = vmatpush1.msra.mxu0 0.0
    %7843 = vmatprep.subr.mxu0 0.0
    %7844 = vmatpush1.msra.mxu0 0.0
    %7845 = vmatprep.subr.mxu0 0.0
    %7846 = vmatpush1.msra.mxu0 0.0
    %7847 = vmatprep.subr.mxu0 0.0
    %7848 = vmatpush1.msra.mxu0 0.0
    %7849 = vmatprep.subr.mxu0 0.0
    %7850 = vmatpush1.msra.mxu0 0.0
    %7851 = vmatprep.subr.mxu0 0.0
    %7852 = vmatpush1.msra.mxu0 0.0
    %7853 = vmatprep.subr.mxu0 0.0
    %7854 = vmatpush1.msra.mxu0 0.0
    %7855 = vmatprep.subr.mxu0 0.0
    %7856 = vmatpush1.msra.mxu0 0.0
    %7857 = vmatprep.subr.mxu0 0.0
    %7858 = vmatpush1.msra.mxu0 0.0
    %7859 = vmatprep.subr.mxu0 0.0
    %7860 = vmatpush1.msra.mxu0 0.0
    %7861 = vmatprep.subr.mxu0 0.0
    %7862 = vmatpush1.msra.mxu0 0.0
    %7863 = vmatprep.subr.mxu0 0.0
    %7864 = vmatpush1.msra.mxu0 0.0
    %7865 = vmatprep.subr.mxu0 0.0
    %7866 = vmatpush1.msra.mxu0 0.0
    %7867 = vmatprep.subr.mxu0 0.0
    %7868 = vmatpush1.msra.mxu0 0.0
    %7869 = vmatprep.subr.mxu0 0.0
    %7870 = vmatpush1.msra.mxu0 0.0
    %7871 = vmatprep.subr.mxu0 0.0
    %7872 = vmatpush1.msra.mxu0 0.0
    %7873 = vmatprep.subr.mxu0 0.0
    %7874 = vmatpush1.msra.mxu0 0.0
    %7875 = vmatprep.subr.mxu0 0.0
    %7876 = vmatpush1.msra.mxu0 0.0
    %7877 = vmatprep.subr.mxu0 0.0
    %7878 = vmatpush1.msra.mxu0 0.0
    %7879 = vmatprep.subr.mxu0 0.0
    %7880 = vmatpush1.msra.mxu0 0.0
    %7881 = vmatprep.subr.mxu0 0.0
    %7882 = vmatpush1.msra.mxu0 0.0
    %7883 = vmatprep.subr.mxu0 0.0
    %7884 = vmatpush1.msra.mxu0 0.0
    %7885 = vmatprep.subr.mxu0 0.0
    %7886 = vmatpush1.msra.mxu0 0.0
    %7887 = vmatprep.subr.mxu0 0.0
    %7888 = vmatpush1.msra.mxu0 0.0
    %7889 = vmatprep.subr.mxu0 0.0
    %7890 = vmatpush1.msra.mxu0 0.0
    %7891 = vmatprep.subr.mxu0 0.0
    %7892 = vmatpush1.msra.mxu0 0.0
    %7893 = vmatprep.subr.mxu0 0.0
    %7894 = vmatpush1.msra.mxu0 0.0
    %7895 = vmatprep.subr.mxu0 0.0
    %7896 = vmatpush1.msra.mxu0 0.0
    %7897 = vmatprep.mubr.f32.mxu0 0.0
    %v7898 = vand.u32 %v7827, 4294901760
    %v7899 = vsub.f32 %v7827, %v7898
    %v7900 = vand.u32 %v7899, 4294901760
    %v7901 = vsub.f32 %v7899, %v7900
    %v7902 = vand.u32 %v7901, 4294901760
    %7903 = vmatmul.mubr.f32.gmra.mrb[0].mxu0 %v7902
    %v7904 = vpop.f32.mrb[0].mxu0
    %v7905 = vadd.f32 0.0, %v7904
    %v7906 = vpop.f32.mrb[0].mxu0
    %7907 = vdwg.mxu0
    %7908 = vmatprep.subr.mxu0 0.0
    %v7909 = vand.u32 %v29, 4294901760
    %v7910 = vsub.f32 %v29, %v7909
    %v7911 = vand.u32 %v7910, 4294901760
    %v7912 = vsub.f32 %v7910, %v7911
    %v7913 = vand.u32 %v7912, 4294901760
    %7914 = vmatpush1.msra.mxu0 %v7913
    %7915 = vmatprep.subr.mxu0 0.0
    %v7916 = vand.u32 %v30, 4294901760
    %v7917 = vsub.f32 %v30, %v7916
    %v7918 = vand.u32 %v7917, 4294901760
    %v7919 = vsub.f32 %v7917, %v7918
    %v7920 = vand.u32 %v7919, 4294901760
    %7921 = vmatpush1.msra.mxu0 %v7920
    %7922 = vmatprep.subr.mxu0 0.0
    %v7923 = vand.u32 %v31, 4294901760
    %v7924 = vsub.f32 %v31, %v7923
    %v7925 = vand.u32 %v7924, 4294901760
    %v7926 = vsub.f32 %v7924, %v7925
    %v7927 = vand.u32 %v7926, 4294901760
    %7928 = vmatpush1.msra.mxu0 %v7927
    %7929 = vmatprep.subr.mxu0 0.0
    %v7930 = vand.u32 %v32, 4294901760
    %v7931 = vsub.f32 %v32, %v7930
    %v7932 = vand.u32 %v7931, 4294901760
    %v7933 = vsub.f32 %v7931, %v7932
    %v7934 = vand.u32 %v7933, 4294901760
    %7935 = vmatpush1.msra.mxu0 %v7934
    %7936 = vmatprep.subr.mxu0 0.0
    %7937 = vmatpush1.msra.mxu0 0.0
    %7938 = vmatprep.subr.mxu0 0.0
    %7939 = vmatpush1.msra.mxu0 0.0
    %7940 = vmatprep.subr.mxu0 0.0
    %7941 = vmatpush1.msra.mxu0 0.0
    %7942 = vmatprep.subr.mxu0 0.0
    %7943 = vmatpush1.msra.mxu0 0.0
    %7944 = vmatprep.subr.mxu0 0.0
    %7945 = vmatpush1.msra.mxu0 0.0
    %7946 = vmatprep.subr.mxu0 0.0
    %7947 = vmatpush1.msra.mxu0 0.0
    %7948 = vmatprep.subr.mxu0 0.0
    %7949 = vmatpush1.msra.mxu0 0.0
    %7950 = vmatprep.subr.mxu0 0.0
    %7951 = vmatpush1.msra.mxu0 0.0
    %7952 = vmatprep.subr.mxu0 0.0
    %7953 = vmatpush1.msra.mxu0 0.0
    %7954 = vmatprep.subr.mxu0 0.0
    %7955 = vmatpush1.msra.mxu0 0.0
    %7956 = vmatprep.subr.mxu0 0.0
    %7957 = vmatpush1.msra.mxu0 0.0
    %7958 = vmatprep.subr.mxu0 0.0
    %7959 = vmatpush1.msra.mxu0 0.0
    %7960 = vmatprep.subr.mxu0 0.0
    %7961 = vmatpush1.msra.mxu0 0.0
    %7962 = vmatprep.subr.mxu0 0.0
    %7963 = vmatpush1.msra.mxu0 0.0
    %7964 = vmatprep.subr.mxu0 0.0
    %7965 = vmatpush1.msra.mxu0 0.0
    %7966 = vmatprep.subr.mxu0 0.0
    %7967 = vmatpush1.msra.mxu0 0.0
    %7968 = vmatprep.subr.mxu0 0.0
    %7969 = vmatpush1.msra.mxu0 0.0
    %7970 = vmatprep.subr.mxu0 0.0
    %7971 = vmatpush1.msra.mxu0 0.0
    %7972 = vmatprep.subr.mxu0 0.0
    %7973 = vmatpush1.msra.mxu0 0.0
    %7974 = vmatprep.subr.mxu0 0.0
    %7975 = vmatpush1.msra.mxu0 0.0
    %7976 = vmatprep.subr.mxu0 0.0
    %7977 = vmatpush1.msra.mxu0 0.0
    %7978 = vmatprep.subr.mxu0 0.0
    %7979 = vmatpush1.msra.mxu0 0.0
    %7980 = vmatprep.subr.mxu0 0.0
    %7981 = vmatpush1.msra.mxu0 0.0
    %7982 = vmatprep.subr.mxu0 0.0
    %7983 = vmatpush1.msra.mxu0 0.0
    %7984 = vmatprep.subr.mxu0 0.0
    %7985 = vmatpush1.msra.mxu0 0.0
    %7986 = vmatprep.subr.mxu0 0.0
    %7987 = vmatpush1.msra.mxu0 0.0
    %7988 = vmatprep.subr.mxu0 0.0
    %7989 = vmatpush1.msra.mxu0 0.0
    %7990 = vmatprep.subr.mxu0 0.0
    %7991 = vmatpush1.msra.mxu0 0.0
    %7992 = vmatprep.mubr.f32.mxu0 0.0
    %v7993 = vand.u32 %v7827, 4294901760
    %7994 = vmatmul.mubr.f32.gmra.mrb[0].mxu0 %v7993
    %v7995 = vpop.f32.mrb[0].mxu0
    %v7996 = vadd.f32 %v7905, %v7995
    %v7997 = vpop.f32.mrb[0].mxu0
    %7998 = vdwg.mxu0
    %7999 = vmatprep.subr.mxu0 0.0
    %v8000 = vand.u32 %v29, 4294901760
    %v8001 = vsub.f32 %v29, %v8000
    %8002 = vmatpush1.msra.mxu0 %v8001
    %8003 = vmatprep.subr.mxu0 0.0
    %v8004 = vand.u32 %v30, 4294901760
    %v8005 = vsub.f32 %v30, %v8004
    %8006 = vmatpush1.msra.mxu0 %v8005
    %8007 = vmatprep.subr.mxu0 0.0
    %v8008 = vand.u32 %v31, 4294901760
    %v8009 = vsub.f32 %v31, %v8008
    %8010 = vmatpush1.msra.mxu0 %v8009
    %8011 = vmatprep.subr.mxu0 0.0
    %v8012 = vand.u32 %v32, 4294901760
    %v8013 = vsub.f32 %v32, %v8012
    %8014 = vmatpush1.msra.mxu0 %v8013
    %8015 = vmatprep.subr.mxu0 0.0
    %8016 = vmatpush1.msra.mxu0 0.0
    %8017 = vmatprep.subr.mxu0 0.0
    %8018 = vmatpush1.msra.mxu0 0.0
    %8019 = vmatprep.subr.mxu0 0.0
    %8020 = vmatpush1.msra.mxu0 0.0
    %8021 = vmatprep.subr.mxu0 0.0
    %8022 = vmatpush1.msra.mxu0 0.0
    %8023 = vmatprep.subr.mxu0 0.0
    %8024 = vmatpush1.msra.mxu0 0.0
    %8025 = vmatprep.subr.mxu0 0.0
    %8026 = vmatpush1.msra.mxu0 0.0
    %8027 = vmatprep.subr.mxu0 0.0
    %8028 = vmatpush1.msra.mxu0 0.0
    %8029 = vmatprep.subr.mxu0 0.0
    %8030 = vmatpush1.msra.mxu0 0.0
    %8031 = vmatprep.subr.mxu0 0.0
    %8032 = vmatpush1.msra.mxu0 0.0
    %8033 = vmatprep.subr.mxu0 0.0
    %8034 = vmatpush1.msra.mxu0 0.0
    %8035 = vmatprep.subr.mxu0 0.0
    %8036 = vmatpush1.msra.mxu0 0.0
    %8037 = vmatprep.subr.mxu0 0.0
    %8038 = vmatpush1.msra.mxu0 0.0
    %8039 = vmatprep.subr.mxu0 0.0
    %8040 = vmatpush1.msra.mxu0 0.0
    %8041 = vmatprep.subr.mxu0 0.0
    %8042 = vmatpush1.msra.mxu0 0.0
    %8043 = vmatprep.subr.mxu0 0.0
    %8044 = vmatpush1.msra.mxu0 0.0
    %8045 = vmatprep.subr.mxu0 0.0
    %8046 = vmatpush1.msra.mxu0 0.0
    %8047 = vmatprep.subr.mxu0 0.0
    %8048 = vmatpush1.msra.mxu0 0.0
    %8049 = vmatprep.subr.mxu0 0.0
    %8050 = vmatpush1.msra.mxu0 0.0
    %8051 = vmatprep.subr.mxu0 0.0
    %8052 = vmatpush1.msra.mxu0 0.0
    %8053 = vmatprep.subr.mxu0 0.0
    %8054 = vmatpush1.msra.mxu0 0.0
    %8055 = vmatprep.subr.mxu0 0.0
    %8056 = vmatpush1.msra.mxu0 0.0
    %8057 = vmatprep.subr.mxu0 0.0
    %8058 = vmatpush1.msra.mxu0 0.0
    %8059 = vmatprep.subr.mxu0 0.0
    %8060 = vmatpush1.msra.mxu0 0.0
    %8061 = vmatprep.subr.mxu0 0.0
    %8062 = vmatpush1.msra.mxu0 0.0
    %8063 = vmatprep.subr.mxu0 0.0
    %8064 = vmatpush1.msra.mxu0 0.0
    %8065 = vmatprep.subr.mxu0 0.0
    %8066 = vmatpush1.msra.mxu0 0.0
    %8067 = vmatprep.subr.mxu0 0.0
    %8068 = vmatpush1.msra.mxu0 0.0
    %8069 = vmatprep.subr.mxu0 0.0
    %8070 = vmatpush1.msra.mxu0 0.0
    %8071 = vmatprep.mubr.f32.mxu0 0.0
    %v8072 = vand.u32 %v7827, 4294901760
    %v8073 = vsub.f32 %v7827, %v8072
    %8074 = vmatmul.mubr.f32.gmra.mrb[0].mxu0 %v8073
    %v8075 = vpop.f32.mrb[0].mxu0
    %v8076 = vadd.f32 %v7996, %v8075
    %v8077 = vpop.f32.mrb[0].mxu0
    %8078 = vdwg.mxu0
    %8079 = vmatprep.subr.mxu0 0.0
    %v8080 = vand.u32 %v29, 4294901760
    %8081 = vmatpush1.msra.mxu0 %v8080
    %8082 = vmatprep.subr.mxu0 0.0
    %v8083 = vand.u32 %v30, 4294901760
    %8084 = vmatpush1.msra.mxu0 %v8083
    %8085 = vmatprep.subr.mxu0 0.0
    %v8086 = vand.u32 %v31, 4294901760
    %8087 = vmatpush1.msra.mxu0 %v8086
    %8088 = vmatprep.subr.mxu0 0.0
    %v8089 = vand.u32 %v32, 4294901760
    %8090 = vmatpush1.msra.mxu0 %v8089
    %8091 = vmatprep.subr.mxu0 0.0
    %8092 = vmatpush1.msra.mxu0 0.0
    %8093 = vmatprep.subr.mxu0 0.0
    %8094 = vmatpush1.msra.mxu0 0.0
    %8095 = vmatprep.subr.mxu0 0.0
    %8096 = vmatpush1.msra.mxu0 0.0
    %8097 = vmatprep.subr.mxu0 0.0
    %8098 = vmatpush1.msra.mxu0 0.0
    %8099 = vmatprep.subr.mxu0 0.0
    %8100 = vmatpush1.msra.mxu0 0.0
    %8101 = vmatprep.subr.mxu0 0.0
    %8102 = vmatpush1.msra.mxu0 0.0
    %8103 = vmatprep.subr.mxu0 0.0
    %8104 = vmatpush1.msra.mxu0 0.0
    %8105 = vmatprep.subr.mxu0 0.0
    %8106 = vmatpush1.msra.mxu0 0.0
    %8107 = vmatprep.subr.mxu0 0.0
    %8108 = vmatpush1.msra.mxu0 0.0
    %8109 = vmatprep.subr.mxu0 0.0
    %8110 = vmatpush1.msra.mxu0 0.0
    %8111 = vmatprep.subr.mxu0 0.0
    %8112 = vmatpush1.msra.mxu0 0.0
    %8113 = vmatprep.subr.mxu0 0.0
    %8114 = vmatpush1.msra.mxu0 0.0
    %8115 = vmatprep.subr.mxu0 0.0
    %8116 = vmatpush1.msra.mxu0 0.0
    %8117 = vmatprep.subr.mxu0 0.0
    %8118 = vmatpush1.msra.mxu0 0.0
    %8119 = vmatprep.subr.mxu0 0.0
    %8120 = vmatpush1.msra.mxu0 0.0
    %8121 = vmatprep.subr.mxu0 0.0
    %8122 = vmatpush1.msra.mxu0 0.0
    %8123 = vmatprep.subr.mxu0 0.0
    %8124 = vmatpush1.msra.mxu0 0.0
    %8125 = vmatprep.subr.mxu0 0.0
    %8126 = vmatpush1.msra.mxu0 0.0
    %8127 = vmatprep.subr.mxu0 0.0
    %8128 = vmatpush1.msra.mxu0 0.0
    %8129 = vmatprep.subr.mxu0 0.0
    %8130 = vmatpush1.msra.mxu0 0.0
    %8131 = vmatprep.subr.mxu0 0.0
    %8132 = vmatpush1.msra.mxu0 0.0
    %8133 = vmatprep.subr.mxu0 0.0
    %8134 = vmatpush1.msra.mxu0 0.0
    %8135 = vmatprep.subr.mxu0 0.0
    %8136 = vmatpush1.msra.mxu0 0.0
    %8137 = vmatprep.subr.mxu0 0.0
    %8138 = vmatpush1.msra.mxu0 0.0
    %8139 = vmatprep.subr.mxu0 0.0
    %8140 = vmatpush1.msra.mxu0 0.0
    %8141 = vmatprep.subr.mxu0 0.0
    %8142 = vmatpush1.msra.mxu0 0.0
    %8143 = vmatprep.subr.mxu0 0.0
    %8144 = vmatpush1.msra.mxu0 0.0
    %8145 = vmatprep.subr.mxu0 0.0
    %8146 = vmatpush1.msra.mxu0 0.0
    %8147 = vmatprep.mubr.f32.mxu0 0.0
    %v8148 = vand.u32 %v7827, 4294901760
    %v8149 = vsub.f32 %v7827, %v8148
    %v8150 = vand.u32 %v8149, 4294901760
    %8151 = vmatmul.mubr.f32.gmra.mrb[0].mxu0 %v8150
    %v8152 = vpop.f32.mrb[0].mxu0
    %v8153 = vadd.f32 %v8076, %v8152
    %v8154 = vpop.f32.mrb[0].mxu0
    %8155 = vdwg.mxu0
    %8156 = vmatprep.subr.mxu0 0.0
    %v8157 = vand.u32 %v29, 4294901760
    %v8158 = vsub.f32 %v29, %v8157
    %v8159 = vand.u32 %v8158, 4294901760
    %8160 = vmatpush1.msra.mxu0 %v8159
    %8161 = vmatprep.subr.mxu0 0.0
    %v8162 = vand.u32 %v30, 4294901760
    %v8163 = vsub.f32 %v30, %v8162
    %v8164 = vand.u32 %v8163, 4294901760
    %8165 = vmatpush1.msra.mxu0 %v8164
    %8166 = vmatprep.subr.mxu0 0.0
    %v8167 = vand.u32 %v31, 4294901760
    %v8168 = vsub.f32 %v31, %v8167
    %v8169 = vand.u32 %v8168, 4294901760
    %8170 = vmatpush1.msra.mxu0 %v8169
    %8171 = vmatprep.subr.mxu0 0.0
    %v8172 = vand.u32 %v32, 4294901760
    %v8173 = vsub.f32 %v32, %v8172
    %v8174 = vand.u32 %v8173, 4294901760
    %8175 = vmatpush1.msra.mxu0 %v8174
    %8176 = vmatprep.subr.mxu0 0.0
    %8177 = vmatpush1.msra.mxu0 0.0
    %8178 = vmatprep.subr.mxu0 0.0
    %8179 = vmatpush1.msra.mxu0 0.0
    %8180 = vmatprep.subr.mxu0 0.0
    %8181 = vmatpush1.msra.mxu0 0.0
    %8182 = vmatprep.subr.mxu0 0.0
    %8183 = vmatpush1.msra.mxu0 0.0
    %8184 = vmatprep.subr.mxu0 0.0
    %8185 = vmatpush1.msra.mxu0 0.0
    %8186 = vmatprep.subr.mxu0 0.0
    %8187 = vmatpush1.msra.mxu0 0.0
    %8188 = vmatprep.subr.mxu0 0.0
    %8189 = vmatpush1.msra.mxu0 0.0
    %8190 = vmatprep.subr.mxu0 0.0
    %8191 = vmatpush1.msra.mxu0 0.0
    %8192 = vmatprep.subr.mxu0 0.0
    %8193 = vmatpush1.msra.mxu0 0.0
    %8194 = vmatprep.subr.mxu0 0.0
    %8195 = vmatpush1.msra.mxu0 0.0
    %8196 = vmatprep.subr.mxu0 0.0
    %8197 = vmatpush1.msra.mxu0 0.0
    %8198 = vmatprep.subr.mxu0 0.0
    %8199 = vmatpush1.msra.mxu0 0.0
    %8200 = vmatprep.subr.mxu0 0.0
    %8201 = vmatpush1.msra.mxu0 0.0
    %8202 = vmatprep.subr.mxu0 0.0
    %8203 = vmatpush1.msra.mxu0 0.0
    %8204 = vmatprep.subr.mxu0 0.0
    %8205 = vmatpush1.msra.mxu0 0.0
    %8206 = vmatprep.subr.mxu0 0.0
    %8207 = vmatpush1.msra.mxu0 0.0
    %8208 = vmatprep.subr.mxu0 0.0
    %8209 = vmatpush1.msra.mxu0 0.0
    %8210 = vmatprep.subr.mxu0 0.0
    %8211 = vmatpush1.msra.mxu0 0.0
    %8212 = vmatprep.subr.mxu0 0.0
    %8213 = vmatpush1.msra.mxu0 0.0
    %8214 = vmatprep.subr.mxu0 0.0
    %8215 = vmatpush1.msra.mxu0 0.0
    %8216 = vmatprep.subr.mxu0 0.0
    %8217 = vmatpush1.msra.mxu0 0.0
    %8218 = vmatprep.subr.mxu0 0.0
    %8219 = vmatpush1.msra.mxu0 0.0
    %8220 = vmatprep.subr.mxu0 0.0
    %8221 = vmatpush1.msra.mxu0 0.0
    %8222 = vmatprep.subr.mxu0 0.0
    %8223 = vmatpush1.msra.mxu0 0.0
    %8224 = vmatprep.subr.mxu0 0.0
    %8225 = vmatpush1.msra.mxu0 0.0
    %8226 = vmatprep.subr.mxu0 0.0
    %8227 = vmatpush1.msra.mxu0 0.0
    %8228 = vmatprep.subr.mxu0 0.0
    %8229 = vmatpush1.msra.mxu0 0.0
    %8230 = vmatprep.subr.mxu0 0.0
    %8231 = vmatpush1.msra.mxu0 0.0
    %8232 = vmatprep.mubr.f32.mxu0 0.0
    %v8233 = vand.u32 %v7827, 4294901760
    %8234 = vmatmul.mubr.f32.gmra.mrb[0].mxu0 %v8233
    %v8235 = vpop.f32.mrb[0].mxu0
    %v8236 = vadd.f32 %v8153, %v8235
    %v8237 = vpop.f32.mrb[0].mxu0
    %8238 = vdwg.mxu0
    %8239 = vmatprep.subr.mxu0 0.0
    %v8240 = vand.u32 %v29, 4294901760
    %8241 = vmatpush1.msra.mxu0 %v8240
    %8242 = vmatprep.subr.mxu0 0.0
    %v8243 = vand.u32 %v30, 4294901760
    %8244 = vmatpush1.msra.mxu0 %v8243
    %8245 = vmatprep.subr.mxu0 0.0
    %v8246 = vand.u32 %v31, 4294901760
    %8247 = vmatpush1.msra.mxu0 %v8246
    %8248 = vmatprep.subr.mxu0 0.0
    %v8249 = vand.u32 %v32, 4294901760
    %8250 = vmatpush1.msra.mxu0 %v8249
    %8251 = vmatprep.subr.mxu0 0.0
    %8252 = vmatpush1.msra.mxu0 0.0
    %8253 = vmatprep.subr.mxu0 0.0
    %8254 = vmatpush1.msra.mxu0 0.0
    %8255 = vmatprep.subr.mxu0 0.0
    %8256 = vmatpush1.msra.mxu0 0.0
    %8257 = vmatprep.subr.mxu0 0.0
    %8258 = vmatpush1.msra.mxu0 0.0
    %8259 = vmatprep.subr.mxu0 0.0
    %8260 = vmatpush1.msra.mxu0 0.0
    %8261 = vmatprep.subr.mxu0 0.0
    %8262 = vmatpush1.msra.mxu0 0.0
    %8263 = vmatprep.subr.mxu0 0.0
    %8264 = vmatpush1.msra.mxu0 0.0
    %8265 = vmatprep.subr.mxu0 0.0
    %8266 = vmatpush1.msra.mxu0 0.0
    %8267 = vmatprep.subr.mxu0 0.0
    %8268 = vmatpush1.msra.mxu0 0.0
    %8269 = vmatprep.subr.mxu0 0.0
    %8270 = vmatpush1.msra.mxu0 0.0
    %8271 = vmatprep.subr.mxu0 0.0
    %8272 = vmatpush1.msra.mxu0 0.0
    %8273 = vmatprep.subr.mxu0 0.0
    %8274 = vmatpush1.msra.mxu0 0.0
    %8275 = vmatprep.subr.mxu0 0.0
    %8276 = vmatpush1.msra.mxu0 0.0
    %8277 = vmatprep.subr.mxu0 0.0
    %8278 = vmatpush1.msra.mxu0 0.0
    %8279 = vmatprep.subr.mxu0 0.0
    %8280 = vmatpush1.msra.mxu0 0.0
    %8281 = vmatprep.subr.mxu0 0.0
    %8282 = vmatpush1.msra.mxu0 0.0
    %8283 = vmatprep.subr.mxu0 0.0
    %8284 = vmatpush1.msra.mxu0 0.0
    %8285 = vmatprep.subr.mxu0 0.0
    %8286 = vmatpush1.msra.mxu0 0.0
    %8287 = vmatprep.subr.mxu0 0.0
    %8288 = vmatpush1.msra.mxu0 0.0
    %8289 = vmatprep.subr.mxu0 0.0
    %8290 = vmatpush1.msra.mxu0 0.0
    %8291 = vmatprep.subr.mxu0 0.0
    %8292 = vmatpush1.msra.mxu0 0.0
    %8293 = vmatprep.subr.mxu0 0.0
    %8294 = vmatpush1.msra.mxu0 0.0
    %8295 = vmatprep.subr.mxu0 0.0
    %8296 = vmatpush1.msra.mxu0 0.0
    %8297 = vmatprep.subr.mxu0 0.0
    %8298 = vmatpush1.msra.mxu0 0.0
    %8299 = vmatprep.subr.mxu0 0.0
    %8300 = vmatpush1.msra.mxu0 0.0
    %8301 = vmatprep.subr.mxu0 0.0
    %8302 = vmatpush1.msra.mxu0 0.0
    %8303 = vmatprep.subr.mxu0 0.0
    %8304 = vmatpush1.msra.mxu0 0.0
    %8305 = vmatprep.subr.mxu0 0.0
    %8306 = vmatpush1.msra.mxu0 0.0
    %8307 = vmatprep.mubr.f32.mxu0 0.0
    %v8308 = vand.u32 %v7827, 4294901760
    %8309 = vmatmul.mubr.f32.gmra.mrb[0].mxu0 %v8308
    %v8310 = vpop.f32.mrb[0].mxu0
    %v8311 = vadd.f32 %v8236, %v8310
    %v8312 = vpop.f32.mrb[0].mxu0
    %8313 = vdwg.mxu0
    %v8314 = vadd.f32 %v7826, %v8311
    %v8315 = vxor.u32 %v8314, 2147483648
    %v8316 = vmul.f32 %v8315, 1.442695
    %v8317 = vpow.pop %v8316
    %v8318 = vadd.f32 %v8317, 1.0
    %v8319 = vrcp.pop %v8318
    %v8320 = vmul.f32 1.0, %v8319
    %v8321 = vadd.f32 %v8311, %v560
    %8323 = vrot.lane.b32.xlu0 %v8321, 64
    %v8324 = vpop.permute.xlu0 %8323
    %v8326 = vmul.f32 %v8320, %v8324
    %8328 = vrot.lane.b32.xlu0 %v8326, 64
    %v8329 = vpop.permute.xlu0 %8328
    %v8331 = vadd.f32 %v7826, %v8329
    %v8332 = vtanh.pop %v8331
    %v8333 = vsub.f32 1.0, %v8320
    %8335 = vrot.lane.b32.xlu0 %v8332, 96
    %v8336 = vpop.permute.xlu0 %8335
    %v8338 = vmul.f32 %v8333, %v8336
    %v8339 = vmul.f32 %v8320, %v7245
    %v8340 = vadd.f32 %v8338, %v8339
    %8342 = vset.pattern.permute.xlu0 0
    %8343 = vperm.xlu0 %8342, %v7823
    %v8344 = vpop.permute.xlu0 %8343
    %v8346 = vmul.f32 %v8344, %v8340
    %8348 = vset.pattern.permute.xlu0 0
    %8349 = vperm.xlu0 %8348, %v7824
    %v8350 = vpop.permute.xlu0 %8349
    %v8352 = vmul.f32 %v8350, %v7245
    %v8353 = vadd.f32 %v8346, %v8352
    %8355 = vrot.lane.b32.xlu0 %v8353, 96
    %v8356 = vpop.permute.xlu0 %8355
    %v8358 = vsel %vm63, %v8356, %v7820
    %v8360 = vsel %vm600, %v8358, 0
    %8362 = vmatprep.subr.mxu0 0.0
    %v8363 = vand.u32 %v39, 4294901760
    %8364 = vmatpush1.msra.mxu0 %v8363
    %8365 = vmatprep.subr.mxu0 0.0
    %v8366 = vand.u32 %v40, 4294901760
    %8367 = vmatpush1.msra.mxu0 %v8366
    %8368 = vmatprep.subr.mxu0 0.0
    %v8369 = vand.u32 %v41, 4294901760
    %8370 = vmatpush1.msra.mxu0 %v8369
    %8371 = vmatprep.subr.mxu0 0.0
    %v8372 = vand.u32 %v42, 4294901760
    %8373 = vmatpush1.msra.mxu0 %v8372
    %8374 = vmatprep.subr.mxu0 0.0
    %v8375 = vand.u32 %v43, 4294901760
    %8376 = vmatpush1.msra.mxu0 %v8375
    %8377 = vmatprep.subr.mxu0 0.0
    %v8378 = vand.u32 %v44, 4294901760
    %8379 = vmatpush1.msra.mxu0 %v8378
    %8380 = vmatprep.subr.mxu0 0.0
    %v8381 = vand.u32 %v45, 4294901760
    %8382 = vmatpush1.msra.mxu0 %v8381
    %8383 = vmatprep.subr.mxu0 0.0
    %v8384 = vand.u32 %v46, 4294901760
    %8385 = vmatpush1.msra.mxu0 %v8384
    %8386 = vmatprep.subr.mxu0 0.0
    %8387 = vmatpush1.msra.mxu0 0.0
    %8388 = vmatprep.subr.mxu0 0.0
    %8389 = vmatpush1.msra.mxu0 0.0
    %8390 = vmatprep.subr.mxu0 0.0
    %8391 = vmatpush1.msra.mxu0 0.0
    %8392 = vmatprep.subr.mxu0 0.0
    %8393 = vmatpush1.msra.mxu0 0.0
    %8394 = vmatprep.subr.mxu0 0.0
    %8395 = vmatpush1.msra.mxu0 0.0
    %8396 = vmatprep.subr.mxu0 0.0
    %8397 = vmatpush1.msra.mxu0 0.0
    %8398 = vmatprep.subr.mxu0 0.0
    %8399 = vmatpush1.msra.mxu0 0.0
    %8400 = vmatprep.subr.mxu0 0.0
    %8401 = vmatpush1.msra.mxu0 0.0
    %8402 = vmatprep.subr.mxu0 0.0
    %8403 = vmatpush1.msra.mxu0 0.0
    %8404 = vmatprep.subr.mxu0 0.0
    %8405 = vmatpush1.msra.mxu0 0.0
    %8406 = vmatprep.subr.mxu0 0.0
    %8407 = vmatpush1.msra.mxu0 0.0
    %8408 = vmatprep.subr.mxu0 0.0
    %8409 = vmatpush1.msra.mxu0 0.0
    %8410 = vmatprep.subr.mxu0 0.0
    %8411 = vmatpush1.msra.mxu0 0.0
    %8412 = vmatprep.subr.mxu0 0.0
    %8413 = vmatpush1.msra.mxu0 0.0
    %8414 = vmatprep.subr.mxu0 0.0
    %8415 = vmatpush1.msra.mxu0 0.0
    %8416 = vmatprep.subr.mxu0 0.0
    %8417 = vmatpush1.msra.mxu0 0.0
    %8418 = vmatprep.subr.mxu0 0.0
    %8419 = vmatpush1.msra.mxu0 0.0
    %8420 = vmatprep.subr.mxu0 0.0
    %8421 = vmatpush1.msra.mxu0 0.0
    %8422 = vmatprep.subr.mxu0 0.0
    %8423 = vmatpush1.msra.mxu0 0.0
    %8424 = vmatprep.subr.mxu0 0.0
    %8425 = vmatpush1.msra.mxu0 0.0
    %8426 = vmatprep.subr.mxu0 0.0
    %8427 = vmatpush1.msra.mxu0 0.0
    %8428 = vmatprep.subr.mxu0 0.0
    %8429 = vmatpush1.msra.mxu0 0.0
    %8430 = vmatprep.subr.mxu0 0.0
    %8431 = vmatpush1.msra.mxu0 0.0
    %8432 = vmatprep.subr.mxu0 0.0
    %8433 = vmatpush1.msra.mxu0 0.0
    %8434 = vmatprep.mubr.f32.mxu0 0.0
    %v8435 = vand.u32 %v8360, 4294901760
    %v8436 = vsub.f32 %v8360, %v8435
    %v8437 = vand.u32 %v8436, 4294901760
    %v8438 = vsub.f32 %v8436, %v8437
    %v8439 = vand.u32 %v8438, 4294901760
    %8440 = vmatmul.mubr.f32.gmra.mrb[0].mxu0 %v8439
    %v8441 = vpop.f32.mrb[0].mxu0
    %v8442 = vadd.f32 0.0, %v8441
    %v8443 = vpop.f32.mrb[0].mxu0
    %8444 = vdwg.mxu0
    %8445 = vmatprep.subr.mxu0 0.0
    %v8446 = vand.u32 %v39, 4294901760
    %v8447 = vsub.f32 %v39, %v8446
    %v8448 = vand.u32 %v8447, 4294901760
    %v8449 = vsub.f32 %v8447, %v8448
    %v8450 = vand.u32 %v8449, 4294901760
    %8451 = vmatpush1.msra.mxu0 %v8450
    %8452 = vmatprep.subr.mxu0 0.0
    %v8453 = vand.u32 %v40, 4294901760
    %v8454 = vsub.f32 %v40, %v8453
    %v8455 = vand.u32 %v8454, 4294901760
    %v8456 = vsub.f32 %v8454, %v8455
    %v8457 = vand.u32 %v8456, 4294901760
    %8458 = vmatpush1.msra.mxu0 %v8457
    %8459 = vmatprep.subr.mxu0 0.0
    %v8460 = vand.u32 %v41, 4294901760
    %v8461 = vsub.f32 %v41, %v8460
    %v8462 = vand.u32 %v8461, 4294901760
    %v8463 = vsub.f32 %v8461, %v8462
    %v8464 = vand.u32 %v8463, 4294901760
    %8465 = vmatpush1.msra.mxu0 %v8464
    %8466 = vmatprep.subr.mxu0 0.0
    %v8467 = vand.u32 %v42, 4294901760
    %v8468 = vsub.f32 %v42, %v8467
    %v8469 = vand.u32 %v8468, 4294901760
    %v8470 = vsub.f32 %v8468, %v8469
    %v8471 = vand.u32 %v8470, 4294901760
    %8472 = vmatpush1.msra.mxu0 %v8471
    %8473 = vmatprep.subr.mxu0 0.0
    %v8474 = vand.u32 %v43, 4294901760
    %v8475 = vsub.f32 %v43, %v8474
    %v8476 = vand.u32 %v8475, 4294901760
    %v8477 = vsub.f32 %v8475, %v8476
    %v8478 = vand.u32 %v8477, 4294901760
    %8479 = vmatpush1.msra.mxu0 %v8478
    %8480 = vmatprep.subr.mxu0 0.0
    %v8481 = vand.u32 %v44, 4294901760
    %v8482 = vsub.f32 %v44, %v8481
    %v8483 = vand.u32 %v8482, 4294901760
    %v8484 = vsub.f32 %v8482, %v8483
    %v8485 = vand.u32 %v8484, 4294901760
    %8486 = vmatpush1.msra.mxu0 %v8485
    %8487 = vmatprep.subr.mxu0 0.0
    %v8488 = vand.u32 %v45, 4294901760
    %v8489 = vsub.f32 %v45, %v8488
    %v8490 = vand.u32 %v8489, 4294901760
    %v8491 = vsub.f32 %v8489, %v8490
    %v8492 = vand.u32 %v8491, 4294901760
    %8493 = vmatpush1.msra.mxu0 %v8492
    %8494 = vmatprep.subr.mxu0 0.0
    %v8495 = vand.u32 %v46, 4294901760
    %v8496 = vsub.f32 %v46, %v8495
    %v8497 = vand.u32 %v8496, 4294901760
    %v8498 = vsub.f32 %v8496, %v8497
    %v8499 = vand.u32 %v8498, 4294901760
    %8500 = vmatpush1.msra.mxu0 %v8499
    %8501 = vmatprep.subr.mxu0 0.0
    %8502 = vmatpush1.msra.mxu0 0.0
    %8503 = vmatprep.subr.mxu0 0.0
    %8504 = vmatpush1.msra.mxu0 0.0
    %8505 = vmatprep.subr.mxu0 0.0
    %8506 = vmatpush1.msra.mxu0 0.0
    %8507 = vmatprep.subr.mxu0 0.0
    %8508 = vmatpush1.msra.mxu0 0.0
    %8509 = vmatprep.subr.mxu0 0.0
    %8510 = vmatpush1.msra.mxu0 0.0
    %8511 = vmatprep.subr.mxu0 0.0
    %8512 = vmatpush1.msra.mxu0 0.0
    %8513 = vmatprep.subr.mxu0 0.0
    %8514 = vmatpush1.msra.mxu0 0.0
    %8515 = vmatprep.subr.mxu0 0.0
    %8516 = vmatpush1.msra.mxu0 0.0
    %8517 = vmatprep.subr.mxu0 0.0
    %8518 = vmatpush1.msra.mxu0 0.0
    %8519 = vmatprep.subr.mxu0 0.0
    %8520 = vmatpush1.msra.mxu0 0.0
    %8521 = vmatprep.subr.mxu0 0.0
    %8522 = vmatpush1.msra.mxu0 0.0
    %8523 = vmatprep.subr.mxu0 0.0
    %8524 = vmatpush1.msra.mxu0 0.0
    %8525 = vmatprep.subr.mxu0 0.0
    %8526 = vmatpush1.msra.mxu0 0.0
    %8527 = vmatprep.subr.mxu0 0.0
    %8528 = vmatpush1.msra.mxu0 0.0
    %8529 = vmatprep.subr.mxu0 0.0
    %8530 = vmatpush1.msra.mxu0 0.0
    %8531 = vmatprep.subr.mxu0 0.0
    %8532 = vmatpush1.msra.mxu0 0.0
    %8533 = vmatprep.subr.mxu0 0.0
    %8534 = vmatpush1.msra.mxu0 0.0
    %8535 = vmatprep.subr.mxu0 0.0
    %8536 = vmatpush1.msra.mxu0 0.0
    %8537 = vmatprep.subr.mxu0 0.0
    %8538 = vmatpush1.msra.mxu0 0.0
    %8539 = vmatprep.subr.mxu0 0.0
    %8540 = vmatpush1.msra.mxu0 0.0
    %8541 = vmatprep.subr.mxu0 0.0
    %8542 = vmatpush1.msra.mxu0 0.0
    %8543 = vmatprep.subr.mxu0 0.0
    %8544 = vmatpush1.msra.mxu0 0.0
    %8545 = vmatprep.subr.mxu0 0.0
    %8546 = vmatpush1.msra.mxu0 0.0
    %8547 = vmatprep.subr.mxu0 0.0
    %8548 = vmatpush1.msra.mxu0 0.0
    %8549 = vmatprep.mubr.f32.mxu0 0.0
    %v8550 = vand.u32 %v8360, 4294901760
    %8551 = vmatmul.mubr.f32.gmra.mrb[0].mxu0 %v8550
    %v8552 = vpop.f32.mrb[0].mxu0
    %v8553 = vadd.f32 %v8442, %v8552
    %v8554 = vpop.f32.mrb[0].mxu0
    %8555 = vdwg.mxu0
    %8556 = vmatprep.subr.mxu0 0.0
    %v8557 = vand.u32 %v39, 4294901760
    %v8558 = vsub.f32 %v39, %v8557
    %8559 = vmatpush1.msra.mxu0 %v8558
    %8560 = vmatprep.subr.mxu0 0.0
    %v8561 = vand.u32 %v40, 4294901760
    %v8562 = vsub.f32 %v40, %v8561
    %8563 = vmatpush1.msra.mxu0 %v8562
    %8564 = vmatprep.subr.mxu0 0.0
    %v8565 = vand.u32 %v41, 4294901760
    %v8566 = vsub.f32 %v41, %v8565
    %8567 = vmatpush1.msra.mxu0 %v8566
    %8568 = vmatprep.subr.mxu0 0.0
    %v8569 = vand.u32 %v42, 4294901760
    %v8570 = vsub.f32 %v42, %v8569
    %8571 = vmatpush1.msra.mxu0 %v8570
    %8572 = vmatprep.subr.mxu0 0.0
    %v8573 = vand.u32 %v43, 4294901760
    %v8574 = vsub.f32 %v43, %v8573
    %8575 = vmatpush1.msra.mxu0 %v8574
    %8576 = vmatprep.subr.mxu0 0.0
    %v8577 = vand.u32 %v44, 4294901760
    %v8578 = vsub.f32 %v44, %v8577
    %8579 = vmatpush1.msra.mxu0 %v8578
    %8580 = vmatprep.subr.mxu0 0.0
    %v8581 = vand.u32 %v45, 4294901760
    %v8582 = vsub.f32 %v45, %v8581
    %8583 = vmatpush1.msra.mxu0 %v8582
    %8584 = vmatprep.subr.mxu0 0.0
    %v8585 = vand.u32 %v46, 4294901760
    %v8586 = vsub.f32 %v46, %v8585
    %8587 = vmatpush1.msra.mxu0 %v8586
    %8588 = vmatprep.subr.mxu0 0.0
    %8589 = vmatpush1.msra.mxu0 0.0
    %8590 = vmatprep.subr.mxu0 0.0
    %8591 = vmatpush1.msra.mxu0 0.0
    %8592 = vmatprep.subr.mxu0 0.0
    %8593 = vmatpush1.msra.mxu0 0.0
    %8594 = vmatprep.subr.mxu0 0.0
    %8595 = vmatpush1.msra.mxu0 0.0
    %8596 = vmatprep.subr.mxu0 0.0
    %8597 = vmatpush1.msra.mxu0 0.0
    %8598 = vmatprep.subr.mxu0 0.0
    %8599 = vmatpush1.msra.mxu0 0.0
    %8600 = vmatprep.subr.mxu0 0.0
    %8601 = vmatpush1.msra.mxu0 0.0
    %8602 = vmatprep.subr.mxu0 0.0
    %8603 = vmatpush1.msra.mxu0 0.0
    %8604 = vmatprep.subr.mxu0 0.0
    %8605 = vmatpush1.msra.mxu0 0.0
    %8606 = vmatprep.subr.mxu0 0.0
    %8607 = vmatpush1.msra.mxu0 0.0
    %8608 = vmatprep.subr.mxu0 0.0
    %8609 = vmatpush1.msra.mxu0 0.0
    %8610 = vmatprep.subr.mxu0 0.0
    %8611 = vmatpush1.msra.mxu0 0.0
    %8612 = vmatprep.subr.mxu0 0.0
    %8613 = vmatpush1.msra.mxu0 0.0
    %8614 = vmatprep.subr.mxu0 0.0
    %8615 = vmatpush1.msra.mxu0 0.0
    %8616 = vmatprep.subr.mxu0 0.0
    %8617 = vmatpush1.msra.mxu0 0.0
    %8618 = vmatprep.subr.mxu0 0.0
    %8619 = vmatpush1.msra.mxu0 0.0
    %8620 = vmatprep.subr.mxu0 0.0
    %8621 = vmatpush1.msra.mxu0 0.0
    %8622 = vmatprep.subr.mxu0 0.0
    %8623 = vmatpush1.msra.mxu0 0.0
    %8624 = vmatprep.subr.mxu0 0.0
    %8625 = vmatpush1.msra.mxu0 0.0
    %8626 = vmatprep.subr.mxu0 0.0
    %8627 = vmatpush1.msra.mxu0 0.0
    %8628 = vmatprep.subr.mxu0 0.0
    %8629 = vmatpush1.msra.mxu0 0.0
    %8630 = vmatprep.subr.mxu0 0.0
    %8631 = vmatpush1.msra.mxu0 0.0
    %8632 = vmatprep.subr.mxu0 0.0
    %8633 = vmatpush1.msra.mxu0 0.0
    %8634 = vmatprep.subr.mxu0 0.0
    %8635 = vmatpush1.msra.mxu0 0.0
    %8636 = vmatprep.mubr.f32.mxu0 0.0
    %v8637 = vand.u32 %v8360, 4294901760
    %v8638 = vsub.f32 %v8360, %v8637
    %8639 = vmatmul.mubr.f32.gmra.mrb[0].mxu0 %v8638
    %v8640 = vpop.f32.mrb[0].mxu0
    %v8641 = vadd.f32 %v8553, %v8640
    %v8642 = vpop.f32.mrb[0].mxu0
    %8643 = vdwg.mxu0
    %8644 = vmatprep.subr.mxu0 0.0
    %v8645 = vand.u32 %v39, 4294901760
    %8646 = vmatpush1.msra.mxu0 %v8645
    %8647 = vmatprep.subr.mxu0 0.0
    %v8648 = vand.u32 %v40, 4294901760
    %8649 = vmatpush1.msra.mxu0 %v8648
    %8650 = vmatprep.subr.mxu0 0.0
    %v8651 = vand.u32 %v41, 4294901760
    %8652 = vmatpush1.msra.mxu0 %v8651
    %8653 = vmatprep.subr.mxu0 0.0
    %v8654 = vand.u32 %v42, 4294901760
    %8655 = vmatpush1.msra.mxu0 %v8654
    %8656 = vmatprep.subr.mxu0 0.0
    %v8657 = vand.u32 %v43, 4294901760
    %8658 = vmatpush1.msra.mxu0 %v8657
    %8659 = vmatprep.subr.mxu0 0.0
    %v8660 = vand.u32 %v44, 4294901760
    %8661 = vmatpush1.msra.mxu0 %v8660
    %8662 = vmatprep.subr.mxu0 0.0
    %v8663 = vand.u32 %v45, 4294901760
    %8664 = vmatpush1.msra.mxu0 %v8663
    %8665 = vmatprep.subr.mxu0 0.0
    %v8666 = vand.u32 %v46, 4294901760
    %8667 = vmatpush1.msra.mxu0 %v8666
    %8668 = vmatprep.subr.mxu0 0.0
    %8669 = vmatpush1.msra.mxu0 0.0
    %8670 = vmatprep.subr.mxu0 0.0
    %8671 = vmatpush1.msra.mxu0 0.0
    %8672 = vmatprep.subr.mxu0 0.0
    %8673 = vmatpush1.msra.mxu0 0.0
    %8674 = vmatprep.subr.mxu0 0.0
    %8675 = vmatpush1.msra.mxu0 0.0
    %8676 = vmatprep.subr.mxu0 0.0
    %8677 = vmatpush1.msra.mxu0 0.0
    %8678 = vmatprep.subr.mxu0 0.0
    %8679 = vmatpush1.msra.mxu0 0.0
    %8680 = vmatprep.subr.mxu0 0.0
    %8681 = vmatpush1.msra.mxu0 0.0
    %8682 = vmatprep.subr.mxu0 0.0
    %8683 = vmatpush1.msra.mxu0 0.0
    %8684 = vmatprep.subr.mxu0 0.0
    %8685 = vmatpush1.msra.mxu0 0.0
    %8686 = vmatprep.subr.mxu0 0.0
    %8687 = vmatpush1.msra.mxu0 0.0
    %8688 = vmatprep.subr.mxu0 0.0
    %8689 = vmatpush1.msra.mxu0 0.0
    %8690 = vmatprep.subr.mxu0 0.0
    %8691 = vmatpush1.msra.mxu0 0.0
    %8692 = vmatprep.subr.mxu0 0.0
    %8693 = vmatpush1.msra.mxu0 0.0
    %8694 = vmatprep.subr.mxu0 0.0
    %8695 = vmatpush1.msra.mxu0 0.0
    %8696 = vmatprep.subr.mxu0 0.0
    %8697 = vmatpush1.msra.mxu0 0.0
    %8698 = vmatprep.subr.mxu0 0.0
    %8699 = vmatpush1.msra.mxu0 0.0
    %8700 = vmatprep.subr.mxu0 0.0
    %8701 = vmatpush1.msra.mxu0 0.0
    %8702 = vmatprep.subr.mxu0 0.0
    %8703 = vmatpush1.msra.mxu0 0.0
    %8704 = vmatprep.subr.mxu0 0.0
    %8705 = vmatpush1.msra.mxu0 0.0
    %8706 = vmatprep.subr.mxu0 0.0
    %8707 = vmatpush1.msra.mxu0 0.0
    %8708 = vmatprep.subr.mxu0 0.0
    %8709 = vmatpush1.msra.mxu0 0.0
    %8710 = vmatprep.subr.mxu0 0.0
    %8711 = vmatpush1.msra.mxu0 0.0
    %8712 = vmatprep.subr.mxu0 0.0
    %8713 = vmatpush1.msra.mxu0 0.0
    %8714 = vmatprep.subr.mxu0 0.0
    %8715 = vmatpush1.msra.mxu0 0.0
    %8716 = vmatprep.mubr.f32.mxu0 0.0
    %v8717 = vand.u32 %v8360, 4294901760
    %v8718 = vsub.f32 %v8360, %v8717
    %v8719 = vand.u32 %v8718, 4294901760
    %8720 = vmatmul.mubr.f32.gmra.mrb[0].mxu0 %v8719
    %v8721 = vpop.f32.mrb[0].mxu0
    %v8722 = vadd.f32 %v8641, %v8721
    %v8723 = vpop.f32.mrb[0].mxu0
    %8724 = vdwg.mxu0
    %8725 = vmatprep.subr.mxu0 0.0
    %v8726 = vand.u32 %v39, 4294901760
    %v8727 = vsub.f32 %v39, %v8726
    %v8728 = vand.u32 %v8727, 4294901760
    %8729 = vmatpush1.msra.mxu0 %v8728
    %8730 = vmatprep.subr.mxu0 0.0
    %v8731 = vand.u32 %v40, 4294901760
    %v8732 = vsub.f32 %v40, %v8731
    %v8733 = vand.u32 %v8732, 4294901760
    %8734 = vmatpush1.msra.mxu0 %v8733
    %8735 = vmatprep.subr.mxu0 0.0
    %v8736 = vand.u32 %v41, 4294901760
    %v8737 = vsub.f32 %v41, %v8736
    %v8738 = vand.u32 %v8737, 4294901760
    %8739 = vmatpush1.msra.mxu0 %v8738
    %8740 = vmatprep.subr.mxu0 0.0
    %v8741 = vand.u32 %v42, 4294901760
    %v8742 = vsub.f32 %v42, %v8741
    %v8743 = vand.u32 %v8742, 4294901760
    %8744 = vmatpush1.msra.mxu0 %v8743
    %8745 = vmatprep.subr.mxu0 0.0
    %v8746 = vand.u32 %v43, 4294901760
    %v8747 = vsub.f32 %v43, %v8746
    %v8748 = vand.u32 %v8747, 4294901760
    %8749 = vmatpush1.msra.mxu0 %v8748
    %8750 = vmatprep.subr.mxu0 0.0
    %v8751 = vand.u32 %v44, 4294901760
    %v8752 = vsub.f32 %v44, %v8751
    %v8753 = vand.u32 %v8752, 4294901760
    %8754 = vmatpush1.msra.mxu0 %v8753
    %8755 = vmatprep.subr.mxu0 0.0
    %v8756 = vand.u32 %v45, 4294901760
    %v8757 = vsub.f32 %v45, %v8756
    %v8758 = vand.u32 %v8757, 4294901760
    %8759 = vmatpush1.msra.mxu0 %v8758
    %8760 = vmatprep.subr.mxu0 0.0
    %v8761 = vand.u32 %v46, 4294901760
    %v8762 = vsub.f32 %v46, %v8761
    %v8763 = vand.u32 %v8762, 4294901760
    %8764 = vmatpush1.msra.mxu0 %v8763
    %8765 = vmatprep.subr.mxu0 0.0
    %8766 = vmatpush1.msra.mxu0 0.0
    %8767 = vmatprep.subr.mxu0 0.0
    %8768 = vmatpush1.msra.mxu0 0.0
    %8769 = vmatprep.subr.mxu0 0.0
    %8770 = vmatpush1.msra.mxu0 0.0
    %8771 = vmatprep.subr.mxu0 0.0
    %8772 = vmatpush1.msra.mxu0 0.0
    %8773 = vmatprep.subr.mxu0 0.0
    %8774 = vmatpush1.msra.mxu0 0.0
    %8775 = vmatprep.subr.mxu0 0.0
    %8776 = vmatpush1.msra.mxu0 0.0
    %8777 = vmatprep.subr.mxu0 0.0
    %8778 = vmatpush1.msra.mxu0 0.0
    %8779 = vmatprep.subr.mxu0 0.0
    %8780 = vmatpush1.msra.mxu0 0.0
    %8781 = vmatprep.subr.mxu0 0.0
    %8782 = vmatpush1.msra.mxu0 0.0
    %8783 = vmatprep.subr.mxu0 0.0
    %8784 = vmatpush1.msra.mxu0 0.0
    %8785 = vmatprep.subr.mxu0 0.0
    %8786 = vmatpush1.msra.mxu0 0.0
    %8787 = vmatprep.subr.mxu0 0.0
    %8788 = vmatpush1.msra.mxu0 0.0
    %8789 = vmatprep.subr.mxu0 0.0
    %8790 = vmatpush1.msra.mxu0 0.0
    %8791 = vmatprep.subr.mxu0 0.0
    %8792 = vmatpush1.msra.mxu0 0.0
    %8793 = vmatprep.subr.mxu0 0.0
    %8794 = vmatpush1.msra.mxu0 0.0
    %8795 = vmatprep.subr.mxu0 0.0
    %8796 = vmatpush1.msra.mxu0 0.0
    %8797 = vmatprep.subr.mxu0 0.0
    %8798 = vmatpush1.msra.mxu0 0.0
    %8799 = vmatprep.subr.mxu0 0.0
    %8800 = vmatpush1.msra.mxu0 0.0
    %8801 = vmatprep.subr.mxu0 0.0
    %8802 = vmatpush1.msra.mxu0 0.0
    %8803 = vmatprep.subr.mxu0 0.0
    %8804 = vmatpush1.msra.mxu0 0.0
    %8805 = vmatprep.subr.mxu0 0.0
    %8806 = vmatpush1.msra.mxu0 0.0
    %8807 = vmatprep.subr.mxu0 0.0
    %8808 = vmatpush1.msra.mxu0 0.0
    %8809 = vmatprep.subr.mxu0 0.0
    %8810 = vmatpush1.msra.mxu0 0.0
    %8811 = vmatprep.subr.mxu0 0.0
    %8812 = vmatpush1.msra.mxu0 0.0
    %8813 = vmatprep.mubr.f32.mxu0 0.0
    %v8814 = vand.u32 %v8360, 4294901760
    %8815 = vmatmul.mubr.f32.gmra.mrb[0].mxu0 %v8814
    %v8816 = vpop.f32.mrb[0].mxu0
    %v8817 = vadd.f32 %v8722, %v8816
    %v8818 = vpop.f32.mrb[0].mxu0
    %8819 = vdwg.mxu0
    %8820 = vmatprep.subr.mxu0 0.0
    %v8821 = vand.u32 %v39, 4294901760
    %8822 = vmatpush1.msra.mxu0 %v8821
    %8823 = vmatprep.subr.mxu0 0.0
    %v8824 = vand.u32 %v40, 4294901760
    %8825 = vmatpush1.msra.mxu0 %v8824
    %8826 = vmatprep.subr.mxu0 0.0
    %v8827 = vand.u32 %v41, 4294901760
    %8828 = vmatpush1.msra.mxu0 %v8827
    %8829 = vmatprep.subr.mxu0 0.0
    %v8830 = vand.u32 %v42, 4294901760
    %8831 = vmatpush1.msra.mxu0 %v8830
    %8832 = vmatprep.subr.mxu0 0.0
    %v8833 = vand.u32 %v43, 4294901760
    %8834 = vmatpush1.msra.mxu0 %v8833
    %8835 = vmatprep.subr.mxu0 0.0
    %v8836 = vand.u32 %v44, 4294901760
    %8837 = vmatpush1.msra.mxu0 %v8836
    %8838 = vmatprep.subr.mxu0 0.0
    %v8839 = vand.u32 %v45, 4294901760
    %8840 = vmatpush1.msra.mxu0 %v8839
    %8841 = vmatprep.subr.mxu0 0.0
    %v8842 = vand.u32 %v46, 4294901760
    %8843 = vmatpush1.msra.mxu0 %v8842
    %8844 = vmatprep.subr.mxu0 0.0
    %8845 = vmatpush1.msra.mxu0 0.0
    %8846 = vmatprep.subr.mxu0 0.0
    %8847 = vmatpush1.msra.mxu0 0.0
    %8848 = vmatprep.subr.mxu0 0.0
    %8849 = vmatpush1.msra.mxu0 0.0
    %8850 = vmatprep.subr.mxu0 0.0
    %8851 = vmatpush1.msra.mxu0 0.0
    %8852 = vmatprep.subr.mxu0 0.0
    %8853 = vmatpush1.msra.mxu0 0.0
    %8854 = vmatprep.subr.mxu0 0.0
    %8855 = vmatpush1.msra.mxu0 0.0
    %8856 = vmatprep.subr.mxu0 0.0
    %8857 = vmatpush1.msra.mxu0 0.0
    %8858 = vmatprep.subr.mxu0 0.0
    %8859 = vmatpush1.msra.mxu0 0.0
    %8860 = vmatprep.subr.mxu0 0.0
    %8861 = vmatpush1.msra.mxu0 0.0
    %8862 = vmatprep.subr.mxu0 0.0
    %8863 = vmatpush1.msra.mxu0 0.0
    %8864 = vmatprep.subr.mxu0 0.0
    %8865 = vmatpush1.msra.mxu0 0.0
    %8866 = vmatprep.subr.mxu0 0.0
    %8867 = vmatpush1.msra.mxu0 0.0
    %8868 = vmatprep.subr.mxu0 0.0
    %8869 = vmatpush1.msra.mxu0 0.0
    %8870 = vmatprep.subr.mxu0 0.0
    %8871 = vmatpush1.msra.mxu0 0.0
    %8872 = vmatprep.subr.mxu0 0.0
    %8873 = vmatpush1.msra.mxu0 0.0
    %8874 = vmatprep.subr.mxu0 0.0
    %8875 = vmatpush1.msra.mxu0 0.0
    %8876 = vmatprep.subr.mxu0 0.0
    %8877 = vmatpush1.msra.mxu0 0.0
    %8878 = vmatprep.subr.mxu0 0.0
    %8879 = vmatpush1.msra.mxu0 0.0
    %8880 = vmatprep.subr.mxu0 0.0
    %8881 = vmatpush1.msra.mxu0 0.0
    %8882 = vmatprep.subr.mxu0 0.0
    %8883 = vmatpush1.msra.mxu0 0.0
    %8884 = vmatprep.subr.mxu0 0.0
    %8885 = vmatpush1.msra.mxu0 0.0
    %8886 = vmatprep.subr.mxu0 0.0
    %8887 = vmatpush1.msra.mxu0 0.0
    %8888 = vmatprep.subr.mxu0 0.0
    %8889 = vmatpush1.msra.mxu0 0.0
    %8890 = vmatprep.subr.mxu0 0.0
    %8891 = vmatpush1.msra.mxu0 0.0
    %8892 = vmatprep.mubr.f32.mxu0 0.0
    %v8893 = vand.u32 %v8360, 4294901760
    %8894 = vmatmul.mubr.f32.gmra.mrb[0].mxu0 %v8893
    %v8895 = vpop.f32.mrb[0].mxu0
    %v8896 = vadd.f32 %v8817, %v8895
    %v8897 = vpop.f32.mrb[0].mxu0
    %8898 = vdwg.mxu0
    %v8899 = vadd.f32 %v8896, %v52
    %v8900 = vxor.u32 %v8899, 2147483648
    %v8901 = vmul.f32 %v8900, 1.442695
    %v8902 = vpow.pop %v8901
    %v8903 = vadd.f32 %v8902, 1.0
    %v8904 = vrcp.pop %v8903
    %v8905 = vmul.f32 1.0, %v8904
    %v8906 = vadd.f32 %v8896, %v1149
    %8908 = vrot.lane.b32.xlu0 %v8906, 32
    %v8909 = vpop.permute.xlu0 %8908
    %v8911 = vmul.f32 %v8905, %v8909
    %8913 = vrot.lane.b32.xlu0 %v8911, 64
    %v8914 = vpop.permute.xlu0 %8913
    %v8916 = vadd.f32 %v8899, %v8914
    %v8917 = vtanh.pop %v8916
    %v8918 = vsub.f32 1.0, %v8905
    %8920 = vrot.lane.b32.xlu0 %v8917, 96
    %v8921 = vpop.permute.xlu0 %8920
    %v8923 = vmul.f32 %v8918, %v8921
    %v8924 = vmul.f32 %v8905, %v7820
    %v8925 = vadd.f32 %v8923, %v8924
    %v8926 = vmul.f32 %v8344, %v8925
    %v8927 = vmul.f32 %v8350, %v7820
    %v8928 = vadd.f32 %v8926, %v8927
    %v8929 = vmul.f32 %v8344, %v8928
    %8938 = vrot.lane.b32.xlu0 %v1173, 96
    %v8939 = vpop.permute.xlu0 %8938
    %8940 = vrot.lane.b32.xlu0 %v2281, 96
    %v8941 = vpop.permute.xlu0 %8940
    %8942 = vrot.lane.b32.xlu0 %v3389, 96
    %v8943 = vpop.permute.xlu0 %8942
    %8944 = vrot.lane.b32.xlu0 %v4497, 96
    %v8945 = vpop.permute.xlu0 %8944
    %8946 = vrot.lane.b32.xlu0 %v5605, 96
    %v8947 = vpop.permute.xlu0 %8946
    %8948 = vrot.lane.b32.xlu0 %v6713, 96
    %v8949 = vpop.permute.xlu0 %8948
    %8950 = vrot.lane.b32.xlu0 %v7821, 96
    %v8951 = vpop.permute.xlu0 %8950
    %8952 = vrot.lane.b32.xlu0 %v8929, 96
    %v8953 = vpop.permute.xlu0 %8952
    %vm8962 = vcmask 254976
    %8963 = vst.msk [vmem:[%s7] sm:$0x3] %vm8962, %v8939
    %8964 = vst.msk [vmem:[%s7 + $0x2] sm:$0x3] %vm8962, %v8941
    %8965 = vst.msk [vmem:[%s7 + $0x4] sm:$0x3] %vm8962, %v8943
    %8966 = vst.msk [vmem:[%s7 + $0x6] sm:$0x3] %vm8962, %v8945
    %8967 = vst.msk [vmem:[%s7 + $0x8] sm:$0x3] %vm8962, %v8947
    %8968 = vst.msk [vmem:[%s7 + $0xa] sm:$0x3] %vm8962, %v8949
    %8969 = vst.msk [vmem:[%s7 + $0xc] sm:$0x3] %vm8962, %v8951
    %8970 = vst.msk [vmem:[%s7 + $0xe] sm:$0x3] %vm8962, %v8953
    %8972 = vrot.lane.b32.xlu0 %v8928, 96
    %v8973 = vpop.permute.xlu0 %8972
    %8975 = vst.msk [vmem:[#allocation2] sm:$0x3] %vm8962, %v8356
    %8976 = vst.msk [vmem:[#allocation2 + $0x2] sm:$0x3] %vm8962, %v8973
    // Predicated region
    $region30: #{encoder_seq_forward.1} parent=1 // pred_check
      _
    $region31: #{encoder_seq_forward.1} parent=1 // pred_check_branch
      %8978 = sbr.rel (0) target = $region33
    $region32: #{encoder_seq_forward.1} parent=1 // pred_region
      _
    $region33: #{encoder_seq_forward.1} parent=1 // pred_fallthru
      _
    // Predicated region
    $region34: #{encoder_seq_forward.1} parent=1 // pred_check
      _
    $region35: #{encoder_seq_forward.1} parent=1 // pred_check_branch
      %8980 = sbr.rel (0) target = $region37
    $region36: #{encoder_seq_forward.1} parent=1 // pred_region
      %s8982 = ssub.s32 64, 64
      %8983 = vsyncadd [#allocation3], %s8982
      %s8984 = sshll.u32 [#allocation2], 4
      %s8985 = int_to_ptr.vmem [resolvable:$true] %s8984
      %8990 = dma.vmem_to_hbm [thread:$0]  %s8985, 64, %s8, [#allocation3], 32, 32, 2
    $region37: #{encoder_seq_forward.1} parent=1 // pred_fallthru
      _
    // Predicated region
    $region38: #{encoder_seq_forward.1} parent=1 // pred_check
      _
    $region39: #{encoder_seq_forward.1} parent=1 // pred_check_branch
      %8992 = sbr.rel (0) target = $region41
    $region40: #{encoder_seq_forward.1} parent=1 // pred_region
      _
    $region41: #{encoder_seq_forward.1} parent=1 // pred_fallthru
      _
    // Predicated region
    $region42: #{encoder_seq_forward.1} parent=1 // pred_check
      _
    $region43: #{encoder_seq_forward.1} parent=1 // pred_check_branch
      %8994 = sbr.rel (0) target = $region45
    $region44: #{encoder_seq_forward.1} parent=1 // pred_region
      %8995 = dma.done [#allocation3], 64
    $region45: #{encoder_seq_forward.1} parent=1 // pred_fallthru
      _
    %8996 = vsyncpa [#allocation3], 1

</llo_original>
